<compile_context>
chip_gen: v6e
topology: v6e:2x2x1
jax: 0.10.0
libtpu: 0.0.40
codegen_flags: <defaults>
</compile_context>

<pallas_src>
import functools

import jax
import jax.numpy as jnp
from jax.experimental import pallas as pl
from jax.experimental.pallas import tpu as pltpu

BN_EPS = 1e-5
LANES = 128      # padded channel width -> lane-dense matmuls / stores
S2D_C = 256      # space-to-depth channel width: 4*4*9 = 144 zero-padded to 2 lane tiles


def _round_up(v, m):
    return -(-v // m) * m


# ------------------------------ fused kernel --------------------------------

def _fused_kernel(cfg, x_ref, w1_ref, b1_ref, w2_hbm, b2_ref, fcw_hbm, fcb_ref,
                  out_ref, lhs1_ref, lhs2_ref, p1_ref, w2_ref, fcw_ref, dma_sem):
    """Entire forward pass for one batch element; all intermediates in VMEM."""
    oh1, ow1, ow_pad, a1, po, po_pad, mk, ms, k2 = cfg
    f32, bf16 = jnp.float32, jnp.bfloat16
    pad2 = k2 // 2

    # Kick off the conv2 / FC weight DMAs so they overlap with conv1 compute.
    # Issued every grid step (correct under megacore sharding of the batch grid);
    # the transfer is hidden behind the conv1 assembly + matmul + maxpool.
    w2_cp = pltpu.make_async_copy(w2_hbm, w2_ref, dma_sem.at[0])
    fc_cp = pltpu.make_async_copy(fcw_hbm, fcw_ref, dma_sem.at[1])
    w2_cp.start()
    fc_cp.start()

    # ---- conv1 (11x11 s4 p2 expressed as 3x3 s1 over space-to-depth input) -----
    # im2col lhs assembled with ONE ref-to-ref copy per tap (a1*a1 = 9 copies);
    # output rows are grouped 8-per-conv-row so the big dot's M stays 8-aligned.
    k1_cols = a1 * a1 * S2D_C
    for a in range(a1):
        for b in range(a1):
            t = a * a1 + b
            lhs1_ref[0:oh1, 0:ow1, t * S2D_C:(t + 1) * S2D_C] = \
                x_ref[0, a:a + oh1, b:b + ow1, :]

    lhs1 = lhs1_ref[...].reshape(oh1 * ow_pad, k1_cols).astype(bf16)
    res1 = jnp.dot(lhs1, w1_ref[...], preferred_element_type=f32)   # (oh1*ow_pad, 128)
    act1 = jnp.maximum(res1 + b1_ref[...], 0.0)                     # BN scale folded in w1
    act1 = act1.reshape(oh1, ow_pad, LANES)

    # ---- maxpool 3x3 s2 (vectorized: whole-row maxes + tiny window reduces) ----
    p1_ref[...] = jnp.zeros_like(p1_ref)         # zero border = conv2 spatial padding
    for i in range(po):
        rm = act1[ms * i]
        for d in range(1, mk):
            rm = jnp.maximum(rm, act1[ms * i + d])                  # (ow_pad, 128)
        row = jnp.concatenate(
            [jnp.max(rm[ms * j:ms * j + mk, :], axis=0, keepdims=True)
             for j in range(po)], axis=0)                           # (po, 128)
        p1_ref[pad2 + i, pad2:pad2 + po, :] = row

    # ---- conv2 (5x5 s1 p2): im2col with one copy per tap (k2*k2 = 25 copies) ---
    k2_cols = k2 * k2 * LANES
    for p in range(k2):
        for q in range(k2):
            t = p * k2 + q
            lhs2_ref[0:po, 0:po, t * LANES:(t + 1) * LANES] = \
                p1_ref[p:p + po, q:q + po, :]

    w2_cp.wait()                                 # hidden behind conv1 + maxpool
    lhs2 = lhs2_ref[...].reshape(po * po_pad, k2_cols).astype(bf16)
    res2 = jnp.dot(lhs2, w2_ref[...], preferred_element_type=f32)   # (po*po_pad, 128)
    act2 = jnp.maximum(res2 + b2_ref[...], 0.0)
    act2 = act2.reshape(po, po_pad, LANES)

    # ---- AdaptiveAvgPool2d((1,1)) + Linear --------------------------------------
    ssum = jnp.sum(act2[:, 0:po, :], axis=(0, 1), keepdims=True)    # (1, 1, 128)
    pooled = (ssum.reshape(1, LANES) * (1.0 / float(po * po))).astype(bf16)
    fc_cp.wait()
    out_ref[0] = (jnp.dot(pooled, fcw_ref[...], preferred_element_type=f32)
                  + fcb_ref[...])


# ------------------------------ parameter prep ------------------------------

def _fold_bn(conv_b, gamma, beta, mean, var):
    scale = gamma / jnp.sqrt(var + BN_EPS)
    bias = beta + scale * (conv_b - mean)
    return scale, bias


def _pad_lanes(v, width=LANES):
    return jnp.pad(v, [(0, 0)] * (v.ndim - 1) + [(0, width - v.shape[-1])])


def _space_to_depth_input(x_nchw, pad, stride):
    """NCHW -> NHWC, spatial pad, then space-to-depth by the conv1 stride."""
    x = jnp.transpose(x_nchw, (0, 2, 3, 1)).astype(jnp.float32)
    x = jnp.pad(x, ((0, 0), (pad, pad), (pad, pad), (0, 0)))
    n, h, w, c = x.shape
    assert h % stride == 0 and w % stride == 0
    assert stride * stride * c <= S2D_C
    hb, wb = h // stride, w // stride
    x = x.reshape(n, hb, stride, wb, stride, c).transpose(0, 1, 3, 2, 4, 5)
    x = x.reshape(n, hb, wb, stride * stride * c)
    return _pad_lanes(x, S2D_C), hb, wb


def _prep_conv1_weight(w, bn_scale, stride):
    """(Cout,Cin,KH,KW) -> bf16 (A*A*S2D_C, 128); BN scale folded into Cout cols."""
    cout, cin, kh, kw = w.shape
    w = w * bn_scale[:, None, None, None]
    khp, kwp = _round_up(kh, stride), _round_up(kw, stride)
    a_taps, b_taps = khp // stride, kwp // stride
    wp = jnp.pad(w, ((0, 0), (0, 0), (0, khp - kh), (0, kwp - kw)))
    wp = wp.reshape(cout, cin, a_taps, stride, b_taps, stride)
    wp = wp.transpose(2, 4, 3, 5, 1, 0)                  # (a, b, r, s, cin, cout)
    wp = wp.reshape(a_taps * b_taps, stride * stride * cin, cout)
    wp = jnp.pad(wp, ((0, 0), (0, S2D_C - stride * stride * cin),
                      (0, LANES - cout)))
    return wp.reshape(a_taps * b_taps * S2D_C, LANES).astype(jnp.bfloat16), a_taps


def _prep_conv2_weight(w, bn_scale):
    """(Cout,Cin,K,K) -> bf16 (K*K*128, 128); BN scale folded into Cout cols."""
    cout, cin, kh, kw = w.shape
    w = w * bn_scale[:, None, None, None]
    wp = jnp.transpose(w, (2, 3, 1, 0))                  # (p, q, cin, cout)
    wp = jnp.pad(wp, ((0, 0), (0, 0), (0, LANES - cin), (0, LANES - cout)))
    return wp.reshape(kh * kw * LANES, LANES).astype(jnp.bfloat16)


# --------------------------------- forward ----------------------------------

def chopped_alexnet64bn_forward(x_nchw, params, out_size):
    assert len(params["convs"]) == 2, "fused kernel implements numLayers=2"
    c1p, c2p = params["convs"]
    n, _, h_in, w_in = x_nchw.shape

    stride1, pad1 = 4, 2
    xs2d, hb, wb = _space_to_depth_input(x_nchw, pad1, stride1)
    assert hb == wb

    k1 = c1p["w"].shape[-1]
    oh1 = (h_in + 2 * pad1 - k1) // stride1 + 1
    ow1 = (w_in + 2 * pad1 - k1) // stride1 + 1
    assert oh1 == ow1
    ow_pad = _round_up(ow1, 8)

    mk, ms = 3, 2                                        # MaxPool2d(3, 2)
    po = (oh1 - mk) // ms + 1
    po_pad = _round_up(po, 8)

    k2 = c2p["w"].shape[-1]                              # 5, padding 2
    p1_side = po + 2 * (k2 // 2)

    s1, b1 = _fold_bn(c1p["b"], c1p["gamma"], c1p["beta"], c1p["mean"], c1p["var"])
    s2, b2 = _fold_bn(c2p["b"], c2p["gamma"], c2p["beta"], c2p["mean"], c2p["var"])
    w1_mat, a1 = _prep_conv1_weight(c1p["w"], s1, stride1)
    w2_mat = _prep_conv2_weight(c2p["w"], s2)
    assert hb - a1 + 1 == oh1 and ow_pad <= 8 or ow1 <= ow_pad

    b1 = _pad_lanes(b1).reshape(1, LANES)
    b2 = _pad_lanes(b2).reshape(1, LANES)

    fc_in, fc_out = params["fc_w"].shape
    assert fc_in <= LANES and out_size <= LANES and fc_out == out_size
    fcw = jnp.pad(params["fc_w"],
                  ((0, LANES - fc_in), (0, LANES - out_size))).astype(jnp.bfloat16)
    fcb = _pad_lanes(params["fc_b"]).reshape(1, LANES)

    cfg = (oh1, ow1, ow_pad, a1, po, po_pad, mk, ms, k2)
    kernel = functools.partial(_fused_kernel, cfg)
    k1_cols = a1 * a1 * S2D_C
    k2_cols = k2 * k2 * LANES

    out = pl.pallas_call(
        kernel,
        out_shape=jax.ShapeDtypeStruct((n, 1, LANES), jnp.float32),
        grid_spec=pltpu.PrefetchScalarGridSpec(
            num_scalar_prefetch=0,
            grid=(n,),
            in_specs=[
                pl.BlockSpec((1, hb, wb, S2D_C), lambda i: (i, 0, 0, 0)),
                pl.BlockSpec(w1_mat.shape, lambda i: (0, 0)),
                pl.BlockSpec((1, LANES), lambda i: (0, 0)),
                pl.BlockSpec(memory_space=pl.ANY),        # w2  -> manual overlapped DMA
                pl.BlockSpec((1, LANES), lambda i: (0, 0)),
                pl.BlockSpec(memory_space=pl.ANY),        # fcw -> manual overlapped DMA
                pl.BlockSpec((1, LANES), lambda i: (0, 0)),
            ],
            out_specs=pl.BlockSpec((1, 1, LANES), lambda i: (i, 0, 0)),
            scratch_shapes=[
                pltpu.VMEM((oh1, ow_pad, k1_cols), jnp.float32),    # conv1 im2col lhs
                pltpu.VMEM((po, po_pad, k2_cols), jnp.float32),     # conv2 im2col lhs
                pltpu.VMEM((p1_side, p1_side, LANES), jnp.float32), # padded pool output
                pltpu.VMEM(w2_mat.shape, jnp.bfloat16),             # resident conv2 weight
                pltpu.VMEM((LANES, LANES), jnp.bfloat16),           # resident FC weight
                pltpu.SemaphoreType.DMA((2,)),
            ],
        ),
        compiler_params=pltpu.CompilerParams(
            dimension_semantics=("parallel",)),
    )(xs2d, w1_mat, b1, w2_mat, b2, fcw, fcb)
    return out[:, 0, :out_size]


# --------------------------- model parameterization -------------------------

def layer_configs(num_layers):
    # (cin, cout, kernel, stride, pad, maxpool_before_this_conv)
    cfgs = [(9, 64, 11, 4, 2, False)]
    if num_layers >= 2:
        cfgs.append((64, 64, 5, 1, 2, True))
    return cfgs


def init_params(key, num_layers, out_size):
    params = {"convs": []}
    for (cin, cout, k, _stride, _pad, _mp) in layer_configs(num_layers):
        key, k1, k2, k3, k4, k5, k6 = jax.random.split(key, 7)
        fan_out = cout * k * k
        std = (2.0 / fan_out) ** 0.5          # kaiming_normal_(mode='fan_out', relu)
        params["convs"].append(dict(
            w=std * jax.random.normal(k1, (cout, cin, k, k), jnp.float32),
            b=0.05 * jax.random.normal(k2, (cout,), jnp.float32),
            gamma=1.0 + 0.1 * jax.random.normal(k3, (cout,), jnp.float32),
            beta=0.1 * jax.random.normal(k4, (cout,), jnp.float32),
            mean=0.1 * jax.random.normal(k5, (cout,), jnp.float32),
            var=jax.random.uniform(k6, (cout,), jnp.float32, 0.5, 1.5),
        ))
    key, k1, k2 = jax.random.split(key, 3)
    params["fc_w"] = 0.05 * jax.random.normal(k1, (64, out_size), jnp.float32)
    params["fc_b"] = 0.05 * jax.random.normal(k2, (out_size,), jnp.float32)
    return params


# ----------------------------------- main ------------------------------------

if __name__ == "__main__":
    NUM_LAYERS = 2
    OUT_SIZE = 10

    key = jax.random.PRNGKey(0)
    kx, kp = jax.random.split(key)
    # NCHW input, 9 channels to match Conv2d(9, 64, kernel_size=11, stride=4, padding=2).
    x = jax.random.normal(kx, (2, 9, 32, 32), jnp.float32)
    params = init_params(kp, NUM_LAYERS, OUT_SIZE)

    fwd = jax.jit(functools.partial(chopped_alexnet64bn_forward, out_size=OUT_SIZE))
    out = fwd(x, params)
    jax.block_until_ready(out)
    assert out.shape == (2, OUT_SIZE) and out.dtype == jnp.float32
    print("KERNEL_OK")
</pallas_src>

<mosaic_0001>
module attributes {stable_mosaic.version = 11 : i64} {
  func.func @_fused_kernel(%arg0: i32, %arg1: memref<1x9x9x256xf32, #tpu.memory_space<vmem>>, %arg2: memref<2304x128xbf16, #tpu.memory_space<vmem>>, %arg3: memref<1x128xf32, #tpu.memory_space<vmem>>, %arg4: memref<3200x128xbf16, #tpu.memory_space<any>>, %arg5: memref<1x128xf32, #tpu.memory_space<vmem>>, %arg6: memref<128x128xbf16, #tpu.memory_space<any>>, %arg7: memref<1x128xf32, #tpu.memory_space<vmem>>, %arg8: memref<1x1x128xf32, #tpu.memory_space<vmem>>, %arg9: memref<7x8x2304xf32, #tpu.memory_space<vmem>>, %arg10: memref<3x8x3200xf32, #tpu.memory_space<vmem>>, %arg11: memref<7x7x128xf32, #tpu.memory_space<vmem>>, %arg12: memref<3200x128xbf16, #tpu.memory_space<vmem>>, %arg13: memref<128x128xbf16, #tpu.memory_space<vmem>>, %arg14: memref<2x!tpu.dma_semaphore, #tpu.memory_space<semaphore_mem>>) attributes {dimension_semantics = [#tpu.dimension_semantics<parallel>], iteration_bounds = array<i64: 2>, scalar_prefetch = 0 : i64, scratch_operands = 6 : i64, tpu.core_type = #tpu.core_type<tc>, window_params = [{transform_indices = @transform_0, window_bounds = array<i64: 1, 9, 9, 256>}, {pipeline_mode = #tpu.pipeline_mode<synchronous>, transform_indices = @transform_1, window_bounds = array<i64: 2304, 128>}, {pipeline_mode = #tpu.pipeline_mode<synchronous>, transform_indices = @transform_2, window_bounds = array<i64: 1, 128>}, {}, {pipeline_mode = #tpu.pipeline_mode<synchronous>, transform_indices = @transform_4, window_bounds = array<i64: 1, 128>}, {}, {pipeline_mode = #tpu.pipeline_mode<synchronous>, transform_indices = @transform_6, window_bounds = array<i64: 1, 128>}, {transform_indices = @transform_7, window_bounds = array<i64: 1, 1, 128>}]} {
    %c0_i32 = arith.constant 0 : i32
    %0 = tpu.memref_slice %arg14[%c0_i32] : memref<2x!tpu.dma_semaphore, #tpu.memory_space<semaphore_mem>> -> memref<1x!tpu.dma_semaphore, #tpu.memory_space<semaphore_mem>>
    %1 = tpu.memref_squeeze %0 : memref<1x!tpu.dma_semaphore, #tpu.memory_space<semaphore_mem>> -> memref<!tpu.dma_semaphore, #tpu.memory_space<semaphore_mem>>
    tpu.enqueue_dma source(%arg4 : memref<3200x128xbf16, #tpu.memory_space<any>>) target(%arg12 : memref<3200x128xbf16, #tpu.memory_space<vmem>>) target_semaphore(%1 : memref<!tpu.dma_semaphore, #tpu.memory_space<semaphore_mem>>)
    %c1_i32 = arith.constant 1 : i32
    %2 = tpu.memref_slice %arg14[%c1_i32] : memref<2x!tpu.dma_semaphore, #tpu.memory_space<semaphore_mem>> -> memref<1x!tpu.dma_semaphore, #tpu.memory_space<semaphore_mem>>
    %3 = tpu.memref_squeeze %2 : memref<1x!tpu.dma_semaphore, #tpu.memory_space<semaphore_mem>> -> memref<!tpu.dma_semaphore, #tpu.memory_space<semaphore_mem>>
    tpu.enqueue_dma source(%arg6 : memref<128x128xbf16, #tpu.memory_space<any>>) target(%arg13 : memref<128x128xbf16, #tpu.memory_space<vmem>>) target_semaphore(%3 : memref<!tpu.dma_semaphore, #tpu.memory_space<semaphore_mem>>)
    %c0 = arith.constant 0 : index
    %c0_0 = arith.constant 0 : index
    %c0_1 = arith.constant 0 : index
    %c0_2 = arith.constant 0 : index
    %4 = vector.load %arg1[%c0, %c0_0, %c0_1, %c0_2] : memref<1x9x9x256xf32, #tpu.memory_space<vmem>>, vector<1x7x7x256xf32>
    %5 = vector.shape_cast %4 : vector<1x7x7x256xf32> to vector<7x7x256xf32>
    %c0_3 = arith.constant 0 : index
    %c0_4 = arith.constant 0 : index
    %c0_5 = arith.constant 0 : index
    %6 = vector.load %arg9[%c0_3, %c0_4, %c0_5] : memref<7x8x2304xf32, #tpu.memory_space<vmem>>, vector<7x7x256xf32>
    tpu.vector_store %arg9[%c0_3, %c0_4, %c0_5], %5 {strides = array<i32>} : memref<7x8x2304xf32, #tpu.memory_space<vmem>>, vector<7x7x256xf32>,
    %c0_6 = arith.constant 0 : index
    %c0_7 = arith.constant 0 : index
    %c1 = arith.constant 1 : index
    %c0_8 = arith.constant 0 : index
    %7 = vector.load %arg1[%c0_6, %c0_7, %c1, %c0_8] : memref<1x9x9x256xf32, #tpu.memory_space<vmem>>, vector<1x7x7x256xf32>
    %8 = vector.shape_cast %7 : vector<1x7x7x256xf32> to vector<7x7x256xf32>
    %c0_9 = arith.constant 0 : index
    %c0_10 = arith.constant 0 : index
    %c256 = arith.constant 256 : index
    %9 = vector.load %arg9[%c0_9, %c0_10, %c256] : memref<7x8x2304xf32, #tpu.memory_space<vmem>>, vector<7x7x256xf32>
    tpu.vector_store %arg9[%c0_9, %c0_10, %c256], %8 {strides = array<i32>} : memref<7x8x2304xf32, #tpu.memory_space<vmem>>, vector<7x7x256xf32>,
    %c0_11 = arith.constant 0 : index
    %c0_12 = arith.constant 0 : index
    %c2 = arith.constant 2 : index
    %c0_13 = arith.constant 0 : index
    %10 = vector.load %arg1[%c0_11, %c0_12, %c2, %c0_13] : memref<1x9x9x256xf32, #tpu.memory_space<vmem>>, vector<1x7x7x256xf32>
    %11 = vector.shape_cast %10 : vector<1x7x7x256xf32> to vector<7x7x256xf32>
    %c0_14 = arith.constant 0 : index
    %c0_15 = arith.constant 0 : index
    %c512 = arith.constant 512 : index
    %12 = vector.load %arg9[%c0_14, %c0_15, %c512] : memref<7x8x2304xf32, #tpu.memory_space<vmem>>, vector<7x7x256xf32>
    tpu.vector_store %arg9[%c0_14, %c0_15, %c512], %11 {strides = array<i32>} : memref<7x8x2304xf32, #tpu.memory_space<vmem>>, vector<7x7x256xf32>,
    %c0_16 = arith.constant 0 : index
    %c1_17 = arith.constant 1 : index
    %c0_18 = arith.constant 0 : index
    %c0_19 = arith.constant 0 : index
    %13 = vector.load %arg1[%c0_16, %c1_17, %c0_18, %c0_19] : memref<1x9x9x256xf32, #tpu.memory_space<vmem>>, vector<1x7x7x256xf32>
    %14 = vector.shape_cast %13 : vector<1x7x7x256xf32> to vector<7x7x256xf32>
    %c0_20 = arith.constant 0 : index
    %c0_21 = arith.constant 0 : index
    %c768 = arith.constant 768 : index
    %15 = vector.load %arg9[%c0_20, %c0_21, %c768] : memref<7x8x2304xf32, #tpu.memory_space<vmem>>, vector<7x7x256xf32>
    tpu.vector_store %arg9[%c0_20, %c0_21, %c768], %14 {strides = array<i32>} : memref<7x8x2304xf32, #tpu.memory_space<vmem>>, vector<7x7x256xf32>,
    %c0_22 = arith.constant 0 : index
    %c1_23 = arith.constant 1 : index
    %c1_24 = arith.constant 1 : index
    %c0_25 = arith.constant 0 : index
    %16 = vector.load %arg1[%c0_22, %c1_23, %c1_24, %c0_25] : memref<1x9x9x256xf32, #tpu.memory_space<vmem>>, vector<1x7x7x256xf32>
    %17 = vector.shape_cast %16 : vector<1x7x7x256xf32> to vector<7x7x256xf32>
    %c0_26 = arith.constant 0 : index
    %c0_27 = arith.constant 0 : index
    %c1024 = arith.constant 1024 : index
    %18 = vector.load %arg9[%c0_26, %c0_27, %c1024] : memref<7x8x2304xf32, #tpu.memory_space<vmem>>, vector<7x7x256xf32>
    tpu.vector_store %arg9[%c0_26, %c0_27, %c1024], %17 {strides = array<i32>} : memref<7x8x2304xf32, #tpu.memory_space<vmem>>, vector<7x7x256xf32>,
    %c0_28 = arith.constant 0 : index
    %c1_29 = arith.constant 1 : index
    %c2_30 = arith.constant 2 : index
    %c0_31 = arith.constant 0 : index
    %19 = vector.load %arg1[%c0_28, %c1_29, %c2_30, %c0_31] : memref<1x9x9x256xf32, #tpu.memory_space<vmem>>, vector<1x7x7x256xf32>
    %20 = vector.shape_cast %19 : vector<1x7x7x256xf32> to vector<7x7x256xf32>
    %c0_32 = arith.constant 0 : index
    %c0_33 = arith.constant 0 : index
    %c1280 = arith.constant 1280 : index
    %21 = vector.load %arg9[%c0_32, %c0_33, %c1280] : memref<7x8x2304xf32, #tpu.memory_space<vmem>>, vector<7x7x256xf32>
    tpu.vector_store %arg9[%c0_32, %c0_33, %c1280], %20 {strides = array<i32>} : memref<7x8x2304xf32, #tpu.memory_space<vmem>>, vector<7x7x256xf32>,
    %c0_34 = arith.constant 0 : index
    %c2_35 = arith.constant 2 : index
    %c0_36 = arith.constant 0 : index
    %c0_37 = arith.constant 0 : index
    %22 = vector.load %arg1[%c0_34, %c2_35, %c0_36, %c0_37] : memref<1x9x9x256xf32, #tpu.memory_space<vmem>>, vector<1x7x7x256xf32>
    %23 = vector.shape_cast %22 : vector<1x7x7x256xf32> to vector<7x7x256xf32>
    %c0_38 = arith.constant 0 : index
    %c0_39 = arith.constant 0 : index
    %c1536 = arith.constant 1536 : index
    %24 = vector.load %arg9[%c0_38, %c0_39, %c1536] : memref<7x8x2304xf32, #tpu.memory_space<vmem>>, vector<7x7x256xf32>
    tpu.vector_store %arg9[%c0_38, %c0_39, %c1536], %23 {strides = array<i32>} : memref<7x8x2304xf32, #tpu.memory_space<vmem>>, vector<7x7x256xf32>,
    %c0_40 = arith.constant 0 : index
    %c2_41 = arith.constant 2 : index
    %c1_42 = arith.constant 1 : index
    %c0_43 = arith.constant 0 : index
    %25 = vector.load %arg1[%c0_40, %c2_41, %c1_42, %c0_43] : memref<1x9x9x256xf32, #tpu.memory_space<vmem>>, vector<1x7x7x256xf32>
    %26 = vector.shape_cast %25 : vector<1x7x7x256xf32> to vector<7x7x256xf32>
    %c0_44 = arith.constant 0 : index
    %c0_45 = arith.constant 0 : index
    %c1792 = arith.constant 1792 : index
    %27 = vector.load %arg9[%c0_44, %c0_45, %c1792] : memref<7x8x2304xf32, #tpu.memory_space<vmem>>, vector<7x7x256xf32>
    tpu.vector_store %arg9[%c0_44, %c0_45, %c1792], %26 {strides = array<i32>} : memref<7x8x2304xf32, #tpu.memory_space<vmem>>, vector<7x7x256xf32>,
    %c0_46 = arith.constant 0 : index
    %c2_47 = arith.constant 2 : index
    %c2_48 = arith.constant 2 : index
    %c0_49 = arith.constant 0 : index
    %28 = vector.load %arg1[%c0_46, %c2_47, %c2_48, %c0_49] : memref<1x9x9x256xf32, #tpu.memory_space<vmem>>, vector<1x7x7x256xf32>
    %29 = vector.shape_cast %28 : vector<1x7x7x256xf32> to vector<7x7x256xf32>
    %c0_50 = arith.constant 0 : index
    %c0_51 = arith.constant 0 : index
    %c2048 = arith.constant 2048 : index
    %30 = vector.load %arg9[%c0_50, %c0_51, %c2048] : memref<7x8x2304xf32, #tpu.memory_space<vmem>>, vector<7x7x256xf32>
    tpu.vector_store %arg9[%c0_50, %c0_51, %c2048], %29 {strides = array<i32>} : memref<7x8x2304xf32, #tpu.memory_space<vmem>>, vector<7x7x256xf32>,
    %c0_52 = arith.constant 0 : index
    %c0_53 = arith.constant 0 : index
    %c0_54 = arith.constant 0 : index
    %31 = vector.load %arg9[%c0_52, %c0_53, %c0_54] : memref<7x8x2304xf32, #tpu.memory_space<vmem>>, vector<7x8x2304xf32>
    %32 = vector.shape_cast %31 : vector<7x8x2304xf32> to vector<56x2304xf32>
    %33 = arith.truncf %32 : vector<56x2304xf32> to vector<56x2304xbf16>
    %c0_55 = arith.constant 0 : index
    %c0_56 = arith.constant 0 : index
    %34 = vector.load %arg2[%c0_55, %c0_56] : memref<2304x128xbf16, #tpu.memory_space<vmem>>, vector<2304x128xbf16>
    %cst = arith.constant dense<0.000000e+00> : vector<56x128xf32>
    %35 = tpu.matmul %33, %34, %cst {dimension_numbers = #tpu.dot_dimension_numbers<[1], [0], [0], [1], [0, 0, 1, 1], [], []>} : vector<56x2304xbf16>, vector<2304x128xbf16>, vector<56x128xf32> -> vector<56x128xf32>
    %c0_57 = arith.constant 0 : index
    %c0_58 = arith.constant 0 : index
    %36 = vector.load %arg3[%c0_57, %c0_58] : memref<1x128xf32, #tpu.memory_space<vmem>>, vector<1x128xf32>
    %37 = vector.broadcast %36 : vector<1x128xf32> to vector<56x128xf32>
    %38 = arith.addf %35, %37 : vector<56x128xf32>
    %cst_59 = arith.constant 0.000000e+00 : f32
    %39 = vector.broadcast %cst_59 : f32 to vector<56x128xf32>
    %40 = arith.maximumf %38, %39 : vector<56x128xf32>
    %41 = vector.shape_cast %40 : vector<56x128xf32> to vector<7x8x128xf32>
    %cst_60 = arith.constant 0.000000e+00 : f32
    %42 = vector.broadcast %cst_60 : f32 to vector<7x7x128xf32>
    %c0_61 = arith.constant 0 : index
    %c0_62 = arith.constant 0 : index
    %c0_63 = arith.constant 0 : index
    %43 = vector.load %arg11[%c0_61, %c0_62, %c0_63] : memref<7x7x128xf32, #tpu.memory_space<vmem>>, vector<7x7x128xf32>
    tpu.vector_store %arg11[%c0_61, %c0_62, %c0_63], %42 {strides = array<i32>} : memref<7x7x128xf32, #tpu.memory_space<vmem>>, vector<7x7x128xf32>,
    %44 = vector.extract_strided_slice %41 {offsets = [0, 0, 0], sizes = [1, 8, 128], strides = [1, 1, 1]} : vector<7x8x128xf32> to vector<1x8x128xf32>
    %45 = vector.shape_cast %44 : vector<1x8x128xf32> to vector<8x128xf32>
    %46 = vector.extract_strided_slice %41 {offsets = [1, 0, 0], sizes = [1, 8, 128], strides = [1, 1, 1]} : vector<7x8x128xf32> to vector<1x8x128xf32>
    %47 = vector.shape_cast %46 : vector<1x8x128xf32> to vector<8x128xf32>
    %48 = arith.maximumf %45, %47 : vector<8x128xf32>
    %49 = vector.extract_strided_slice %41 {offsets = [2, 0, 0], sizes = [1, 8, 128], strides = [1, 1, 1]} : vector<7x8x128xf32> to vector<1x8x128xf32>
    %50 = vector.shape_cast %49 : vector<1x8x128xf32> to vector<8x128xf32>
    %51 = arith.maximumf %48, %50 : vector<8x128xf32>
    %52 = vector.extract_strided_slice %51 {offsets = [0, 0], sizes = [3, 128], strides = [1, 1]} : vector<8x128xf32> to vector<3x128xf32>
    %cst_64 = arith.constant dense<0xFF800000> : vector<128xf32>
    %53 = vector.multi_reduction <maximumf>, %52, %cst_64 [0] : vector<3x128xf32> to vector<128xf32>
    %54 = vector.shape_cast %53 : vector<128xf32> to vector<1x128xf32>
    %55 = vector.extract_strided_slice %51 {offsets = [2, 0], sizes = [3, 128], strides = [1, 1]} : vector<8x128xf32> to vector<3x128xf32>
    %cst_65 = arith.constant dense<0xFF800000> : vector<128xf32>
    %56 = vector.multi_reduction <maximumf>, %55, %cst_65 [0] : vector<3x128xf32> to vector<128xf32>
    %57 = vector.shape_cast %56 : vector<128xf32> to vector<1x128xf32>
    %58 = vector.extract_strided_slice %51 {offsets = [4, 0], sizes = [3, 128], strides = [1, 1]} : vector<8x128xf32> to vector<3x128xf32>
    %cst_66 = arith.constant dense<0xFF800000> : vector<128xf32>
    %59 = vector.multi_reduction <maximumf>, %58, %cst_66 [0] : vector<3x128xf32> to vector<128xf32>
    %60 = vector.shape_cast %59 : vector<128xf32> to vector<1x128xf32>
    %61 = tpu.concatenate %54, %57, %60 in 0 : vector<1x128xf32>, vector<1x128xf32>, vector<1x128xf32> -> vector<3x128xf32>
    %c2_67 = arith.constant 2 : index
    %c2_68 = arith.constant 2 : index
    %c0_69 = arith.constant 0 : index
    %62 = vector.load %arg11[%c2_67, %c2_68, %c0_69] : memref<7x7x128xf32, #tpu.memory_space<vmem>>, vector<1x3x128xf32>
    %63 = vector.shape_cast %62 : vector<1x3x128xf32> to vector<3x128xf32>
    %64 = vector.shape_cast %61 : vector<3x128xf32> to vector<1x3x128xf32>
    tpu.vector_store %arg11[%c2_67, %c2_68, %c0_69], %64 {strides = array<i32>} : memref<7x7x128xf32, #tpu.memory_space<vmem>>, vector<1x3x128xf32>,
    %65 = vector.extract_strided_slice %41 {offsets = [2, 0, 0], sizes = [1, 8, 128], strides = [1, 1, 1]} : vector<7x8x128xf32> to vector<1x8x128xf32>
    %66 = vector.shape_cast %65 : vector<1x8x128xf32> to vector<8x128xf32>
    %67 = vector.extract_strided_slice %41 {offsets = [3, 0, 0], sizes = [1, 8, 128], strides = [1, 1, 1]} : vector<7x8x128xf32> to vector<1x8x128xf32>
    %68 = vector.shape_cast %67 : vector<1x8x128xf32> to vector<8x128xf32>
    %69 = arith.maximumf %66, %68 : vector<8x128xf32>
    %70 = vector.extract_strided_slice %41 {offsets = [4, 0, 0], sizes = [1, 8, 128], strides = [1, 1, 1]} : vector<7x8x128xf32> to vector<1x8x128xf32>
    %71 = vector.shape_cast %70 : vector<1x8x128xf32> to vector<8x128xf32>
    %72 = arith.maximumf %69, %71 : vector<8x128xf32>
    %73 = vector.extract_strided_slice %72 {offsets = [0, 0], sizes = [3, 128], strides = [1, 1]} : vector<8x128xf32> to vector<3x128xf32>
    %cst_70 = arith.constant dense<0xFF800000> : vector<128xf32>
    %74 = vector.multi_reduction <maximumf>, %73, %cst_70 [0] : vector<3x128xf32> to vector<128xf32>
    %75 = vector.shape_cast %74 : vector<128xf32> to vector<1x128xf32>
    %76 = vector.extract_strided_slice %72 {offsets = [2, 0], sizes = [3, 128], strides = [1, 1]} : vector<8x128xf32> to vector<3x128xf32>
    %cst_71 = arith.constant dense<0xFF800000> : vector<128xf32>
    %77 = vector.multi_reduction <maximumf>, %76, %cst_71 [0] : vector<3x128xf32> to vector<128xf32>
    %78 = vector.shape_cast %77 : vector<128xf32> to vector<1x128xf32>
    %79 = vector.extract_strided_slice %72 {offsets = [4, 0], sizes = [3, 128], strides = [1, 1]} : vector<8x128xf32> to vector<3x128xf32>
    %cst_72 = arith.constant dense<0xFF800000> : vector<128xf32>
    %80 = vector.multi_reduction <maximumf>, %79, %cst_72 [0] : vector<3x128xf32> to vector<128xf32>
    %81 = vector.shape_cast %80 : vector<128xf32> to vector<1x128xf32>
    %82 = tpu.concatenate %75, %78, %81 in 0 : vector<1x128xf32>, vector<1x128xf32>, vector<1x128xf32> -> vector<3x128xf32>
    %c3 = arith.constant 3 : index
    %c2_73 = arith.constant 2 : index
    %c0_74 = arith.constant 0 : index
    %83 = vector.load %arg11[%c3, %c2_73, %c0_74] : memref<7x7x128xf32, #tpu.memory_space<vmem>>, vector<1x3x128xf32>
    %84 = vector.shape_cast %83 : vector<1x3x128xf32> to vector<3x128xf32>
    %85 = vector.shape_cast %82 : vector<3x128xf32> to vector<1x3x128xf32>
    tpu.vector_store %arg11[%c3, %c2_73, %c0_74], %85 {strides = array<i32>} : memref<7x7x128xf32, #tpu.memory_space<vmem>>, vector<1x3x128xf32>,
    %86 = vector.extract_strided_slice %41 {offsets = [4, 0, 0], sizes = [1, 8, 128], strides = [1, 1, 1]} : vector<7x8x128xf32> to vector<1x8x128xf32>
    %87 = vector.shape_cast %86 : vector<1x8x128xf32> to vector<8x128xf32>
    %88 = vector.extract_strided_slice %41 {offsets = [5, 0, 0], sizes = [1, 8, 128], strides = [1, 1, 1]} : vector<7x8x128xf32> to vector<1x8x128xf32>
    %89 = vector.shape_cast %88 : vector<1x8x128xf32> to vector<8x128xf32>
    %90 = arith.maximumf %87, %89 : vector<8x128xf32>
    %91 = vector.extract_strided_slice %41 {offsets = [6, 0, 0], sizes = [1, 8, 128], strides = [1, 1, 1]} : vector<7x8x128xf32> to vector<1x8x128xf32>
    %92 = vector.shape_cast %91 : vector<1x8x128xf32> to vector<8x128xf32>
    %93 = arith.maximumf %90, %92 : vector<8x128xf32>
    %94 = vector.extract_strided_slice %93 {offsets = [0, 0], sizes = [3, 128], strides = [1, 1]} : vector<8x128xf32> to vector<3x128xf32>
    %cst_75 = arith.constant dense<0xFF800000> : vector<128xf32>
    %95 = vector.multi_reduction <maximumf>, %94, %cst_75 [0] : vector<3x128xf32> to vector<128xf32>
    %96 = vector.shape_cast %95 : vector<128xf32> to vector<1x128xf32>
    %97 = vector.extract_strided_slice %93 {offsets = [2, 0], sizes = [3, 128], strides = [1, 1]} : vector<8x128xf32> to vector<3x128xf32>
    %cst_76 = arith.constant dense<0xFF800000> : vector<128xf32>
    %98 = vector.multi_reduction <maximumf>, %97, %cst_76 [0] : vector<3x128xf32> to vector<128xf32>
    %99 = vector.shape_cast %98 : vector<128xf32> to vector<1x128xf32>
    %100 = vector.extract_strided_slice %93 {offsets = [4, 0], sizes = [3, 128], strides = [1, 1]} : vector<8x128xf32> to vector<3x128xf32>
    %cst_77 = arith.constant dense<0xFF800000> : vector<128xf32>
    %101 = vector.multi_reduction <maximumf>, %100, %cst_77 [0] : vector<3x128xf32> to vector<128xf32>
    %102 = vector.shape_cast %101 : vector<128xf32> to vector<1x128xf32>
    %103 = tpu.concatenate %96, %99, %102 in 0 : vector<1x128xf32>, vector<1x128xf32>, vector<1x128xf32> -> vector<3x128xf32>
    %c4 = arith.constant 4 : index
    %c2_78 = arith.constant 2 : index
    %c0_79 = arith.constant 0 : index
    %104 = vector.load %arg11[%c4, %c2_78, %c0_79] : memref<7x7x128xf32, #tpu.memory_space<vmem>>, vector<1x3x128xf32>
    %105 = vector.shape_cast %104 : vector<1x3x128xf32> to vector<3x128xf32>
    %106 = vector.shape_cast %103 : vector<3x128xf32> to vector<1x3x128xf32>
    tpu.vector_store %arg11[%c4, %c2_78, %c0_79], %106 {strides = array<i32>} : memref<7x7x128xf32, #tpu.memory_space<vmem>>, vector<1x3x128xf32>,
    %c0_80 = arith.constant 0 : index
    %c0_81 = arith.constant 0 : index
    %c0_82 = arith.constant 0 : index
    %107 = vector.load %arg11[%c0_80, %c0_81, %c0_82] : memref<7x7x128xf32, #tpu.memory_space<vmem>>, vector<3x3x128xf32>
    %c0_83 = arith.constant 0 : index
    %c0_84 = arith.constant 0 : index
    %c0_85 = arith.constant 0 : index
    %108 = vector.load %arg10[%c0_83, %c0_84, %c0_85] : memref<3x8x3200xf32, #tpu.memory_space<vmem>>, vector<3x3x128xf32>
    tpu.vector_store %arg10[%c0_83, %c0_84, %c0_85], %107 {strides = array<i32>} : memref<3x8x3200xf32, #tpu.memory_space<vmem>>, vector<3x3x128xf32>,
    %c0_86 = arith.constant 0 : index
    %c1_87 = arith.constant 1 : index
    %c0_88 = arith.constant 0 : index
    %109 = vector.load %arg11[%c0_86, %c1_87, %c0_88] : memref<7x7x128xf32, #tpu.memory_space<vmem>>, vector<3x3x128xf32>
    %c0_89 = arith.constant 0 : index
    %c0_90 = arith.constant 0 : index
    %c128 = arith.constant 128 : index
    %110 = vector.load %arg10[%c0_89, %c0_90, %c128] : memref<3x8x3200xf32, #tpu.memory_space<vmem>>, vector<3x3x128xf32>
    tpu.vector_store %arg10[%c0_89, %c0_90, %c128], %109 {strides = array<i32>} : memref<3x8x3200xf32, #tpu.memory_space<vmem>>, vector<3x3x128xf32>,
    %c0_91 = arith.constant 0 : index
    %c2_92 = arith.constant 2 : index
    %c0_93 = arith.constant 0 : index
    %111 = vector.load %arg11[%c0_91, %c2_92, %c0_93] : memref<7x7x128xf32, #tpu.memory_space<vmem>>, vector<3x3x128xf32>
    %c0_94 = arith.constant 0 : index
    %c0_95 = arith.constant 0 : index
    %c256_96 = arith.constant 256 : index
    %112 = vector.load %arg10[%c0_94, %c0_95, %c256_96] : memref<3x8x3200xf32, #tpu.memory_space<vmem>>, vector<3x3x128xf32>
    tpu.vector_store %arg10[%c0_94, %c0_95, %c256_96], %111 {strides = array<i32>} : memref<3x8x3200xf32, #tpu.memory_space<vmem>>, vector<3x3x128xf32>,
    %c0_97 = arith.constant 0 : index
    %c3_98 = arith.constant 3 : index
    %c0_99 = arith.constant 0 : index
    %113 = vector.load %arg11[%c0_97, %c3_98, %c0_99] : memref<7x7x128xf32, #tpu.memory_space<vmem>>, vector<3x3x128xf32>
    %c0_100 = arith.constant 0 : index
    %c0_101 = arith.constant 0 : index
    %c384 = arith.constant 384 : index
    %114 = vector.load %arg10[%c0_100, %c0_101, %c384] : memref<3x8x3200xf32, #tpu.memory_space<vmem>>, vector<3x3x128xf32>
    tpu.vector_store %arg10[%c0_100, %c0_101, %c384], %113 {strides = array<i32>} : memref<3x8x3200xf32, #tpu.memory_space<vmem>>, vector<3x3x128xf32>,
    %c0_102 = arith.constant 0 : index
    %c4_103 = arith.constant 4 : index
    %c0_104 = arith.constant 0 : index
    %115 = vector.load %arg11[%c0_102, %c4_103, %c0_104] : memref<7x7x128xf32, #tpu.memory_space<vmem>>, vector<3x3x128xf32>
    %c0_105 = arith.constant 0 : index
    %c0_106 = arith.constant 0 : index
    %c512_107 = arith.constant 512 : index
    %116 = vector.load %arg10[%c0_105, %c0_106, %c512_107] : memref<3x8x3200xf32, #tpu.memory_space<vmem>>, vector<3x3x128xf32>
    tpu.vector_store %arg10[%c0_105, %c0_106, %c512_107], %115 {strides = array<i32>} : memref<3x8x3200xf32, #tpu.memory_space<vmem>>, vector<3x3x128xf32>,
    %c1_108 = arith.constant 1 : index
    %c0_109 = arith.constant 0 : index
    %c0_110 = arith.constant 0 : index
    %117 = vector.load %arg11[%c1_108, %c0_109, %c0_110] : memref<7x7x128xf32, #tpu.memory_space<vmem>>, vector<3x3x128xf32>
    %c0_111 = arith.constant 0 : index
    %c0_112 = arith.constant 0 : index
    %c640 = arith.constant 640 : index
    %118 = vector.load %arg10[%c0_111, %c0_112, %c640] : memref<3x8x3200xf32, #tpu.memory_space<vmem>>, vector<3x3x128xf32>
    tpu.vector_store %arg10[%c0_111, %c0_112, %c640], %117 {strides = array<i32>} : memref<3x8x3200xf32, #tpu.memory_space<vmem>>, vector<3x3x128xf32>,
    %c1_113 = arith.constant 1 : index
    %c1_114 = arith.constant 1 : index
    %c0_115 = arith.constant 0 : index
    %119 = vector.load %arg11[%c1_113, %c1_114, %c0_115] : memref<7x7x128xf32, #tpu.memory_space<vmem>>, vector<3x3x128xf32>
    %c0_116 = arith.constant 0 : index
    %c0_117 = arith.constant 0 : index
    %c768_118 = arith.constant 768 : index
    %120 = vector.load %arg10[%c0_116, %c0_117, %c768_118] : memref<3x8x3200xf32, #tpu.memory_space<vmem>>, vector<3x3x128xf32>
    tpu.vector_store %arg10[%c0_116, %c0_117, %c768_118], %119 {strides = array<i32>} : memref<3x8x3200xf32, #tpu.memory_space<vmem>>, vector<3x3x128xf32>,
    %c1_119 = arith.constant 1 : index
    %c2_120 = arith.constant 2 : index
    %c0_121 = arith.constant 0 : index
    %121 = vector.load %arg11[%c1_119, %c2_120, %c0_121] : memref<7x7x128xf32, #tpu.memory_space<vmem>>, vector<3x3x128xf32>
    %c0_122 = arith.constant 0 : index
    %c0_123 = arith.constant 0 : index
    %c896 = arith.constant 896 : index
    %122 = vector.load %arg10[%c0_122, %c0_123, %c896] : memref<3x8x3200xf32, #tpu.memory_space<vmem>>, vector<3x3x128xf32>
    tpu.vector_store %arg10[%c0_122, %c0_123, %c896], %121 {strides = array<i32>} : memref<3x8x3200xf32, #tpu.memory_space<vmem>>, vector<3x3x128xf32>,
    %c1_124 = arith.constant 1 : index
    %c3_125 = arith.constant 3 : index
    %c0_126 = arith.constant 0 : index
    %123 = vector.load %arg11[%c1_124, %c3_125, %c0_126] : memref<7x7x128xf32, #tpu.memory_space<vmem>>, vector<3x3x128xf32>
    %c0_127 = arith.constant 0 : index
    %c0_128 = arith.constant 0 : index
    %c1024_129 = arith.constant 1024 : index
    %124 = vector.load %arg10[%c0_127, %c0_128, %c1024_129] : memref<3x8x3200xf32, #tpu.memory_space<vmem>>, vector<3x3x128xf32>
    tpu.vector_store %arg10[%c0_127, %c0_128, %c1024_129], %123 {strides = array<i32>} : memref<3x8x3200xf32, #tpu.memory_space<vmem>>, vector<3x3x128xf32>,
    %c1_130 = arith.constant 1 : index
    %c4_131 = arith.constant 4 : index
    %c0_132 = arith.constant 0 : index
    %125 = vector.load %arg11[%c1_130, %c4_131, %c0_132] : memref<7x7x128xf32, #tpu.memory_space<vmem>>, vector<3x3x128xf32>
    %c0_133 = arith.constant 0 : index
    %c0_134 = arith.constant 0 : index
    %c1152 = arith.constant 1152 : index
    %126 = vector.load %arg10[%c0_133, %c0_134, %c1152] : memref<3x8x3200xf32, #tpu.memory_space<vmem>>, vector<3x3x128xf32>
    tpu.vector_store %arg10[%c0_133, %c0_134, %c1152], %125 {strides = array<i32>} : memref<3x8x3200xf32, #tpu.memory_space<vmem>>, vector<3x3x128xf32>,
    %c2_135 = arith.constant 2 : index
    %c0_136 = arith.constant 0 : index
    %c0_137 = arith.constant 0 : index
    %127 = vector.load %arg11[%c2_135, %c0_136, %c0_137] : memref<7x7x128xf32, #tpu.memory_space<vmem>>, vector<3x3x128xf32>
    %c0_138 = arith.constant 0 : index
    %c0_139 = arith.constant 0 : index
    %c1280_140 = arith.constant 1280 : index
    %128 = vector.load %arg10[%c0_138, %c0_139, %c1280_140] : memref<3x8x3200xf32, #tpu.memory_space<vmem>>, vector<3x3x128xf32>
    tpu.vector_store %arg10[%c0_138, %c0_139, %c1280_140], %127 {strides = array<i32>} : memref<3x8x3200xf32, #tpu.memory_space<vmem>>, vector<3x3x128xf32>,
    %c2_141 = arith.constant 2 : index
    %c1_142 = arith.constant 1 : index
    %c0_143 = arith.constant 0 : index
    %129 = vector.load %arg11[%c2_141, %c1_142, %c0_143] : memref<7x7x128xf32, #tpu.memory_space<vmem>>, vector<3x3x128xf32>
    %c0_144 = arith.constant 0 : index
    %c0_145 = arith.constant 0 : index
    %c1408 = arith.constant 1408 : index
    %130 = vector.load %arg10[%c0_144, %c0_145, %c1408] : memref<3x8x3200xf32, #tpu.memory_space<vmem>>, vector<3x3x128xf32>
    tpu.vector_store %arg10[%c0_144, %c0_145, %c1408], %129 {strides = array<i32>} : memref<3x8x3200xf32, #tpu.memory_space<vmem>>, vector<3x3x128xf32>,
    %c2_146 = arith.constant 2 : index
    %c2_147 = arith.constant 2 : index
    %c0_148 = arith.constant 0 : index
    %131 = vector.load %arg11[%c2_146, %c2_147, %c0_148] : memref<7x7x128xf32, #tpu.memory_space<vmem>>, vector<3x3x128xf32>
    %c0_149 = arith.constant 0 : index
    %c0_150 = arith.constant 0 : index
    %c1536_151 = arith.constant 1536 : index
    %132 = vector.load %arg10[%c0_149, %c0_150, %c1536_151] : memref<3x8x3200xf32, #tpu.memory_space<vmem>>, vector<3x3x128xf32>
    tpu.vector_store %arg10[%c0_149, %c0_150, %c1536_151], %131 {strides = array<i32>} : memref<3x8x3200xf32, #tpu.memory_space<vmem>>, vector<3x3x128xf32>,
    %c2_152 = arith.constant 2 : index
    %c3_153 = arith.constant 3 : index
    %c0_154 = arith.constant 0 : index
    %133 = vector.load %arg11[%c2_152, %c3_153, %c0_154] : memref<7x7x128xf32, #tpu.memory_space<vmem>>, vector<3x3x128xf32>
    %c0_155 = arith.constant 0 : index
    %c0_156 = arith.constant 0 : index
    %c1664 = arith.constant 1664 : index
    %134 = vector.load %arg10[%c0_155, %c0_156, %c1664] : memref<3x8x3200xf32, #tpu.memory_space<vmem>>, vector<3x3x128xf32>
    tpu.vector_store %arg10[%c0_155, %c0_156, %c1664], %133 {strides = array<i32>} : memref<3x8x3200xf32, #tpu.memory_space<vmem>>, vector<3x3x128xf32>,
    %c2_157 = arith.constant 2 : index
    %c4_158 = arith.constant 4 : index
    %c0_159 = arith.constant 0 : index
    %135 = vector.load %arg11[%c2_157, %c4_158, %c0_159] : memref<7x7x128xf32, #tpu.memory_space<vmem>>, vector<3x3x128xf32>
    %c0_160 = arith.constant 0 : index
    %c0_161 = arith.constant 0 : index
    %c1792_162 = arith.constant 1792 : index
    %136 = vector.load %arg10[%c0_160, %c0_161, %c1792_162] : memref<3x8x3200xf32, #tpu.memory_space<vmem>>, vector<3x3x128xf32>
    tpu.vector_store %arg10[%c0_160, %c0_161, %c1792_162], %135 {strides = array<i32>} : memref<3x8x3200xf32, #tpu.memory_space<vmem>>, vector<3x3x128xf32>,
    %c3_163 = arith.constant 3 : index
    %c0_164 = arith.constant 0 : index
    %c0_165 = arith.constant 0 : index
    %137 = vector.load %arg11[%c3_163, %c0_164, %c0_165] : memref<7x7x128xf32, #tpu.memory_space<vmem>>, vector<3x3x128xf32>
    %c0_166 = arith.constant 0 : index
    %c0_167 = arith.constant 0 : index
    %c1920 = arith.constant 1920 : index
    %138 = vector.load %arg10[%c0_166, %c0_167, %c1920] : memref<3x8x3200xf32, #tpu.memory_space<vmem>>, vector<3x3x128xf32>
    tpu.vector_store %arg10[%c0_166, %c0_167, %c1920], %137 {strides = array<i32>} : memref<3x8x3200xf32, #tpu.memory_space<vmem>>, vector<3x3x128xf32>,
    %c3_168 = arith.constant 3 : index
    %c1_169 = arith.constant 1 : index
    %c0_170 = arith.constant 0 : index
    %139 = vector.load %arg11[%c3_168, %c1_169, %c0_170] : memref<7x7x128xf32, #tpu.memory_space<vmem>>, vector<3x3x128xf32>
    %c0_171 = arith.constant 0 : index
    %c0_172 = arith.constant 0 : index
    %c2048_173 = arith.constant 2048 : index
    %140 = vector.load %arg10[%c0_171, %c0_172, %c2048_173] : memref<3x8x3200xf32, #tpu.memory_space<vmem>>, vector<3x3x128xf32>
    tpu.vector_store %arg10[%c0_171, %c0_172, %c2048_173], %139 {strides = array<i32>} : memref<3x8x3200xf32, #tpu.memory_space<vmem>>, vector<3x3x128xf32>,
    %c3_174 = arith.constant 3 : index
    %c2_175 = arith.constant 2 : index
    %c0_176 = arith.constant 0 : index
    %141 = vector.load %arg11[%c3_174, %c2_175, %c0_176] : memref<7x7x128xf32, #tpu.memory_space<vmem>>, vector<3x3x128xf32>
    %c0_177 = arith.constant 0 : index
    %c0_178 = arith.constant 0 : index
    %c2176 = arith.constant 2176 : index
    %142 = vector.load %arg10[%c0_177, %c0_178, %c2176] : memref<3x8x3200xf32, #tpu.memory_space<vmem>>, vector<3x3x128xf32>
    tpu.vector_store %arg10[%c0_177, %c0_178, %c2176], %141 {strides = array<i32>} : memref<3x8x3200xf32, #tpu.memory_space<vmem>>, vector<3x3x128xf32>,
    %c3_179 = arith.constant 3 : index
    %c3_180 = arith.constant 3 : index
    %c0_181 = arith.constant 0 : index
    %143 = vector.load %arg11[%c3_179, %c3_180, %c0_181] : memref<7x7x128xf32, #tpu.memory_space<vmem>>, vector<3x3x128xf32>
    %c0_182 = arith.constant 0 : index
    %c0_183 = arith.constant 0 : index
    %c2304 = arith.constant 2304 : index
    %144 = vector.load %arg10[%c0_182, %c0_183, %c2304] : memref<3x8x3200xf32, #tpu.memory_space<vmem>>, vector<3x3x128xf32>
    tpu.vector_store %arg10[%c0_182, %c0_183, %c2304], %143 {strides = array<i32>} : memref<3x8x3200xf32, #tpu.memory_space<vmem>>, vector<3x3x128xf32>,
    %c3_184 = arith.constant 3 : index
    %c4_185 = arith.constant 4 : index
    %c0_186 = arith.constant 0 : index
    %145 = vector.load %arg11[%c3_184, %c4_185, %c0_186] : memref<7x7x128xf32, #tpu.memory_space<vmem>>, vector<3x3x128xf32>
    %c0_187 = arith.constant 0 : index
    %c0_188 = arith.constant 0 : index
    %c2432 = arith.constant 2432 : index
    %146 = vector.load %arg10[%c0_187, %c0_188, %c2432] : memref<3x8x3200xf32, #tpu.memory_space<vmem>>, vector<3x3x128xf32>
    tpu.vector_store %arg10[%c0_187, %c0_188, %c2432], %145 {strides = array<i32>} : memref<3x8x3200xf32, #tpu.memory_space<vmem>>, vector<3x3x128xf32>,
    %c4_189 = arith.constant 4 : index
    %c0_190 = arith.constant 0 : index
    %c0_191 = arith.constant 0 : index
    %147 = vector.load %arg11[%c4_189, %c0_190, %c0_191] : memref<7x7x128xf32, #tpu.memory_space<vmem>>, vector<3x3x128xf32>
    %c0_192 = arith.constant 0 : index
    %c0_193 = arith.constant 0 : index
    %c2560 = arith.constant 2560 : index
    %148 = vector.load %arg10[%c0_192, %c0_193, %c2560] : memref<3x8x3200xf32, #tpu.memory_space<vmem>>, vector<3x3x128xf32>
    tpu.vector_store %arg10[%c0_192, %c0_193, %c2560], %147 {strides = array<i32>} : memref<3x8x3200xf32, #tpu.memory_space<vmem>>, vector<3x3x128xf32>,
    %c4_194 = arith.constant 4 : index
    %c1_195 = arith.constant 1 : index
    %c0_196 = arith.constant 0 : index
    %149 = vector.load %arg11[%c4_194, %c1_195, %c0_196] : memref<7x7x128xf32, #tpu.memory_space<vmem>>, vector<3x3x128xf32>
    %c0_197 = arith.constant 0 : index
    %c0_198 = arith.constant 0 : index
    %c2688 = arith.constant 2688 : index
    %150 = vector.load %arg10[%c0_197, %c0_198, %c2688] : memref<3x8x3200xf32, #tpu.memory_space<vmem>>, vector<3x3x128xf32>
    tpu.vector_store %arg10[%c0_197, %c0_198, %c2688], %149 {strides = array<i32>} : memref<3x8x3200xf32, #tpu.memory_space<vmem>>, vector<3x3x128xf32>,
    %c4_199 = arith.constant 4 : index
    %c2_200 = arith.constant 2 : index
    %c0_201 = arith.constant 0 : index
    %151 = vector.load %arg11[%c4_199, %c2_200, %c0_201] : memref<7x7x128xf32, #tpu.memory_space<vmem>>, vector<3x3x128xf32>
    %c0_202 = arith.constant 0 : index
    %c0_203 = arith.constant 0 : index
    %c2816 = arith.constant 2816 : index
    %152 = vector.load %arg10[%c0_202, %c0_203, %c2816] : memref<3x8x3200xf32, #tpu.memory_space<vmem>>, vector<3x3x128xf32>
    tpu.vector_store %arg10[%c0_202, %c0_203, %c2816], %151 {strides = array<i32>} : memref<3x8x3200xf32, #tpu.memory_space<vmem>>, vector<3x3x128xf32>,
    %c4_204 = arith.constant 4 : index
    %c3_205 = arith.constant 3 : index
    %c0_206 = arith.constant 0 : index
    %153 = vector.load %arg11[%c4_204, %c3_205, %c0_206] : memref<7x7x128xf32, #tpu.memory_space<vmem>>, vector<3x3x128xf32>
    %c0_207 = arith.constant 0 : index
    %c0_208 = arith.constant 0 : index
    %c2944 = arith.constant 2944 : index
    %154 = vector.load %arg10[%c0_207, %c0_208, %c2944] : memref<3x8x3200xf32, #tpu.memory_space<vmem>>, vector<3x3x128xf32>
    tpu.vector_store %arg10[%c0_207, %c0_208, %c2944], %153 {strides = array<i32>} : memref<3x8x3200xf32, #tpu.memory_space<vmem>>, vector<3x3x128xf32>,
    %c4_209 = arith.constant 4 : index
    %c4_210 = arith.constant 4 : index
    %c0_211 = arith.constant 0 : index
    %155 = vector.load %arg11[%c4_209, %c4_210, %c0_211] : memref<7x7x128xf32, #tpu.memory_space<vmem>>, vector<3x3x128xf32>
    %c0_212 = arith.constant 0 : index
    %c0_213 = arith.constant 0 : index
    %c3072 = arith.constant 3072 : index
    %156 = vector.load %arg10[%c0_212, %c0_213, %c3072] : memref<3x8x3200xf32, #tpu.memory_space<vmem>>, vector<3x3x128xf32>
    tpu.vector_store %arg10[%c0_212, %c0_213, %c3072], %155 {strides = array<i32>} : memref<3x8x3200xf32, #tpu.memory_space<vmem>>, vector<3x3x128xf32>,
    %c0_i32_214 = arith.constant 0 : i32
    %157 = tpu.memref_slice %arg14[%c0_i32_214] : memref<2x!tpu.dma_semaphore, #tpu.memory_space<semaphore_mem>> -> memref<1x!tpu.dma_semaphore, #tpu.memory_space<semaphore_mem>>
    %158 = tpu.memref_squeeze %157 : memref<1x!tpu.dma_semaphore, #tpu.memory_space<semaphore_mem>> -> memref<!tpu.dma_semaphore, #tpu.memory_space<semaphore_mem>>
    tpu.wait_dma2 semaphore(%158 : memref<!tpu.dma_semaphore, #tpu.memory_space<semaphore_mem>>) src(%arg4 : memref<3200x128xbf16, #tpu.memory_space<any>>) dst(%arg12 : memref<3200x128xbf16, #tpu.memory_space<vmem>>)
    %c0_215 = arith.constant 0 : index
    %c0_216 = arith.constant 0 : index
    %c0_217 = arith.constant 0 : index
    %159 = vector.load %arg10[%c0_215, %c0_216, %c0_217] : memref<3x8x3200xf32, #tpu.memory_space<vmem>>, vector<3x8x3200xf32>
    %160 = vector.shape_cast %159 : vector<3x8x3200xf32> to vector<24x3200xf32>
    %161 = arith.truncf %160 : vector<24x3200xf32> to vector<24x3200xbf16>
    %c0_218 = arith.constant 0 : index
    %c0_219 = arith.constant 0 : index
    %162 = vector.load %arg12[%c0_218, %c0_219] : memref<3200x128xbf16, #tpu.memory_space<vmem>>, vector<3200x128xbf16>
    %cst_220 = arith.constant dense<0.000000e+00> : vector<24x128xf32>
    %163 = tpu.matmul %161, %162, %cst_220 {dimension_numbers = #tpu.dot_dimension_numbers<[1], [0], [0], [1], [0, 0, 1, 1], [], []>} : vector<24x3200xbf16>, vector<3200x128xbf16>, vector<24x128xf32> -> vector<24x128xf32>
    %c0_221 = arith.constant 0 : index
    %c0_222 = arith.constant 0 : index
    %164 = vector.load %arg5[%c0_221, %c0_222] : memref<1x128xf32, #tpu.memory_space<vmem>>, vector<1x128xf32>
    %165 = vector.broadcast %164 : vector<1x128xf32> to vector<24x128xf32>
    %166 = arith.addf %163, %165 : vector<24x128xf32>
    %cst_223 = arith.constant 0.000000e+00 : f32
    %167 = vector.broadcast %cst_223 : f32 to vector<24x128xf32>
    %168 = arith.maximumf %166, %167 : vector<24x128xf32>
    %169 = vector.shape_cast %168 : vector<24x128xf32> to vector<3x8x128xf32>
    %170 = vector.extract_strided_slice %169 {offsets = [0, 0, 0], sizes = [3, 3, 128], strides = [1, 1, 1]} : vector<3x8x128xf32> to vector<3x3x128xf32>
    %cst_224 = arith.constant dense<0.000000e+00> : vector<128xf32>
    %171 = vector.multi_reduction <add>, %170, %cst_224 [0, 1] : vector<3x3x128xf32> to vector<128xf32>
    %172 = vector.shape_cast %171 : vector<128xf32> to vector<1x1x128xf32>
    %173 = vector.shape_cast %172 : vector<1x1x128xf32> to vector<1x128xf32>
    %cst_225 = arith.constant 0.111111112 : f32
    %174 = vector.broadcast %cst_225 : f32 to vector<1x128xf32>
    %175 = arith.mulf %173, %174 : vector<1x128xf32>
    %176 = arith.truncf %175 : vector<1x128xf32> to vector<1x128xbf16>
    %c1_i32_226 = arith.constant 1 : i32
    %177 = tpu.memref_slice %arg14[%c1_i32_226] : memref<2x!tpu.dma_semaphore, #tpu.memory_space<semaphore_mem>> -> memref<1x!tpu.dma_semaphore, #tpu.memory_space<semaphore_mem>>
    %178 = tpu.memref_squeeze %177 : memref<1x!tpu.dma_semaphore, #tpu.memory_space<semaphore_mem>> -> memref<!tpu.dma_semaphore, #tpu.memory_space<semaphore_mem>>
    tpu.wait_dma2 semaphore(%178 : memref<!tpu.dma_semaphore, #tpu.memory_space<semaphore_mem>>) src(%arg6 : memref<128x128xbf16, #tpu.memory_space<any>>) dst(%arg13 : memref<128x128xbf16, #tpu.memory_space<vmem>>)
    %c0_227 = arith.constant 0 : index
    %c0_228 = arith.constant 0 : index
    %179 = vector.load %arg13[%c0_227, %c0_228] : memref<128x128xbf16, #tpu.memory_space<vmem>>, vector<128x128xbf16>
    %cst_229 = arith.constant dense<0.000000e+00> : vector<1x128xf32>
    %180 = tpu.matmul %176, %179, %cst_229 {dimension_numbers = #tpu.dot_dimension_numbers<[1], [0], [0], [1], [0, 0, 1, 1], [], []>} : vector<1x128xbf16>, vector<128x128xbf16>, vector<1x128xf32> -> vector<1x128xf32>
    %c0_230 = arith.constant 0 : index
    %c0_231 = arith.constant 0 : index
    %181 = vector.load %arg7[%c0_230, %c0_231] : memref<1x128xf32, #tpu.memory_space<vmem>>, vector<1x128xf32>
    %182 = arith.addf %180, %181 : vector<1x128xf32>
    %c0_232 = arith.constant 0 : index
    %c0_233 = arith.constant 0 : index
    %c0_234 = arith.constant 0 : index
    %183 = vector.load %arg8[%c0_232, %c0_233, %c0_234] : memref<1x1x128xf32, #tpu.memory_space<vmem>>, vector<1x1x128xf32>
    %184 = vector.shape_cast %183 : vector<1x1x128xf32> to vector<1x128xf32>
    %185 = vector.shape_cast %182 : vector<1x128xf32> to vector<1x1x128xf32>
    tpu.vector_store %arg8[%c0_232, %c0_233, %c0_234], %185 {strides = array<i32>} : memref<1x1x128xf32, #tpu.memory_space<vmem>>, vector<1x1x128xf32>,
    return
  }
  func.func @transform_0(%arg0: i32) -> (i32, i32, i32, i32) {
    %c0_i32 = arith.constant 0 : i32
    %c0_i32_0 = arith.constant 0 : i32
    %c0_i32_1 = arith.constant 0 : i32
    %c0_i32_2 = arith.constant 0 : i32
    return %arg0, %c0_i32, %c0_i32_0, %c0_i32_1 : i32, i32, i32, i32
  }
  func.func @transform_1(%arg0: i32) -> (i32, i32) {
    %c0_i32 = arith.constant 0 : i32
    %c0_i32_0 = arith.constant 0 : i32
    %c0_i32_1 = arith.constant 0 : i32
    return %c0_i32, %c0_i32_0 : i32, i32
  }
  func.func @transform_2(%arg0: i32) -> (i32, i32) {
    %c0_i32 = arith.constant 0 : i32
    %c0_i32_0 = arith.constant 0 : i32
    %c0_i32_1 = arith.constant 0 : i32
    return %c0_i32, %c0_i32_0 : i32, i32
  }
  func.func @transform_4(%arg0: i32) -> (i32, i32) {
    %c0_i32 = arith.constant 0 : i32
    %c0_i32_0 = arith.constant 0 : i32
    %c0_i32_1 = arith.constant 0 : i32
    return %c0_i32, %c0_i32_0 : i32, i32
  }
  func.func @transform_6(%arg0: i32) -> (i32, i32) {
    %c0_i32 = arith.constant 0 : i32
    %c0_i32_0 = arith.constant 0 : i32
    %c0_i32_1 = arith.constant 0 : i32
    return %c0_i32, %c0_i32_0 : i32, i32
  }
  func.func @transform_7(%arg0: i32) -> (i32, i32, i32) {
    %c0_i32 = arith.constant 0 : i32
    %c0_i32_0 = arith.constant 0 : i32
    %c0_i32_1 = arith.constant 0 : i32
    return %arg0, %c0_i32, %c0_i32_0 : i32, i32, i32
  }
}

</mosaic_0001>

<llo_original>
// kernel: chopped_alexnet64bn_forward.1
$region0: #{chopped_alexnet64bn_forward.1}
  #allocation0 [shape = 'u32[]', space=smem, size = 0x4, offset = 0x4, fixed_abs, tag = 'smem constant byte address 0x4 - core index']
  #allocation1 [shape = 'u32[144,128]{1,0:T(1,128)}', space=vmem, size = 0x12000, scoped, tag = 'internal scratch']
  #allocation2 [shape = 'f32[7,8,2304]{2,1,0:T(8,128)}', space=vmem, size = 0x7e000, scoped, tag = 'scratch operand']
  #allocation3 [shape = 'f32[3,8,3200]{2,1,0:T(8,128)}', space=vmem, size = 0x4b000, scoped, tag = 'scratch operand']
  #allocation4 [shape = 'f32[7,7,128]{2,1,0:T(8,128)}', space=vmem, size = 0x7000, scoped, tag = 'scratch operand']
  #allocation5 [shape = 'bf16[3200,128]{1,0:T(8,128)(2,1)}', space=vmem, size = 0xc8000, scoped, tag = 'scratch operand']
  #allocation6 [shape = 'bf16[128,128]{1,0:T(8,128)(2,1)}', space=vmem, size = 0x8000, scoped, tag = 'scratch operand']
  #allocation7 [shape = 's32[2]{0}', space=sflag, size = 0x8, scoped, tag = 'scratch operand']
  #allocation10 [shape = 's32[]', space=sflag, size = 0x4, offset = 0, fixed_abs, tag = 'sflag constant byte address 0x0 - dummy sync flag']
  #allocation11 [shape = 's32[]', space=sflag, size = 0x4, offset = 0, fixed_abs, tag = 'sflag constant byte address 0x0 - dummy sync flag']
  %s0 = inlined_call_operand.vmem [shape: f32[2,9,9,256], index: 0, kind: input, shape index: {}]
  %s1 = inlined_call_operand.vmem [shape: bf16[2304,128], index: 1, kind: input, shape index: {}]
  %s2 = inlined_call_operand.vmem [shape: f32[1,128], index: 2, kind: input, shape index: {}]
  %s3 = inlined_call_operand.vmem [shape: bf16[3200,128], index: 3, kind: input, shape index: {}]
  %s4 = inlined_call_operand.vmem [shape: f32[1,128], index: 4, kind: input, shape index: {}]
  %s5 = inlined_call_operand.vmem [shape: bf16[128,128], index: 5, kind: input, shape index: {}]
  %s6 = inlined_call_operand.vmem [shape: f32[1,128], index: 6, kind: input, shape index: {}]
  %s7 = inlined_call_operand.hbm [shape: f32[2,1,128], index: 7, kind: output, shape index: {}]
  %s8 = sld [smem:[#allocation0]]
  $region121: #{chopped_alexnet64bn_forward.1} parent=0
    _
  %s10 = ssub.s32 1, %s8
  %s11 = scalar_select 0, %s10, %s8
  $region1: #{chopped_alexnet64bn_forward.1} parent=0
    #allocation8 [shape = 'u8[1024]{0}', space=vmem, size = 0x400, scoped, tag = 'output window, operand 0']
    #allocation9 [shape = 's32[2]{0}', space=sflag, size = 0x8, scoped, tag = 'scoped memory for chopped_alexnet64bn_forward.1']
    %12 = vsyncpa [#allocation9], 0
    %s13 = scalar_lea.sflag [#allocation9], 1
    %14 = vsyncpa %s13, 0
    loop: start=0, step=1, limit=4
    $region2: #{chopped_alexnet64bn_forward.1} parent=1 // loop_pre_header
      _
    $region3: #{chopped_alexnet64bn_forward.1} parent=1 // loop_header
      %s16 = sphi 0, %s20
      %p17 = scmp.ge.s32.totalorder %s16, 4
      %s26 = sphi 0, %s28
      %s29 = sphi 0, %s26
      %s30 = sphi 0, %s29
      %s46 = sphi 0, %s30
      %s50 = sphi 0, %s50
      %s52 = sphi 0, %s50
      %s53 = sphi 0, %s52
      %s67 = sphi 0, %s53
      %s71 = sphi 0, %s71
      %s73 = sphi 0, %s71
      %s74 = sphi 0, %s73
      %s88 = sphi 0, %s74
      %s92 = sphi 0, %s92
      %s94 = sphi 0, %s92
      %s95 = sphi 0, %s94
      %s109 = sphi 0, %s95
      %s113 = sphi 0, %s113
      %s115 = sphi 0, %s113
      %s116 = sphi 0, %s115
      %s130 = sphi 0, %s116
      %s136 = sphi 0, %s138
      %s139 = sphi 0, %s136
      %s140 = sphi 0, %s139
      %s156 = sphi 0, %s140
    $region4: #{chopped_alexnet64bn_forward.1} parent=1 // loop_header_branch
      %19 = sbr.rel (%p17) target = $region8
    $region5: #{chopped_alexnet64bn_forward.1} parent=1 // loop_body
      %s21 = ssub.s32 %s16, 1
      %s22 = ssub.s32 %s16, 2
      %s23 = sadd.s32 %s16, 1
      %s24 = ssub.s32 %s16, %s23
      %p25 = scmp.eq.s32.totalorder %s24, 0
      %s27 = sadd.s32 %s26, 1
      %s28 = scalar_select %p25, %s26, %s27
      %p31 = pneg %p25
      %p32 = scmp.eq.s32.totalorder %s16, 1
      %p33 = por %p31, %p32
      %p34 = scmp.ne.s32.totalorder %s26, %s29
      %p35 = scmp.eq.s32.totalorder %s16, 0
      %p36 = por %p34, %p35
      %p37 = scmp.ne.s32.totalorder %s26, %s29
      %p38 = scmp.eq.s32.totalorder %s21, 1
      %p39 = por %p37, %p38
      %p40 = scmp.ne.s32.totalorder %s29, %s30
      %p41 = scmp.eq.s32.totalorder %s21, 0
      %p42 = por %p40, %p41
      %p43 = scmp.ne.s32.totalorder %s29, %s30
      %p44 = scmp.eq.s32.totalorder %s22, 1
      %p45 = por %p43, %p44
      %p47 = scmp.ne.s32.totalorder %s30, %s46
      %p48 = scmp.eq.s32.totalorder %s22, 0
      %p49 = por %p47, %p48
      %s51 = sadd.s32 %s50, 1
      %p54 = scmp.eq.s32.totalorder %s16, 1
      %p55 = scmp.ne.s32.totalorder %s50, %s52
      %p56 = scmp.eq.s32.totalorder %s16, 0
      %p57 = por %p55, %p56
      %p58 = scmp.ne.s32.totalorder %s50, %s52
      %p59 = scmp.eq.s32.totalorder %s21, 1
      %p60 = por %p58, %p59
      %p61 = scmp.ne.s32.totalorder %s52, %s53
      %p62 = scmp.eq.s32.totalorder %s21, 0
      %p63 = por %p61, %p62
      %p64 = scmp.ne.s32.totalorder %s52, %s53
      %p65 = scmp.eq.s32.totalorder %s22, 1
      %p66 = por %p64, %p65
      %p68 = scmp.ne.s32.totalorder %s53, %s67
      %p69 = scmp.eq.s32.totalorder %s22, 0
      %p70 = por %p68, %p69
      %s72 = sadd.s32 %s71, 1
      %p75 = scmp.eq.s32.totalorder %s16, 1
      %p76 = scmp.ne.s32.totalorder %s71, %s73
      %p77 = scmp.eq.s32.totalorder %s16, 0
      %p78 = por %p76, %p77
      %p79 = scmp.ne.s32.totalorder %s71, %s73
      %p80 = scmp.eq.s32.totalorder %s21, 1
      %p81 = por %p79, %p80
      %p82 = scmp.ne.s32.totalorder %s73, %s74
      %p83 = scmp.eq.s32.totalorder %s21, 0
      %p84 = por %p82, %p83
      %p85 = scmp.ne.s32.totalorder %s73, %s74
      %p86 = scmp.eq.s32.totalorder %s22, 1
      %p87 = por %p85, %p86
      %p89 = scmp.ne.s32.totalorder %s74, %s88
      %p90 = scmp.eq.s32.totalorder %s22, 0
      %p91 = por %p89, %p90
      %s93 = sadd.s32 %s92, 1
      %p96 = scmp.eq.s32.totalorder %s16, 1
      %p97 = scmp.ne.s32.totalorder %s92, %s94
      %p98 = scmp.eq.s32.totalorder %s16, 0
      %p99 = por %p97, %p98
      %p100 = scmp.ne.s32.totalorder %s92, %s94
      %p101 = scmp.eq.s32.totalorder %s21, 1
      %p102 = por %p100, %p101
      %p103 = scmp.ne.s32.totalorder %s94, %s95
      %p104 = scmp.eq.s32.totalorder %s21, 0
      %p105 = por %p103, %p104
      %p106 = scmp.ne.s32.totalorder %s94, %s95
      %p107 = scmp.eq.s32.totalorder %s22, 1
      %p108 = por %p106, %p107
      %p110 = scmp.ne.s32.totalorder %s95, %s109
      %p111 = scmp.eq.s32.totalorder %s22, 0
      %p112 = por %p110, %p111
      %s114 = sadd.s32 %s113, 1
      %p117 = scmp.eq.s32.totalorder %s16, 1
      %p118 = scmp.ne.s32.totalorder %s113, %s115
      %p119 = scmp.eq.s32.totalorder %s16, 0
      %p120 = por %p118, %p119
      %p121 = scmp.ne.s32.totalorder %s113, %s115
      %p122 = scmp.eq.s32.totalorder %s21, 1
      %p123 = por %p121, %p122
      %p124 = scmp.ne.s32.totalorder %s115, %s116
      %p125 = scmp.eq.s32.totalorder %s21, 0
      %p126 = por %p124, %p125
      %p127 = scmp.ne.s32.totalorder %s115, %s116
      %p128 = scmp.eq.s32.totalorder %s22, 1
      %p129 = por %p127, %p128
      %p131 = scmp.ne.s32.totalorder %s116, %s130
      %p132 = scmp.eq.s32.totalorder %s22, 0
      %p133 = por %p131, %p132
      %s134 = ssub.s32 %s16, %s23
      %p135 = scmp.eq.s32.totalorder %s134, 0
      %s137 = sadd.s32 %s136, 1
      %s138 = scalar_select %p135, %s136, %s137
      %p141 = pneg %p135
      %p142 = scmp.eq.s32.totalorder %s16, 1
      %p143 = por %p141, %p142
      %p144 = scmp.ne.s32.totalorder %s136, %s139
      %p145 = scmp.eq.s32.totalorder %s16, 0
      %p146 = por %p144, %p145
      %p147 = scmp.ne.s32.totalorder %s136, %s139
      %p148 = scmp.eq.s32.totalorder %s21, 1
      %p149 = por %p147, %p148
      %p150 = scmp.ne.s32.totalorder %s139, %s140
      %p151 = scmp.eq.s32.totalorder %s21, 0
      %p152 = por %p150, %p151
      %p153 = scmp.ne.s32.totalorder %s139, %s140
      %p154 = scmp.eq.s32.totalorder %s22, 1
      %p155 = por %p153, %p154
      %p157 = scmp.ne.s32.totalorder %s140, %s156
      %p158 = scmp.eq.s32.totalorder %s22, 0
      %p159 = por %p157, %p158
      %p160 = scmp.le.s32.totalorder 1, %s16
      %p161 = scmp.lt.s32.totalorder %s16, 3
      %p162 = pnand %p160, %p161
      %p163 = pneg %p162
      // Predicated region
      $region9: #{chopped_alexnet64bn_forward.1} parent=5 // pred_check
        _
      $region10: #{chopped_alexnet64bn_forward.1} parent=5 // pred_check_branch
        %165 = sbr.rel (%p162) target = $region12
      $region11: #{chopped_alexnet64bn_forward.1} parent=5 // pred_region
        %s166 = ssub.s32 %s16, 1
        // Predicated region
        $region13: #{chopped_alexnet64bn_forward.1} parent=11 // pred_check
          %p167 = pneg %p63
        $region14: #{chopped_alexnet64bn_forward.1} parent=11 // pred_check_branch
          %169 = sbr.rel (%p167) target = $region16
        $region15: #{chopped_alexnet64bn_forward.1} parent=11 // pred_region
          _
        $region16: #{chopped_alexnet64bn_forward.1} parent=11 // pred_fallthru
          _
        // Predicated region
        $region17: #{chopped_alexnet64bn_forward.1} parent=11 // pred_check
          %p170 = pneg %p84
        $region18: #{chopped_alexnet64bn_forward.1} parent=11 // pred_check_branch
          %172 = sbr.rel (%p170) target = $region20
        $region19: #{chopped_alexnet64bn_forward.1} parent=11 // pred_region
          _
        $region20: #{chopped_alexnet64bn_forward.1} parent=11 // pred_fallthru
          _
        // Predicated region
        $region21: #{chopped_alexnet64bn_forward.1} parent=11 // pred_check
          %p173 = pneg %p105
        $region22: #{chopped_alexnet64bn_forward.1} parent=11 // pred_check_branch
          %175 = sbr.rel (%p173) target = $region24
        $region23: #{chopped_alexnet64bn_forward.1} parent=11 // pred_region
          _
        $region24: #{chopped_alexnet64bn_forward.1} parent=11 // pred_fallthru
          _
        // Predicated region
        $region25: #{chopped_alexnet64bn_forward.1} parent=11 // pred_check
          %p176 = pneg %p126
        $region26: #{chopped_alexnet64bn_forward.1} parent=11 // pred_check_branch
          %178 = sbr.rel (%p176) target = $region28
        $region27: #{chopped_alexnet64bn_forward.1} parent=11 // pred_region
          _
        $region28: #{chopped_alexnet64bn_forward.1} parent=11 // pred_fallthru
          _
      $region12: #{chopped_alexnet64bn_forward.1} parent=5 // pred_fallthru
        _
      %p179 = scmp.lt.s32.totalorder %s16, 2
      // Predicated region
      $region29: #{chopped_alexnet64bn_forward.1} parent=5 // pred_check
        %p180 = pneg %p179
      $region30: #{chopped_alexnet64bn_forward.1} parent=5 // pred_check_branch
        %182 = sbr.rel (%p180) target = $region32
      $region31: #{chopped_alexnet64bn_forward.1} parent=5 // pred_region
        // Predicated region
        $region33: #{chopped_alexnet64bn_forward.1} parent=31 // pred_check
          %p183 = pneg %p36
        $region34: #{chopped_alexnet64bn_forward.1} parent=31 // pred_check_branch
          %185 = sbr.rel (%p183) target = $region36
        $region35: #{chopped_alexnet64bn_forward.1} parent=31 // pred_region
          %p186 = scmp.lt.s32.totalorder %s16, 1
          %s187 = scalar_select %p186, %s16, 1
          %s188 = smul.addr %s187, 36
          %s189 = smul.addr %s188, 8
          %s190 = scalar_lea.vmem %s0, %s189
        $region36: #{chopped_alexnet64bn_forward.1} parent=31 // pred_fallthru
          _
      $region32: #{chopped_alexnet64bn_forward.1} parent=5 // pred_fallthru
        _
      %p191 = scmp.le.s32.totalorder 1, %s16
      %p192 = scmp.lt.s32.totalorder %s16, 3
      %p193 = pnand %p191, %p192
      %p194 = pneg %p193
      // Predicated region
      $region37: #{chopped_alexnet64bn_forward.1} parent=5 // pred_check
        _
      $region38: #{chopped_alexnet64bn_forward.1} parent=5 // pred_check_branch
        %196 = sbr.rel (%p193) target = $region40
      $region39: #{chopped_alexnet64bn_forward.1} parent=5 // pred_region
        %s197 = ssub.s32 %s16, 1
        %p198 = scmp.lt.s32.totalorder %s21, 1
        %s199 = scalar_select %p198, %s21, 1
        %s200 = smul.addr %s199, 36
        %s201 = smul.addr %s200, 8
        %s202 = scalar_lea.vmem %s0, %s201
        %p203 = pneg %p42
        %p204 = pneg %p39
        %p205 = pneg %p63
        %p206 = pneg %p60
        %p207 = pneg %p84
        %p208 = pneg %p81
        %p209 = pneg %p105
        %p210 = pneg %p102
        %p211 = pneg %p126
        %p212 = pneg %p123
        %p213 = pneg %p152
        %p214 = pneg %p149
        %s215 = sand.u32 %s139, 1
        %s216 = scalar_lea.sflag [#allocation9], %s215
        %s217 = sand.u32 %s139, 1
        %s218 = scalar_lea.vmem [#allocation8], %s217
        %p219 = scmp.lt.s32.totalorder %s21, 1
        %s220 = scalar_select %p219, %s21, 1
        %s221 = smul.addr %s220, 36
        %s222 = smul.addr %s221, 8
        %s223 = scalar_lea.vmem %s0, %s222
        %p226 = scmp.lt.u32.totalorder 1600, 8
        %p227 = pneg %p226
        // Predicated region
        $region41: #{chopped_alexnet64bn_forward.1} parent=39 // pred_check
          _
        $region42: #{chopped_alexnet64bn_forward.1} parent=39 // pred_check_branch
          %229 = sbr.rel (%p226) target = $region44
        $region43: #{chopped_alexnet64bn_forward.1} parent=39 // pred_region
          %s245 = sand.u32 1600, 7
          %p246 = scmp.eq.s32.totalorder %s245, 0
          // Predicated region
          $region56: #{chopped_alexnet64bn_forward.1} parent=43 // pred_check
            %p247 = pneg %p246
          $region57: #{chopped_alexnet64bn_forward.1} parent=43 // pred_check_branch
            %249 = sbr.rel (%p247) target = $region59
          $region58: #{chopped_alexnet64bn_forward.1} parent=43 // pred_region
            loop: start=0, step=1, limit=1
            $region60: #{chopped_alexnet64bn_forward.1} parent=58 // loop_pre_header
              _
            $region61: #{chopped_alexnet64bn_forward.1} parent=58 // loop_header
              %s251 = sphi 0, %s255
              %p252 = scmp.ge.s32.totalorder %s251, 1
              %s256 = sphi %s3, %s3
              %s257 = sphi [#allocation5], [#allocation5]
            $region62: #{chopped_alexnet64bn_forward.1} parent=58 // loop_header_branch
              %254 = sbr.rel (%p252) target = $region66
            $region63: #{chopped_alexnet64bn_forward.1} parent=58 // loop_body
              %v258 = vld [vmem:[%s256] sm:$0xff]
              %259 = vst [vmem:[%s257] sm:$0xff] %v258
              %v260 = vld [vmem:[%s256 + $0x8] sm:$0xff]
              %261 = vst [vmem:[%s257 + $0x8] sm:$0xff] %v260
              %v262 = vld [vmem:[%s256 + $0x10] sm:$0xff]
              %263 = vst [vmem:[%s257 + $0x10] sm:$0xff] %v262
              %v264 = vld [vmem:[%s256 + $0x18] sm:$0xff]
              %265 = vst [vmem:[%s257 + $0x18] sm:$0xff] %v264
              %v266 = vld [vmem:[%s256 + $0x20] sm:$0xff]
              %267 = vst [vmem:[%s257 + $0x20] sm:$0xff] %v266
              %v268 = vld [vmem:[%s256 + $0x28] sm:$0xff]
              %269 = vst [vmem:[%s257 + $0x28] sm:$0xff] %v268
              %v270 = vld [vmem:[%s256 + $0x30] sm:$0xff]
              %271 = vst [vmem:[%s257 + $0x30] sm:$0xff] %v270
              %v272 = vld [vmem:[%s256 + $0x38] sm:$0xff]
              %273 = vst [vmem:[%s257 + $0x38] sm:$0xff] %v272
              %v274 = vld [vmem:[%s256 + $0x40] sm:$0xff]
              %275 = vst [vmem:[%s257 + $0x40] sm:$0xff] %v274
              %v276 = vld [vmem:[%s256 + $0x48] sm:$0xff]
              %277 = vst [vmem:[%s257 + $0x48] sm:$0xff] %v276
              %v278 = vld [vmem:[%s256 + $0x50] sm:$0xff]
              %279 = vst [vmem:[%s257 + $0x50] sm:$0xff] %v278
              %v280 = vld [vmem:[%s256 + $0x58] sm:$0xff]
              %281 = vst [vmem:[%s257 + $0x58] sm:$0xff] %v280
              %v282 = vld [vmem:[%s256 + $0x60] sm:$0xff]
              %283 = vst [vmem:[%s257 + $0x60] sm:$0xff] %v282
              %v284 = vld [vmem:[%s256 + $0x68] sm:$0xff]
              %285 = vst [vmem:[%s257 + $0x68] sm:$0xff] %v284
              %v286 = vld [vmem:[%s256 + $0x70] sm:$0xff]
              %287 = vst [vmem:[%s257 + $0x70] sm:$0xff] %v286
              %v288 = vld [vmem:[%s256 + $0x78] sm:$0xff]
              %289 = vst [vmem:[%s257 + $0x78] sm:$0xff] %v288
              %v290 = vld [vmem:[%s256 + $0x80] sm:$0xff]
              %291 = vst [vmem:[%s257 + $0x80] sm:$0xff] %v290
              %v292 = vld [vmem:[%s256 + $0x88] sm:$0xff]
              %293 = vst [vmem:[%s257 + $0x88] sm:$0xff] %v292
              %v294 = vld [vmem:[%s256 + $0x90] sm:$0xff]
              %295 = vst [vmem:[%s257 + $0x90] sm:$0xff] %v294
              %v296 = vld [vmem:[%s256 + $0x98] sm:$0xff]
              %297 = vst [vmem:[%s257 + $0x98] sm:$0xff] %v296
              %v298 = vld [vmem:[%s256 + $0xa0] sm:$0xff]
              %299 = vst [vmem:[%s257 + $0xa0] sm:$0xff] %v298
              %v300 = vld [vmem:[%s256 + $0xa8] sm:$0xff]
              %301 = vst [vmem:[%s257 + $0xa8] sm:$0xff] %v300
              %v302 = vld [vmem:[%s256 + $0xb0] sm:$0xff]
              %303 = vst [vmem:[%s257 + $0xb0] sm:$0xff] %v302
              %v304 = vld [vmem:[%s256 + $0xb8] sm:$0xff]
              %305 = vst [vmem:[%s257 + $0xb8] sm:$0xff] %v304
              %v306 = vld [vmem:[%s256 + $0xc0] sm:$0xff]
              %307 = vst [vmem:[%s257 + $0xc0] sm:$0xff] %v306
              %v308 = vld [vmem:[%s256 + $0xc8] sm:$0xff]
              %309 = vst [vmem:[%s257 + $0xc8] sm:$0xff] %v308
              %v310 = vld [vmem:[%s256 + $0xd0] sm:$0xff]
              %311 = vst [vmem:[%s257 + $0xd0] sm:$0xff] %v310
              %v312 = vld [vmem:[%s256 + $0xd8] sm:$0xff]
              %313 = vst [vmem:[%s257 + $0xd8] sm:$0xff] %v312
              %v314 = vld [vmem:[%s256 + $0xe0] sm:$0xff]
              %315 = vst [vmem:[%s257 + $0xe0] sm:$0xff] %v314
              %v316 = vld [vmem:[%s256 + $0xe8] sm:$0xff]
              %317 = vst [vmem:[%s257 + $0xe8] sm:$0xff] %v316
              %v318 = vld [vmem:[%s256 + $0xf0] sm:$0xff]
              %319 = vst [vmem:[%s257 + $0xf0] sm:$0xff] %v318
              %v320 = vld [vmem:[%s256 + $0xf8] sm:$0xff]
              %321 = vst [vmem:[%s257 + $0xf8] sm:$0xff] %v320
              %v322 = vld [vmem:[%s256 + $0x100] sm:$0xff]
              %323 = vst [vmem:[%s257 + $0x100] sm:$0xff] %v322
              %v324 = vld [vmem:[%s256 + $0x108] sm:$0xff]
              %325 = vst [vmem:[%s257 + $0x108] sm:$0xff] %v324
              %v326 = vld [vmem:[%s256 + $0x110] sm:$0xff]
              %327 = vst [vmem:[%s257 + $0x110] sm:$0xff] %v326
              %v328 = vld [vmem:[%s256 + $0x118] sm:$0xff]
              %329 = vst [vmem:[%s257 + $0x118] sm:$0xff] %v328
              %v330 = vld [vmem:[%s256 + $0x120] sm:$0xff]
              %331 = vst [vmem:[%s257 + $0x120] sm:$0xff] %v330
              %v332 = vld [vmem:[%s256 + $0x128] sm:$0xff]
              %333 = vst [vmem:[%s257 + $0x128] sm:$0xff] %v332
              %v334 = vld [vmem:[%s256 + $0x130] sm:$0xff]
              %335 = vst [vmem:[%s257 + $0x130] sm:$0xff] %v334
              %v336 = vld [vmem:[%s256 + $0x138] sm:$0xff]
              %337 = vst [vmem:[%s257 + $0x138] sm:$0xff] %v336
              %v338 = vld [vmem:[%s256 + $0x140] sm:$0xff]
              %339 = vst [vmem:[%s257 + $0x140] sm:$0xff] %v338
              %v340 = vld [vmem:[%s256 + $0x148] sm:$0xff]
              %341 = vst [vmem:[%s257 + $0x148] sm:$0xff] %v340
              %v342 = vld [vmem:[%s256 + $0x150] sm:$0xff]
              %343 = vst [vmem:[%s257 + $0x150] sm:$0xff] %v342
              %v344 = vld [vmem:[%s256 + $0x158] sm:$0xff]
              %345 = vst [vmem:[%s257 + $0x158] sm:$0xff] %v344
              %v346 = vld [vmem:[%s256 + $0x160] sm:$0xff]
              %347 = vst [vmem:[%s257 + $0x160] sm:$0xff] %v346
              %v348 = vld [vmem:[%s256 + $0x168] sm:$0xff]
              %349 = vst [vmem:[%s257 + $0x168] sm:$0xff] %v348
              %v350 = vld [vmem:[%s256 + $0x170] sm:$0xff]
              %351 = vst [vmem:[%s257 + $0x170] sm:$0xff] %v350
              %v352 = vld [vmem:[%s256 + $0x178] sm:$0xff]
              %353 = vst [vmem:[%s257 + $0x178] sm:$0xff] %v352
              %v354 = vld [vmem:[%s256 + $0x180] sm:$0xff]
              %355 = vst [vmem:[%s257 + $0x180] sm:$0xff] %v354
              %v356 = vld [vmem:[%s256 + $0x188] sm:$0xff]
              %357 = vst [vmem:[%s257 + $0x188] sm:$0xff] %v356
              %v358 = vld [vmem:[%s256 + $0x190] sm:$0xff]
              %359 = vst [vmem:[%s257 + $0x190] sm:$0xff] %v358
              %v360 = vld [vmem:[%s256 + $0x198] sm:$0xff]
              %361 = vst [vmem:[%s257 + $0x198] sm:$0xff] %v360
              %v362 = vld [vmem:[%s256 + $0x1a0] sm:$0xff]
              %363 = vst [vmem:[%s257 + $0x1a0] sm:$0xff] %v362
              %v364 = vld [vmem:[%s256 + $0x1a8] sm:$0xff]
              %365 = vst [vmem:[%s257 + $0x1a8] sm:$0xff] %v364
              %v366 = vld [vmem:[%s256 + $0x1b0] sm:$0xff]
              %367 = vst [vmem:[%s257 + $0x1b0] sm:$0xff] %v366
              %v368 = vld [vmem:[%s256 + $0x1b8] sm:$0xff]
              %369 = vst [vmem:[%s257 + $0x1b8] sm:$0xff] %v368
              %v370 = vld [vmem:[%s256 + $0x1c0] sm:$0xff]
              %371 = vst [vmem:[%s257 + $0x1c0] sm:$0xff] %v370
              %v372 = vld [vmem:[%s256 + $0x1c8] sm:$0xff]
              %373 = vst [vmem:[%s257 + $0x1c8] sm:$0xff] %v372
              %v374 = vld [vmem:[%s256 + $0x1d0] sm:$0xff]
              %375 = vst [vmem:[%s257 + $0x1d0] sm:$0xff] %v374
              %v376 = vld [vmem:[%s256 + $0x1d8] sm:$0xff]
              %377 = vst [vmem:[%s257 + $0x1d8] sm:$0xff] %v376
              %v378 = vld [vmem:[%s256 + $0x1e0] sm:$0xff]
              %379 = vst [vmem:[%s257 + $0x1e0] sm:$0xff] %v378
              %v380 = vld [vmem:[%s256 + $0x1e8] sm:$0xff]
              %381 = vst [vmem:[%s257 + $0x1e8] sm:$0xff] %v380
              %v382 = vld [vmem:[%s256 + $0x1f0] sm:$0xff]
              %383 = vst [vmem:[%s257 + $0x1f0] sm:$0xff] %v382
              %v384 = vld [vmem:[%s256 + $0x1f8] sm:$0xff]
              %385 = vst [vmem:[%s257 + $0x1f8] sm:$0xff] %v384
              %v386 = vld [vmem:[%s256 + $0x200] sm:$0xff]
              %387 = vst [vmem:[%s257 + $0x200] sm:$0xff] %v386
              %v388 = vld [vmem:[%s256 + $0x208] sm:$0xff]
              %389 = vst [vmem:[%s257 + $0x208] sm:$0xff] %v388
              %v390 = vld [vmem:[%s256 + $0x210] sm:$0xff]
              %391 = vst [vmem:[%s257 + $0x210] sm:$0xff] %v390
              %v392 = vld [vmem:[%s256 + $0x218] sm:$0xff]
              %393 = vst [vmem:[%s257 + $0x218] sm:$0xff] %v392
              %v394 = vld [vmem:[%s256 + $0x220] sm:$0xff]
              %395 = vst [vmem:[%s257 + $0x220] sm:$0xff] %v394
              %v396 = vld [vmem:[%s256 + $0x228] sm:$0xff]
              %397 = vst [vmem:[%s257 + $0x228] sm:$0xff] %v396
              %v398 = vld [vmem:[%s256 + $0x230] sm:$0xff]
              %399 = vst [vmem:[%s257 + $0x230] sm:$0xff] %v398
              %v400 = vld [vmem:[%s256 + $0x238] sm:$0xff]
              %401 = vst [vmem:[%s257 + $0x238] sm:$0xff] %v400
              %v402 = vld [vmem:[%s256 + $0x240] sm:$0xff]
              %403 = vst [vmem:[%s257 + $0x240] sm:$0xff] %v402
              %v404 = vld [vmem:[%s256 + $0x248] sm:$0xff]
              %405 = vst [vmem:[%s257 + $0x248] sm:$0xff] %v404
              %v406 = vld [vmem:[%s256 + $0x250] sm:$0xff]
              %407 = vst [vmem:[%s257 + $0x250] sm:$0xff] %v406
              %v408 = vld [vmem:[%s256 + $0x258] sm:$0xff]
              %409 = vst [vmem:[%s257 + $0x258] sm:$0xff] %v408
              %v410 = vld [vmem:[%s256 + $0x260] sm:$0xff]
              %411 = vst [vmem:[%s257 + $0x260] sm:$0xff] %v410
              %v412 = vld [vmem:[%s256 + $0x268] sm:$0xff]
              %413 = vst [vmem:[%s257 + $0x268] sm:$0xff] %v412
              %v414 = vld [vmem:[%s256 + $0x270] sm:$0xff]
              %415 = vst [vmem:[%s257 + $0x270] sm:$0xff] %v414
              %v416 = vld [vmem:[%s256 + $0x278] sm:$0xff]
              %417 = vst [vmem:[%s257 + $0x278] sm:$0xff] %v416
              %v418 = vld [vmem:[%s256 + $0x280] sm:$0xff]
              %419 = vst [vmem:[%s257 + $0x280] sm:$0xff] %v418
              %v420 = vld [vmem:[%s256 + $0x288] sm:$0xff]
              %421 = vst [vmem:[%s257 + $0x288] sm:$0xff] %v420
              %v422 = vld [vmem:[%s256 + $0x290] sm:$0xff]
              %423 = vst [vmem:[%s257 + $0x290] sm:$0xff] %v422
              %v424 = vld [vmem:[%s256 + $0x298] sm:$0xff]
              %425 = vst [vmem:[%s257 + $0x298] sm:$0xff] %v424
              %v426 = vld [vmem:[%s256 + $0x2a0] sm:$0xff]
              %427 = vst [vmem:[%s257 + $0x2a0] sm:$0xff] %v426
              %v428 = vld [vmem:[%s256 + $0x2a8] sm:$0xff]
              %429 = vst [vmem:[%s257 + $0x2a8] sm:$0xff] %v428
              %v430 = vld [vmem:[%s256 + $0x2b0] sm:$0xff]
              %431 = vst [vmem:[%s257 + $0x2b0] sm:$0xff] %v430
              %v432 = vld [vmem:[%s256 + $0x2b8] sm:$0xff]
              %433 = vst [vmem:[%s257 + $0x2b8] sm:$0xff] %v432
              %v434 = vld [vmem:[%s256 + $0x2c0] sm:$0xff]
              %435 = vst [vmem:[%s257 + $0x2c0] sm:$0xff] %v434
              %v436 = vld [vmem:[%s256 + $0x2c8] sm:$0xff]
              %437 = vst [vmem:[%s257 + $0x2c8] sm:$0xff] %v436
              %v438 = vld [vmem:[%s256 + $0x2d0] sm:$0xff]
              %439 = vst [vmem:[%s257 + $0x2d0] sm:$0xff] %v438
              %v440 = vld [vmem:[%s256 + $0x2d8] sm:$0xff]
              %441 = vst [vmem:[%s257 + $0x2d8] sm:$0xff] %v440
              %v442 = vld [vmem:[%s256 + $0x2e0] sm:$0xff]
              %443 = vst [vmem:[%s257 + $0x2e0] sm:$0xff] %v442
              %v444 = vld [vmem:[%s256 + $0x2e8] sm:$0xff]
              %445 = vst [vmem:[%s257 + $0x2e8] sm:$0xff] %v444
              %v446 = vld [vmem:[%s256 + $0x2f0] sm:$0xff]
              %447 = vst [vmem:[%s257 + $0x2f0] sm:$0xff] %v446
              %v448 = vld [vmem:[%s256 + $0x2f8] sm:$0xff]
              %449 = vst [vmem:[%s257 + $0x2f8] sm:$0xff] %v448
              %v450 = vld [vmem:[%s256 + $0x300] sm:$0xff]
              %451 = vst [vmem:[%s257 + $0x300] sm:$0xff] %v450
              %v452 = vld [vmem:[%s256 + $0x308] sm:$0xff]
              %453 = vst [vmem:[%s257 + $0x308] sm:$0xff] %v452
              %v454 = vld [vmem:[%s256 + $0x310] sm:$0xff]
              %455 = vst [vmem:[%s257 + $0x310] sm:$0xff] %v454
              %v456 = vld [vmem:[%s256 + $0x318] sm:$0xff]
              %457 = vst [vmem:[%s257 + $0x318] sm:$0xff] %v456
              %v458 = vld [vmem:[%s256 + $0x320] sm:$0xff]
              %459 = vst [vmem:[%s257 + $0x320] sm:$0xff] %v458
              %v460 = vld [vmem:[%s256 + $0x328] sm:$0xff]
              %461 = vst [vmem:[%s257 + $0x328] sm:$0xff] %v460
              %v462 = vld [vmem:[%s256 + $0x330] sm:$0xff]
              %463 = vst [vmem:[%s257 + $0x330] sm:$0xff] %v462
              %v464 = vld [vmem:[%s256 + $0x338] sm:$0xff]
              %465 = vst [vmem:[%s257 + $0x338] sm:$0xff] %v464
              %v466 = vld [vmem:[%s256 + $0x340] sm:$0xff]
              %467 = vst [vmem:[%s257 + $0x340] sm:$0xff] %v466
              %v468 = vld [vmem:[%s256 + $0x348] sm:$0xff]
              %469 = vst [vmem:[%s257 + $0x348] sm:$0xff] %v468
              %v470 = vld [vmem:[%s256 + $0x350] sm:$0xff]
              %471 = vst [vmem:[%s257 + $0x350] sm:$0xff] %v470
              %v472 = vld [vmem:[%s256 + $0x358] sm:$0xff]
              %473 = vst [vmem:[%s257 + $0x358] sm:$0xff] %v472
              %v474 = vld [vmem:[%s256 + $0x360] sm:$0xff]
              %475 = vst [vmem:[%s257 + $0x360] sm:$0xff] %v474
              %v476 = vld [vmem:[%s256 + $0x368] sm:$0xff]
              %477 = vst [vmem:[%s257 + $0x368] sm:$0xff] %v476
              %v478 = vld [vmem:[%s256 + $0x370] sm:$0xff]
              %479 = vst [vmem:[%s257 + $0x370] sm:$0xff] %v478
              %v480 = vld [vmem:[%s256 + $0x378] sm:$0xff]
              %481 = vst [vmem:[%s257 + $0x378] sm:$0xff] %v480
              %v482 = vld [vmem:[%s256 + $0x380] sm:$0xff]
              %483 = vst [vmem:[%s257 + $0x380] sm:$0xff] %v482
              %v484 = vld [vmem:[%s256 + $0x388] sm:$0xff]
              %485 = vst [vmem:[%s257 + $0x388] sm:$0xff] %v484
              %v486 = vld [vmem:[%s256 + $0x390] sm:$0xff]
              %487 = vst [vmem:[%s257 + $0x390] sm:$0xff] %v486
              %v488 = vld [vmem:[%s256 + $0x398] sm:$0xff]
              %489 = vst [vmem:[%s257 + $0x398] sm:$0xff] %v488
              %v490 = vld [vmem:[%s256 + $0x3a0] sm:$0xff]
              %491 = vst [vmem:[%s257 + $0x3a0] sm:$0xff] %v490
              %v492 = vld [vmem:[%s256 + $0x3a8] sm:$0xff]
              %493 = vst [vmem:[%s257 + $0x3a8] sm:$0xff] %v492
              %v494 = vld [vmem:[%s256 + $0x3b0] sm:$0xff]
              %495 = vst [vmem:[%s257 + $0x3b0] sm:$0xff] %v494
              %v496 = vld [vmem:[%s256 + $0x3b8] sm:$0xff]
              %497 = vst [vmem:[%s257 + $0x3b8] sm:$0xff] %v496
              %v498 = vld [vmem:[%s256 + $0x3c0] sm:$0xff]
              %499 = vst [vmem:[%s257 + $0x3c0] sm:$0xff] %v498
              %v500 = vld [vmem:[%s256 + $0x3c8] sm:$0xff]
              %501 = vst [vmem:[%s257 + $0x3c8] sm:$0xff] %v500
              %v502 = vld [vmem:[%s256 + $0x3d0] sm:$0xff]
              %503 = vst [vmem:[%s257 + $0x3d0] sm:$0xff] %v502
              %v504 = vld [vmem:[%s256 + $0x3d8] sm:$0xff]
              %505 = vst [vmem:[%s257 + $0x3d8] sm:$0xff] %v504
              %v506 = vld [vmem:[%s256 + $0x3e0] sm:$0xff]
              %507 = vst [vmem:[%s257 + $0x3e0] sm:$0xff] %v506
              %v508 = vld [vmem:[%s256 + $0x3e8] sm:$0xff]
              %509 = vst [vmem:[%s257 + $0x3e8] sm:$0xff] %v508
              %v510 = vld [vmem:[%s256 + $0x3f0] sm:$0xff]
              %511 = vst [vmem:[%s257 + $0x3f0] sm:$0xff] %v510
              %v512 = vld [vmem:[%s256 + $0x3f8] sm:$0xff]
              %513 = vst [vmem:[%s257 + $0x3f8] sm:$0xff] %v512
              %v514 = vld [vmem:[%s256 + $0x400] sm:$0xff]
              %515 = vst [vmem:[%s257 + $0x400] sm:$0xff] %v514
              %v516 = vld [vmem:[%s256 + $0x408] sm:$0xff]
              %517 = vst [vmem:[%s257 + $0x408] sm:$0xff] %v516
              %v518 = vld [vmem:[%s256 + $0x410] sm:$0xff]
              %519 = vst [vmem:[%s257 + $0x410] sm:$0xff] %v518
              %v520 = vld [vmem:[%s256 + $0x418] sm:$0xff]
              %521 = vst [vmem:[%s257 + $0x418] sm:$0xff] %v520
              %v522 = vld [vmem:[%s256 + $0x420] sm:$0xff]
              %523 = vst [vmem:[%s257 + $0x420] sm:$0xff] %v522
              %v524 = vld [vmem:[%s256 + $0x428] sm:$0xff]
              %525 = vst [vmem:[%s257 + $0x428] sm:$0xff] %v524
              %v526 = vld [vmem:[%s256 + $0x430] sm:$0xff]
              %527 = vst [vmem:[%s257 + $0x430] sm:$0xff] %v526
              %v528 = vld [vmem:[%s256 + $0x438] sm:$0xff]
              %529 = vst [vmem:[%s257 + $0x438] sm:$0xff] %v528
              %v530 = vld [vmem:[%s256 + $0x440] sm:$0xff]
              %531 = vst [vmem:[%s257 + $0x440] sm:$0xff] %v530
              %v532 = vld [vmem:[%s256 + $0x448] sm:$0xff]
              %533 = vst [vmem:[%s257 + $0x448] sm:$0xff] %v532
              %v534 = vld [vmem:[%s256 + $0x450] sm:$0xff]
              %535 = vst [vmem:[%s257 + $0x450] sm:$0xff] %v534
              %v536 = vld [vmem:[%s256 + $0x458] sm:$0xff]
              %537 = vst [vmem:[%s257 + $0x458] sm:$0xff] %v536
              %v538 = vld [vmem:[%s256 + $0x460] sm:$0xff]
              %539 = vst [vmem:[%s257 + $0x460] sm:$0xff] %v538
              %v540 = vld [vmem:[%s256 + $0x468] sm:$0xff]
              %541 = vst [vmem:[%s257 + $0x468] sm:$0xff] %v540
              %v542 = vld [vmem:[%s256 + $0x470] sm:$0xff]
              %543 = vst [vmem:[%s257 + $0x470] sm:$0xff] %v542
              %v544 = vld [vmem:[%s256 + $0x478] sm:$0xff]
              %545 = vst [vmem:[%s257 + $0x478] sm:$0xff] %v544
              %v546 = vld [vmem:[%s256 + $0x480] sm:$0xff]
              %547 = vst [vmem:[%s257 + $0x480] sm:$0xff] %v546
              %v548 = vld [vmem:[%s256 + $0x488] sm:$0xff]
              %549 = vst [vmem:[%s257 + $0x488] sm:$0xff] %v548
              %v550 = vld [vmem:[%s256 + $0x490] sm:$0xff]
              %551 = vst [vmem:[%s257 + $0x490] sm:$0xff] %v550
              %v552 = vld [vmem:[%s256 + $0x498] sm:$0xff]
              %553 = vst [vmem:[%s257 + $0x498] sm:$0xff] %v552
              %v554 = vld [vmem:[%s256 + $0x4a0] sm:$0xff]
              %555 = vst [vmem:[%s257 + $0x4a0] sm:$0xff] %v554
              %v556 = vld [vmem:[%s256 + $0x4a8] sm:$0xff]
              %557 = vst [vmem:[%s257 + $0x4a8] sm:$0xff] %v556
              %v558 = vld [vmem:[%s256 + $0x4b0] sm:$0xff]
              %559 = vst [vmem:[%s257 + $0x4b0] sm:$0xff] %v558
              %v560 = vld [vmem:[%s256 + $0x4b8] sm:$0xff]
              %561 = vst [vmem:[%s257 + $0x4b8] sm:$0xff] %v560
              %v562 = vld [vmem:[%s256 + $0x4c0] sm:$0xff]
              %563 = vst [vmem:[%s257 + $0x4c0] sm:$0xff] %v562
              %v564 = vld [vmem:[%s256 + $0x4c8] sm:$0xff]
              %565 = vst [vmem:[%s257 + $0x4c8] sm:$0xff] %v564
              %v566 = vld [vmem:[%s256 + $0x4d0] sm:$0xff]
              %567 = vst [vmem:[%s257 + $0x4d0] sm:$0xff] %v566
              %v568 = vld [vmem:[%s256 + $0x4d8] sm:$0xff]
              %569 = vst [vmem:[%s257 + $0x4d8] sm:$0xff] %v568
              %v570 = vld [vmem:[%s256 + $0x4e0] sm:$0xff]
              %571 = vst [vmem:[%s257 + $0x4e0] sm:$0xff] %v570
              %v572 = vld [vmem:[%s256 + $0x4e8] sm:$0xff]
              %573 = vst [vmem:[%s257 + $0x4e8] sm:$0xff] %v572
              %v574 = vld [vmem:[%s256 + $0x4f0] sm:$0xff]
              %575 = vst [vmem:[%s257 + $0x4f0] sm:$0xff] %v574
              %v576 = vld [vmem:[%s256 + $0x4f8] sm:$0xff]
              %577 = vst [vmem:[%s257 + $0x4f8] sm:$0xff] %v576
              %v578 = vld [vmem:[%s256 + $0x500] sm:$0xff]
              %579 = vst [vmem:[%s257 + $0x500] sm:$0xff] %v578
              %v580 = vld [vmem:[%s256 + $0x508] sm:$0xff]
              %581 = vst [vmem:[%s257 + $0x508] sm:$0xff] %v580
              %v582 = vld [vmem:[%s256 + $0x510] sm:$0xff]
              %583 = vst [vmem:[%s257 + $0x510] sm:$0xff] %v582
              %v584 = vld [vmem:[%s256 + $0x518] sm:$0xff]
              %585 = vst [vmem:[%s257 + $0x518] sm:$0xff] %v584
              %v586 = vld [vmem:[%s256 + $0x520] sm:$0xff]
              %587 = vst [vmem:[%s257 + $0x520] sm:$0xff] %v586
              %v588 = vld [vmem:[%s256 + $0x528] sm:$0xff]
              %589 = vst [vmem:[%s257 + $0x528] sm:$0xff] %v588
              %v590 = vld [vmem:[%s256 + $0x530] sm:$0xff]
              %591 = vst [vmem:[%s257 + $0x530] sm:$0xff] %v590
              %v592 = vld [vmem:[%s256 + $0x538] sm:$0xff]
              %593 = vst [vmem:[%s257 + $0x538] sm:$0xff] %v592
              %v594 = vld [vmem:[%s256 + $0x540] sm:$0xff]
              %595 = vst [vmem:[%s257 + $0x540] sm:$0xff] %v594
              %v596 = vld [vmem:[%s256 + $0x548] sm:$0xff]
              %597 = vst [vmem:[%s257 + $0x548] sm:$0xff] %v596
              %v598 = vld [vmem:[%s256 + $0x550] sm:$0xff]
              %599 = vst [vmem:[%s257 + $0x550] sm:$0xff] %v598
              %v600 = vld [vmem:[%s256 + $0x558] sm:$0xff]
              %601 = vst [vmem:[%s257 + $0x558] sm:$0xff] %v600
              %v602 = vld [vmem:[%s256 + $0x560] sm:$0xff]
              %603 = vst [vmem:[%s257 + $0x560] sm:$0xff] %v602
              %v604 = vld [vmem:[%s256 + $0x568] sm:$0xff]
              %605 = vst [vmem:[%s257 + $0x568] sm:$0xff] %v604
              %v606 = vld [vmem:[%s256 + $0x570] sm:$0xff]
              %607 = vst [vmem:[%s257 + $0x570] sm:$0xff] %v606
              %v608 = vld [vmem:[%s256 + $0x578] sm:$0xff]
              %609 = vst [vmem:[%s257 + $0x578] sm:$0xff] %v608
              %v610 = vld [vmem:[%s256 + $0x580] sm:$0xff]
              %611 = vst [vmem:[%s257 + $0x580] sm:$0xff] %v610
              %v612 = vld [vmem:[%s256 + $0x588] sm:$0xff]
              %613 = vst [vmem:[%s257 + $0x588] sm:$0xff] %v612
              %v614 = vld [vmem:[%s256 + $0x590] sm:$0xff]
              %615 = vst [vmem:[%s257 + $0x590] sm:$0xff] %v614
              %v616 = vld [vmem:[%s256 + $0x598] sm:$0xff]
              %617 = vst [vmem:[%s257 + $0x598] sm:$0xff] %v616
              %v618 = vld [vmem:[%s256 + $0x5a0] sm:$0xff]
              %619 = vst [vmem:[%s257 + $0x5a0] sm:$0xff] %v618
              %v620 = vld [vmem:[%s256 + $0x5a8] sm:$0xff]
              %621 = vst [vmem:[%s257 + $0x5a8] sm:$0xff] %v620
              %v622 = vld [vmem:[%s256 + $0x5b0] sm:$0xff]
              %623 = vst [vmem:[%s257 + $0x5b0] sm:$0xff] %v622
              %v624 = vld [vmem:[%s256 + $0x5b8] sm:$0xff]
              %625 = vst [vmem:[%s257 + $0x5b8] sm:$0xff] %v624
              %v626 = vld [vmem:[%s256 + $0x5c0] sm:$0xff]
              %627 = vst [vmem:[%s257 + $0x5c0] sm:$0xff] %v626
              %v628 = vld [vmem:[%s256 + $0x5c8] sm:$0xff]
              %629 = vst [vmem:[%s257 + $0x5c8] sm:$0xff] %v628
              %v630 = vld [vmem:[%s256 + $0x5d0] sm:$0xff]
              %631 = vst [vmem:[%s257 + $0x5d0] sm:$0xff] %v630
              %v632 = vld [vmem:[%s256 + $0x5d8] sm:$0xff]
              %633 = vst [vmem:[%s257 + $0x5d8] sm:$0xff] %v632
              %v634 = vld [vmem:[%s256 + $0x5e0] sm:$0xff]
              %635 = vst [vmem:[%s257 + $0x5e0] sm:$0xff] %v634
              %v636 = vld [vmem:[%s256 + $0x5e8] sm:$0xff]
              %637 = vst [vmem:[%s257 + $0x5e8] sm:$0xff] %v636
              %v638 = vld [vmem:[%s256 + $0x5f0] sm:$0xff]
              %639 = vst [vmem:[%s257 + $0x5f0] sm:$0xff] %v638
              %v640 = vld [vmem:[%s256 + $0x5f8] sm:$0xff]
              %641 = vst [vmem:[%s257 + $0x5f8] sm:$0xff] %v640
              %v642 = vld [vmem:[%s256 + $0x600] sm:$0xff]
              %643 = vst [vmem:[%s257 + $0x600] sm:$0xff] %v642
              %v644 = vld [vmem:[%s256 + $0x608] sm:$0xff]
              %645 = vst [vmem:[%s257 + $0x608] sm:$0xff] %v644
              %v646 = vld [vmem:[%s256 + $0x610] sm:$0xff]
              %647 = vst [vmem:[%s257 + $0x610] sm:$0xff] %v646
              %v648 = vld [vmem:[%s256 + $0x618] sm:$0xff]
              %649 = vst [vmem:[%s257 + $0x618] sm:$0xff] %v648
              %v650 = vld [vmem:[%s256 + $0x620] sm:$0xff]
              %651 = vst [vmem:[%s257 + $0x620] sm:$0xff] %v650
              %v652 = vld [vmem:[%s256 + $0x628] sm:$0xff]
              %653 = vst [vmem:[%s257 + $0x628] sm:$0xff] %v652
              %v654 = vld [vmem:[%s256 + $0x630] sm:$0xff]
              %655 = vst [vmem:[%s257 + $0x630] sm:$0xff] %v654
              %v656 = vld [vmem:[%s256 + $0x638] sm:$0xff]
              %657 = vst [vmem:[%s257 + $0x638] sm:$0xff] %v656
            $region64: #{chopped_alexnet64bn_forward.1} parent=58 // loop_footer
              %s255 = sadd.s32 1, %s251
            $region65: #{chopped_alexnet64bn_forward.1} parent=58 // loop_footer_branch
              %250 = sbr.rel target = $region61
            $region66: #{chopped_alexnet64bn_forward.1} parent=58 // loop_exit
              _
          $region59: #{chopped_alexnet64bn_forward.1} parent=43 // pred_fallthru
            _
          %p658 = pneg %p246
          // Predicated region
          $region67: #{chopped_alexnet64bn_forward.1} parent=43 // pred_check
            _
          $region68: #{chopped_alexnet64bn_forward.1} parent=43 // pred_check_branch
            %660 = sbr.rel (%p246) target = $region70
          $region69: #{chopped_alexnet64bn_forward.1} parent=43 // pred_region
            %s661 = sand.u32 1600, 7
          $region70: #{chopped_alexnet64bn_forward.1} parent=43 // pred_fallthru
            _
        $region44: #{chopped_alexnet64bn_forward.1} parent=39 // pred_fallthru
          _
        // Predicated region
        $region45: #{chopped_alexnet64bn_forward.1} parent=39 // pred_check
          %p230 = pneg %p226
        $region46: #{chopped_alexnet64bn_forward.1} parent=39 // pred_check_branch
          %232 = sbr.rel (%p230) target = $region48
        $region47: #{chopped_alexnet64bn_forward.1} parent=39 // pred_region
          %s233 = sshll.u32 1, 1600
          %s234 = ssub.s32 %s233, 1
          loop: start=0, step=1, limit=1
          $region49: #{chopped_alexnet64bn_forward.1} parent=47 // loop_pre_header
            _
          $region50: #{chopped_alexnet64bn_forward.1} parent=47 // loop_header
            %s236 = sphi 0, %s240
            %p237 = scmp.ge.s32.totalorder %s236, 1
            %s241 = sphi %s3, %s3
            %s242 = sphi [#allocation5], [#allocation5]
          $region51: #{chopped_alexnet64bn_forward.1} parent=47 // loop_header_branch
            %239 = sbr.rel (%p237) target = $region55
          $region52: #{chopped_alexnet64bn_forward.1} parent=47 // loop_body
            %v243 = vld [vmem:[%s241] sm:%s234]
            %244 = vst [vmem:[%s242] sm:%s234] %v243
          $region53: #{chopped_alexnet64bn_forward.1} parent=47 // loop_footer
            %s240 = sadd.s32 1, %s236
          $region54: #{chopped_alexnet64bn_forward.1} parent=47 // loop_footer_branch
            %235 = sbr.rel target = $region50
          $region55: #{chopped_alexnet64bn_forward.1} parent=47 // loop_exit
            _
        $region48: #{chopped_alexnet64bn_forward.1} parent=39 // pred_fallthru
          _
        // Predicated region
        $region71: #{chopped_alexnet64bn_forward.1} parent=39 // pred_check
          _
        $region72: #{chopped_alexnet64bn_forward.1} parent=39 // pred_check_branch
          %664 = sbr.rel (0) target = $region74
        $region73: #{chopped_alexnet64bn_forward.1} parent=39 // pred_region
          %665 = vsyncadd [#allocation7], 25600
        $region74: #{chopped_alexnet64bn_forward.1} parent=39 // pred_fallthru
          _
        %s666 = scalar_lea.sflag [#allocation7], 1
        %p668 = scmp.lt.u32.totalorder 64, 8
        %p669 = pneg %p668
        // Predicated region
        $region75: #{chopped_alexnet64bn_forward.1} parent=39 // pred_check
          _
        $region76: #{chopped_alexnet64bn_forward.1} parent=39 // pred_check_branch
          %671 = sbr.rel (%p668) target = $region78
        $region77: #{chopped_alexnet64bn_forward.1} parent=39 // pred_region
          %s687 = sand.u32 64, 7
          %p688 = scmp.eq.s32.totalorder %s687, 0
          // Predicated region
          $region90: #{chopped_alexnet64bn_forward.1} parent=77 // pred_check
            %p689 = pneg %p688
          $region91: #{chopped_alexnet64bn_forward.1} parent=77 // pred_check_branch
            %691 = sbr.rel (%p689) target = $region93
          $region92: #{chopped_alexnet64bn_forward.1} parent=77 // pred_region
            loop: start=0, step=1, limit=1
            $region94: #{chopped_alexnet64bn_forward.1} parent=92 // loop_pre_header
              _
            $region95: #{chopped_alexnet64bn_forward.1} parent=92 // loop_header
              %s693 = sphi 0, %s697
              %p694 = scmp.ge.s32.totalorder %s693, 1
              %s698 = sphi %s5, %s5
              %s699 = sphi [#allocation6], [#allocation6]
            $region96: #{chopped_alexnet64bn_forward.1} parent=92 // loop_header_branch
              %696 = sbr.rel (%p694) target = $region100
            $region97: #{chopped_alexnet64bn_forward.1} parent=92 // loop_body
              %v700 = vld [vmem:[%s698] sm:$0xff]
              %701 = vst [vmem:[%s699] sm:$0xff] %v700
              %v702 = vld [vmem:[%s698 + $0x8] sm:$0xff]
              %703 = vst [vmem:[%s699 + $0x8] sm:$0xff] %v702
              %v704 = vld [vmem:[%s698 + $0x10] sm:$0xff]
              %705 = vst [vmem:[%s699 + $0x10] sm:$0xff] %v704
              %v706 = vld [vmem:[%s698 + $0x18] sm:$0xff]
              %707 = vst [vmem:[%s699 + $0x18] sm:$0xff] %v706
              %v708 = vld [vmem:[%s698 + $0x20] sm:$0xff]
              %709 = vst [vmem:[%s699 + $0x20] sm:$0xff] %v708
              %v710 = vld [vmem:[%s698 + $0x28] sm:$0xff]
              %711 = vst [vmem:[%s699 + $0x28] sm:$0xff] %v710
              %v712 = vld [vmem:[%s698 + $0x30] sm:$0xff]
              %713 = vst [vmem:[%s699 + $0x30] sm:$0xff] %v712
              %v714 = vld [vmem:[%s698 + $0x38] sm:$0xff]
              %715 = vst [vmem:[%s699 + $0x38] sm:$0xff] %v714
            $region98: #{chopped_alexnet64bn_forward.1} parent=92 // loop_footer
              %s697 = sadd.s32 1, %s693
            $region99: #{chopped_alexnet64bn_forward.1} parent=92 // loop_footer_branch
              %692 = sbr.rel target = $region95
            $region100: #{chopped_alexnet64bn_forward.1} parent=92 // loop_exit
              _
          $region93: #{chopped_alexnet64bn_forward.1} parent=77 // pred_fallthru
            _
          %p716 = pneg %p688
          // Predicated region
          $region101: #{chopped_alexnet64bn_forward.1} parent=77 // pred_check
            _
          $region102: #{chopped_alexnet64bn_forward.1} parent=77 // pred_check_branch
            %718 = sbr.rel (%p688) target = $region104
          $region103: #{chopped_alexnet64bn_forward.1} parent=77 // pred_region
            %s719 = sand.u32 64, 7
          $region104: #{chopped_alexnet64bn_forward.1} parent=77 // pred_fallthru
            _
        $region78: #{chopped_alexnet64bn_forward.1} parent=39 // pred_fallthru
          _
        // Predicated region
        $region79: #{chopped_alexnet64bn_forward.1} parent=39 // pred_check
          %p672 = pneg %p668
        $region80: #{chopped_alexnet64bn_forward.1} parent=39 // pred_check_branch
          %674 = sbr.rel (%p672) target = $region82
        $region81: #{chopped_alexnet64bn_forward.1} parent=39 // pred_region
          %s675 = sshll.u32 1, 64
          %s676 = ssub.s32 %s675, 1
          loop: start=0, step=1, limit=1
          $region83: #{chopped_alexnet64bn_forward.1} parent=81 // loop_pre_header
            _
          $region84: #{chopped_alexnet64bn_forward.1} parent=81 // loop_header
            %s678 = sphi 0, %s682
            %p679 = scmp.ge.s32.totalorder %s678, 1
            %s683 = sphi %s5, %s5
            %s684 = sphi [#allocation6], [#allocation6]
          $region85: #{chopped_alexnet64bn_forward.1} parent=81 // loop_header_branch
            %681 = sbr.rel (%p679) target = $region89
          $region86: #{chopped_alexnet64bn_forward.1} parent=81 // loop_body
            %v685 = vld [vmem:[%s683] sm:%s676]
            %686 = vst [vmem:[%s684] sm:%s676] %v685
          $region87: #{chopped_alexnet64bn_forward.1} parent=81 // loop_footer
            %s682 = sadd.s32 1, %s678
          $region88: #{chopped_alexnet64bn_forward.1} parent=81 // loop_footer_branch
            %677 = sbr.rel target = $region84
          $region89: #{chopped_alexnet64bn_forward.1} parent=81 // loop_exit
            _
        $region82: #{chopped_alexnet64bn_forward.1} parent=39 // pred_fallthru
          _
        // Predicated region
        $region105: #{chopped_alexnet64bn_forward.1} parent=39 // pred_check
          _
        $region106: #{chopped_alexnet64bn_forward.1} parent=39 // pred_check_branch
          %722 = sbr.rel (0) target = $region108
        $region107: #{chopped_alexnet64bn_forward.1} parent=39 // pred_region
          %723 = vsyncadd %s666, 1024
        $region108: #{chopped_alexnet64bn_forward.1} parent=39 // pred_fallthru
          _
        %v724 = vld [vmem:[%s223] sm:$0x7f]
        %v725 = vld [vmem:[%s223 + $0x8] sm:$0x7f]
        %v726 = vld [vmem:[%s223 + $0x20] sm:$0x7f]
        %v727 = vld [vmem:[%s223 + $0x28] sm:$0x7f]
        %v728 = vld [vmem:[%s223 + $0x40] sm:$0x7f]
        %v729 = vld [vmem:[%s223 + $0x48] sm:$0x7f]
        %v730 = vld [vmem:[%s223 + $0x60] sm:$0x7f]
        %v731 = vld [vmem:[%s223 + $0x68] sm:$0x7f]
        %v732 = vld [vmem:[%s223 + $0x80] sm:$0x7f]
        %v733 = vld [vmem:[%s223 + $0x88] sm:$0x7f]
        %v734 = vld [vmem:[%s223 + $0xa0] sm:$0x7f]
        %v735 = vld [vmem:[%s223 + $0xa8] sm:$0x7f]
        %v736 = vld [vmem:[%s223 + $0xc0] sm:$0x7f]
        %v737 = vld [vmem:[%s223 + $0xc8] sm:$0x7f]
        %738 = vst [vmem:[#allocation2] sm:$0x7f] %v724
        %739 = vst [vmem:[#allocation2 + $0x8] sm:$0x7f] %v725
        %740 = vst [vmem:[#allocation2 + $0x90] sm:$0x7f] %v726
        %741 = vst [vmem:[#allocation2 + $0x98] sm:$0x7f] %v727
        %742 = vst [vmem:[#allocation2 + $0x120] sm:$0x7f] %v728
        %743 = vst [vmem:[#allocation2 + $0x128] sm:$0x7f] %v729
        %744 = vst [vmem:[#allocation2 + $0x1b0] sm:$0x7f] %v730
        %745 = vst [vmem:[#allocation2 + $0x1b8] sm:$0x7f] %v731
        %746 = vst [vmem:[#allocation2 + $0x240] sm:$0x7f] %v732
        %747 = vst [vmem:[#allocation2 + $0x248] sm:$0x7f] %v733
        %748 = vst [vmem:[#allocation2 + $0x2d0] sm:$0x7f] %v734
        %749 = vst [vmem:[#allocation2 + $0x2d8] sm:$0x7f] %v735
        %750 = vst [vmem:[#allocation2 + $0x360] sm:$0x7f] %v736
        %751 = vst [vmem:[#allocation2 + $0x368] sm:$0x7f] %v737
        %v752 = vld [vmem:[%s223] sm:$0xfe]
        %v753 = vld [vmem:[%s223 + $0x8] sm:$0xfe]
        %v754 = vld [vmem:[%s223 + $0x20] sm:$0xfe]
        %v755 = vld [vmem:[%s223 + $0x28] sm:$0xfe]
        %v756 = vld [vmem:[%s223 + $0x40] sm:$0xfe]
        %v757 = vld [vmem:[%s223 + $0x48] sm:$0xfe]
        %v758 = vld [vmem:[%s223 + $0x60] sm:$0xfe]
        %v759 = vld [vmem:[%s223 + $0x68] sm:$0xfe]
        %v760 = vld [vmem:[%s223 + $0x80] sm:$0xfe]
        %v761 = vld [vmem:[%s223 + $0x88] sm:$0xfe]
        %v762 = vld [vmem:[%s223 + $0xa0] sm:$0xfe]
        %v763 = vld [vmem:[%s223 + $0xa8] sm:$0xfe]
        %v764 = vld [vmem:[%s223 + $0xc0] sm:$0xfe]
        %v765 = vld [vmem:[%s223 + $0xc8] sm:$0xfe]
        %v780 = vrot.slane %v752, 1
        %v781 = vrot.slane %v753, 1
        %v782 = vrot.slane %v754, 1
        %v783 = vrot.slane %v755, 1
        %v784 = vrot.slane %v756, 1
        %v785 = vrot.slane %v757, 1
        %v786 = vrot.slane %v758, 1
        %v787 = vrot.slane %v759, 1
        %v788 = vrot.slane %v760, 1
        %v789 = vrot.slane %v761, 1
        %v790 = vrot.slane %v762, 1
        %v791 = vrot.slane %v763, 1
        %v792 = vrot.slane %v764, 1
        %v793 = vrot.slane %v765, 1
        %808 = vst [vmem:[#allocation2 + $0x10] sm:$0x7f] %v780
        %809 = vst [vmem:[#allocation2 + $0x18] sm:$0x7f] %v781
        %810 = vst [vmem:[#allocation2 + $0xa0] sm:$0x7f] %v782
        %811 = vst [vmem:[#allocation2 + $0xa8] sm:$0x7f] %v783
        %812 = vst [vmem:[#allocation2 + $0x130] sm:$0x7f] %v784
        %813 = vst [vmem:[#allocation2 + $0x138] sm:$0x7f] %v785
        %814 = vst [vmem:[#allocation2 + $0x1c0] sm:$0x7f] %v786
        %815 = vst [vmem:[#allocation2 + $0x1c8] sm:$0x7f] %v787
        %816 = vst [vmem:[#allocation2 + $0x250] sm:$0x7f] %v788
        %817 = vst [vmem:[#allocation2 + $0x258] sm:$0x7f] %v789
        %818 = vst [vmem:[#allocation2 + $0x2e0] sm:$0x7f] %v790
        %819 = vst [vmem:[#allocation2 + $0x2e8] sm:$0x7f] %v791
        %820 = vst [vmem:[#allocation2 + $0x370] sm:$0x7f] %v792
        %821 = vst [vmem:[#allocation2 + $0x378] sm:$0x7f] %v793
        %v822 = vld [vmem:[%s223] sm:$0xfc]
        %v823 = vld [vmem:[%s223 + $0x8] sm:$0xfc]
        %v824 = vld [vmem:[%s223 + $0x10] sm:$0x1]
        %v825 = vld [vmem:[%s223 + $0x18] sm:$0x1]
        %v826 = vld [vmem:[%s223 + $0x20] sm:$0xfc]
        %v827 = vld [vmem:[%s223 + $0x28] sm:$0xfc]
        %v828 = vld [vmem:[%s223 + $0x30] sm:$0x1]
        %v829 = vld [vmem:[%s223 + $0x38] sm:$0x1]
        %v830 = vld [vmem:[%s223 + $0x40] sm:$0xfc]
        %v831 = vld [vmem:[%s223 + $0x48] sm:$0xfc]
        %v832 = vld [vmem:[%s223 + $0x50] sm:$0x1]
        %v833 = vld [vmem:[%s223 + $0x58] sm:$0x1]
        %v834 = vld [vmem:[%s223 + $0x60] sm:$0xfc]
        %v835 = vld [vmem:[%s223 + $0x68] sm:$0xfc]
        %v836 = vld [vmem:[%s223 + $0x70] sm:$0x1]
        %v837 = vld [vmem:[%s223 + $0x78] sm:$0x1]
        %v838 = vld [vmem:[%s223 + $0x80] sm:$0xfc]
        %v839 = vld [vmem:[%s223 + $0x88] sm:$0xfc]
        %v840 = vld [vmem:[%s223 + $0x90] sm:$0x1]
        %v841 = vld [vmem:[%s223 + $0x98] sm:$0x1]
        %v842 = vld [vmem:[%s223 + $0xa0] sm:$0xfc]
        %v843 = vld [vmem:[%s223 + $0xa8] sm:$0xfc]
        %v844 = vld [vmem:[%s223 + $0xb0] sm:$0x1]
        %v845 = vld [vmem:[%s223 + $0xb8] sm:$0x1]
        %v846 = vld [vmem:[%s223 + $0xc0] sm:$0xfc]
        %v847 = vld [vmem:[%s223 + $0xc8] sm:$0xfc]
        %v848 = vld [vmem:[%s223 + $0xd0] sm:$0x1]
        %v849 = vld [vmem:[%s223 + $0xd8] sm:$0x1]
        %vm878 = vcmask 1045504
        %v879 = vrot.slane %v822, 2
        %v880 = vrot.slane %v824, 2
        %v881 = vsel %vm878, %v879, %v880
        %v882 = vrot.slane %v823, 2
        %v883 = vrot.slane %v825, 2
        %v884 = vsel %vm878, %v882, %v883
        %v885 = vrot.slane %v826, 2
        %v886 = vrot.slane %v828, 2
        %v887 = vsel %vm878, %v885, %v886
        %v888 = vrot.slane %v827, 2
        %v889 = vrot.slane %v829, 2
        %v890 = vsel %vm878, %v888, %v889
        %v891 = vrot.slane %v830, 2
        %v892 = vrot.slane %v832, 2
        %v893 = vsel %vm878, %v891, %v892
        %v894 = vrot.slane %v831, 2
        %v895 = vrot.slane %v833, 2
        %v896 = vsel %vm878, %v894, %v895
        %v897 = vrot.slane %v834, 2
        %v898 = vrot.slane %v836, 2
        %v899 = vsel %vm878, %v897, %v898
        %v900 = vrot.slane %v835, 2
        %v901 = vrot.slane %v837, 2
        %v902 = vsel %vm878, %v900, %v901
        %v903 = vrot.slane %v838, 2
        %v904 = vrot.slane %v840, 2
        %v905 = vsel %vm878, %v903, %v904
        %v906 = vrot.slane %v839, 2
        %v907 = vrot.slane %v841, 2
        %v908 = vsel %vm878, %v906, %v907
        %v909 = vrot.slane %v842, 2
        %v910 = vrot.slane %v844, 2
        %v911 = vsel %vm878, %v909, %v910
        %v912 = vrot.slane %v843, 2
        %v913 = vrot.slane %v845, 2
        %v914 = vsel %vm878, %v912, %v913
        %v915 = vrot.slane %v846, 2
        %v916 = vrot.slane %v848, 2
        %v917 = vsel %vm878, %v915, %v916
        %v918 = vrot.slane %v847, 2
        %v919 = vrot.slane %v849, 2
        %v920 = vsel %vm878, %v918, %v919
        %935 = vst [vmem:[#allocation2 + $0x20] sm:$0x7f] %v881
        %936 = vst [vmem:[#allocation2 + $0x28] sm:$0x7f] %v884
        %937 = vst [vmem:[#allocation2 + $0xb0] sm:$0x7f] %v887
        %938 = vst [vmem:[#allocation2 + $0xb8] sm:$0x7f] %v890
        %939 = vst [vmem:[#allocation2 + $0x140] sm:$0x7f] %v893
        %940 = vst [vmem:[#allocation2 + $0x148] sm:$0x7f] %v896
        %941 = vst [vmem:[#allocation2 + $0x1d0] sm:$0x7f] %v899
        %942 = vst [vmem:[#allocation2 + $0x1d8] sm:$0x7f] %v902
        %943 = vst [vmem:[#allocation2 + $0x260] sm:$0x7f] %v905
        %944 = vst [vmem:[#allocation2 + $0x268] sm:$0x7f] %v908
        %945 = vst [vmem:[#allocation2 + $0x2f0] sm:$0x7f] %v911
        %946 = vst [vmem:[#allocation2 + $0x2f8] sm:$0x7f] %v914
        %947 = vst [vmem:[#allocation2 + $0x380] sm:$0x7f] %v917
        %948 = vst [vmem:[#allocation2 + $0x388] sm:$0x7f] %v920
        %s949 = scalar_lea.vmem %s223, 32
        %v950 = vld [vmem:[%s949] sm:$0x7f]
        %v951 = vld [vmem:[%s949 + $0x8] sm:$0x7f]
        %v952 = vld [vmem:[%s949 + $0x20] sm:$0x7f]
        %v953 = vld [vmem:[%s949 + $0x28] sm:$0x7f]
        %v954 = vld [vmem:[%s949 + $0x40] sm:$0x7f]
        %v955 = vld [vmem:[%s949 + $0x48] sm:$0x7f]
        %v956 = vld [vmem:[%s949 + $0x60] sm:$0x7f]
        %v957 = vld [vmem:[%s949 + $0x68] sm:$0x7f]
        %v958 = vld [vmem:[%s949 + $0x80] sm:$0x7f]
        %v959 = vld [vmem:[%s949 + $0x88] sm:$0x7f]
        %v960 = vld [vmem:[%s949 + $0xa0] sm:$0x7f]
        %v961 = vld [vmem:[%s949 + $0xa8] sm:$0x7f]
        %v962 = vld [vmem:[%s949 + $0xc0] sm:$0x7f]
        %v963 = vld [vmem:[%s949 + $0xc8] sm:$0x7f]
        %964 = vst [vmem:[#allocation2 + $0x30] sm:$0x7f] %v950
        %965 = vst [vmem:[#allocation2 + $0x38] sm:$0x7f] %v951
        %966 = vst [vmem:[#allocation2 + $0xc0] sm:$0x7f] %v952
        %967 = vst [vmem:[#allocation2 + $0xc8] sm:$0x7f] %v953
        %968 = vst [vmem:[#allocation2 + $0x150] sm:$0x7f] %v954
        %969 = vst [vmem:[#allocation2 + $0x158] sm:$0x7f] %v955
        %970 = vst [vmem:[#allocation2 + $0x1e0] sm:$0x7f] %v956
        %971 = vst [vmem:[#allocation2 + $0x1e8] sm:$0x7f] %v957
        %972 = vst [vmem:[#allocation2 + $0x270] sm:$0x7f] %v958
        %973 = vst [vmem:[#allocation2 + $0x278] sm:$0x7f] %v959
        %974 = vst [vmem:[#allocation2 + $0x300] sm:$0x7f] %v960
        %975 = vst [vmem:[#allocation2 + $0x308] sm:$0x7f] %v961
        %976 = vst [vmem:[#allocation2 + $0x390] sm:$0x7f] %v962
        %977 = vst [vmem:[#allocation2 + $0x398] sm:$0x7f] %v963
        %v978 = vld [vmem:[%s949] sm:$0xfe]
        %v979 = vld [vmem:[%s949 + $0x8] sm:$0xfe]
        %v980 = vld [vmem:[%s949 + $0x20] sm:$0xfe]
        %v981 = vld [vmem:[%s949 + $0x28] sm:$0xfe]
        %v982 = vld [vmem:[%s949 + $0x40] sm:$0xfe]
        %v983 = vld [vmem:[%s949 + $0x48] sm:$0xfe]
        %v984 = vld [vmem:[%s949 + $0x60] sm:$0xfe]
        %v985 = vld [vmem:[%s949 + $0x68] sm:$0xfe]
        %v986 = vld [vmem:[%s949 + $0x80] sm:$0xfe]
        %v987 = vld [vmem:[%s949 + $0x88] sm:$0xfe]
        %v988 = vld [vmem:[%s949 + $0xa0] sm:$0xfe]
        %v989 = vld [vmem:[%s949 + $0xa8] sm:$0xfe]
        %v990 = vld [vmem:[%s949 + $0xc0] sm:$0xfe]
        %v991 = vld [vmem:[%s949 + $0xc8] sm:$0xfe]
        %v1006 = vrot.slane %v978, 1
        %v1007 = vrot.slane %v979, 1
        %v1008 = vrot.slane %v980, 1
        %v1009 = vrot.slane %v981, 1
        %v1010 = vrot.slane %v982, 1
        %v1011 = vrot.slane %v983, 1
        %v1012 = vrot.slane %v984, 1
        %v1013 = vrot.slane %v985, 1
        %v1014 = vrot.slane %v986, 1
        %v1015 = vrot.slane %v987, 1
        %v1016 = vrot.slane %v988, 1
        %v1017 = vrot.slane %v989, 1
        %v1018 = vrot.slane %v990, 1
        %v1019 = vrot.slane %v991, 1
        %1034 = vst [vmem:[#allocation2 + $0x40] sm:$0x7f] %v1006
        %1035 = vst [vmem:[#allocation2 + $0x48] sm:$0x7f] %v1007
        %1036 = vst [vmem:[#allocation2 + $0xd0] sm:$0x7f] %v1008
        %1037 = vst [vmem:[#allocation2 + $0xd8] sm:$0x7f] %v1009
        %1038 = vst [vmem:[#allocation2 + $0x160] sm:$0x7f] %v1010
        %1039 = vst [vmem:[#allocation2 + $0x168] sm:$0x7f] %v1011
        %1040 = vst [vmem:[#allocation2 + $0x1f0] sm:$0x7f] %v1012
        %1041 = vst [vmem:[#allocation2 + $0x1f8] sm:$0x7f] %v1013
        %1042 = vst [vmem:[#allocation2 + $0x280] sm:$0x7f] %v1014
        %1043 = vst [vmem:[#allocation2 + $0x288] sm:$0x7f] %v1015
        %1044 = vst [vmem:[#allocation2 + $0x310] sm:$0x7f] %v1016
        %1045 = vst [vmem:[#allocation2 + $0x318] sm:$0x7f] %v1017
        %1046 = vst [vmem:[#allocation2 + $0x3a0] sm:$0x7f] %v1018
        %1047 = vst [vmem:[#allocation2 + $0x3a8] sm:$0x7f] %v1019
        %v1048 = vld [vmem:[%s949] sm:$0xfc]
        %v1049 = vld [vmem:[%s949 + $0x8] sm:$0xfc]
        %v1050 = vld [vmem:[%s949 + $0x10] sm:$0x1]
        %v1051 = vld [vmem:[%s949 + $0x18] sm:$0x1]
        %v1052 = vld [vmem:[%s949 + $0x20] sm:$0xfc]
        %v1053 = vld [vmem:[%s949 + $0x28] sm:$0xfc]
        %v1054 = vld [vmem:[%s949 + $0x30] sm:$0x1]
        %v1055 = vld [vmem:[%s949 + $0x38] sm:$0x1]
        %v1056 = vld [vmem:[%s949 + $0x40] sm:$0xfc]
        %v1057 = vld [vmem:[%s949 + $0x48] sm:$0xfc]
        %v1058 = vld [vmem:[%s949 + $0x50] sm:$0x1]
        %v1059 = vld [vmem:[%s949 + $0x58] sm:$0x1]
        %v1060 = vld [vmem:[%s949 + $0x60] sm:$0xfc]
        %v1061 = vld [vmem:[%s949 + $0x68] sm:$0xfc]
        %v1062 = vld [vmem:[%s949 + $0x70] sm:$0x1]
        %v1063 = vld [vmem:[%s949 + $0x78] sm:$0x1]
        %v1064 = vld [vmem:[%s949 + $0x80] sm:$0xfc]
        %v1065 = vld [vmem:[%s949 + $0x88] sm:$0xfc]
        %v1066 = vld [vmem:[%s949 + $0x90] sm:$0x1]
        %v1067 = vld [vmem:[%s949 + $0x98] sm:$0x1]
        %v1068 = vld [vmem:[%s949 + $0xa0] sm:$0xfc]
        %v1069 = vld [vmem:[%s949 + $0xa8] sm:$0xfc]
        %v1070 = vld [vmem:[%s949 + $0xb0] sm:$0x1]
        %v1071 = vld [vmem:[%s949 + $0xb8] sm:$0x1]
        %v1072 = vld [vmem:[%s949 + $0xc0] sm:$0xfc]
        %v1073 = vld [vmem:[%s949 + $0xc8] sm:$0xfc]
        %v1074 = vld [vmem:[%s949 + $0xd0] sm:$0x1]
        %v1075 = vld [vmem:[%s949 + $0xd8] sm:$0x1]
        %v1104 = vrot.slane %v1048, 2
        %v1105 = vrot.slane %v1050, 2
        %v1106 = vsel %vm878, %v1104, %v1105
        %v1107 = vrot.slane %v1049, 2
        %v1108 = vrot.slane %v1051, 2
        %v1109 = vsel %vm878, %v1107, %v1108
        %v1110 = vrot.slane %v1052, 2
        %v1111 = vrot.slane %v1054, 2
        %v1112 = vsel %vm878, %v1110, %v1111
        %v1113 = vrot.slane %v1053, 2
        %v1114 = vrot.slane %v1055, 2
        %v1115 = vsel %vm878, %v1113, %v1114
        %v1116 = vrot.slane %v1056, 2
        %v1117 = vrot.slane %v1058, 2
        %v1118 = vsel %vm878, %v1116, %v1117
        %v1119 = vrot.slane %v1057, 2
        %v1120 = vrot.slane %v1059, 2
        %v1121 = vsel %vm878, %v1119, %v1120
        %v1122 = vrot.slane %v1060, 2
        %v1123 = vrot.slane %v1062, 2
        %v1124 = vsel %vm878, %v1122, %v1123
        %v1125 = vrot.slane %v1061, 2
        %v1126 = vrot.slane %v1063, 2
        %v1127 = vsel %vm878, %v1125, %v1126
        %v1128 = vrot.slane %v1064, 2
        %v1129 = vrot.slane %v1066, 2
        %v1130 = vsel %vm878, %v1128, %v1129
        %v1131 = vrot.slane %v1065, 2
        %v1132 = vrot.slane %v1067, 2
        %v1133 = vsel %vm878, %v1131, %v1132
        %v1134 = vrot.slane %v1068, 2
        %v1135 = vrot.slane %v1070, 2
        %v1136 = vsel %vm878, %v1134, %v1135
        %v1137 = vrot.slane %v1069, 2
        %v1138 = vrot.slane %v1071, 2
        %v1139 = vsel %vm878, %v1137, %v1138
        %v1140 = vrot.slane %v1072, 2
        %v1141 = vrot.slane %v1074, 2
        %v1142 = vsel %vm878, %v1140, %v1141
        %v1143 = vrot.slane %v1073, 2
        %v1144 = vrot.slane %v1075, 2
        %v1145 = vsel %vm878, %v1143, %v1144
        %1160 = vst [vmem:[#allocation2 + $0x50] sm:$0x7f] %v1106
        %1161 = vst [vmem:[#allocation2 + $0x58] sm:$0x7f] %v1109
        %1162 = vst [vmem:[#allocation2 + $0xe0] sm:$0x7f] %v1112
        %1163 = vst [vmem:[#allocation2 + $0xe8] sm:$0x7f] %v1115
        %1164 = vst [vmem:[#allocation2 + $0x170] sm:$0x7f] %v1118
        %1165 = vst [vmem:[#allocation2 + $0x178] sm:$0x7f] %v1121
        %1166 = vst [vmem:[#allocation2 + $0x200] sm:$0x7f] %v1124
        %1167 = vst [vmem:[#allocation2 + $0x208] sm:$0x7f] %v1127
        %1168 = vst [vmem:[#allocation2 + $0x290] sm:$0x7f] %v1130
        %1169 = vst [vmem:[#allocation2 + $0x298] sm:$0x7f] %v1133
        %1170 = vst [vmem:[#allocation2 + $0x320] sm:$0x7f] %v1136
        %1171 = vst [vmem:[#allocation2 + $0x328] sm:$0x7f] %v1139
        %1172 = vst [vmem:[#allocation2 + $0x3b0] sm:$0x7f] %v1142
        %1173 = vst [vmem:[#allocation2 + $0x3b8] sm:$0x7f] %v1145
        %s1174 = scalar_lea.vmem %s223, 64
        %v1175 = vld [vmem:[%s1174] sm:$0x7f]
        %v1176 = vld [vmem:[%s1174 + $0x8] sm:$0x7f]
        %v1177 = vld [vmem:[%s1174 + $0x20] sm:$0x7f]
        %v1178 = vld [vmem:[%s1174 + $0x28] sm:$0x7f]
        %v1179 = vld [vmem:[%s1174 + $0x40] sm:$0x7f]
        %v1180 = vld [vmem:[%s1174 + $0x48] sm:$0x7f]
        %v1181 = vld [vmem:[%s1174 + $0x60] sm:$0x7f]
        %v1182 = vld [vmem:[%s1174 + $0x68] sm:$0x7f]
        %v1183 = vld [vmem:[%s1174 + $0x80] sm:$0x7f]
        %v1184 = vld [vmem:[%s1174 + $0x88] sm:$0x7f]
        %v1185 = vld [vmem:[%s1174 + $0xa0] sm:$0x7f]
        %v1186 = vld [vmem:[%s1174 + $0xa8] sm:$0x7f]
        %v1187 = vld [vmem:[%s1174 + $0xc0] sm:$0x7f]
        %v1188 = vld [vmem:[%s1174 + $0xc8] sm:$0x7f]
        %1189 = vst [vmem:[#allocation2 + $0x60] sm:$0x7f] %v1175
        %1190 = vst [vmem:[#allocation2 + $0x68] sm:$0x7f] %v1176
        %1191 = vst [vmem:[#allocation2 + $0xf0] sm:$0x7f] %v1177
        %1192 = vst [vmem:[#allocation2 + $0xf8] sm:$0x7f] %v1178
        %1193 = vst [vmem:[#allocation2 + $0x180] sm:$0x7f] %v1179
        %1194 = vst [vmem:[#allocation2 + $0x188] sm:$0x7f] %v1180
        %1195 = vst [vmem:[#allocation2 + $0x210] sm:$0x7f] %v1181
        %1196 = vst [vmem:[#allocation2 + $0x218] sm:$0x7f] %v1182
        %1197 = vst [vmem:[#allocation2 + $0x2a0] sm:$0x7f] %v1183
        %1198 = vst [vmem:[#allocation2 + $0x2a8] sm:$0x7f] %v1184
        %1199 = vst [vmem:[#allocation2 + $0x330] sm:$0x7f] %v1185
        %1200 = vst [vmem:[#allocation2 + $0x338] sm:$0x7f] %v1186
        %1201 = vst [vmem:[#allocation2 + $0x3c0] sm:$0x7f] %v1187
        %1202 = vst [vmem:[#allocation2 + $0x3c8] sm:$0x7f] %v1188
        %v1203 = vld [vmem:[%s1174] sm:$0xfe]
        %v1204 = vld [vmem:[%s1174 + $0x8] sm:$0xfe]
        %v1205 = vld [vmem:[%s1174 + $0x20] sm:$0xfe]
        %v1206 = vld [vmem:[%s1174 + $0x28] sm:$0xfe]
        %v1207 = vld [vmem:[%s1174 + $0x40] sm:$0xfe]
        %v1208 = vld [vmem:[%s1174 + $0x48] sm:$0xfe]
        %v1209 = vld [vmem:[%s1174 + $0x60] sm:$0xfe]
        %v1210 = vld [vmem:[%s1174 + $0x68] sm:$0xfe]
        %v1211 = vld [vmem:[%s1174 + $0x80] sm:$0xfe]
        %v1212 = vld [vmem:[%s1174 + $0x88] sm:$0xfe]
        %v1213 = vld [vmem:[%s1174 + $0xa0] sm:$0xfe]
        %v1214 = vld [vmem:[%s1174 + $0xa8] sm:$0xfe]
        %v1215 = vld [vmem:[%s1174 + $0xc0] sm:$0xfe]
        %v1216 = vld [vmem:[%s1174 + $0xc8] sm:$0xfe]
        %v1231 = vrot.slane %v1203, 1
        %v1232 = vrot.slane %v1204, 1
        %v1233 = vrot.slane %v1205, 1
        %v1234 = vrot.slane %v1206, 1
        %v1235 = vrot.slane %v1207, 1
        %v1236 = vrot.slane %v1208, 1
        %v1237 = vrot.slane %v1209, 1
        %v1238 = vrot.slane %v1210, 1
        %v1239 = vrot.slane %v1211, 1
        %v1240 = vrot.slane %v1212, 1
        %v1241 = vrot.slane %v1213, 1
        %v1242 = vrot.slane %v1214, 1
        %v1243 = vrot.slane %v1215, 1
        %v1244 = vrot.slane %v1216, 1
        %1259 = vst [vmem:[#allocation2 + $0x70] sm:$0x7f] %v1231
        %1260 = vst [vmem:[#allocation2 + $0x78] sm:$0x7f] %v1232
        %1261 = vst [vmem:[#allocation2 + $0x100] sm:$0x7f] %v1233
        %1262 = vst [vmem:[#allocation2 + $0x108] sm:$0x7f] %v1234
        %1263 = vst [vmem:[#allocation2 + $0x190] sm:$0x7f] %v1235
        %1264 = vst [vmem:[#allocation2 + $0x198] sm:$0x7f] %v1236
        %1265 = vst [vmem:[#allocation2 + $0x220] sm:$0x7f] %v1237
        %1266 = vst [vmem:[#allocation2 + $0x228] sm:$0x7f] %v1238
        %1267 = vst [vmem:[#allocation2 + $0x2b0] sm:$0x7f] %v1239
        %1268 = vst [vmem:[#allocation2 + $0x2b8] sm:$0x7f] %v1240
        %1269 = vst [vmem:[#allocation2 + $0x340] sm:$0x7f] %v1241
        %1270 = vst [vmem:[#allocation2 + $0x348] sm:$0x7f] %v1242
        %1271 = vst [vmem:[#allocation2 + $0x3d0] sm:$0x7f] %v1243
        %1272 = vst [vmem:[#allocation2 + $0x3d8] sm:$0x7f] %v1244
        %v1273 = vld [vmem:[%s1174] sm:$0xfc]
        %v1274 = vld [vmem:[%s1174 + $0x8] sm:$0xfc]
        %v1275 = vld [vmem:[%s1174 + $0x10] sm:$0x1]
        %v1276 = vld [vmem:[%s1174 + $0x18] sm:$0x1]
        %v1277 = vld [vmem:[%s1174 + $0x20] sm:$0xfc]
        %v1278 = vld [vmem:[%s1174 + $0x28] sm:$0xfc]
        %v1279 = vld [vmem:[%s1174 + $0x30] sm:$0x1]
        %v1280 = vld [vmem:[%s1174 + $0x38] sm:$0x1]
        %v1281 = vld [vmem:[%s1174 + $0x40] sm:$0xfc]
        %v1282 = vld [vmem:[%s1174 + $0x48] sm:$0xfc]
        %v1283 = vld [vmem:[%s1174 + $0x50] sm:$0x1]
        %v1284 = vld [vmem:[%s1174 + $0x58] sm:$0x1]
        %v1285 = vld [vmem:[%s1174 + $0x60] sm:$0xfc]
        %v1286 = vld [vmem:[%s1174 + $0x68] sm:$0xfc]
        %v1287 = vld [vmem:[%s1174 + $0x70] sm:$0x1]
        %v1288 = vld [vmem:[%s1174 + $0x78] sm:$0x1]
        %v1289 = vld [vmem:[%s1174 + $0x80] sm:$0xfc]
        %v1290 = vld [vmem:[%s1174 + $0x88] sm:$0xfc]
        %v1291 = vld [vmem:[%s1174 + $0x90] sm:$0x1]
        %v1292 = vld [vmem:[%s1174 + $0x98] sm:$0x1]
        %v1293 = vld [vmem:[%s1174 + $0xa0] sm:$0xfc]
        %v1294 = vld [vmem:[%s1174 + $0xa8] sm:$0xfc]
        %v1295 = vld [vmem:[%s1174 + $0xb0] sm:$0x1]
        %v1296 = vld [vmem:[%s1174 + $0xb8] sm:$0x1]
        %v1297 = vld [vmem:[%s1174 + $0xc0] sm:$0xfc]
        %v1298 = vld [vmem:[%s1174 + $0xc8] sm:$0xfc]
        %v1299 = vld [vmem:[%s1174 + $0xd0] sm:$0x1]
        %v1300 = vld [vmem:[%s1174 + $0xd8] sm:$0x1]
        %v1329 = vrot.slane %v1273, 2
        %v1330 = vrot.slane %v1275, 2
        %v1331 = vsel %vm878, %v1329, %v1330
        %v1332 = vrot.slane %v1274, 2
        %v1333 = vrot.slane %v1276, 2
        %v1334 = vsel %vm878, %v1332, %v1333
        %v1335 = vrot.slane %v1277, 2
        %v1336 = vrot.slane %v1279, 2
        %v1337 = vsel %vm878, %v1335, %v1336
        %v1338 = vrot.slane %v1278, 2
        %v1339 = vrot.slane %v1280, 2
        %v1340 = vsel %vm878, %v1338, %v1339
        %v1341 = vrot.slane %v1281, 2
        %v1342 = vrot.slane %v1283, 2
        %v1343 = vsel %vm878, %v1341, %v1342
        %v1344 = vrot.slane %v1282, 2
        %v1345 = vrot.slane %v1284, 2
        %v1346 = vsel %vm878, %v1344, %v1345
        %v1347 = vrot.slane %v1285, 2
        %v1348 = vrot.slane %v1287, 2
        %v1349 = vsel %vm878, %v1347, %v1348
        %v1350 = vrot.slane %v1286, 2
        %v1351 = vrot.slane %v1288, 2
        %v1352 = vsel %vm878, %v1350, %v1351
        %v1353 = vrot.slane %v1289, 2
        %v1354 = vrot.slane %v1291, 2
        %v1355 = vsel %vm878, %v1353, %v1354
        %v1356 = vrot.slane %v1290, 2
        %v1357 = vrot.slane %v1292, 2
        %v1358 = vsel %vm878, %v1356, %v1357
        %v1359 = vrot.slane %v1293, 2
        %v1360 = vrot.slane %v1295, 2
        %v1361 = vsel %vm878, %v1359, %v1360
        %v1362 = vrot.slane %v1294, 2
        %v1363 = vrot.slane %v1296, 2
        %v1364 = vsel %vm878, %v1362, %v1363
        %v1365 = vrot.slane %v1297, 2
        %v1366 = vrot.slane %v1299, 2
        %v1367 = vsel %vm878, %v1365, %v1366
        %v1368 = vrot.slane %v1298, 2
        %v1369 = vrot.slane %v1300, 2
        %v1370 = vsel %vm878, %v1368, %v1369
        %1385 = vst [vmem:[#allocation2 + $0x80] sm:$0x7f] %v1331
        %1386 = vst [vmem:[#allocation2 + $0x88] sm:$0x7f] %v1334
        %1387 = vst [vmem:[#allocation2 + $0x110] sm:$0x7f] %v1337
        %1388 = vst [vmem:[#allocation2 + $0x118] sm:$0x7f] %v1340
        %1389 = vst [vmem:[#allocation2 + $0x1a0] sm:$0x7f] %v1343
        %1390 = vst [vmem:[#allocation2 + $0x1a8] sm:$0x7f] %v1346
        %1391 = vst [vmem:[#allocation2 + $0x230] sm:$0x7f] %v1349
        %1392 = vst [vmem:[#allocation2 + $0x238] sm:$0x7f] %v1352
        %1393 = vst [vmem:[#allocation2 + $0x2c0] sm:$0x7f] %v1355
        %1394 = vst [vmem:[#allocation2 + $0x2c8] sm:$0x7f] %v1358
        %1395 = vst [vmem:[#allocation2 + $0x350] sm:$0x7f] %v1361
        %1396 = vst [vmem:[#allocation2 + $0x358] sm:$0x7f] %v1364
        %1397 = vst [vmem:[#allocation2 + $0x3e0] sm:$0x7f] %v1367
        %1398 = vst [vmem:[#allocation2 + $0x3e8] sm:$0x7f] %v1370
        %v1399 = vld [vmem:[#allocation2] sm:$0xff]
        %v1400 = vld [vmem:[#allocation2 + $0x8] sm:$0xff]
        %v1401 = vld [vmem:[#allocation2 + $0x10] sm:$0xff]
        %v1402 = vld [vmem:[#allocation2 + $0x18] sm:$0xff]
        %v1403 = vld [vmem:[#allocation2 + $0x20] sm:$0xff]
        %v1404 = vld [vmem:[#allocation2 + $0x28] sm:$0xff]
        %v1405 = vld [vmem:[#allocation2 + $0x30] sm:$0xff]
        %v1406 = vld [vmem:[#allocation2 + $0x38] sm:$0xff]
        %v1407 = vld [vmem:[#allocation2 + $0x40] sm:$0xff]
        %v1408 = vld [vmem:[#allocation2 + $0x48] sm:$0xff]
        %v1409 = vld [vmem:[#allocation2 + $0x50] sm:$0xff]
        %v1410 = vld [vmem:[#allocation2 + $0x58] sm:$0xff]
        %v1411 = vld [vmem:[#allocation2 + $0x60] sm:$0xff]
        %v1412 = vld [vmem:[#allocation2 + $0x68] sm:$0xff]
        %v1413 = vld [vmem:[#allocation2 + $0x70] sm:$0xff]
        %v1414 = vld [vmem:[#allocation2 + $0x78] sm:$0xff]
        %v1415 = vld [vmem:[#allocation2 + $0x80] sm:$0xff]
        %v1416 = vld [vmem:[#allocation2 + $0x88] sm:$0xff]
        %v1417 = vld [vmem:[#allocation2 + $0x90] sm:$0xff]
        %v1418 = vld [vmem:[#allocation2 + $0x98] sm:$0xff]
        %v1419 = vld [vmem:[#allocation2 + $0xa0] sm:$0xff]
        %v1420 = vld [vmem:[#allocation2 + $0xa8] sm:$0xff]
        %v1421 = vld [vmem:[#allocation2 + $0xb0] sm:$0xff]
        %v1422 = vld [vmem:[#allocation2 + $0xb8] sm:$0xff]
        %v1423 = vld [vmem:[#allocation2 + $0xc0] sm:$0xff]
        %v1424 = vld [vmem:[#allocation2 + $0xc8] sm:$0xff]
        %v1425 = vld [vmem:[#allocation2 + $0xd0] sm:$0xff]
        %v1426 = vld [vmem:[#allocation2 + $0xd8] sm:$0xff]
        %v1427 = vld [vmem:[#allocation2 + $0xe0] sm:$0xff]
        %v1428 = vld [vmem:[#allocation2 + $0xe8] sm:$0xff]
        %v1429 = vld [vmem:[#allocation2 + $0xf0] sm:$0xff]
        %v1430 = vld [vmem:[#allocation2 + $0xf8] sm:$0xff]
        %v1431 = vld [vmem:[#allocation2 + $0x100] sm:$0xff]
        %v1432 = vld [vmem:[#allocation2 + $0x108] sm:$0xff]
        %v1433 = vld [vmem:[#allocation2 + $0x110] sm:$0xff]
        %v1434 = vld [vmem:[#allocation2 + $0x118] sm:$0xff]
        %v1435 = vld [vmem:[#allocation2 + $0x120] sm:$0xff]
        %v1436 = vld [vmem:[#allocation2 + $0x128] sm:$0xff]
        %v1437 = vld [vmem:[#allocation2 + $0x130] sm:$0xff]
        %v1438 = vld [vmem:[#allocation2 + $0x138] sm:$0xff]
        %v1439 = vld [vmem:[#allocation2 + $0x140] sm:$0xff]
        %v1440 = vld [vmem:[#allocation2 + $0x148] sm:$0xff]
        %v1441 = vld [vmem:[#allocation2 + $0x150] sm:$0xff]
        %v1442 = vld [vmem:[#allocation2 + $0x158] sm:$0xff]
        %v1443 = vld [vmem:[#allocation2 + $0x160] sm:$0xff]
        %v1444 = vld [vmem:[#allocation2 + $0x168] sm:$0xff]
        %v1445 = vld [vmem:[#allocation2 + $0x170] sm:$0xff]
        %v1446 = vld [vmem:[#allocation2 + $0x178] sm:$0xff]
        %v1447 = vld [vmem:[#allocation2 + $0x180] sm:$0xff]
        %v1448 = vld [vmem:[#allocation2 + $0x188] sm:$0xff]
        %v1449 = vld [vmem:[#allocation2 + $0x190] sm:$0xff]
        %v1450 = vld [vmem:[#allocation2 + $0x198] sm:$0xff]
        %v1451 = vld [vmem:[#allocation2 + $0x1a0] sm:$0xff]
        %v1452 = vld [vmem:[#allocation2 + $0x1a8] sm:$0xff]
        %v1453 = vld [vmem:[#allocation2 + $0x1b0] sm:$0xff]
        %v1454 = vld [vmem:[#allocation2 + $0x1b8] sm:$0xff]
        %v1455 = vld [vmem:[#allocation2 + $0x1c0] sm:$0xff]
        %v1456 = vld [vmem:[#allocation2 + $0x1c8] sm:$0xff]
        %v1457 = vld [vmem:[#allocation2 + $0x1d0] sm:$0xff]
        %v1458 = vld [vmem:[#allocation2 + $0x1d8] sm:$0xff]
        %v1459 = vld [vmem:[#allocation2 + $0x1e0] sm:$0xff]
        %v1460 = vld [vmem:[#allocation2 + $0x1e8] sm:$0xff]
        %v1461 = vld [vmem:[#allocation2 + $0x1f0] sm:$0xff]
        %v1462 = vld [vmem:[#allocation2 + $0x1f8] sm:$0xff]
        %v1463 = vld [vmem:[#allocation2 + $0x200] sm:$0xff]
        %v1464 = vld [vmem:[#allocation2 + $0x208] sm:$0xff]
        %v1465 = vld [vmem:[#allocation2 + $0x210] sm:$0xff]
        %v1466 = vld [vmem:[#allocation2 + $0x218] sm:$0xff]
        %v1467 = vld [vmem:[#allocation2 + $0x220] sm:$0xff]
        %v1468 = vld [vmem:[#allocation2 + $0x228] sm:$0xff]
        %v1469 = vld [vmem:[#allocation2 + $0x230] sm:$0xff]
        %v1470 = vld [vmem:[#allocation2 + $0x238] sm:$0xff]
        %v1471 = vld [vmem:[#allocation2 + $0x240] sm:$0xff]
        %v1472 = vld [vmem:[#allocation2 + $0x248] sm:$0xff]
        %v1473 = vld [vmem:[#allocation2 + $0x250] sm:$0xff]
        %v1474 = vld [vmem:[#allocation2 + $0x258] sm:$0xff]
        %v1475 = vld [vmem:[#allocation2 + $0x260] sm:$0xff]
        %v1476 = vld [vmem:[#allocation2 + $0x268] sm:$0xff]
        %v1477 = vld [vmem:[#allocation2 + $0x270] sm:$0xff]
        %v1478 = vld [vmem:[#allocation2 + $0x278] sm:$0xff]
        %v1479 = vld [vmem:[#allocation2 + $0x280] sm:$0xff]
        %v1480 = vld [vmem:[#allocation2 + $0x288] sm:$0xff]
        %v1481 = vld [vmem:[#allocation2 + $0x290] sm:$0xff]
        %v1482 = vld [vmem:[#allocation2 + $0x298] sm:$0xff]
        %v1483 = vld [vmem:[#allocation2 + $0x2a0] sm:$0xff]
        %v1484 = vld [vmem:[#allocation2 + $0x2a8] sm:$0xff]
        %v1485 = vld [vmem:[#allocation2 + $0x2b0] sm:$0xff]
        %v1486 = vld [vmem:[#allocation2 + $0x2b8] sm:$0xff]
        %v1487 = vld [vmem:[#allocation2 + $0x2c0] sm:$0xff]
        %v1488 = vld [vmem:[#allocation2 + $0x2c8] sm:$0xff]
        %v1489 = vld [vmem:[#allocation2 + $0x2d0] sm:$0xff]
        %v1490 = vld [vmem:[#allocation2 + $0x2d8] sm:$0xff]
        %v1491 = vld [vmem:[#allocation2 + $0x2e0] sm:$0xff]
        %v1492 = vld [vmem:[#allocation2 + $0x2e8] sm:$0xff]
        %v1493 = vld [vmem:[#allocation2 + $0x2f0] sm:$0xff]
        %v1494 = vld [vmem:[#allocation2 + $0x2f8] sm:$0xff]
        %v1495 = vld [vmem:[#allocation2 + $0x300] sm:$0xff]
        %v1496 = vld [vmem:[#allocation2 + $0x308] sm:$0xff]
        %v1497 = vld [vmem:[#allocation2 + $0x310] sm:$0xff]
        %v1498 = vld [vmem:[#allocation2 + $0x318] sm:$0xff]
        %v1499 = vld [vmem:[#allocation2 + $0x320] sm:$0xff]
        %v1500 = vld [vmem:[#allocation2 + $0x328] sm:$0xff]
        %v1501 = vld [vmem:[#allocation2 + $0x330] sm:$0xff]
        %v1502 = vld [vmem:[#allocation2 + $0x338] sm:$0xff]
        %v1503 = vld [vmem:[#allocation2 + $0x340] sm:$0xff]
        %v1504 = vld [vmem:[#allocation2 + $0x348] sm:$0xff]
        %v1505 = vld [vmem:[#allocation2 + $0x350] sm:$0xff]
        %v1506 = vld [vmem:[#allocation2 + $0x358] sm:$0xff]
        %v1507 = vld [vmem:[#allocation2 + $0x360] sm:$0xff]
        %v1508 = vld [vmem:[#allocation2 + $0x368] sm:$0xff]
        %v1509 = vld [vmem:[#allocation2 + $0x370] sm:$0xff]
        %v1510 = vld [vmem:[#allocation2 + $0x378] sm:$0xff]
        %v1511 = vld [vmem:[#allocation2 + $0x380] sm:$0xff]
        %v1512 = vld [vmem:[#allocation2 + $0x388] sm:$0xff]
        %v1513 = vld [vmem:[#allocation2 + $0x390] sm:$0xff]
        %v1514 = vld [vmem:[#allocation2 + $0x398] sm:$0xff]
        %v1515 = vld [vmem:[#allocation2 + $0x3a0] sm:$0xff]
        %v1516 = vld [vmem:[#allocation2 + $0x3a8] sm:$0xff]
        %v1517 = vld [vmem:[#allocation2 + $0x3b0] sm:$0xff]
        %v1518 = vld [vmem:[#allocation2 + $0x3b8] sm:$0xff]
        %v1519 = vld [vmem:[#allocation2 + $0x3c0] sm:$0xff]
        %v1520 = vld [vmem:[#allocation2 + $0x3c8] sm:$0xff]
        %v1521 = vld [vmem:[#allocation2 + $0x3d0] sm:$0xff]
        %v1522 = vld [vmem:[#allocation2 + $0x3d8] sm:$0xff]
        %v1523 = vld [vmem:[#allocation2 + $0x3e0] sm:$0xff]
        %v1524 = vld [vmem:[#allocation2 + $0x3e8] sm:$0xff]
        %v1525 = vpack.c.bf16 %v1417, %v1399
        %v1526 = vpack.c.bf16 %v1418, %v1400
        %v1527 = vpack.c.bf16 %v1419, %v1401
        %v1528 = vpack.c.bf16 %v1420, %v1402
        %v1529 = vpack.c.bf16 %v1421, %v1403
        %v1530 = vpack.c.bf16 %v1422, %v1404
        %v1531 = vpack.c.bf16 %v1423, %v1405
        %v1532 = vpack.c.bf16 %v1424, %v1406
        %v1533 = vpack.c.bf16 %v1425, %v1407
        %v1534 = vpack.c.bf16 %v1426, %v1408
        %v1535 = vpack.c.bf16 %v1427, %v1409
        %v1536 = vpack.c.bf16 %v1428, %v1410
        %v1537 = vpack.c.bf16 %v1429, %v1411
        %v1538 = vpack.c.bf16 %v1430, %v1412
        %v1539 = vpack.c.bf16 %v1431, %v1413
        %v1540 = vpack.c.bf16 %v1432, %v1414
        %v1541 = vpack.c.bf16 %v1433, %v1415
        %v1542 = vpack.c.bf16 %v1434, %v1416
        %v1543 = vpack.c.bf16 %v1453, %v1435
        %v1544 = vpack.c.bf16 %v1454, %v1436
        %v1545 = vpack.c.bf16 %v1455, %v1437
        %v1546 = vpack.c.bf16 %v1456, %v1438
        %v1547 = vpack.c.bf16 %v1457, %v1439
        %v1548 = vpack.c.bf16 %v1458, %v1440
        %v1549 = vpack.c.bf16 %v1459, %v1441
        %v1550 = vpack.c.bf16 %v1460, %v1442
        %v1551 = vpack.c.bf16 %v1461, %v1443
        %v1552 = vpack.c.bf16 %v1462, %v1444
        %v1553 = vpack.c.bf16 %v1463, %v1445
        %v1554 = vpack.c.bf16 %v1464, %v1446
        %v1555 = vpack.c.bf16 %v1465, %v1447
        %v1556 = vpack.c.bf16 %v1466, %v1448
        %v1557 = vpack.c.bf16 %v1467, %v1449
        %v1558 = vpack.c.bf16 %v1468, %v1450
        %v1559 = vpack.c.bf16 %v1469, %v1451
        %v1560 = vpack.c.bf16 %v1470, %v1452
        %v1561 = vpack.c.bf16 %v1489, %v1471
        %v1562 = vpack.c.bf16 %v1490, %v1472
        %v1563 = vpack.c.bf16 %v1491, %v1473
        %v1564 = vpack.c.bf16 %v1492, %v1474
        %v1565 = vpack.c.bf16 %v1493, %v1475
        %v1566 = vpack.c.bf16 %v1494, %v1476
        %v1567 = vpack.c.bf16 %v1495, %v1477
        %v1568 = vpack.c.bf16 %v1496, %v1478
        %v1569 = vpack.c.bf16 %v1497, %v1479
        %v1570 = vpack.c.bf16 %v1498, %v1480
        %v1571 = vpack.c.bf16 %v1499, %v1481
        %v1572 = vpack.c.bf16 %v1500, %v1482
        %v1573 = vpack.c.bf16 %v1501, %v1483
        %v1574 = vpack.c.bf16 %v1502, %v1484
        %v1575 = vpack.c.bf16 %v1503, %v1485
        %v1576 = vpack.c.bf16 %v1504, %v1486
        %v1577 = vpack.c.bf16 %v1505, %v1487
        %v1578 = vpack.c.bf16 %v1506, %v1488
        %v1579 = vpack.c.bf16 %v1507, %v1507
        %v1580 = vpack.c.bf16 %v1508, %v1508
        %v1581 = vpack.c.bf16 %v1509, %v1509
        %v1582 = vpack.c.bf16 %v1510, %v1510
        %v1583 = vpack.c.bf16 %v1511, %v1511
        %v1584 = vpack.c.bf16 %v1512, %v1512
        %v1585 = vpack.c.bf16 %v1513, %v1513
        %v1586 = vpack.c.bf16 %v1514, %v1514
        %v1587 = vpack.c.bf16 %v1515, %v1515
        %v1588 = vpack.c.bf16 %v1516, %v1516
        %v1589 = vpack.c.bf16 %v1517, %v1517
        %v1590 = vpack.c.bf16 %v1518, %v1518
        %v1591 = vpack.c.bf16 %v1519, %v1519
        %v1592 = vpack.c.bf16 %v1520, %v1520
        %v1593 = vpack.c.bf16 %v1521, %v1521
        %v1594 = vpack.c.bf16 %v1522, %v1522
        %v1595 = vpack.c.bf16 %v1523, %v1523
        %v1596 = vpack.c.bf16 %v1524, %v1524
        %v1597 = vld [vmem:[%s1] sm:$0xf]
        %v1598 = vld [vmem:[%s1 + $0x4] sm:$0xf]
        %v1599 = vld [vmem:[%s1 + $0x8] sm:$0xf]
        %v1600 = vld [vmem:[%s1 + $0xc] sm:$0xf]
        %v1601 = vld [vmem:[%s1 + $0x10] sm:$0xf]
        %v1602 = vld [vmem:[%s1 + $0x14] sm:$0xf]
        %v1603 = vld [vmem:[%s1 + $0x18] sm:$0xf]
        %v1604 = vld [vmem:[%s1 + $0x1c] sm:$0xf]
        %v1605 = vld [vmem:[%s1 + $0x20] sm:$0xf]
        %v1606 = vld [vmem:[%s1 + $0x24] sm:$0xf]
        %v1607 = vld [vmem:[%s1 + $0x28] sm:$0xf]
        %v1608 = vld [vmem:[%s1 + $0x2c] sm:$0xf]
        %v1609 = vld [vmem:[%s1 + $0x30] sm:$0xf]
        %v1610 = vld [vmem:[%s1 + $0x34] sm:$0xf]
        %v1611 = vld [vmem:[%s1 + $0x38] sm:$0xf]
        %v1612 = vld [vmem:[%s1 + $0x3c] sm:$0xf]
        %v1613 = vld [vmem:[%s1 + $0x40] sm:$0xf]
        %v1614 = vld [vmem:[%s1 + $0x44] sm:$0xf]
        %v1615 = vld [vmem:[%s1 + $0x48] sm:$0xf]
        %v1616 = vld [vmem:[%s1 + $0x4c] sm:$0xf]
        %v1617 = vld [vmem:[%s1 + $0x50] sm:$0xf]
        %v1618 = vld [vmem:[%s1 + $0x54] sm:$0xf]
        %v1619 = vld [vmem:[%s1 + $0x58] sm:$0xf]
        %v1620 = vld [vmem:[%s1 + $0x5c] sm:$0xf]
        %v1621 = vld [vmem:[%s1 + $0x60] sm:$0xf]
        %v1622 = vld [vmem:[%s1 + $0x64] sm:$0xf]
        %v1623 = vld [vmem:[%s1 + $0x68] sm:$0xf]
        %v1624 = vld [vmem:[%s1 + $0x6c] sm:$0xf]
        %v1625 = vld [vmem:[%s1 + $0x70] sm:$0xf]
        %v1626 = vld [vmem:[%s1 + $0x74] sm:$0xf]
        %v1627 = vld [vmem:[%s1 + $0x78] sm:$0xf]
        %v1628 = vld [vmem:[%s1 + $0x7c] sm:$0xf]
        %v1629 = vld [vmem:[%s1 + $0x80] sm:$0xf]
        %v1630 = vld [vmem:[%s1 + $0x84] sm:$0xf]
        %v1631 = vld [vmem:[%s1 + $0x88] sm:$0xf]
        %v1632 = vld [vmem:[%s1 + $0x8c] sm:$0xf]
        %v1633 = vld [vmem:[%s1 + $0x90] sm:$0xf]
        %v1634 = vld [vmem:[%s1 + $0x94] sm:$0xf]
        %v1635 = vld [vmem:[%s1 + $0x98] sm:$0xf]
        %v1636 = vld [vmem:[%s1 + $0x9c] sm:$0xf]
        %v1637 = vld [vmem:[%s1 + $0xa0] sm:$0xf]
        %v1638 = vld [vmem:[%s1 + $0xa4] sm:$0xf]
        %v1639 = vld [vmem:[%s1 + $0xa8] sm:$0xf]
        %v1640 = vld [vmem:[%s1 + $0xac] sm:$0xf]
        %v1641 = vld [vmem:[%s1 + $0xb0] sm:$0xf]
        %v1642 = vld [vmem:[%s1 + $0xb4] sm:$0xf]
        %v1643 = vld [vmem:[%s1 + $0xb8] sm:$0xf]
        %v1644 = vld [vmem:[%s1 + $0xbc] sm:$0xf]
        %v1645 = vld [vmem:[%s1 + $0xc0] sm:$0xf]
        %v1646 = vld [vmem:[%s1 + $0xc4] sm:$0xf]
        %v1647 = vld [vmem:[%s1 + $0xc8] sm:$0xf]
        %v1648 = vld [vmem:[%s1 + $0xcc] sm:$0xf]
        %v1649 = vld [vmem:[%s1 + $0xd0] sm:$0xf]
        %v1650 = vld [vmem:[%s1 + $0xd4] sm:$0xf]
        %v1651 = vld [vmem:[%s1 + $0xd8] sm:$0xf]
        %v1652 = vld [vmem:[%s1 + $0xdc] sm:$0xf]
        %v1653 = vld [vmem:[%s1 + $0xe0] sm:$0xf]
        %v1654 = vld [vmem:[%s1 + $0xe4] sm:$0xf]
        %v1655 = vld [vmem:[%s1 + $0xe8] sm:$0xf]
        %v1656 = vld [vmem:[%s1 + $0xec] sm:$0xf]
        %v1657 = vld [vmem:[%s1 + $0xf0] sm:$0xf]
        %v1658 = vld [vmem:[%s1 + $0xf4] sm:$0xf]
        %v1659 = vld [vmem:[%s1 + $0xf8] sm:$0xf]
        %v1660 = vld [vmem:[%s1 + $0xfc] sm:$0xf]
        %v1661 = vld [vmem:[%s1 + $0x100] sm:$0xf]
        %v1662 = vld [vmem:[%s1 + $0x104] sm:$0xf]
        %v1663 = vld [vmem:[%s1 + $0x108] sm:$0xf]
        %v1664 = vld [vmem:[%s1 + $0x10c] sm:$0xf]
        %v1665 = vld [vmem:[%s1 + $0x110] sm:$0xf]
        %v1666 = vld [vmem:[%s1 + $0x114] sm:$0xf]
        %v1667 = vld [vmem:[%s1 + $0x118] sm:$0xf]
        %v1668 = vld [vmem:[%s1 + $0x11c] sm:$0xf]
        %v1669 = vld [vmem:[%s1 + $0x120] sm:$0xf]
        %v1670 = vld [vmem:[%s1 + $0x124] sm:$0xf]
        %v1671 = vld [vmem:[%s1 + $0x128] sm:$0xf]
        %v1672 = vld [vmem:[%s1 + $0x12c] sm:$0xf]
        %v1673 = vld [vmem:[%s1 + $0x130] sm:$0xf]
        %v1674 = vld [vmem:[%s1 + $0x134] sm:$0xf]
        %v1675 = vld [vmem:[%s1 + $0x138] sm:$0xf]
        %v1676 = vld [vmem:[%s1 + $0x13c] sm:$0xf]
        %v1677 = vld [vmem:[%s1 + $0x140] sm:$0xf]
        %v1678 = vld [vmem:[%s1 + $0x144] sm:$0xf]
        %v1679 = vld [vmem:[%s1 + $0x148] sm:$0xf]
        %v1680 = vld [vmem:[%s1 + $0x14c] sm:$0xf]
        %v1681 = vld [vmem:[%s1 + $0x150] sm:$0xf]
        %v1682 = vld [vmem:[%s1 + $0x154] sm:$0xf]
        %v1683 = vld [vmem:[%s1 + $0x158] sm:$0xf]
        %v1684 = vld [vmem:[%s1 + $0x15c] sm:$0xf]
        %v1685 = vld [vmem:[%s1 + $0x160] sm:$0xf]
        %v1686 = vld [vmem:[%s1 + $0x164] sm:$0xf]
        %v1687 = vld [vmem:[%s1 + $0x168] sm:$0xf]
        %v1688 = vld [vmem:[%s1 + $0x16c] sm:$0xf]
        %v1689 = vld [vmem:[%s1 + $0x170] sm:$0xf]
        %v1690 = vld [vmem:[%s1 + $0x174] sm:$0xf]
        %v1691 = vld [vmem:[%s1 + $0x178] sm:$0xf]
        %v1692 = vld [vmem:[%s1 + $0x17c] sm:$0xf]
        %v1693 = vld [vmem:[%s1 + $0x180] sm:$0xf]
        %v1694 = vld [vmem:[%s1 + $0x184] sm:$0xf]
        %v1695 = vld [vmem:[%s1 + $0x188] sm:$0xf]
        %v1696 = vld [vmem:[%s1 + $0x18c] sm:$0xf]
        %v1697 = vld [vmem:[%s1 + $0x190] sm:$0xf]
        %v1698 = vld [vmem:[%s1 + $0x194] sm:$0xf]
        %v1699 = vld [vmem:[%s1 + $0x198] sm:$0xf]
        %v1700 = vld [vmem:[%s1 + $0x19c] sm:$0xf]
        %v1701 = vld [vmem:[%s1 + $0x1a0] sm:$0xf]
        %v1702 = vld [vmem:[%s1 + $0x1a4] sm:$0xf]
        %v1703 = vld [vmem:[%s1 + $0x1a8] sm:$0xf]
        %v1704 = vld [vmem:[%s1 + $0x1ac] sm:$0xf]
        %v1705 = vld [vmem:[%s1 + $0x1b0] sm:$0xf]
        %v1706 = vld [vmem:[%s1 + $0x1b4] sm:$0xf]
        %v1707 = vld [vmem:[%s1 + $0x1b8] sm:$0xf]
        %v1708 = vld [vmem:[%s1 + $0x1bc] sm:$0xf]
        %v1709 = vld [vmem:[%s1 + $0x1c0] sm:$0xf]
        %v1710 = vld [vmem:[%s1 + $0x1c4] sm:$0xf]
        %v1711 = vld [vmem:[%s1 + $0x1c8] sm:$0xf]
        %v1712 = vld [vmem:[%s1 + $0x1cc] sm:$0xf]
        %v1713 = vld [vmem:[%s1 + $0x1d0] sm:$0xf]
        %v1714 = vld [vmem:[%s1 + $0x1d4] sm:$0xf]
        %v1715 = vld [vmem:[%s1 + $0x1d8] sm:$0xf]
        %v1716 = vld [vmem:[%s1 + $0x1dc] sm:$0xf]
        %v1717 = vld [vmem:[%s1 + $0x1e0] sm:$0xf]
        %v1718 = vld [vmem:[%s1 + $0x1e4] sm:$0xf]
        %v1719 = vld [vmem:[%s1 + $0x1e8] sm:$0xf]
        %v1720 = vld [vmem:[%s1 + $0x1ec] sm:$0xf]
        %v1721 = vld [vmem:[%s1 + $0x1f0] sm:$0xf]
        %v1722 = vld [vmem:[%s1 + $0x1f4] sm:$0xf]
        %v1723 = vld [vmem:[%s1 + $0x1f8] sm:$0xf]
        %v1724 = vld [vmem:[%s1 + $0x1fc] sm:$0xf]
        %v1725 = vld [vmem:[%s1 + $0x200] sm:$0xf]
        %v1726 = vld [vmem:[%s1 + $0x204] sm:$0xf]
        %v1727 = vld [vmem:[%s1 + $0x208] sm:$0xf]
        %v1728 = vld [vmem:[%s1 + $0x20c] sm:$0xf]
        %v1729 = vld [vmem:[%s1 + $0x210] sm:$0xf]
        %v1730 = vld [vmem:[%s1 + $0x214] sm:$0xf]
        %v1731 = vld [vmem:[%s1 + $0x218] sm:$0xf]
        %v1732 = vld [vmem:[%s1 + $0x21c] sm:$0xf]
        %v1733 = vld [vmem:[%s1 + $0x220] sm:$0xf]
        %v1734 = vld [vmem:[%s1 + $0x224] sm:$0xf]
        %v1735 = vld [vmem:[%s1 + $0x228] sm:$0xf]
        %v1736 = vld [vmem:[%s1 + $0x22c] sm:$0xf]
        %v1737 = vld [vmem:[%s1 + $0x230] sm:$0xf]
        %v1738 = vld [vmem:[%s1 + $0x234] sm:$0xf]
        %v1739 = vld [vmem:[%s1 + $0x238] sm:$0xf]
        %v1740 = vld [vmem:[%s1 + $0x23c] sm:$0xf]
        %v1741 = vld [vmem:[%s1 + $0x240] sm:$0xf]
        %v1742 = vld [vmem:[%s1 + $0x244] sm:$0xf]
        %v1743 = vld [vmem:[%s1 + $0x248] sm:$0xf]
        %v1744 = vld [vmem:[%s1 + $0x24c] sm:$0xf]
        %v1745 = vld [vmem:[%s1 + $0x250] sm:$0xf]
        %v1746 = vld [vmem:[%s1 + $0x254] sm:$0xf]
        %v1747 = vld [vmem:[%s1 + $0x258] sm:$0xf]
        %v1748 = vld [vmem:[%s1 + $0x25c] sm:$0xf]
        %v1749 = vld [vmem:[%s1 + $0x260] sm:$0xf]
        %v1750 = vld [vmem:[%s1 + $0x264] sm:$0xf]
        %v1751 = vld [vmem:[%s1 + $0x268] sm:$0xf]
        %v1752 = vld [vmem:[%s1 + $0x26c] sm:$0xf]
        %v1753 = vld [vmem:[%s1 + $0x270] sm:$0xf]
        %v1754 = vld [vmem:[%s1 + $0x274] sm:$0xf]
        %v1755 = vld [vmem:[%s1 + $0x278] sm:$0xf]
        %v1756 = vld [vmem:[%s1 + $0x27c] sm:$0xf]
        %v1757 = vld [vmem:[%s1 + $0x280] sm:$0xf]
        %v1758 = vld [vmem:[%s1 + $0x284] sm:$0xf]
        %v1759 = vld [vmem:[%s1 + $0x288] sm:$0xf]
        %v1760 = vld [vmem:[%s1 + $0x28c] sm:$0xf]
        %v1761 = vld [vmem:[%s1 + $0x290] sm:$0xf]
        %v1762 = vld [vmem:[%s1 + $0x294] sm:$0xf]
        %v1763 = vld [vmem:[%s1 + $0x298] sm:$0xf]
        %v1764 = vld [vmem:[%s1 + $0x29c] sm:$0xf]
        %v1765 = vld [vmem:[%s1 + $0x2a0] sm:$0xf]
        %v1766 = vld [vmem:[%s1 + $0x2a4] sm:$0xf]
        %v1767 = vld [vmem:[%s1 + $0x2a8] sm:$0xf]
        %v1768 = vld [vmem:[%s1 + $0x2ac] sm:$0xf]
        %v1769 = vld [vmem:[%s1 + $0x2b0] sm:$0xf]
        %v1770 = vld [vmem:[%s1 + $0x2b4] sm:$0xf]
        %v1771 = vld [vmem:[%s1 + $0x2b8] sm:$0xf]
        %v1772 = vld [vmem:[%s1 + $0x2bc] sm:$0xf]
        %v1773 = vld [vmem:[%s1 + $0x2c0] sm:$0xf]
        %v1774 = vld [vmem:[%s1 + $0x2c4] sm:$0xf]
        %v1775 = vld [vmem:[%s1 + $0x2c8] sm:$0xf]
        %v1776 = vld [vmem:[%s1 + $0x2cc] sm:$0xf]
        %v1777 = vld [vmem:[%s1 + $0x2d0] sm:$0xf]
        %v1778 = vld [vmem:[%s1 + $0x2d4] sm:$0xf]
        %v1779 = vld [vmem:[%s1 + $0x2d8] sm:$0xf]
        %v1780 = vld [vmem:[%s1 + $0x2dc] sm:$0xf]
        %v1781 = vld [vmem:[%s1 + $0x2e0] sm:$0xf]
        %v1782 = vld [vmem:[%s1 + $0x2e4] sm:$0xf]
        %v1783 = vld [vmem:[%s1 + $0x2e8] sm:$0xf]
        %v1784 = vld [vmem:[%s1 + $0x2ec] sm:$0xf]
        %v1785 = vld [vmem:[%s1 + $0x2f0] sm:$0xf]
        %v1786 = vld [vmem:[%s1 + $0x2f4] sm:$0xf]
        %v1787 = vld [vmem:[%s1 + $0x2f8] sm:$0xf]
        %v1788 = vld [vmem:[%s1 + $0x2fc] sm:$0xf]
        %v1789 = vld [vmem:[%s1 + $0x300] sm:$0xf]
        %v1790 = vld [vmem:[%s1 + $0x304] sm:$0xf]
        %v1791 = vld [vmem:[%s1 + $0x308] sm:$0xf]
        %v1792 = vld [vmem:[%s1 + $0x30c] sm:$0xf]
        %v1793 = vld [vmem:[%s1 + $0x310] sm:$0xf]
        %v1794 = vld [vmem:[%s1 + $0x314] sm:$0xf]
        %v1795 = vld [vmem:[%s1 + $0x318] sm:$0xf]
        %v1796 = vld [vmem:[%s1 + $0x31c] sm:$0xf]
        %v1797 = vld [vmem:[%s1 + $0x320] sm:$0xf]
        %v1798 = vld [vmem:[%s1 + $0x324] sm:$0xf]
        %v1799 = vld [vmem:[%s1 + $0x328] sm:$0xf]
        %v1800 = vld [vmem:[%s1 + $0x32c] sm:$0xf]
        %v1801 = vld [vmem:[%s1 + $0x330] sm:$0xf]
        %v1802 = vld [vmem:[%s1 + $0x334] sm:$0xf]
        %v1803 = vld [vmem:[%s1 + $0x338] sm:$0xf]
        %v1804 = vld [vmem:[%s1 + $0x33c] sm:$0xf]
        %v1805 = vld [vmem:[%s1 + $0x340] sm:$0xf]
        %v1806 = vld [vmem:[%s1 + $0x344] sm:$0xf]
        %v1807 = vld [vmem:[%s1 + $0x348] sm:$0xf]
        %v1808 = vld [vmem:[%s1 + $0x34c] sm:$0xf]
        %v1809 = vld [vmem:[%s1 + $0x350] sm:$0xf]
        %v1810 = vld [vmem:[%s1 + $0x354] sm:$0xf]
        %v1811 = vld [vmem:[%s1 + $0x358] sm:$0xf]
        %v1812 = vld [vmem:[%s1 + $0x35c] sm:$0xf]
        %v1813 = vld [vmem:[%s1 + $0x360] sm:$0xf]
        %v1814 = vld [vmem:[%s1 + $0x364] sm:$0xf]
        %v1815 = vld [vmem:[%s1 + $0x368] sm:$0xf]
        %v1816 = vld [vmem:[%s1 + $0x36c] sm:$0xf]
        %v1817 = vld [vmem:[%s1 + $0x370] sm:$0xf]
        %v1818 = vld [vmem:[%s1 + $0x374] sm:$0xf]
        %v1819 = vld [vmem:[%s1 + $0x378] sm:$0xf]
        %v1820 = vld [vmem:[%s1 + $0x37c] sm:$0xf]
        %v1821 = vld [vmem:[%s1 + $0x380] sm:$0xf]
        %v1822 = vld [vmem:[%s1 + $0x384] sm:$0xf]
        %v1823 = vld [vmem:[%s1 + $0x388] sm:$0xf]
        %v1824 = vld [vmem:[%s1 + $0x38c] sm:$0xf]
        %v1825 = vld [vmem:[%s1 + $0x390] sm:$0xf]
        %v1826 = vld [vmem:[%s1 + $0x394] sm:$0xf]
        %v1827 = vld [vmem:[%s1 + $0x398] sm:$0xf]
        %v1828 = vld [vmem:[%s1 + $0x39c] sm:$0xf]
        %v1829 = vld [vmem:[%s1 + $0x3a0] sm:$0xf]
        %v1830 = vld [vmem:[%s1 + $0x3a4] sm:$0xf]
        %v1831 = vld [vmem:[%s1 + $0x3a8] sm:$0xf]
        %v1832 = vld [vmem:[%s1 + $0x3ac] sm:$0xf]
        %v1833 = vld [vmem:[%s1 + $0x3b0] sm:$0xf]
        %v1834 = vld [vmem:[%s1 + $0x3b4] sm:$0xf]
        %v1835 = vld [vmem:[%s1 + $0x3b8] sm:$0xf]
        %v1836 = vld [vmem:[%s1 + $0x3bc] sm:$0xf]
        %v1837 = vld [vmem:[%s1 + $0x3c0] sm:$0xf]
        %v1838 = vld [vmem:[%s1 + $0x3c4] sm:$0xf]
        %v1839 = vld [vmem:[%s1 + $0x3c8] sm:$0xf]
        %v1840 = vld [vmem:[%s1 + $0x3cc] sm:$0xf]
        %v1841 = vld [vmem:[%s1 + $0x3d0] sm:$0xf]
        %v1842 = vld [vmem:[%s1 + $0x3d4] sm:$0xf]
        %v1843 = vld [vmem:[%s1 + $0x3d8] sm:$0xf]
        %v1844 = vld [vmem:[%s1 + $0x3dc] sm:$0xf]
        %v1845 = vld [vmem:[%s1 + $0x3e0] sm:$0xf]
        %v1846 = vld [vmem:[%s1 + $0x3e4] sm:$0xf]
        %v1847 = vld [vmem:[%s1 + $0x3e8] sm:$0xf]
        %v1848 = vld [vmem:[%s1 + $0x3ec] sm:$0xf]
        %v1849 = vld [vmem:[%s1 + $0x3f0] sm:$0xf]
        %v1850 = vld [vmem:[%s1 + $0x3f4] sm:$0xf]
        %v1851 = vld [vmem:[%s1 + $0x3f8] sm:$0xf]
        %v1852 = vld [vmem:[%s1 + $0x3fc] sm:$0xf]
        %v1853 = vld [vmem:[%s1 + $0x400] sm:$0xf]
        %v1854 = vld [vmem:[%s1 + $0x404] sm:$0xf]
        %v1855 = vld [vmem:[%s1 + $0x408] sm:$0xf]
        %v1856 = vld [vmem:[%s1 + $0x40c] sm:$0xf]
        %v1857 = vld [vmem:[%s1 + $0x410] sm:$0xf]
        %v1858 = vld [vmem:[%s1 + $0x414] sm:$0xf]
        %v1859 = vld [vmem:[%s1 + $0x418] sm:$0xf]
        %v1860 = vld [vmem:[%s1 + $0x41c] sm:$0xf]
        %v1861 = vld [vmem:[%s1 + $0x420] sm:$0xf]
        %v1862 = vld [vmem:[%s1 + $0x424] sm:$0xf]
        %v1863 = vld [vmem:[%s1 + $0x428] sm:$0xf]
        %v1864 = vld [vmem:[%s1 + $0x42c] sm:$0xf]
        %v1865 = vld [vmem:[%s1 + $0x430] sm:$0xf]
        %v1866 = vld [vmem:[%s1 + $0x434] sm:$0xf]
        %v1867 = vld [vmem:[%s1 + $0x438] sm:$0xf]
        %v1868 = vld [vmem:[%s1 + $0x43c] sm:$0xf]
        %v1869 = vld [vmem:[%s1 + $0x440] sm:$0xf]
        %v1870 = vld [vmem:[%s1 + $0x444] sm:$0xf]
        %v1871 = vld [vmem:[%s1 + $0x448] sm:$0xf]
        %v1872 = vld [vmem:[%s1 + $0x44c] sm:$0xf]
        %v1873 = vld [vmem:[%s1 + $0x450] sm:$0xf]
        %v1874 = vld [vmem:[%s1 + $0x454] sm:$0xf]
        %v1875 = vld [vmem:[%s1 + $0x458] sm:$0xf]
        %v1876 = vld [vmem:[%s1 + $0x45c] sm:$0xf]
        %v1877 = vld [vmem:[%s1 + $0x460] sm:$0xf]
        %v1878 = vld [vmem:[%s1 + $0x464] sm:$0xf]
        %v1879 = vld [vmem:[%s1 + $0x468] sm:$0xf]
        %v1880 = vld [vmem:[%s1 + $0x46c] sm:$0xf]
        %v1881 = vld [vmem:[%s1 + $0x470] sm:$0xf]
        %v1882 = vld [vmem:[%s1 + $0x474] sm:$0xf]
        %v1883 = vld [vmem:[%s1 + $0x478] sm:$0xf]
        %v1884 = vld [vmem:[%s1 + $0x47c] sm:$0xf]
        %v1885 = vld [vmem:[%s2] sm:$0x1]
        %v1887 = vlaneseq
        %v1888 = vshrl.u32 %v1887, 7
        %v1889 = vsub.s32 0, %v1888
        %v1890 = vrot.slane %v1885, %v1889
        %v2180 = vunpack.c.l.b16 %v1597
        %v2181 = vunpack.c.l.b16 %v1598
        %v2182 = vunpack.c.l.b16 %v1599
        %v2183 = vunpack.c.l.b16 %v1600
        %v2184 = vunpack.c.l.b16 %v1601
        %v2185 = vunpack.c.l.b16 %v1602
        %v2186 = vunpack.c.l.b16 %v1603
        %v2187 = vunpack.c.l.b16 %v1604
        %v2188 = vunpack.c.l.b16 %v1605
        %v2189 = vunpack.c.l.b16 %v1606
        %v2190 = vunpack.c.l.b16 %v1607
        %v2191 = vunpack.c.l.b16 %v1608
        %v2192 = vunpack.c.l.b16 %v1609
        %v2193 = vunpack.c.l.b16 %v1610
        %v2194 = vunpack.c.l.b16 %v1611
        %v2195 = vunpack.c.l.b16 %v1612
        %v2196 = vunpack.c.l.b16 %v1613
        %v2197 = vunpack.c.l.b16 %v1614
        %v2198 = vunpack.c.l.b16 %v1615
        %v2199 = vunpack.c.l.b16 %v1616
        %v2200 = vunpack.c.l.b16 %v1617
        %v2201 = vunpack.c.l.b16 %v1618
        %v2202 = vunpack.c.l.b16 %v1619
        %v2203 = vunpack.c.l.b16 %v1620
        %v2204 = vunpack.c.l.b16 %v1621
        %v2205 = vunpack.c.l.b16 %v1622
        %v2206 = vunpack.c.l.b16 %v1623
        %v2207 = vunpack.c.l.b16 %v1624
        %v2208 = vunpack.c.l.b16 %v1625
        %v2209 = vunpack.c.l.b16 %v1626
        %v2210 = vunpack.c.l.b16 %v1627
        %v2211 = vunpack.c.l.b16 %v1628
        %v2212 = vunpack.c.l.b16 %v1629
        %v2213 = vunpack.c.l.b16 %v1630
        %v2214 = vunpack.c.l.b16 %v1631
        %v2215 = vunpack.c.l.b16 %v1632
        %v2216 = vunpack.c.l.b16 %v1633
        %v2217 = vunpack.c.l.b16 %v1634
        %v2218 = vunpack.c.l.b16 %v1635
        %v2219 = vunpack.c.l.b16 %v1636
        %v2220 = vunpack.c.l.b16 %v1637
        %v2221 = vunpack.c.l.b16 %v1638
        %v2222 = vunpack.c.l.b16 %v1639
        %v2223 = vunpack.c.l.b16 %v1640
        %v2224 = vunpack.c.l.b16 %v1641
        %v2225 = vunpack.c.l.b16 %v1642
        %v2226 = vunpack.c.l.b16 %v1643
        %v2227 = vunpack.c.l.b16 %v1644
        %v2228 = vunpack.c.l.b16 %v1645
        %v2229 = vunpack.c.l.b16 %v1646
        %v2230 = vunpack.c.l.b16 %v1647
        %v2231 = vunpack.c.l.b16 %v1648
        %v2232 = vunpack.c.l.b16 %v1649
        %v2233 = vunpack.c.l.b16 %v1650
        %v2234 = vunpack.c.l.b16 %v1651
        %v2235 = vunpack.c.l.b16 %v1652
        %v2236 = vunpack.c.l.b16 %v1653
        %v2237 = vunpack.c.l.b16 %v1654
        %v2238 = vunpack.c.l.b16 %v1655
        %v2239 = vunpack.c.l.b16 %v1656
        %v2240 = vunpack.c.l.b16 %v1657
        %v2241 = vunpack.c.l.b16 %v1658
        %v2242 = vunpack.c.l.b16 %v1659
        %v2243 = vunpack.c.l.b16 %v1660
        %v2244 = vunpack.c.l.b16 %v1661
        %v2245 = vunpack.c.l.b16 %v1662
        %v2246 = vunpack.c.l.b16 %v1663
        %v2247 = vunpack.c.l.b16 %v1664
        %v2248 = vunpack.c.l.b16 %v1665
        %v2249 = vunpack.c.l.b16 %v1666
        %v2250 = vunpack.c.l.b16 %v1667
        %v2251 = vunpack.c.l.b16 %v1668
        %v2252 = vunpack.c.l.b16 %v1669
        %v2253 = vunpack.c.l.b16 %v1670
        %v2254 = vunpack.c.l.b16 %v1671
        %v2255 = vunpack.c.l.b16 %v1672
        %v2256 = vunpack.c.l.b16 %v1673
        %v2257 = vunpack.c.l.b16 %v1674
        %v2258 = vunpack.c.l.b16 %v1675
        %v2259 = vunpack.c.l.b16 %v1676
        %v2260 = vunpack.c.l.b16 %v1677
        %v2261 = vunpack.c.l.b16 %v1678
        %v2262 = vunpack.c.l.b16 %v1679
        %v2263 = vunpack.c.l.b16 %v1680
        %v2264 = vunpack.c.l.b16 %v1681
        %v2265 = vunpack.c.l.b16 %v1682
        %v2266 = vunpack.c.l.b16 %v1683
        %v2267 = vunpack.c.l.b16 %v1684
        %v2268 = vunpack.c.l.b16 %v1685
        %v2269 = vunpack.c.l.b16 %v1686
        %v2270 = vunpack.c.l.b16 %v1687
        %v2271 = vunpack.c.l.b16 %v1688
        %v2272 = vunpack.c.l.b16 %v1689
        %v2273 = vunpack.c.l.b16 %v1690
        %v2274 = vunpack.c.l.b16 %v1691
        %v2275 = vunpack.c.l.b16 %v1692
        %v2276 = vunpack.c.l.b16 %v1693
        %v2277 = vunpack.c.l.b16 %v1694
        %v2278 = vunpack.c.l.b16 %v1695
        %v2279 = vunpack.c.l.b16 %v1696
        %v2280 = vunpack.c.l.b16 %v1697
        %v2281 = vunpack.c.l.b16 %v1698
        %v2282 = vunpack.c.l.b16 %v1699
        %v2283 = vunpack.c.l.b16 %v1700
        %v2284 = vunpack.c.l.b16 %v1701
        %v2285 = vunpack.c.l.b16 %v1702
        %v2286 = vunpack.c.l.b16 %v1703
        %v2287 = vunpack.c.l.b16 %v1704
        %v2288 = vunpack.c.l.b16 %v1705
        %v2289 = vunpack.c.l.b16 %v1706
        %v2290 = vunpack.c.l.b16 %v1707
        %v2291 = vunpack.c.l.b16 %v1708
        %v2292 = vunpack.c.l.b16 %v1709
        %v2293 = vunpack.c.l.b16 %v1710
        %v2294 = vunpack.c.l.b16 %v1711
        %v2295 = vunpack.c.l.b16 %v1712
        %v2296 = vunpack.c.l.b16 %v1713
        %v2297 = vunpack.c.l.b16 %v1714
        %v2298 = vunpack.c.l.b16 %v1715
        %v2299 = vunpack.c.l.b16 %v1716
        %v2300 = vunpack.c.l.b16 %v1717
        %v2301 = vunpack.c.l.b16 %v1718
        %v2302 = vunpack.c.l.b16 %v1719
        %v2303 = vunpack.c.l.b16 %v1720
        %v2304 = vunpack.c.l.b16 %v1721
        %v2305 = vunpack.c.l.b16 %v1722
        %v2306 = vunpack.c.l.b16 %v1723
        %v2307 = vunpack.c.l.b16 %v1724
        %v2308 = vunpack.c.l.b16 %v1725
        %v2309 = vunpack.c.l.b16 %v1726
        %v2310 = vunpack.c.l.b16 %v1727
        %v2311 = vunpack.c.l.b16 %v1728
        %v2312 = vunpack.c.l.b16 %v1729
        %v2313 = vunpack.c.l.b16 %v1730
        %v2314 = vunpack.c.l.b16 %v1731
        %v2315 = vunpack.c.l.b16 %v1732
        %v2316 = vunpack.c.l.b16 %v1733
        %v2317 = vunpack.c.l.b16 %v1734
        %v2318 = vunpack.c.l.b16 %v1735
        %v2319 = vunpack.c.l.b16 %v1736
        %v2320 = vunpack.c.l.b16 %v1737
        %v2321 = vunpack.c.l.b16 %v1738
        %v2322 = vunpack.c.l.b16 %v1739
        %v2323 = vunpack.c.l.b16 %v1740
        %v2324 = vunpack.c.l.b16 %v1741
        %v2325 = vunpack.c.l.b16 %v1742
        %v2326 = vunpack.c.l.b16 %v1743
        %v2327 = vunpack.c.l.b16 %v1744
        %v2328 = vunpack.c.l.b16 %v1745
        %v2329 = vunpack.c.l.b16 %v1746
        %v2330 = vunpack.c.l.b16 %v1747
        %v2331 = vunpack.c.l.b16 %v1748
        %v2332 = vunpack.c.l.b16 %v1749
        %v2333 = vunpack.c.l.b16 %v1750
        %v2334 = vunpack.c.l.b16 %v1751
        %v2335 = vunpack.c.l.b16 %v1752
        %v2336 = vunpack.c.l.b16 %v1753
        %v2337 = vunpack.c.l.b16 %v1754
        %v2338 = vunpack.c.l.b16 %v1755
        %v2339 = vunpack.c.l.b16 %v1756
        %v2340 = vunpack.c.l.b16 %v1757
        %v2341 = vunpack.c.l.b16 %v1758
        %v2342 = vunpack.c.l.b16 %v1759
        %v2343 = vunpack.c.l.b16 %v1760
        %v2344 = vunpack.c.l.b16 %v1761
        %v2345 = vunpack.c.l.b16 %v1762
        %v2346 = vunpack.c.l.b16 %v1763
        %v2347 = vunpack.c.l.b16 %v1764
        %v2348 = vunpack.c.l.b16 %v1765
        %v2349 = vunpack.c.l.b16 %v1766
        %v2350 = vunpack.c.l.b16 %v1767
        %v2351 = vunpack.c.l.b16 %v1768
        %v2352 = vunpack.c.l.b16 %v1769
        %v2353 = vunpack.c.l.b16 %v1770
        %v2354 = vunpack.c.l.b16 %v1771
        %v2355 = vunpack.c.l.b16 %v1772
        %v2356 = vunpack.c.l.b16 %v1773
        %v2357 = vunpack.c.l.b16 %v1774
        %v2358 = vunpack.c.l.b16 %v1775
        %v2359 = vunpack.c.l.b16 %v1776
        %v2360 = vunpack.c.l.b16 %v1777
        %v2361 = vunpack.c.l.b16 %v1778
        %v2362 = vunpack.c.l.b16 %v1779
        %v2363 = vunpack.c.l.b16 %v1780
        %v2364 = vunpack.c.l.b16 %v1781
        %v2365 = vunpack.c.l.b16 %v1782
        %v2366 = vunpack.c.l.b16 %v1783
        %v2367 = vunpack.c.l.b16 %v1784
        %v2368 = vunpack.c.l.b16 %v1785
        %v2369 = vunpack.c.l.b16 %v1786
        %v2370 = vunpack.c.l.b16 %v1787
        %v2371 = vunpack.c.l.b16 %v1788
        %v2372 = vunpack.c.l.b16 %v1789
        %v2373 = vunpack.c.l.b16 %v1790
        %v2374 = vunpack.c.l.b16 %v1791
        %v2375 = vunpack.c.l.b16 %v1792
        %v2376 = vunpack.c.l.b16 %v1793
        %v2377 = vunpack.c.l.b16 %v1794
        %v2378 = vunpack.c.l.b16 %v1795
        %v2379 = vunpack.c.l.b16 %v1796
        %v2380 = vunpack.c.l.b16 %v1797
        %v2381 = vunpack.c.l.b16 %v1798
        %v2382 = vunpack.c.l.b16 %v1799
        %v2383 = vunpack.c.l.b16 %v1800
        %v2384 = vunpack.c.l.b16 %v1801
        %v2385 = vunpack.c.l.b16 %v1802
        %v2386 = vunpack.c.l.b16 %v1803
        %v2387 = vunpack.c.l.b16 %v1804
        %v2388 = vunpack.c.l.b16 %v1805
        %v2389 = vunpack.c.l.b16 %v1806
        %v2390 = vunpack.c.l.b16 %v1807
        %v2391 = vunpack.c.l.b16 %v1808
        %v2392 = vunpack.c.l.b16 %v1809
        %v2393 = vunpack.c.l.b16 %v1810
        %v2394 = vunpack.c.l.b16 %v1811
        %v2395 = vunpack.c.l.b16 %v1812
        %v2396 = vunpack.c.l.b16 %v1813
        %v2397 = vunpack.c.l.b16 %v1814
        %v2398 = vunpack.c.l.b16 %v1815
        %v2399 = vunpack.c.l.b16 %v1816
        %v2400 = vunpack.c.l.b16 %v1817
        %v2401 = vunpack.c.l.b16 %v1818
        %v2402 = vunpack.c.l.b16 %v1819
        %v2403 = vunpack.c.l.b16 %v1820
        %v2404 = vunpack.c.l.b16 %v1821
        %v2405 = vunpack.c.l.b16 %v1822
        %v2406 = vunpack.c.l.b16 %v1823
        %v2407 = vunpack.c.l.b16 %v1824
        %v2408 = vunpack.c.l.b16 %v1825
        %v2409 = vunpack.c.l.b16 %v1826
        %v2410 = vunpack.c.l.b16 %v1827
        %v2411 = vunpack.c.l.b16 %v1828
        %v2412 = vunpack.c.l.b16 %v1829
        %v2413 = vunpack.c.l.b16 %v1830
        %v2414 = vunpack.c.l.b16 %v1831
        %v2415 = vunpack.c.l.b16 %v1832
        %v2416 = vunpack.c.l.b16 %v1833
        %v2417 = vunpack.c.l.b16 %v1834
        %v2418 = vunpack.c.l.b16 %v1835
        %v2419 = vunpack.c.l.b16 %v1836
        %v2420 = vunpack.c.l.b16 %v1837
        %v2421 = vunpack.c.l.b16 %v1838
        %v2422 = vunpack.c.l.b16 %v1839
        %v2423 = vunpack.c.l.b16 %v1840
        %v2424 = vunpack.c.l.b16 %v1841
        %v2425 = vunpack.c.l.b16 %v1842
        %v2426 = vunpack.c.l.b16 %v1843
        %v2427 = vunpack.c.l.b16 %v1844
        %v2428 = vunpack.c.l.b16 %v1845
        %v2429 = vunpack.c.l.b16 %v1846
        %v2430 = vunpack.c.l.b16 %v1847
        %v2431 = vunpack.c.l.b16 %v1848
        %v2432 = vunpack.c.l.b16 %v1849
        %v2433 = vunpack.c.l.b16 %v1850
        %v2434 = vunpack.c.l.b16 %v1851
        %v2435 = vunpack.c.l.b16 %v1852
        %v2436 = vunpack.c.l.b16 %v1853
        %v2437 = vunpack.c.l.b16 %v1854
        %v2438 = vunpack.c.l.b16 %v1855
        %v2439 = vunpack.c.l.b16 %v1856
        %v2440 = vunpack.c.l.b16 %v1857
        %v2441 = vunpack.c.l.b16 %v1858
        %v2442 = vunpack.c.l.b16 %v1859
        %v2443 = vunpack.c.l.b16 %v1860
        %v2444 = vunpack.c.l.b16 %v1861
        %v2445 = vunpack.c.l.b16 %v1862
        %v2446 = vunpack.c.l.b16 %v1863
        %v2447 = vunpack.c.l.b16 %v1864
        %v2448 = vunpack.c.l.b16 %v1865
        %v2449 = vunpack.c.l.b16 %v1866
        %v2450 = vunpack.c.l.b16 %v1867
        %v2451 = vunpack.c.l.b16 %v1868
        %v2452 = vunpack.c.l.b16 %v1869
        %v2453 = vunpack.c.l.b16 %v1870
        %v2454 = vunpack.c.l.b16 %v1871
        %v2455 = vunpack.c.l.b16 %v1872
        %v2456 = vunpack.c.l.b16 %v1873
        %v2457 = vunpack.c.l.b16 %v1874
        %v2458 = vunpack.c.l.b16 %v1875
        %v2459 = vunpack.c.l.b16 %v1876
        %v2460 = vunpack.c.l.b16 %v1877
        %v2461 = vunpack.c.l.b16 %v1878
        %v2462 = vunpack.c.l.b16 %v1879
        %v2463 = vunpack.c.l.b16 %v1880
        %v2464 = vunpack.c.l.b16 %v1881
        %v2465 = vunpack.c.l.b16 %v1882
        %v2466 = vunpack.c.l.b16 %v1883
        %v2467 = vunpack.c.l.b16 %v1884
        %v2468 = vpack.c.b16 %v2181, %v2180
        %v2469 = vpack.c.b16 %v2183, %v2182
        %v2470 = vpack.c.b16 %v2185, %v2184
        %v2471 = vpack.c.b16 %v2187, %v2186
        %v2472 = vpack.c.b16 %v2189, %v2188
        %v2473 = vpack.c.b16 %v2191, %v2190
        %v2474 = vpack.c.b16 %v2193, %v2192
        %v2475 = vpack.c.b16 %v2195, %v2194
        %v2476 = vpack.c.b16 %v2197, %v2196
        %v2477 = vpack.c.b16 %v2199, %v2198
        %v2478 = vpack.c.b16 %v2201, %v2200
        %v2479 = vpack.c.b16 %v2203, %v2202
        %v2480 = vpack.c.b16 %v2205, %v2204
        %v2481 = vpack.c.b16 %v2207, %v2206
        %v2482 = vpack.c.b16 %v2209, %v2208
        %v2483 = vpack.c.b16 %v2211, %v2210
        %v2484 = vpack.c.b16 %v2213, %v2212
        %v2485 = vpack.c.b16 %v2215, %v2214
        %v2486 = vpack.c.b16 %v2217, %v2216
        %v2487 = vpack.c.b16 %v2219, %v2218
        %v2488 = vpack.c.b16 %v2221, %v2220
        %v2489 = vpack.c.b16 %v2223, %v2222
        %v2490 = vpack.c.b16 %v2225, %v2224
        %v2491 = vpack.c.b16 %v2227, %v2226
        %v2492 = vpack.c.b16 %v2229, %v2228
        %v2493 = vpack.c.b16 %v2231, %v2230
        %v2494 = vpack.c.b16 %v2233, %v2232
        %v2495 = vpack.c.b16 %v2235, %v2234
        %v2496 = vpack.c.b16 %v2237, %v2236
        %v2497 = vpack.c.b16 %v2239, %v2238
        %v2498 = vpack.c.b16 %v2241, %v2240
        %v2499 = vpack.c.b16 %v2243, %v2242
        %v2500 = vpack.c.b16 %v2245, %v2244
        %v2501 = vpack.c.b16 %v2247, %v2246
        %v2502 = vpack.c.b16 %v2249, %v2248
        %v2503 = vpack.c.b16 %v2251, %v2250
        %v2504 = vpack.c.b16 %v2253, %v2252
        %v2505 = vpack.c.b16 %v2255, %v2254
        %v2506 = vpack.c.b16 %v2257, %v2256
        %v2507 = vpack.c.b16 %v2259, %v2258
        %v2508 = vpack.c.b16 %v2261, %v2260
        %v2509 = vpack.c.b16 %v2263, %v2262
        %v2510 = vpack.c.b16 %v2265, %v2264
        %v2511 = vpack.c.b16 %v2267, %v2266
        %v2512 = vpack.c.b16 %v2269, %v2268
        %v2513 = vpack.c.b16 %v2271, %v2270
        %v2514 = vpack.c.b16 %v2273, %v2272
        %v2515 = vpack.c.b16 %v2275, %v2274
        %v2516 = vpack.c.b16 %v2277, %v2276
        %v2517 = vpack.c.b16 %v2279, %v2278
        %v2518 = vpack.c.b16 %v2281, %v2280
        %v2519 = vpack.c.b16 %v2283, %v2282
        %v2520 = vpack.c.b16 %v2285, %v2284
        %v2521 = vpack.c.b16 %v2287, %v2286
        %v2522 = vpack.c.b16 %v2289, %v2288
        %v2523 = vpack.c.b16 %v2291, %v2290
        %v2524 = vpack.c.b16 %v2293, %v2292
        %v2525 = vpack.c.b16 %v2295, %v2294
        %v2526 = vpack.c.b16 %v2297, %v2296
        %v2527 = vpack.c.b16 %v2299, %v2298
        %v2528 = vpack.c.b16 %v2301, %v2300
        %v2529 = vpack.c.b16 %v2303, %v2302
        %v2530 = vpack.c.b16 %v2305, %v2304
        %v2531 = vpack.c.b16 %v2307, %v2306
        %v2532 = vpack.c.b16 %v2309, %v2308
        %v2533 = vpack.c.b16 %v2311, %v2310
        %v2534 = vpack.c.b16 %v2313, %v2312
        %v2535 = vpack.c.b16 %v2315, %v2314
        %v2536 = vpack.c.b16 %v2317, %v2316
        %v2537 = vpack.c.b16 %v2319, %v2318
        %v2538 = vpack.c.b16 %v2321, %v2320
        %v2539 = vpack.c.b16 %v2323, %v2322
        %v2540 = vpack.c.b16 %v2325, %v2324
        %v2541 = vpack.c.b16 %v2327, %v2326
        %v2542 = vpack.c.b16 %v2329, %v2328
        %v2543 = vpack.c.b16 %v2331, %v2330
        %v2544 = vpack.c.b16 %v2333, %v2332
        %v2545 = vpack.c.b16 %v2335, %v2334
        %v2546 = vpack.c.b16 %v2337, %v2336
        %v2547 = vpack.c.b16 %v2339, %v2338
        %v2548 = vpack.c.b16 %v2341, %v2340
        %v2549 = vpack.c.b16 %v2343, %v2342
        %v2550 = vpack.c.b16 %v2345, %v2344
        %v2551 = vpack.c.b16 %v2347, %v2346
        %v2552 = vpack.c.b16 %v2349, %v2348
        %v2553 = vpack.c.b16 %v2351, %v2350
        %v2554 = vpack.c.b16 %v2353, %v2352
        %v2555 = vpack.c.b16 %v2355, %v2354
        %v2556 = vpack.c.b16 %v2357, %v2356
        %v2557 = vpack.c.b16 %v2359, %v2358
        %v2558 = vpack.c.b16 %v2361, %v2360
        %v2559 = vpack.c.b16 %v2363, %v2362
        %v2560 = vpack.c.b16 %v2365, %v2364
        %v2561 = vpack.c.b16 %v2367, %v2366
        %v2562 = vpack.c.b16 %v2369, %v2368
        %v2563 = vpack.c.b16 %v2371, %v2370
        %v2564 = vpack.c.b16 %v2373, %v2372
        %v2565 = vpack.c.b16 %v2375, %v2374
        %v2566 = vpack.c.b16 %v2377, %v2376
        %v2567 = vpack.c.b16 %v2379, %v2378
        %v2568 = vpack.c.b16 %v2381, %v2380
        %v2569 = vpack.c.b16 %v2383, %v2382
        %v2570 = vpack.c.b16 %v2385, %v2384
        %v2571 = vpack.c.b16 %v2387, %v2386
        %v2572 = vpack.c.b16 %v2389, %v2388
        %v2573 = vpack.c.b16 %v2391, %v2390
        %v2574 = vpack.c.b16 %v2393, %v2392
        %v2575 = vpack.c.b16 %v2395, %v2394
        %v2576 = vpack.c.b16 %v2397, %v2396
        %v2577 = vpack.c.b16 %v2399, %v2398
        %v2578 = vpack.c.b16 %v2401, %v2400
        %v2579 = vpack.c.b16 %v2403, %v2402
        %v2580 = vpack.c.b16 %v2405, %v2404
        %v2581 = vpack.c.b16 %v2407, %v2406
        %v2582 = vpack.c.b16 %v2409, %v2408
        %v2583 = vpack.c.b16 %v2411, %v2410
        %v2584 = vpack.c.b16 %v2413, %v2412
        %v2585 = vpack.c.b16 %v2415, %v2414
        %v2586 = vpack.c.b16 %v2417, %v2416
        %v2587 = vpack.c.b16 %v2419, %v2418
        %v2588 = vpack.c.b16 %v2421, %v2420
        %v2589 = vpack.c.b16 %v2423, %v2422
        %v2590 = vpack.c.b16 %v2425, %v2424
        %v2591 = vpack.c.b16 %v2427, %v2426
        %v2592 = vpack.c.b16 %v2429, %v2428
        %v2593 = vpack.c.b16 %v2431, %v2430
        %v2594 = vpack.c.b16 %v2433, %v2432
        %v2595 = vpack.c.b16 %v2435, %v2434
        %v2596 = vpack.c.b16 %v2437, %v2436
        %v2597 = vpack.c.b16 %v2439, %v2438
        %v2598 = vpack.c.b16 %v2441, %v2440
        %v2599 = vpack.c.b16 %v2443, %v2442
        %v2600 = vpack.c.b16 %v2445, %v2444
        %v2601 = vpack.c.b16 %v2447, %v2446
        %v2602 = vpack.c.b16 %v2449, %v2448
        %v2603 = vpack.c.b16 %v2451, %v2450
        %v2604 = vpack.c.b16 %v2453, %v2452
        %v2605 = vpack.c.b16 %v2455, %v2454
        %v2606 = vpack.c.b16 %v2457, %v2456
        %v2607 = vpack.c.b16 %v2459, %v2458
        %v2608 = vpack.c.b16 %v2461, %v2460
        %v2609 = vpack.c.b16 %v2463, %v2462
        %v2610 = vpack.c.b16 %v2465, %v2464
        %v2611 = vpack.c.b16 %v2467, %v2466
        %2756 = vmatprep.subr.bf16.mxu0 0
        %2757 = vmatpush1.bf16.msra.mxu0 %v2475
        %2758 = vmatprep.subr.bf16.mxu0 0
        %2759 = vmatpush1.bf16.msra.mxu0 %v2474
        %2760 = vmatprep.subr.bf16.mxu0 0
        %2761 = vmatpush1.bf16.msra.mxu0 %v2473
        %2762 = vmatprep.subr.bf16.mxu0 0
        %2763 = vmatpush1.bf16.msra.mxu0 %v2472
        %2764 = vmatprep.subr.bf16.mxu0 0
        %2765 = vmatpush1.bf16.msra.mxu0 %v2471
        %2766 = vmatprep.subr.bf16.mxu0 0
        %2767 = vmatpush1.bf16.msra.mxu0 %v2470
        %2768 = vmatprep.subr.bf16.mxu0 0
        %2769 = vmatpush1.bf16.msra.mxu0 %v2469
        %2770 = vmatprep.subr.bf16.mxu0 0
        %2771 = vmatpush1.bf16.msra.mxu0 %v2468
        %2772 = vmatprep.subr.bf16.mxu0 0
        %2773 = vmatpush2.bf16.msra.mxu0 %v2483
        %2774 = vmatprep.subr.bf16.mxu0 0
        %2775 = vmatpush2.bf16.msra.mxu0 %v2482
        %2776 = vmatprep.subr.bf16.mxu0 0
        %2777 = vmatpush2.bf16.msra.mxu0 %v2481
        %2778 = vmatprep.subr.bf16.mxu0 0
        %2779 = vmatpush2.bf16.msra.mxu0 %v2480
        %2780 = vmatprep.subr.bf16.mxu0 0
        %2781 = vmatpush2.bf16.msra.mxu0 %v2479
        %2782 = vmatprep.subr.bf16.mxu0 0
        %2783 = vmatpush2.bf16.msra.mxu0 %v2478
        %2784 = vmatprep.subr.bf16.mxu0 0
        %2785 = vmatpush2.bf16.msra.mxu0 %v2477
        %2786 = vmatprep.subr.bf16.mxu0 0
        %2787 = vmatpush2.bf16.msra.mxu0 %v2476
        %2788 = vmatprep.mubr.bf16.mxu0 %v1526
        %2789 = vmatmul.mubr.bf16.gmra.mxu0 %v1525
        %v2790 = vpop.f32.mrf.mxu0
        %v2791 = vadd.f32 %v1890, %v2790
        %v2792 = vpop.f32.mrf.mxu0
        %v2793 = vpop.f32.mrf.mxu0
        %v2794 = vadd.f32 %v1890, %v2793
        %v2795 = vpop.f32.mrf.mxu0
        %2796 = vmatprep.mubr.bf16.mxu0 %v1544
        %2797 = vmatmul.mubr.bf16.gmra.mxu0 %v1543
        %v2798 = vpop.f32.mrf.mxu0
        %v2799 = vadd.f32 %v1890, %v2798
        %v2800 = vpop.f32.mrf.mxu0
        %v2801 = vpop.f32.mrf.mxu0
        %v2802 = vadd.f32 %v1890, %v2801
        %v2803 = vpop.f32.mrf.mxu0
        %2804 = vmatprep.mubr.bf16.mxu0 %v1562
        %2805 = vmatmul.mubr.bf16.gmra.mxu0 %v1561
        %v2806 = vpop.f32.mrf.mxu0
        %v2807 = vadd.f32 %v1890, %v2806
        %v2808 = vpop.f32.mrf.mxu0
        %v2809 = vpop.f32.mrf.mxu0
        %v2810 = vadd.f32 %v1890, %v2809
        %v2811 = vpop.f32.mrf.mxu0
        %2812 = vmatprep.mubr.bf16.mxu0 %v1580
        %2813 = vmatmul.mubr.bf16.gmra.mxu0 %v1579
        %v2814 = vpop.f32.mrf.mxu0
        %v2815 = vadd.f32 %v1890, %v2814
        %v2816 = vpop.f32.mrf.mxu0
        %v2817 = vpop.f32.mrf.mxu0
        %v2818 = vpop.f32.mrf.mxu0
        %2819 = vdwg.mxu0
        %2820 = vmatprep.subr.bf16.mxu0 0
        %2821 = vmatpush1.bf16.msra.mxu0 %v2491
        %2822 = vmatprep.subr.bf16.mxu0 0
        %2823 = vmatpush1.bf16.msra.mxu0 %v2490
        %2824 = vmatprep.subr.bf16.mxu0 0
        %2825 = vmatpush1.bf16.msra.mxu0 %v2489
        %2826 = vmatprep.subr.bf16.mxu0 0
        %2827 = vmatpush1.bf16.msra.mxu0 %v2488
        %2828 = vmatprep.subr.bf16.mxu0 0
        %2829 = vmatpush1.bf16.msra.mxu0 %v2487
        %2830 = vmatprep.subr.bf16.mxu0 0
        %2831 = vmatpush1.bf16.msra.mxu0 %v2486
        %2832 = vmatprep.subr.bf16.mxu0 0
        %2833 = vmatpush1.bf16.msra.mxu0 %v2485
        %2834 = vmatprep.subr.bf16.mxu0 0
        %2835 = vmatpush1.bf16.msra.mxu0 %v2484
        %2836 = vmatprep.subr.bf16.mxu0 0
        %2837 = vmatpush2.bf16.msra.mxu0 %v2499
        %2838 = vmatprep.subr.bf16.mxu0 0
        %2839 = vmatpush2.bf16.msra.mxu0 %v2498
        %2840 = vmatprep.subr.bf16.mxu0 0
        %2841 = vmatpush2.bf16.msra.mxu0 %v2497
        %2842 = vmatprep.subr.bf16.mxu0 0
        %2843 = vmatpush2.bf16.msra.mxu0 %v2496
        %2844 = vmatprep.subr.bf16.mxu0 0
        %2845 = vmatpush2.bf16.msra.mxu0 %v2495
        %2846 = vmatprep.subr.bf16.mxu0 0
        %2847 = vmatpush2.bf16.msra.mxu0 %v2494
        %2848 = vmatprep.subr.bf16.mxu0 0
        %2849 = vmatpush2.bf16.msra.mxu0 %v2493
        %2850 = vmatprep.subr.bf16.mxu0 0
        %2851 = vmatpush2.bf16.msra.mxu0 %v2492
        %2852 = vmatprep.mubr.bf16.mxu0 %v1528
        %2853 = vmatmul.mubr.bf16.gmra.mxu0 %v1527
        %v2854 = vpop.f32.mrf.mxu0
        %v2855 = vadd.f32 %v2791, %v2854
        %v2856 = vpop.f32.mrf.mxu0
        %v2857 = vpop.f32.mrf.mxu0
        %v2858 = vadd.f32 %v2794, %v2857
        %v2859 = vpop.f32.mrf.mxu0
        %2860 = vmatprep.mubr.bf16.mxu0 %v1546
        %2861 = vmatmul.mubr.bf16.gmra.mxu0 %v1545
        %v2862 = vpop.f32.mrf.mxu0
        %v2863 = vadd.f32 %v2799, %v2862
        %v2864 = vpop.f32.mrf.mxu0
        %v2865 = vpop.f32.mrf.mxu0
        %v2866 = vadd.f32 %v2802, %v2865
        %v2867 = vpop.f32.mrf.mxu0
        %2868 = vmatprep.mubr.bf16.mxu0 %v1564
        %2869 = vmatmul.mubr.bf16.gmra.mxu0 %v1563
        %v2870 = vpop.f32.mrf.mxu0
        %v2871 = vadd.f32 %v2807, %v2870
        %v2872 = vpop.f32.mrf.mxu0
        %v2873 = vpop.f32.mrf.mxu0
        %v2874 = vadd.f32 %v2810, %v2873
        %v2875 = vpop.f32.mrf.mxu0
        %2876 = vmatprep.mubr.bf16.mxu0 %v1582
        %2877 = vmatmul.mubr.bf16.gmra.mxu0 %v1581
        %v2878 = vpop.f32.mrf.mxu0
        %v2879 = vadd.f32 %v2815, %v2878
        %v2880 = vpop.f32.mrf.mxu0
        %v2881 = vpop.f32.mrf.mxu0
        %v2882 = vpop.f32.mrf.mxu0
        %2883 = vdwg.mxu0
        %2884 = vmatprep.subr.bf16.mxu0 0
        %2885 = vmatpush1.bf16.msra.mxu0 %v2507
        %2886 = vmatprep.subr.bf16.mxu0 0
        %2887 = vmatpush1.bf16.msra.mxu0 %v2506
        %2888 = vmatprep.subr.bf16.mxu0 0
        %2889 = vmatpush1.bf16.msra.mxu0 %v2505
        %2890 = vmatprep.subr.bf16.mxu0 0
        %2891 = vmatpush1.bf16.msra.mxu0 %v2504
        %2892 = vmatprep.subr.bf16.mxu0 0
        %2893 = vmatpush1.bf16.msra.mxu0 %v2503
        %2894 = vmatprep.subr.bf16.mxu0 0
        %2895 = vmatpush1.bf16.msra.mxu0 %v2502
        %2896 = vmatprep.subr.bf16.mxu0 0
        %2897 = vmatpush1.bf16.msra.mxu0 %v2501
        %2898 = vmatprep.subr.bf16.mxu0 0
        %2899 = vmatpush1.bf16.msra.mxu0 %v2500
        %2900 = vmatprep.subr.bf16.mxu0 0
        %2901 = vmatpush2.bf16.msra.mxu0 %v2515
        %2902 = vmatprep.subr.bf16.mxu0 0
        %2903 = vmatpush2.bf16.msra.mxu0 %v2514
        %2904 = vmatprep.subr.bf16.mxu0 0
        %2905 = vmatpush2.bf16.msra.mxu0 %v2513
        %2906 = vmatprep.subr.bf16.mxu0 0
        %2907 = vmatpush2.bf16.msra.mxu0 %v2512
        %2908 = vmatprep.subr.bf16.mxu0 0
        %2909 = vmatpush2.bf16.msra.mxu0 %v2511
        %2910 = vmatprep.subr.bf16.mxu0 0
        %2911 = vmatpush2.bf16.msra.mxu0 %v2510
        %2912 = vmatprep.subr.bf16.mxu0 0
        %2913 = vmatpush2.bf16.msra.mxu0 %v2509
        %2914 = vmatprep.subr.bf16.mxu0 0
        %2915 = vmatpush2.bf16.msra.mxu0 %v2508
        %2916 = vmatprep.mubr.bf16.mxu0 %v1530
        %2917 = vmatmul.mubr.bf16.gmra.mxu0 %v1529
        %v2918 = vpop.f32.mrf.mxu0
        %v2919 = vadd.f32 %v2855, %v2918
        %v2920 = vpop.f32.mrf.mxu0
        %v2921 = vpop.f32.mrf.mxu0
        %v2922 = vadd.f32 %v2858, %v2921
        %v2923 = vpop.f32.mrf.mxu0
        %2924 = vmatprep.mubr.bf16.mxu0 %v1548
        %2925 = vmatmul.mubr.bf16.gmra.mxu0 %v1547
        %v2926 = vpop.f32.mrf.mxu0
        %v2927 = vadd.f32 %v2863, %v2926
        %v2928 = vpop.f32.mrf.mxu0
        %v2929 = vpop.f32.mrf.mxu0
        %v2930 = vadd.f32 %v2866, %v2929
        %v2931 = vpop.f32.mrf.mxu0
        %2932 = vmatprep.mubr.bf16.mxu0 %v1566
        %2933 = vmatmul.mubr.bf16.gmra.mxu0 %v1565
        %v2934 = vpop.f32.mrf.mxu0
        %v2935 = vadd.f32 %v2871, %v2934
        %v2936 = vpop.f32.mrf.mxu0
        %v2937 = vpop.f32.mrf.mxu0
        %v2938 = vadd.f32 %v2874, %v2937
        %v2939 = vpop.f32.mrf.mxu0
        %2940 = vmatprep.mubr.bf16.mxu0 %v1584
        %2941 = vmatmul.mubr.bf16.gmra.mxu0 %v1583
        %v2942 = vpop.f32.mrf.mxu0
        %v2943 = vadd.f32 %v2879, %v2942
        %v2944 = vpop.f32.mrf.mxu0
        %v2945 = vpop.f32.mrf.mxu0
        %v2946 = vpop.f32.mrf.mxu0
        %2947 = vdwg.mxu0
        %2948 = vmatprep.subr.bf16.mxu0 0
        %2949 = vmatpush1.bf16.msra.mxu0 %v2523
        %2950 = vmatprep.subr.bf16.mxu0 0
        %2951 = vmatpush1.bf16.msra.mxu0 %v2522
        %2952 = vmatprep.subr.bf16.mxu0 0
        %2953 = vmatpush1.bf16.msra.mxu0 %v2521
        %2954 = vmatprep.subr.bf16.mxu0 0
        %2955 = vmatpush1.bf16.msra.mxu0 %v2520
        %2956 = vmatprep.subr.bf16.mxu0 0
        %2957 = vmatpush1.bf16.msra.mxu0 %v2519
        %2958 = vmatprep.subr.bf16.mxu0 0
        %2959 = vmatpush1.bf16.msra.mxu0 %v2518
        %2960 = vmatprep.subr.bf16.mxu0 0
        %2961 = vmatpush1.bf16.msra.mxu0 %v2517
        %2962 = vmatprep.subr.bf16.mxu0 0
        %2963 = vmatpush1.bf16.msra.mxu0 %v2516
        %2964 = vmatprep.subr.bf16.mxu0 0
        %2965 = vmatpush2.bf16.msra.mxu0 %v2531
        %2966 = vmatprep.subr.bf16.mxu0 0
        %2967 = vmatpush2.bf16.msra.mxu0 %v2530
        %2968 = vmatprep.subr.bf16.mxu0 0
        %2969 = vmatpush2.bf16.msra.mxu0 %v2529
        %2970 = vmatprep.subr.bf16.mxu0 0
        %2971 = vmatpush2.bf16.msra.mxu0 %v2528
        %2972 = vmatprep.subr.bf16.mxu0 0
        %2973 = vmatpush2.bf16.msra.mxu0 %v2527
        %2974 = vmatprep.subr.bf16.mxu0 0
        %2975 = vmatpush2.bf16.msra.mxu0 %v2526
        %2976 = vmatprep.subr.bf16.mxu0 0
        %2977 = vmatpush2.bf16.msra.mxu0 %v2525
        %2978 = vmatprep.subr.bf16.mxu0 0
        %2979 = vmatpush2.bf16.msra.mxu0 %v2524
        %2980 = vmatprep.mubr.bf16.mxu0 %v1532
        %2981 = vmatmul.mubr.bf16.gmra.mxu0 %v1531
        %v2982 = vpop.f32.mrf.mxu0
        %v2983 = vadd.f32 %v2919, %v2982
        %v2984 = vpop.f32.mrf.mxu0
        %v2985 = vpop.f32.mrf.mxu0
        %v2986 = vadd.f32 %v2922, %v2985
        %v2987 = vpop.f32.mrf.mxu0
        %2988 = vmatprep.mubr.bf16.mxu0 %v1550
        %2989 = vmatmul.mubr.bf16.gmra.mxu0 %v1549
        %v2990 = vpop.f32.mrf.mxu0
        %v2991 = vadd.f32 %v2927, %v2990
        %v2992 = vpop.f32.mrf.mxu0
        %v2993 = vpop.f32.mrf.mxu0
        %v2994 = vadd.f32 %v2930, %v2993
        %v2995 = vpop.f32.mrf.mxu0
        %2996 = vmatprep.mubr.bf16.mxu0 %v1568
        %2997 = vmatmul.mubr.bf16.gmra.mxu0 %v1567
        %v2998 = vpop.f32.mrf.mxu0
        %v2999 = vadd.f32 %v2935, %v2998
        %v3000 = vpop.f32.mrf.mxu0
        %v3001 = vpop.f32.mrf.mxu0
        %v3002 = vadd.f32 %v2938, %v3001
        %v3003 = vpop.f32.mrf.mxu0
        %3004 = vmatprep.mubr.bf16.mxu0 %v1586
        %3005 = vmatmul.mubr.bf16.gmra.mxu0 %v1585
        %v3006 = vpop.f32.mrf.mxu0
        %v3007 = vadd.f32 %v2943, %v3006
        %v3008 = vpop.f32.mrf.mxu0
        %v3009 = vpop.f32.mrf.mxu0
        %v3010 = vpop.f32.mrf.mxu0
        %3011 = vdwg.mxu0
        %3012 = vmatprep.subr.bf16.mxu0 0
        %3013 = vmatpush1.bf16.msra.mxu0 %v2539
        %3014 = vmatprep.subr.bf16.mxu0 0
        %3015 = vmatpush1.bf16.msra.mxu0 %v2538
        %3016 = vmatprep.subr.bf16.mxu0 0
        %3017 = vmatpush1.bf16.msra.mxu0 %v2537
        %3018 = vmatprep.subr.bf16.mxu0 0
        %3019 = vmatpush1.bf16.msra.mxu0 %v2536
        %3020 = vmatprep.subr.bf16.mxu0 0
        %3021 = vmatpush1.bf16.msra.mxu0 %v2535
        %3022 = vmatprep.subr.bf16.mxu0 0
        %3023 = vmatpush1.bf16.msra.mxu0 %v2534
        %3024 = vmatprep.subr.bf16.mxu0 0
        %3025 = vmatpush1.bf16.msra.mxu0 %v2533
        %3026 = vmatprep.subr.bf16.mxu0 0
        %3027 = vmatpush1.bf16.msra.mxu0 %v2532
        %3028 = vmatprep.subr.bf16.mxu0 0
        %3029 = vmatpush2.bf16.msra.mxu0 %v2547
        %3030 = vmatprep.subr.bf16.mxu0 0
        %3031 = vmatpush2.bf16.msra.mxu0 %v2546
        %3032 = vmatprep.subr.bf16.mxu0 0
        %3033 = vmatpush2.bf16.msra.mxu0 %v2545
        %3034 = vmatprep.subr.bf16.mxu0 0
        %3035 = vmatpush2.bf16.msra.mxu0 %v2544
        %3036 = vmatprep.subr.bf16.mxu0 0
        %3037 = vmatpush2.bf16.msra.mxu0 %v2543
        %3038 = vmatprep.subr.bf16.mxu0 0
        %3039 = vmatpush2.bf16.msra.mxu0 %v2542
        %3040 = vmatprep.subr.bf16.mxu0 0
        %3041 = vmatpush2.bf16.msra.mxu0 %v2541
        %3042 = vmatprep.subr.bf16.mxu0 0
        %3043 = vmatpush2.bf16.msra.mxu0 %v2540
        %3044 = vmatprep.mubr.bf16.mxu0 %v1534
        %3045 = vmatmul.mubr.bf16.gmra.mxu0 %v1533
        %v3046 = vpop.f32.mrf.mxu0
        %v3047 = vadd.f32 %v2983, %v3046
        %v3048 = vpop.f32.mrf.mxu0
        %v3049 = vpop.f32.mrf.mxu0
        %v3050 = vadd.f32 %v2986, %v3049
        %v3051 = vpop.f32.mrf.mxu0
        %3052 = vmatprep.mubr.bf16.mxu0 %v1552
        %3053 = vmatmul.mubr.bf16.gmra.mxu0 %v1551
        %v3054 = vpop.f32.mrf.mxu0
        %v3055 = vadd.f32 %v2991, %v3054
        %v3056 = vpop.f32.mrf.mxu0
        %v3057 = vpop.f32.mrf.mxu0
        %v3058 = vadd.f32 %v2994, %v3057
        %v3059 = vpop.f32.mrf.mxu0
        %3060 = vmatprep.mubr.bf16.mxu0 %v1570
        %3061 = vmatmul.mubr.bf16.gmra.mxu0 %v1569
        %v3062 = vpop.f32.mrf.mxu0
        %v3063 = vadd.f32 %v2999, %v3062
        %v3064 = vpop.f32.mrf.mxu0
        %v3065 = vpop.f32.mrf.mxu0
        %v3066 = vadd.f32 %v3002, %v3065
        %v3067 = vpop.f32.mrf.mxu0
        %3068 = vmatprep.mubr.bf16.mxu0 %v1588
        %3069 = vmatmul.mubr.bf16.gmra.mxu0 %v1587
        %v3070 = vpop.f32.mrf.mxu0
        %v3071 = vadd.f32 %v3007, %v3070
        %v3072 = vpop.f32.mrf.mxu0
        %v3073 = vpop.f32.mrf.mxu0
        %v3074 = vpop.f32.mrf.mxu0
        %3075 = vdwg.mxu0
        %3076 = vmatprep.subr.bf16.mxu0 0
        %3077 = vmatpush1.bf16.msra.mxu0 %v2555
        %3078 = vmatprep.subr.bf16.mxu0 0
        %3079 = vmatpush1.bf16.msra.mxu0 %v2554
        %3080 = vmatprep.subr.bf16.mxu0 0
        %3081 = vmatpush1.bf16.msra.mxu0 %v2553
        %3082 = vmatprep.subr.bf16.mxu0 0
        %3083 = vmatpush1.bf16.msra.mxu0 %v2552
        %3084 = vmatprep.subr.bf16.mxu0 0
        %3085 = vmatpush1.bf16.msra.mxu0 %v2551
        %3086 = vmatprep.subr.bf16.mxu0 0
        %3087 = vmatpush1.bf16.msra.mxu0 %v2550
        %3088 = vmatprep.subr.bf16.mxu0 0
        %3089 = vmatpush1.bf16.msra.mxu0 %v2549
        %3090 = vmatprep.subr.bf16.mxu0 0
        %3091 = vmatpush1.bf16.msra.mxu0 %v2548
        %3092 = vmatprep.subr.bf16.mxu0 0
        %3093 = vmatpush2.bf16.msra.mxu0 %v2563
        %3094 = vmatprep.subr.bf16.mxu0 0
        %3095 = vmatpush2.bf16.msra.mxu0 %v2562
        %3096 = vmatprep.subr.bf16.mxu0 0
        %3097 = vmatpush2.bf16.msra.mxu0 %v2561
        %3098 = vmatprep.subr.bf16.mxu0 0
        %3099 = vmatpush2.bf16.msra.mxu0 %v2560
        %3100 = vmatprep.subr.bf16.mxu0 0
        %3101 = vmatpush2.bf16.msra.mxu0 %v2559
        %3102 = vmatprep.subr.bf16.mxu0 0
        %3103 = vmatpush2.bf16.msra.mxu0 %v2558
        %3104 = vmatprep.subr.bf16.mxu0 0
        %3105 = vmatpush2.bf16.msra.mxu0 %v2557
        %3106 = vmatprep.subr.bf16.mxu0 0
        %3107 = vmatpush2.bf16.msra.mxu0 %v2556
        %3108 = vmatprep.mubr.bf16.mxu0 %v1536
        %3109 = vmatmul.mubr.bf16.gmra.mxu0 %v1535
        %v3110 = vpop.f32.mrf.mxu0
        %v3111 = vadd.f32 %v3047, %v3110
        %v3112 = vpop.f32.mrf.mxu0
        %v3113 = vpop.f32.mrf.mxu0
        %v3114 = vadd.f32 %v3050, %v3113
        %v3115 = vpop.f32.mrf.mxu0
        %3116 = vmatprep.mubr.bf16.mxu0 %v1554
        %3117 = vmatmul.mubr.bf16.gmra.mxu0 %v1553
        %v3118 = vpop.f32.mrf.mxu0
        %v3119 = vadd.f32 %v3055, %v3118
        %v3120 = vpop.f32.mrf.mxu0
        %v3121 = vpop.f32.mrf.mxu0
        %v3122 = vadd.f32 %v3058, %v3121
        %v3123 = vpop.f32.mrf.mxu0
        %3124 = vmatprep.mubr.bf16.mxu0 %v1572
        %3125 = vmatmul.mubr.bf16.gmra.mxu0 %v1571
        %v3126 = vpop.f32.mrf.mxu0
        %v3127 = vadd.f32 %v3063, %v3126
        %v3128 = vpop.f32.mrf.mxu0
        %v3129 = vpop.f32.mrf.mxu0
        %v3130 = vadd.f32 %v3066, %v3129
        %v3131 = vpop.f32.mrf.mxu0
        %3132 = vmatprep.mubr.bf16.mxu0 %v1590
        %3133 = vmatmul.mubr.bf16.gmra.mxu0 %v1589
        %v3134 = vpop.f32.mrf.mxu0
        %v3135 = vadd.f32 %v3071, %v3134
        %v3136 = vpop.f32.mrf.mxu0
        %v3137 = vpop.f32.mrf.mxu0
        %v3138 = vpop.f32.mrf.mxu0
        %3139 = vdwg.mxu0
        %3140 = vmatprep.subr.bf16.mxu0 0
        %3141 = vmatpush1.bf16.msra.mxu0 %v2571
        %3142 = vmatprep.subr.bf16.mxu0 0
        %3143 = vmatpush1.bf16.msra.mxu0 %v2570
        %3144 = vmatprep.subr.bf16.mxu0 0
        %3145 = vmatpush1.bf16.msra.mxu0 %v2569
        %3146 = vmatprep.subr.bf16.mxu0 0
        %3147 = vmatpush1.bf16.msra.mxu0 %v2568
        %3148 = vmatprep.subr.bf16.mxu0 0
        %3149 = vmatpush1.bf16.msra.mxu0 %v2567
        %3150 = vmatprep.subr.bf16.mxu0 0
        %3151 = vmatpush1.bf16.msra.mxu0 %v2566
        %3152 = vmatprep.subr.bf16.mxu0 0
        %3153 = vmatpush1.bf16.msra.mxu0 %v2565
        %3154 = vmatprep.subr.bf16.mxu0 0
        %3155 = vmatpush1.bf16.msra.mxu0 %v2564
        %3156 = vmatprep.subr.bf16.mxu0 0
        %3157 = vmatpush2.bf16.msra.mxu0 %v2579
        %3158 = vmatprep.subr.bf16.mxu0 0
        %3159 = vmatpush2.bf16.msra.mxu0 %v2578
        %3160 = vmatprep.subr.bf16.mxu0 0
        %3161 = vmatpush2.bf16.msra.mxu0 %v2577
        %3162 = vmatprep.subr.bf16.mxu0 0
        %3163 = vmatpush2.bf16.msra.mxu0 %v2576
        %3164 = vmatprep.subr.bf16.mxu0 0
        %3165 = vmatpush2.bf16.msra.mxu0 %v2575
        %3166 = vmatprep.subr.bf16.mxu0 0
        %3167 = vmatpush2.bf16.msra.mxu0 %v2574
        %3168 = vmatprep.subr.bf16.mxu0 0
        %3169 = vmatpush2.bf16.msra.mxu0 %v2573
        %3170 = vmatprep.subr.bf16.mxu0 0
        %3171 = vmatpush2.bf16.msra.mxu0 %v2572
        %3172 = vmatprep.mubr.bf16.mxu0 %v1538
        %3173 = vmatmul.mubr.bf16.gmra.mxu0 %v1537
        %v3174 = vpop.f32.mrf.mxu0
        %v3175 = vadd.f32 %v3111, %v3174
        %v3176 = vpop.f32.mrf.mxu0
        %v3177 = vpop.f32.mrf.mxu0
        %v3178 = vadd.f32 %v3114, %v3177
        %v3179 = vpop.f32.mrf.mxu0
        %3180 = vmatprep.mubr.bf16.mxu0 %v1556
        %3181 = vmatmul.mubr.bf16.gmra.mxu0 %v1555
        %v3182 = vpop.f32.mrf.mxu0
        %v3183 = vadd.f32 %v3119, %v3182
        %v3184 = vpop.f32.mrf.mxu0
        %v3185 = vpop.f32.mrf.mxu0
        %v3186 = vadd.f32 %v3122, %v3185
        %v3187 = vpop.f32.mrf.mxu0
        %3188 = vmatprep.mubr.bf16.mxu0 %v1574
        %3189 = vmatmul.mubr.bf16.gmra.mxu0 %v1573
        %v3190 = vpop.f32.mrf.mxu0
        %v3191 = vadd.f32 %v3127, %v3190
        %v3192 = vpop.f32.mrf.mxu0
        %v3193 = vpop.f32.mrf.mxu0
        %v3194 = vadd.f32 %v3130, %v3193
        %v3195 = vpop.f32.mrf.mxu0
        %3196 = vmatprep.mubr.bf16.mxu0 %v1592
        %3197 = vmatmul.mubr.bf16.gmra.mxu0 %v1591
        %v3198 = vpop.f32.mrf.mxu0
        %v3199 = vadd.f32 %v3135, %v3198
        %v3200 = vpop.f32.mrf.mxu0
        %v3201 = vpop.f32.mrf.mxu0
        %v3202 = vpop.f32.mrf.mxu0
        %3203 = vdwg.mxu0
        %3204 = vmatprep.subr.bf16.mxu0 0
        %3205 = vmatpush1.bf16.msra.mxu0 %v2587
        %3206 = vmatprep.subr.bf16.mxu0 0
        %3207 = vmatpush1.bf16.msra.mxu0 %v2586
        %3208 = vmatprep.subr.bf16.mxu0 0
        %3209 = vmatpush1.bf16.msra.mxu0 %v2585
        %3210 = vmatprep.subr.bf16.mxu0 0
        %3211 = vmatpush1.bf16.msra.mxu0 %v2584
        %3212 = vmatprep.subr.bf16.mxu0 0
        %3213 = vmatpush1.bf16.msra.mxu0 %v2583
        %3214 = vmatprep.subr.bf16.mxu0 0
        %3215 = vmatpush1.bf16.msra.mxu0 %v2582
        %3216 = vmatprep.subr.bf16.mxu0 0
        %3217 = vmatpush1.bf16.msra.mxu0 %v2581
        %3218 = vmatprep.subr.bf16.mxu0 0
        %3219 = vmatpush1.bf16.msra.mxu0 %v2580
        %3220 = vmatprep.subr.bf16.mxu0 0
        %3221 = vmatpush2.bf16.msra.mxu0 %v2595
        %3222 = vmatprep.subr.bf16.mxu0 0
        %3223 = vmatpush2.bf16.msra.mxu0 %v2594
        %3224 = vmatprep.subr.bf16.mxu0 0
        %3225 = vmatpush2.bf16.msra.mxu0 %v2593
        %3226 = vmatprep.subr.bf16.mxu0 0
        %3227 = vmatpush2.bf16.msra.mxu0 %v2592
        %3228 = vmatprep.subr.bf16.mxu0 0
        %3229 = vmatpush2.bf16.msra.mxu0 %v2591
        %3230 = vmatprep.subr.bf16.mxu0 0
        %3231 = vmatpush2.bf16.msra.mxu0 %v2590
        %3232 = vmatprep.subr.bf16.mxu0 0
        %3233 = vmatpush2.bf16.msra.mxu0 %v2589
        %3234 = vmatprep.subr.bf16.mxu0 0
        %3235 = vmatpush2.bf16.msra.mxu0 %v2588
        %3236 = vmatprep.mubr.bf16.mxu0 %v1540
        %3237 = vmatmul.mubr.bf16.gmra.mxu0 %v1539
        %v3238 = vpop.f32.mrf.mxu0
        %v3239 = vadd.f32 %v3175, %v3238
        %v3240 = vpop.f32.mrf.mxu0
        %v3241 = vpop.f32.mrf.mxu0
        %v3242 = vadd.f32 %v3178, %v3241
        %v3243 = vpop.f32.mrf.mxu0
        %3244 = vmatprep.mubr.bf16.mxu0 %v1558
        %3245 = vmatmul.mubr.bf16.gmra.mxu0 %v1557
        %v3246 = vpop.f32.mrf.mxu0
        %v3247 = vadd.f32 %v3183, %v3246
        %v3248 = vpop.f32.mrf.mxu0
        %v3249 = vpop.f32.mrf.mxu0
        %v3250 = vadd.f32 %v3186, %v3249
        %v3251 = vpop.f32.mrf.mxu0
        %3252 = vmatprep.mubr.bf16.mxu0 %v1576
        %3253 = vmatmul.mubr.bf16.gmra.mxu0 %v1575
        %v3254 = vpop.f32.mrf.mxu0
        %v3255 = vadd.f32 %v3191, %v3254
        %v3256 = vpop.f32.mrf.mxu0
        %v3257 = vpop.f32.mrf.mxu0
        %v3258 = vadd.f32 %v3194, %v3257
        %v3259 = vpop.f32.mrf.mxu0
        %3260 = vmatprep.mubr.bf16.mxu0 %v1594
        %3261 = vmatmul.mubr.bf16.gmra.mxu0 %v1593
        %v3262 = vpop.f32.mrf.mxu0
        %v3263 = vadd.f32 %v3199, %v3262
        %v3264 = vpop.f32.mrf.mxu0
        %v3265 = vpop.f32.mrf.mxu0
        %v3266 = vpop.f32.mrf.mxu0
        %3267 = vdwg.mxu0
        %3268 = vmatprep.subr.bf16.mxu0 0
        %3269 = vmatpush1.bf16.msra.mxu0 %v2603
        %3270 = vmatprep.subr.bf16.mxu0 0
        %3271 = vmatpush1.bf16.msra.mxu0 %v2602
        %3272 = vmatprep.subr.bf16.mxu0 0
        %3273 = vmatpush1.bf16.msra.mxu0 %v2601
        %3274 = vmatprep.subr.bf16.mxu0 0
        %3275 = vmatpush1.bf16.msra.mxu0 %v2600
        %3276 = vmatprep.subr.bf16.mxu0 0
        %3277 = vmatpush1.bf16.msra.mxu0 %v2599
        %3278 = vmatprep.subr.bf16.mxu0 0
        %3279 = vmatpush1.bf16.msra.mxu0 %v2598
        %3280 = vmatprep.subr.bf16.mxu0 0
        %3281 = vmatpush1.bf16.msra.mxu0 %v2597
        %3282 = vmatprep.subr.bf16.mxu0 0
        %3283 = vmatpush1.bf16.msra.mxu0 %v2596
        %3284 = vmatprep.subr.bf16.mxu0 0
        %3285 = vmatpush2.bf16.msra.mxu0 %v2611
        %3286 = vmatprep.subr.bf16.mxu0 0
        %3287 = vmatpush2.bf16.msra.mxu0 %v2610
        %3288 = vmatprep.subr.bf16.mxu0 0
        %3289 = vmatpush2.bf16.msra.mxu0 %v2609
        %3290 = vmatprep.subr.bf16.mxu0 0
        %3291 = vmatpush2.bf16.msra.mxu0 %v2608
        %3292 = vmatprep.subr.bf16.mxu0 0
        %3293 = vmatpush2.bf16.msra.mxu0 %v2607
        %3294 = vmatprep.subr.bf16.mxu0 0
        %3295 = vmatpush2.bf16.msra.mxu0 %v2606
        %3296 = vmatprep.subr.bf16.mxu0 0
        %3297 = vmatpush2.bf16.msra.mxu0 %v2605
        %3298 = vmatprep.subr.bf16.mxu0 0
        %3299 = vmatpush2.bf16.msra.mxu0 %v2604
        %3300 = vmatprep.mubr.bf16.mxu0 %v1542
        %3301 = vmatmul.mubr.bf16.gmra.mxu0 %v1541
        %v3302 = vpop.f32.mrf.mxu0
        %v3303 = vadd.f32 %v3239, %v3302
        %v3304 = vpop.f32.mrf.mxu0
        %v3305 = vpop.f32.mrf.mxu0
        %v3306 = vadd.f32 %v3242, %v3305
        %v3307 = vpop.f32.mrf.mxu0
        %3308 = vmatprep.mubr.bf16.mxu0 %v1560
        %3309 = vmatmul.mubr.bf16.gmra.mxu0 %v1559
        %v3310 = vpop.f32.mrf.mxu0
        %v3311 = vadd.f32 %v3247, %v3310
        %v3312 = vpop.f32.mrf.mxu0
        %v3313 = vpop.f32.mrf.mxu0
        %v3314 = vadd.f32 %v3250, %v3313
        %v3315 = vpop.f32.mrf.mxu0
        %3316 = vmatprep.mubr.bf16.mxu0 %v1578
        %3317 = vmatmul.mubr.bf16.gmra.mxu0 %v1577
        %v3318 = vpop.f32.mrf.mxu0
        %v3319 = vadd.f32 %v3255, %v3318
        %v3320 = vpop.f32.mrf.mxu0
        %v3321 = vpop.f32.mrf.mxu0
        %v3322 = vadd.f32 %v3258, %v3321
        %v3323 = vpop.f32.mrf.mxu0
        %3324 = vmatprep.mubr.bf16.mxu0 %v1596
        %3325 = vmatmul.mubr.bf16.gmra.mxu0 %v1595
        %v3326 = vpop.f32.mrf.mxu0
        %v3327 = vadd.f32 %v3263, %v3326
        %v3328 = vpop.f32.mrf.mxu0
        %v3329 = vpop.f32.mrf.mxu0
        %v3330 = vpop.f32.mrf.mxu0
        %3331 = vdwg.mxu0
        %v3332 = vmax.f32 %v3303, 0.0
        %v3333 = vmax.f32 %v3306, 0.0
        %v3334 = vmax.f32 %v3311, 0.0
        %v3335 = vmax.f32 %v3314, 0.0
        %v3336 = vmax.f32 %v3319, 0.0
        %v3337 = vmax.f32 %v3322, 0.0
        %v3338 = vmax.f32 %v3327, 0.0
        %3339 = vst [vmem:[#allocation4] sm:$0x7f] 0.0
        %3340 = vst [vmem:[#allocation4 + $0x8] sm:$0x7f] 0.0
        %3341 = vst [vmem:[#allocation4 + $0x10] sm:$0x7f] 0.0
        %3342 = vst [vmem:[#allocation4 + $0x18] sm:$0x7f] 0.0
        %3343 = vst [vmem:[#allocation4 + $0x20] sm:$0x7f] 0.0
        %3344 = vst [vmem:[#allocation4 + $0x28] sm:$0x7f] 0.0
        %3345 = vst [vmem:[#allocation4 + $0x30] sm:$0x7f] 0.0
        %v3346 = vmax.f32 %v3332, %v3333
        %v3347 = vmax.f32 %v3346, %v3334
        %vm3348 = vcmask 1042432
        %v3349 = vsel %vm3348, %v3347, -inf
        %v3350 = vrot.slane %v3349, 4
        %v3351 = vmax.f32 %v3349, %v3350
        %v3352 = vrot.slane %v3351, 2
        %v3353 = vmax.f32 %v3351, %v3352
        %v3354 = vrot.slane %v3353, 1
        %v3355 = vmax.f32 %v3353, %v3354
        %vm3356 = vcmask 1044482
        %v3357 = vsel %vm3356, %v3347, -inf
        %v3358 = vrot.slane %v3357, 4
        %v3359 = vmax.f32 %v3357, %v3358
        %v3360 = vrot.slane %v3359, 2
        %v3361 = vmax.f32 %v3359, %v3360
        %v3362 = vrot.slane %v3361, 1
        %v3363 = vmax.f32 %v3361, %v3362
        %vm3364 = vcmask 1046532
        %v3365 = vsel %vm3364, %v3347, -inf
        %v3366 = vrot.slane %v3365, 4
        %v3367 = vmax.f32 %v3365, %v3366
        %v3368 = vrot.slane %v3367, 2
        %v3369 = vmax.f32 %v3367, %v3368
        %v3370 = vrot.slane %v3369, 1
        %v3371 = vmax.f32 %v3369, %v3370
        %vm3372 = vcmask 1040384
        %v3373 = vsel %vm3372, %v3355, %v3363
        %vm3374 = vcmask 1041408
        %v3375 = vsel %vm3374, %v3373, %v3371
        %s3376 = scalar_lea.vmem [#allocation4], 16
        %3377 = vst [vmem:[%s3376 + $0x2] sm:$0x7] %v3375
        %v3378 = vmax.f32 %v3334, %v3335
        %v3379 = vmax.f32 %v3378, %v3336
        %v3380 = vsel %vm3348, %v3379, -inf
        %v3381 = vrot.slane %v3380, 4
        %v3382 = vmax.f32 %v3380, %v3381
        %v3383 = vrot.slane %v3382, 2
        %v3384 = vmax.f32 %v3382, %v3383
        %v3385 = vrot.slane %v3384, 1
        %v3386 = vmax.f32 %v3384, %v3385
        %v3387 = vsel %vm3356, %v3379, -inf
        %v3388 = vrot.slane %v3387, 4
        %v3389 = vmax.f32 %v3387, %v3388
        %v3390 = vrot.slane %v3389, 2
        %v3391 = vmax.f32 %v3389, %v3390
        %v3392 = vrot.slane %v3391, 1
        %v3393 = vmax.f32 %v3391, %v3392
        %v3394 = vsel %vm3364, %v3379, -inf
        %v3395 = vrot.slane %v3394, 4
        %v3396 = vmax.f32 %v3394, %v3395
        %v3397 = vrot.slane %v3396, 2
        %v3398 = vmax.f32 %v3396, %v3397
        %v3399 = vrot.slane %v3398, 1
        %v3400 = vmax.f32 %v3398, %v3399
        %v3401 = vsel %vm3372, %v3386, %v3393
        %v3402 = vsel %vm3374, %v3401, %v3400
        %s3403 = scalar_lea.vmem [#allocation4], 24
        %3404 = vst [vmem:[%s3403 + $0x2] sm:$0x7] %v3402
        %v3405 = vmax.f32 %v3336, %v3337
        %v3406 = vmax.f32 %v3405, %v3338
        %v3407 = vsel %vm3348, %v3406, -inf
        %v3408 = vrot.slane %v3407, 4
        %v3409 = vmax.f32 %v3407, %v3408
        %v3410 = vrot.slane %v3409, 2
        %v3411 = vmax.f32 %v3409, %v3410
        %v3412 = vrot.slane %v3411, 1
        %v3413 = vmax.f32 %v3411, %v3412
        %v3414 = vsel %vm3356, %v3406, -inf
        %v3415 = vrot.slane %v3414, 4
        %v3416 = vmax.f32 %v3414, %v3415
        %v3417 = vrot.slane %v3416, 2
        %v3418 = vmax.f32 %v3416, %v3417
        %v3419 = vrot.slane %v3418, 1
        %v3420 = vmax.f32 %v3418, %v3419
        %v3421 = vsel %vm3364, %v3406, -inf
        %v3422 = vrot.slane %v3421, 4
        %v3423 = vmax.f32 %v3421, %v3422
        %v3424 = vrot.slane %v3423, 2
        %v3425 = vmax.f32 %v3423, %v3424
        %v3426 = vrot.slane %v3425, 1
        %v3427 = vmax.f32 %v3425, %v3426
        %v3428 = vsel %vm3372, %v3413, %v3420
        %v3429 = vsel %vm3374, %v3428, %v3427
        %s3430 = scalar_lea.vmem [#allocation4], 32
        %3431 = vst [vmem:[%s3430 + $0x2] sm:$0x7] %v3429
        %v3432 = vld [vmem:[#allocation4] sm:$0x7]
        %v3433 = vld [vmem:[#allocation4 + $0x8] sm:$0x7]
        %v3434 = vld [vmem:[#allocation4 + $0x10] sm:$0x7]
        %3435 = vst [vmem:[#allocation3] sm:$0x7] %v3432
        %3436 = vst [vmem:[#allocation3 + $0xc8] sm:$0x7] %v3433
        %3437 = vst [vmem:[#allocation3 + $0x190] sm:$0x7] %v3434
        %v3438 = vld [vmem:[#allocation4 + $0x1] sm:$0x7]
        %v3439 = vld [vmem:[#allocation4 + $0x9] sm:$0x7]
        %v3440 = vld [vmem:[#allocation4 + $0x11] sm:$0x7]
        %3441 = vst [vmem:[#allocation3 + $0x8] sm:$0x7] %v3438
        %3442 = vst [vmem:[#allocation3 + $0xd0] sm:$0x7] %v3439
        %3443 = vst [vmem:[#allocation3 + $0x198] sm:$0x7] %v3440
        %v3444 = vld [vmem:[#allocation4 + $0x2] sm:$0x7]
        %v3445 = vld [vmem:[#allocation4 + $0xa] sm:$0x7]
        %v3446 = vld [vmem:[#allocation4 + $0x12] sm:$0x7]
        %3447 = vst [vmem:[#allocation3 + $0x10] sm:$0x7] %v3444
        %3448 = vst [vmem:[#allocation3 + $0xd8] sm:$0x7] %v3445
        %3449 = vst [vmem:[#allocation3 + $0x1a0] sm:$0x7] %v3446
        %v3450 = vld [vmem:[#allocation4 + $0x3] sm:$0x7]
        %v3451 = vld [vmem:[#allocation4 + $0xb] sm:$0x7]
        %v3452 = vld [vmem:[#allocation4 + $0x13] sm:$0x7]
        %3453 = vst [vmem:[#allocation3 + $0x18] sm:$0x7] %v3450
        %3454 = vst [vmem:[#allocation3 + $0xe0] sm:$0x7] %v3451
        %3455 = vst [vmem:[#allocation3 + $0x1a8] sm:$0x7] %v3452
        %v3456 = vld [vmem:[#allocation4 + $0x4] sm:$0x7]
        %v3457 = vld [vmem:[#allocation4 + $0xc] sm:$0x7]
        %v3458 = vld [vmem:[#allocation4 + $0x14] sm:$0x7]
        %3459 = vst [vmem:[#allocation3 + $0x20] sm:$0x7] %v3456
        %3460 = vst [vmem:[#allocation3 + $0xe8] sm:$0x7] %v3457
        %3461 = vst [vmem:[#allocation3 + $0x1b0] sm:$0x7] %v3458
        %s3462 = scalar_lea.vmem [#allocation4], 8
        %v3463 = vld [vmem:[%s3462] sm:$0x7]
        %v3464 = vld [vmem:[%s3462 + $0x8] sm:$0x7]
        %v3465 = vld [vmem:[%s3462 + $0x10] sm:$0x7]
        %3466 = vst [vmem:[#allocation3 + $0x28] sm:$0x7] %v3463
        %3467 = vst [vmem:[#allocation3 + $0xf0] sm:$0x7] %v3464
        %3468 = vst [vmem:[#allocation3 + $0x1b8] sm:$0x7] %v3465
        %v3469 = vld [vmem:[%s3462 + $0x1] sm:$0x7]
        %v3470 = vld [vmem:[%s3462 + $0x9] sm:$0x7]
        %v3471 = vld [vmem:[%s3462 + $0x11] sm:$0x7]
        %3472 = vst [vmem:[#allocation3 + $0x30] sm:$0x7] %v3469
        %3473 = vst [vmem:[#allocation3 + $0xf8] sm:$0x7] %v3470
        %3474 = vst [vmem:[#allocation3 + $0x1c0] sm:$0x7] %v3471
        %v3475 = vld [vmem:[%s3462 + $0x2] sm:$0x7]
        %v3476 = vld [vmem:[%s3462 + $0xa] sm:$0x7]
        %v3477 = vld [vmem:[%s3462 + $0x12] sm:$0x7]
        %3478 = vst [vmem:[#allocation3 + $0x38] sm:$0x7] %v3475
        %3479 = vst [vmem:[#allocation3 + $0x100] sm:$0x7] %v3476
        %3480 = vst [vmem:[#allocation3 + $0x1c8] sm:$0x7] %v3477
        %v3481 = vld [vmem:[%s3462 + $0x3] sm:$0x7]
        %v3482 = vld [vmem:[%s3462 + $0xb] sm:$0x7]
        %v3483 = vld [vmem:[%s3462 + $0x13] sm:$0x7]
        %3484 = vst [vmem:[#allocation3 + $0x40] sm:$0x7] %v3481
        %3485 = vst [vmem:[#allocation3 + $0x108] sm:$0x7] %v3482
        %3486 = vst [vmem:[#allocation3 + $0x1d0] sm:$0x7] %v3483
        %v3487 = vld [vmem:[%s3462 + $0x4] sm:$0x7]
        %v3488 = vld [vmem:[%s3462 + $0xc] sm:$0x7]
        %v3489 = vld [vmem:[%s3462 + $0x14] sm:$0x7]
        %3490 = vst [vmem:[#allocation3 + $0x48] sm:$0x7] %v3487
        %3491 = vst [vmem:[#allocation3 + $0x110] sm:$0x7] %v3488
        %3492 = vst [vmem:[#allocation3 + $0x1d8] sm:$0x7] %v3489
        %v3493 = vld [vmem:[%s3376] sm:$0x7]
        %v3494 = vld [vmem:[%s3376 + $0x8] sm:$0x7]
        %v3495 = vld [vmem:[%s3376 + $0x10] sm:$0x7]
        %3496 = vst [vmem:[#allocation3 + $0x50] sm:$0x7] %v3493
        %3497 = vst [vmem:[#allocation3 + $0x118] sm:$0x7] %v3494
        %3498 = vst [vmem:[#allocation3 + $0x1e0] sm:$0x7] %v3495
        %v3499 = vld [vmem:[%s3376 + $0x1] sm:$0x7]
        %v3500 = vld [vmem:[%s3376 + $0x9] sm:$0x7]
        %v3501 = vld [vmem:[%s3376 + $0x11] sm:$0x7]
        %3502 = vst [vmem:[#allocation3 + $0x58] sm:$0x7] %v3499
        %3503 = vst [vmem:[#allocation3 + $0x120] sm:$0x7] %v3500
        %3504 = vst [vmem:[#allocation3 + $0x1e8] sm:$0x7] %v3501
        %v3505 = vld [vmem:[%s3376 + $0x2] sm:$0x7]
        %v3506 = vld [vmem:[%s3376 + $0xa] sm:$0x7]
        %v3507 = vld [vmem:[%s3376 + $0x12] sm:$0x7]
        %3508 = vst [vmem:[#allocation3 + $0x60] sm:$0x7] %v3505
        %3509 = vst [vmem:[#allocation3 + $0x128] sm:$0x7] %v3506
        %3510 = vst [vmem:[#allocation3 + $0x1f0] sm:$0x7] %v3507
        %v3511 = vld [vmem:[%s3376 + $0x3] sm:$0x7]
        %v3512 = vld [vmem:[%s3376 + $0xb] sm:$0x7]
        %v3513 = vld [vmem:[%s3376 + $0x13] sm:$0x7]
        %3514 = vst [vmem:[#allocation3 + $0x68] sm:$0x7] %v3511
        %3515 = vst [vmem:[#allocation3 + $0x130] sm:$0x7] %v3512
        %3516 = vst [vmem:[#allocation3 + $0x1f8] sm:$0x7] %v3513
        %v3517 = vld [vmem:[%s3376 + $0x4] sm:$0x7]
        %v3518 = vld [vmem:[%s3376 + $0xc] sm:$0x7]
        %v3519 = vld [vmem:[%s3376 + $0x14] sm:$0x7]
        %3520 = vst [vmem:[#allocation3 + $0x70] sm:$0x7] %v3517
        %3521 = vst [vmem:[#allocation3 + $0x138] sm:$0x7] %v3518
        %3522 = vst [vmem:[#allocation3 + $0x200] sm:$0x7] %v3519
        %v3523 = vld [vmem:[%s3403] sm:$0x7]
        %v3524 = vld [vmem:[%s3403 + $0x8] sm:$0x7]
        %v3525 = vld [vmem:[%s3403 + $0x10] sm:$0x7]
        %3526 = vst [vmem:[#allocation3 + $0x78] sm:$0x7] %v3523
        %3527 = vst [vmem:[#allocation3 + $0x140] sm:$0x7] %v3524
        %3528 = vst [vmem:[#allocation3 + $0x208] sm:$0x7] %v3525
        %v3529 = vld [vmem:[%s3403 + $0x1] sm:$0x7]
        %v3530 = vld [vmem:[%s3403 + $0x9] sm:$0x7]
        %v3531 = vld [vmem:[%s3403 + $0x11] sm:$0x7]
        %3532 = vst [vmem:[#allocation3 + $0x80] sm:$0x7] %v3529
        %3533 = vst [vmem:[#allocation3 + $0x148] sm:$0x7] %v3530
        %3534 = vst [vmem:[#allocation3 + $0x210] sm:$0x7] %v3531
        %v3535 = vld [vmem:[%s3403 + $0x2] sm:$0x7]
        %v3536 = vld [vmem:[%s3403 + $0xa] sm:$0x7]
        %v3537 = vld [vmem:[%s3403 + $0x12] sm:$0x7]
        %3538 = vst [vmem:[#allocation3 + $0x88] sm:$0x7] %v3535
        %3539 = vst [vmem:[#allocation3 + $0x150] sm:$0x7] %v3536
        %3540 = vst [vmem:[#allocation3 + $0x218] sm:$0x7] %v3537
        %v3541 = vld [vmem:[%s3403 + $0x3] sm:$0x7]
        %v3542 = vld [vmem:[%s3403 + $0xb] sm:$0x7]
        %v3543 = vld [vmem:[%s3403 + $0x13] sm:$0x7]
        %3544 = vst [vmem:[#allocation3 + $0x90] sm:$0x7] %v3541
        %3545 = vst [vmem:[#allocation3 + $0x158] sm:$0x7] %v3542
        %3546 = vst [vmem:[#allocation3 + $0x220] sm:$0x7] %v3543
        %v3547 = vld [vmem:[%s3403 + $0x4] sm:$0x7]
        %v3548 = vld [vmem:[%s3403 + $0xc] sm:$0x7]
        %v3549 = vld [vmem:[%s3403 + $0x14] sm:$0x7]
        %3550 = vst [vmem:[#allocation3 + $0x98] sm:$0x7] %v3547
        %3551 = vst [vmem:[#allocation3 + $0x160] sm:$0x7] %v3548
        %3552 = vst [vmem:[#allocation3 + $0x228] sm:$0x7] %v3549
        %v3553 = vld [vmem:[%s3430] sm:$0x7]
        %v3554 = vld [vmem:[%s3430 + $0x8] sm:$0x7]
        %v3555 = vld [vmem:[%s3430 + $0x10] sm:$0x7]
        %3556 = vst [vmem:[#allocation3 + $0xa0] sm:$0x7] %v3553
        %3557 = vst [vmem:[#allocation3 + $0x168] sm:$0x7] %v3554
        %3558 = vst [vmem:[#allocation3 + $0x230] sm:$0x7] %v3555
        %v3559 = vld [vmem:[%s3430 + $0x1] sm:$0x7]
        %v3560 = vld [vmem:[%s3430 + $0x9] sm:$0x7]
        %v3561 = vld [vmem:[%s3430 + $0x11] sm:$0x7]
        %3562 = vst [vmem:[#allocation3 + $0xa8] sm:$0x7] %v3559
        %3563 = vst [vmem:[#allocation3 + $0x170] sm:$0x7] %v3560
        %3564 = vst [vmem:[#allocation3 + $0x238] sm:$0x7] %v3561
        %v3565 = vld [vmem:[%s3430 + $0x2] sm:$0x7]
        %v3566 = vld [vmem:[%s3430 + $0xa] sm:$0x7]
        %v3567 = vld [vmem:[%s3430 + $0x12] sm:$0x7]
        %3568 = vst [vmem:[#allocation3 + $0xb0] sm:$0x7] %v3565
        %3569 = vst [vmem:[#allocation3 + $0x178] sm:$0x7] %v3566
        %3570 = vst [vmem:[#allocation3 + $0x240] sm:$0x7] %v3567
        %v3571 = vld [vmem:[%s3430 + $0x3] sm:$0x7]
        %v3572 = vld [vmem:[%s3430 + $0xb] sm:$0x7]
        %v3573 = vld [vmem:[%s3430 + $0x13] sm:$0x7]
        %3574 = vst [vmem:[#allocation3 + $0xb8] sm:$0x7] %v3571
        %3575 = vst [vmem:[#allocation3 + $0x180] sm:$0x7] %v3572
        %3576 = vst [vmem:[#allocation3 + $0x248] sm:$0x7] %v3573
        %v3577 = vld [vmem:[%s3430 + $0x4] sm:$0x7]
        %v3578 = vld [vmem:[%s3430 + $0xc] sm:$0x7]
        %v3579 = vld [vmem:[%s3430 + $0x14] sm:$0x7]
        %3580 = vst [vmem:[#allocation3 + $0xc0] sm:$0x7] %v3577
        %3581 = vst [vmem:[#allocation3 + $0x188] sm:$0x7] %v3578
        %3582 = vst [vmem:[#allocation3 + $0x250] sm:$0x7] %v3579
        %s3583 = smul.u32 4, 400
        %s3584 = smul.u32 %s3583, 1
        %s3585 = sshll.u32 %s3584, 4
        %3586 = dma.done [#allocation7], %s3585
        %v3587 = vld [vmem:[#allocation3] sm:$0xff]
        %v3588 = vld [vmem:[#allocation3 + $0x8] sm:$0xff]
        %v3589 = vld [vmem:[#allocation3 + $0x10] sm:$0xff]
        %v3590 = vld [vmem:[#allocation3 + $0x18] sm:$0xff]
        %v3591 = vld [vmem:[#allocation3 + $0x20] sm:$0xff]
        %v3592 = vld [vmem:[#allocation3 + $0x28] sm:$0xff]
        %v3593 = vld [vmem:[#allocation3 + $0x30] sm:$0xff]
        %v3594 = vld [vmem:[#allocation3 + $0x38] sm:$0xff]
        %v3595 = vld [vmem:[#allocation3 + $0x40] sm:$0xff]
        %v3596 = vld [vmem:[#allocation3 + $0x48] sm:$0xff]
        %v3597 = vld [vmem:[#allocation3 + $0x50] sm:$0xff]
        %v3598 = vld [vmem:[#allocation3 + $0x58] sm:$0xff]
        %v3599 = vld [vmem:[#allocation3 + $0x60] sm:$0xff]
        %v3600 = vld [vmem:[#allocation3 + $0x68] sm:$0xff]
        %v3601 = vld [vmem:[#allocation3 + $0x70] sm:$0xff]
        %v3602 = vld [vmem:[#allocation3 + $0x78] sm:$0xff]
        %v3603 = vld [vmem:[#allocation3 + $0x80] sm:$0xff]
        %v3604 = vld [vmem:[#allocation3 + $0x88] sm:$0xff]
        %v3605 = vld [vmem:[#allocation3 + $0x90] sm:$0xff]
        %v3606 = vld [vmem:[#allocation3 + $0x98] sm:$0xff]
        %v3607 = vld [vmem:[#allocation3 + $0xa0] sm:$0xff]
        %v3608 = vld [vmem:[#allocation3 + $0xa8] sm:$0xff]
        %v3609 = vld [vmem:[#allocation3 + $0xb0] sm:$0xff]
        %v3610 = vld [vmem:[#allocation3 + $0xb8] sm:$0xff]
        %v3611 = vld [vmem:[#allocation3 + $0xc0] sm:$0xff]
        %v3612 = vld [vmem:[#allocation3 + $0xc8] sm:$0xff]
        %v3613 = vld [vmem:[#allocation3 + $0xd0] sm:$0xff]
        %v3614 = vld [vmem:[#allocation3 + $0xd8] sm:$0xff]
        %v3615 = vld [vmem:[#allocation3 + $0xe0] sm:$0xff]
        %v3616 = vld [vmem:[#allocation3 + $0xe8] sm:$0xff]
        %v3617 = vld [vmem:[#allocation3 + $0xf0] sm:$0xff]
        %v3618 = vld [vmem:[#allocation3 + $0xf8] sm:$0xff]
        %v3619 = vld [vmem:[#allocation3 + $0x100] sm:$0xff]
        %v3620 = vld [vmem:[#allocation3 + $0x108] sm:$0xff]
        %v3621 = vld [vmem:[#allocation3 + $0x110] sm:$0xff]
        %v3622 = vld [vmem:[#allocation3 + $0x118] sm:$0xff]
        %v3623 = vld [vmem:[#allocation3 + $0x120] sm:$0xff]
        %v3624 = vld [vmem:[#allocation3 + $0x128] sm:$0xff]
        %v3625 = vld [vmem:[#allocation3 + $0x130] sm:$0xff]
        %v3626 = vld [vmem:[#allocation3 + $0x138] sm:$0xff]
        %v3627 = vld [vmem:[#allocation3 + $0x140] sm:$0xff]
        %v3628 = vld [vmem:[#allocation3 + $0x148] sm:$0xff]
        %v3629 = vld [vmem:[#allocation3 + $0x150] sm:$0xff]
        %v3630 = vld [vmem:[#allocation3 + $0x158] sm:$0xff]
        %v3631 = vld [vmem:[#allocation3 + $0x160] sm:$0xff]
        %v3632 = vld [vmem:[#allocation3 + $0x168] sm:$0xff]
        %v3633 = vld [vmem:[#allocation3 + $0x170] sm:$0xff]
        %v3634 = vld [vmem:[#allocation3 + $0x178] sm:$0xff]
        %v3635 = vld [vmem:[#allocation3 + $0x180] sm:$0xff]
        %v3636 = vld [vmem:[#allocation3 + $0x188] sm:$0xff]
        %v3637 = vld [vmem:[#allocation3 + $0x190] sm:$0xff]
        %v3638 = vld [vmem:[#allocation3 + $0x198] sm:$0xff]
        %v3639 = vld [vmem:[#allocation3 + $0x1a0] sm:$0xff]
        %v3640 = vld [vmem:[#allocation3 + $0x1a8] sm:$0xff]
        %v3641 = vld [vmem:[#allocation3 + $0x1b0] sm:$0xff]
        %v3642 = vld [vmem:[#allocation3 + $0x1b8] sm:$0xff]
        %v3643 = vld [vmem:[#allocation3 + $0x1c0] sm:$0xff]
        %v3644 = vld [vmem:[#allocation3 + $0x1c8] sm:$0xff]
        %v3645 = vld [vmem:[#allocation3 + $0x1d0] sm:$0xff]
        %v3646 = vld [vmem:[#allocation3 + $0x1d8] sm:$0xff]
        %v3647 = vld [vmem:[#allocation3 + $0x1e0] sm:$0xff]
        %v3648 = vld [vmem:[#allocation3 + $0x1e8] sm:$0xff]
        %v3649 = vld [vmem:[#allocation3 + $0x1f0] sm:$0xff]
        %v3650 = vld [vmem:[#allocation3 + $0x1f8] sm:$0xff]
        %v3651 = vld [vmem:[#allocation3 + $0x200] sm:$0xff]
        %v3652 = vld [vmem:[#allocation3 + $0x208] sm:$0xff]
        %v3653 = vld [vmem:[#allocation3 + $0x210] sm:$0xff]
        %v3654 = vld [vmem:[#allocation3 + $0x218] sm:$0xff]
        %v3655 = vld [vmem:[#allocation3 + $0x220] sm:$0xff]
        %v3656 = vld [vmem:[#allocation3 + $0x228] sm:$0xff]
        %v3657 = vld [vmem:[#allocation3 + $0x230] sm:$0xff]
        %v3658 = vld [vmem:[#allocation3 + $0x238] sm:$0xff]
        %v3659 = vld [vmem:[#allocation3 + $0x240] sm:$0xff]
        %v3660 = vld [vmem:[#allocation3 + $0x248] sm:$0xff]
        %v3661 = vld [vmem:[#allocation3 + $0x250] sm:$0xff]
        %v3662 = vpack.c.bf16 %v3612, %v3587
        %v3663 = vpack.c.bf16 %v3613, %v3588
        %v3664 = vpack.c.bf16 %v3614, %v3589
        %v3665 = vpack.c.bf16 %v3615, %v3590
        %v3666 = vpack.c.bf16 %v3616, %v3591
        %v3667 = vpack.c.bf16 %v3617, %v3592
        %v3668 = vpack.c.bf16 %v3618, %v3593
        %v3669 = vpack.c.bf16 %v3619, %v3594
        %v3670 = vpack.c.bf16 %v3620, %v3595
        %v3671 = vpack.c.bf16 %v3621, %v3596
        %v3672 = vpack.c.bf16 %v3622, %v3597
        %v3673 = vpack.c.bf16 %v3623, %v3598
        %v3674 = vpack.c.bf16 %v3624, %v3599
        %v3675 = vpack.c.bf16 %v3625, %v3600
        %v3676 = vpack.c.bf16 %v3626, %v3601
        %v3677 = vpack.c.bf16 %v3627, %v3602
        %v3678 = vpack.c.bf16 %v3628, %v3603
        %v3679 = vpack.c.bf16 %v3629, %v3604
        %v3680 = vpack.c.bf16 %v3630, %v3605
        %v3681 = vpack.c.bf16 %v3631, %v3606
        %v3682 = vpack.c.bf16 %v3632, %v3607
        %v3683 = vpack.c.bf16 %v3633, %v3608
        %v3684 = vpack.c.bf16 %v3634, %v3609
        %v3685 = vpack.c.bf16 %v3635, %v3610
        %v3686 = vpack.c.bf16 %v3636, %v3611
        %v3687 = vpack.c.bf16 %v3637, %v3637
        %v3688 = vpack.c.bf16 %v3638, %v3638
        %v3689 = vpack.c.bf16 %v3639, %v3639
        %v3690 = vpack.c.bf16 %v3640, %v3640
        %v3691 = vpack.c.bf16 %v3641, %v3641
        %v3692 = vpack.c.bf16 %v3642, %v3642
        %v3693 = vpack.c.bf16 %v3643, %v3643
        %v3694 = vpack.c.bf16 %v3644, %v3644
        %v3695 = vpack.c.bf16 %v3645, %v3645
        %v3696 = vpack.c.bf16 %v3646, %v3646
        %v3697 = vpack.c.bf16 %v3647, %v3647
        %v3698 = vpack.c.bf16 %v3648, %v3648
        %v3699 = vpack.c.bf16 %v3649, %v3649
        %v3700 = vpack.c.bf16 %v3650, %v3650
        %v3701 = vpack.c.bf16 %v3651, %v3651
        %v3702 = vpack.c.bf16 %v3652, %v3652
        %v3703 = vpack.c.bf16 %v3653, %v3653
        %v3704 = vpack.c.bf16 %v3654, %v3654
        %v3705 = vpack.c.bf16 %v3655, %v3655
        %v3706 = vpack.c.bf16 %v3656, %v3656
        %v3707 = vpack.c.bf16 %v3657, %v3657
        %v3708 = vpack.c.bf16 %v3658, %v3658
        %v3709 = vpack.c.bf16 %v3659, %v3659
        %v3710 = vpack.c.bf16 %v3660, %v3660
        %v3711 = vpack.c.bf16 %v3661, %v3661
        %v3712 = vld [vmem:[#allocation5] sm:$0xf]
        %v3713 = vld [vmem:[#allocation5 + $0x4] sm:$0xf]
        %v3714 = vld [vmem:[#allocation5 + $0x8] sm:$0xf]
        %v3715 = vld [vmem:[#allocation5 + $0xc] sm:$0xf]
        %v3716 = vld [vmem:[#allocation5 + $0x10] sm:$0xf]
        %v3717 = vld [vmem:[#allocation5 + $0x14] sm:$0xf]
        %v3718 = vld [vmem:[#allocation5 + $0x18] sm:$0xf]
        %v3719 = vld [vmem:[#allocation5 + $0x1c] sm:$0xf]
        %v3720 = vld [vmem:[#allocation5 + $0x20] sm:$0xf]
        %v3721 = vld [vmem:[#allocation5 + $0x24] sm:$0xf]
        %v3722 = vld [vmem:[#allocation5 + $0x28] sm:$0xf]
        %v3723 = vld [vmem:[#allocation5 + $0x2c] sm:$0xf]
        %v3724 = vld [vmem:[#allocation5 + $0x30] sm:$0xf]
        %v3725 = vld [vmem:[#allocation5 + $0x34] sm:$0xf]
        %v3726 = vld [vmem:[#allocation5 + $0x38] sm:$0xf]
        %v3727 = vld [vmem:[#allocation5 + $0x3c] sm:$0xf]
        %v3728 = vld [vmem:[#allocation5 + $0x40] sm:$0xf]
        %v3729 = vld [vmem:[#allocation5 + $0x44] sm:$0xf]
        %v3730 = vld [vmem:[#allocation5 + $0x48] sm:$0xf]
        %v3731 = vld [vmem:[#allocation5 + $0x4c] sm:$0xf]
        %v3732 = vld [vmem:[#allocation5 + $0x50] sm:$0xf]
        %v3733 = vld [vmem:[#allocation5 + $0x54] sm:$0xf]
        %v3734 = vld [vmem:[#allocation5 + $0x58] sm:$0xf]
        %v3735 = vld [vmem:[#allocation5 + $0x5c] sm:$0xf]
        %v3736 = vld [vmem:[#allocation5 + $0x60] sm:$0xf]
        %v3737 = vld [vmem:[#allocation5 + $0x64] sm:$0xf]
        %v3738 = vld [vmem:[#allocation5 + $0x68] sm:$0xf]
        %v3739 = vld [vmem:[#allocation5 + $0x6c] sm:$0xf]
        %v3740 = vld [vmem:[#allocation5 + $0x70] sm:$0xf]
        %v3741 = vld [vmem:[#allocation5 + $0x74] sm:$0xf]
        %v3742 = vld [vmem:[#allocation5 + $0x78] sm:$0xf]
        %v3743 = vld [vmem:[#allocation5 + $0x7c] sm:$0xf]
        %v3744 = vld [vmem:[#allocation5 + $0x80] sm:$0xf]
        %v3745 = vld [vmem:[#allocation5 + $0x84] sm:$0xf]
        %v3746 = vld [vmem:[#allocation5 + $0x88] sm:$0xf]
        %v3747 = vld [vmem:[#allocation5 + $0x8c] sm:$0xf]
        %v3748 = vld [vmem:[#allocation5 + $0x90] sm:$0xf]
        %v3749 = vld [vmem:[#allocation5 + $0x94] sm:$0xf]
        %v3750 = vld [vmem:[#allocation5 + $0x98] sm:$0xf]
        %v3751 = vld [vmem:[#allocation5 + $0x9c] sm:$0xf]
        %v3752 = vld [vmem:[#allocation5 + $0xa0] sm:$0xf]
        %v3753 = vld [vmem:[#allocation5 + $0xa4] sm:$0xf]
        %v3754 = vld [vmem:[#allocation5 + $0xa8] sm:$0xf]
        %v3755 = vld [vmem:[#allocation5 + $0xac] sm:$0xf]
        %v3756 = vld [vmem:[#allocation5 + $0xb0] sm:$0xf]
        %v3757 = vld [vmem:[#allocation5 + $0xb4] sm:$0xf]
        %v3758 = vld [vmem:[#allocation5 + $0xb8] sm:$0xf]
        %v3759 = vld [vmem:[#allocation5 + $0xbc] sm:$0xf]
        %v3760 = vld [vmem:[#allocation5 + $0xc0] sm:$0xf]
        %v3761 = vld [vmem:[#allocation5 + $0xc4] sm:$0xf]
        %v3762 = vld [vmem:[#allocation5 + $0xc8] sm:$0xf]
        %v3763 = vld [vmem:[#allocation5 + $0xcc] sm:$0xf]
        %v3764 = vld [vmem:[#allocation5 + $0xd0] sm:$0xf]
        %v3765 = vld [vmem:[#allocation5 + $0xd4] sm:$0xf]
        %v3766 = vld [vmem:[#allocation5 + $0xd8] sm:$0xf]
        %v3767 = vld [vmem:[#allocation5 + $0xdc] sm:$0xf]
        %v3768 = vld [vmem:[#allocation5 + $0xe0] sm:$0xf]
        %v3769 = vld [vmem:[#allocation5 + $0xe4] sm:$0xf]
        %v3770 = vld [vmem:[#allocation5 + $0xe8] sm:$0xf]
        %v3771 = vld [vmem:[#allocation5 + $0xec] sm:$0xf]
        %v3772 = vld [vmem:[#allocation5 + $0xf0] sm:$0xf]
        %v3773 = vld [vmem:[#allocation5 + $0xf4] sm:$0xf]
        %v3774 = vld [vmem:[#allocation5 + $0xf8] sm:$0xf]
        %v3775 = vld [vmem:[#allocation5 + $0xfc] sm:$0xf]
        %v3776 = vld [vmem:[#allocation5 + $0x100] sm:$0xf]
        %v3777 = vld [vmem:[#allocation5 + $0x104] sm:$0xf]
        %v3778 = vld [vmem:[#allocation5 + $0x108] sm:$0xf]
        %v3779 = vld [vmem:[#allocation5 + $0x10c] sm:$0xf]
        %v3780 = vld [vmem:[#allocation5 + $0x110] sm:$0xf]
        %v3781 = vld [vmem:[#allocation5 + $0x114] sm:$0xf]
        %v3782 = vld [vmem:[#allocation5 + $0x118] sm:$0xf]
        %v3783 = vld [vmem:[#allocation5 + $0x11c] sm:$0xf]
        %v3784 = vld [vmem:[#allocation5 + $0x120] sm:$0xf]
        %v3785 = vld [vmem:[#allocation5 + $0x124] sm:$0xf]
        %v3786 = vld [vmem:[#allocation5 + $0x128] sm:$0xf]
        %v3787 = vld [vmem:[#allocation5 + $0x12c] sm:$0xf]
        %v3788 = vld [vmem:[#allocation5 + $0x130] sm:$0xf]
        %v3789 = vld [vmem:[#allocation5 + $0x134] sm:$0xf]
        %v3790 = vld [vmem:[#allocation5 + $0x138] sm:$0xf]
        %v3791 = vld [vmem:[#allocation5 + $0x13c] sm:$0xf]
        %v3792 = vld [vmem:[#allocation5 + $0x140] sm:$0xf]
        %v3793 = vld [vmem:[#allocation5 + $0x144] sm:$0xf]
        %v3794 = vld [vmem:[#allocation5 + $0x148] sm:$0xf]
        %v3795 = vld [vmem:[#allocation5 + $0x14c] sm:$0xf]
        %v3796 = vld [vmem:[#allocation5 + $0x150] sm:$0xf]
        %v3797 = vld [vmem:[#allocation5 + $0x154] sm:$0xf]
        %v3798 = vld [vmem:[#allocation5 + $0x158] sm:$0xf]
        %v3799 = vld [vmem:[#allocation5 + $0x15c] sm:$0xf]
        %v3800 = vld [vmem:[#allocation5 + $0x160] sm:$0xf]
        %v3801 = vld [vmem:[#allocation5 + $0x164] sm:$0xf]
        %v3802 = vld [vmem:[#allocation5 + $0x168] sm:$0xf]
        %v3803 = vld [vmem:[#allocation5 + $0x16c] sm:$0xf]
        %v3804 = vld [vmem:[#allocation5 + $0x170] sm:$0xf]
        %v3805 = vld [vmem:[#allocation5 + $0x174] sm:$0xf]
        %v3806 = vld [vmem:[#allocation5 + $0x178] sm:$0xf]
        %v3807 = vld [vmem:[#allocation5 + $0x17c] sm:$0xf]
        %v3808 = vld [vmem:[#allocation5 + $0x180] sm:$0xf]
        %v3809 = vld [vmem:[#allocation5 + $0x184] sm:$0xf]
        %v3810 = vld [vmem:[#allocation5 + $0x188] sm:$0xf]
        %v3811 = vld [vmem:[#allocation5 + $0x18c] sm:$0xf]
        %v3812 = vld [vmem:[#allocation5 + $0x190] sm:$0xf]
        %v3813 = vld [vmem:[#allocation5 + $0x194] sm:$0xf]
        %v3814 = vld [vmem:[#allocation5 + $0x198] sm:$0xf]
        %v3815 = vld [vmem:[#allocation5 + $0x19c] sm:$0xf]
        %v3816 = vld [vmem:[#allocation5 + $0x1a0] sm:$0xf]
        %v3817 = vld [vmem:[#allocation5 + $0x1a4] sm:$0xf]
        %v3818 = vld [vmem:[#allocation5 + $0x1a8] sm:$0xf]
        %v3819 = vld [vmem:[#allocation5 + $0x1ac] sm:$0xf]
        %v3820 = vld [vmem:[#allocation5 + $0x1b0] sm:$0xf]
        %v3821 = vld [vmem:[#allocation5 + $0x1b4] sm:$0xf]
        %v3822 = vld [vmem:[#allocation5 + $0x1b8] sm:$0xf]
        %v3823 = vld [vmem:[#allocation5 + $0x1bc] sm:$0xf]
        %v3824 = vld [vmem:[#allocation5 + $0x1c0] sm:$0xf]
        %v3825 = vld [vmem:[#allocation5 + $0x1c4] sm:$0xf]
        %v3826 = vld [vmem:[#allocation5 + $0x1c8] sm:$0xf]
        %v3827 = vld [vmem:[#allocation5 + $0x1cc] sm:$0xf]
        %v3828 = vld [vmem:[#allocation5 + $0x1d0] sm:$0xf]
        %v3829 = vld [vmem:[#allocation5 + $0x1d4] sm:$0xf]
        %v3830 = vld [vmem:[#allocation5 + $0x1d8] sm:$0xf]
        %v3831 = vld [vmem:[#allocation5 + $0x1dc] sm:$0xf]
        %v3832 = vld [vmem:[#allocation5 + $0x1e0] sm:$0xf]
        %v3833 = vld [vmem:[#allocation5 + $0x1e4] sm:$0xf]
        %v3834 = vld [vmem:[#allocation5 + $0x1e8] sm:$0xf]
        %v3835 = vld [vmem:[#allocation5 + $0x1ec] sm:$0xf]
        %v3836 = vld [vmem:[#allocation5 + $0x1f0] sm:$0xf]
        %v3837 = vld [vmem:[#allocation5 + $0x1f4] sm:$0xf]
        %v3838 = vld [vmem:[#allocation5 + $0x1f8] sm:$0xf]
        %v3839 = vld [vmem:[#allocation5 + $0x1fc] sm:$0xf]
        %v3840 = vld [vmem:[#allocation5 + $0x200] sm:$0xf]
        %v3841 = vld [vmem:[#allocation5 + $0x204] sm:$0xf]
        %v3842 = vld [vmem:[#allocation5 + $0x208] sm:$0xf]
        %v3843 = vld [vmem:[#allocation5 + $0x20c] sm:$0xf]
        %v3844 = vld [vmem:[#allocation5 + $0x210] sm:$0xf]
        %v3845 = vld [vmem:[#allocation5 + $0x214] sm:$0xf]
        %v3846 = vld [vmem:[#allocation5 + $0x218] sm:$0xf]
        %v3847 = vld [vmem:[#allocation5 + $0x21c] sm:$0xf]
        %v3848 = vld [vmem:[#allocation5 + $0x220] sm:$0xf]
        %v3849 = vld [vmem:[#allocation5 + $0x224] sm:$0xf]
        %v3850 = vld [vmem:[#allocation5 + $0x228] sm:$0xf]
        %v3851 = vld [vmem:[#allocation5 + $0x22c] sm:$0xf]
        %v3852 = vld [vmem:[#allocation5 + $0x230] sm:$0xf]
        %v3853 = vld [vmem:[#allocation5 + $0x234] sm:$0xf]
        %v3854 = vld [vmem:[#allocation5 + $0x238] sm:$0xf]
        %v3855 = vld [vmem:[#allocation5 + $0x23c] sm:$0xf]
        %v3856 = vld [vmem:[#allocation5 + $0x240] sm:$0xf]
        %v3857 = vld [vmem:[#allocation5 + $0x244] sm:$0xf]
        %v3858 = vld [vmem:[#allocation5 + $0x248] sm:$0xf]
        %v3859 = vld [vmem:[#allocation5 + $0x24c] sm:$0xf]
        %v3860 = vld [vmem:[#allocation5 + $0x250] sm:$0xf]
        %v3861 = vld [vmem:[#allocation5 + $0x254] sm:$0xf]
        %v3862 = vld [vmem:[#allocation5 + $0x258] sm:$0xf]
        %v3863 = vld [vmem:[#allocation5 + $0x25c] sm:$0xf]
        %v3864 = vld [vmem:[#allocation5 + $0x260] sm:$0xf]
        %v3865 = vld [vmem:[#allocation5 + $0x264] sm:$0xf]
        %v3866 = vld [vmem:[#allocation5 + $0x268] sm:$0xf]
        %v3867 = vld [vmem:[#allocation5 + $0x26c] sm:$0xf]
        %v3868 = vld [vmem:[#allocation5 + $0x270] sm:$0xf]
        %v3869 = vld [vmem:[#allocation5 + $0x274] sm:$0xf]
        %v3870 = vld [vmem:[#allocation5 + $0x278] sm:$0xf]
        %v3871 = vld [vmem:[#allocation5 + $0x27c] sm:$0xf]
        %v3872 = vld [vmem:[#allocation5 + $0x280] sm:$0xf]
        %v3873 = vld [vmem:[#allocation5 + $0x284] sm:$0xf]
        %v3874 = vld [vmem:[#allocation5 + $0x288] sm:$0xf]
        %v3875 = vld [vmem:[#allocation5 + $0x28c] sm:$0xf]
        %v3876 = vld [vmem:[#allocation5 + $0x290] sm:$0xf]
        %v3877 = vld [vmem:[#allocation5 + $0x294] sm:$0xf]
        %v3878 = vld [vmem:[#allocation5 + $0x298] sm:$0xf]
        %v3879 = vld [vmem:[#allocation5 + $0x29c] sm:$0xf]
        %v3880 = vld [vmem:[#allocation5 + $0x2a0] sm:$0xf]
        %v3881 = vld [vmem:[#allocation5 + $0x2a4] sm:$0xf]
        %v3882 = vld [vmem:[#allocation5 + $0x2a8] sm:$0xf]
        %v3883 = vld [vmem:[#allocation5 + $0x2ac] sm:$0xf]
        %v3884 = vld [vmem:[#allocation5 + $0x2b0] sm:$0xf]
        %v3885 = vld [vmem:[#allocation5 + $0x2b4] sm:$0xf]
        %v3886 = vld [vmem:[#allocation5 + $0x2b8] sm:$0xf]
        %v3887 = vld [vmem:[#allocation5 + $0x2bc] sm:$0xf]
        %v3888 = vld [vmem:[#allocation5 + $0x2c0] sm:$0xf]
        %v3889 = vld [vmem:[#allocation5 + $0x2c4] sm:$0xf]
        %v3890 = vld [vmem:[#allocation5 + $0x2c8] sm:$0xf]
        %v3891 = vld [vmem:[#allocation5 + $0x2cc] sm:$0xf]
        %v3892 = vld [vmem:[#allocation5 + $0x2d0] sm:$0xf]
        %v3893 = vld [vmem:[#allocation5 + $0x2d4] sm:$0xf]
        %v3894 = vld [vmem:[#allocation5 + $0x2d8] sm:$0xf]
        %v3895 = vld [vmem:[#allocation5 + $0x2dc] sm:$0xf]
        %v3896 = vld [vmem:[#allocation5 + $0x2e0] sm:$0xf]
        %v3897 = vld [vmem:[#allocation5 + $0x2e4] sm:$0xf]
        %v3898 = vld [vmem:[#allocation5 + $0x2e8] sm:$0xf]
        %v3899 = vld [vmem:[#allocation5 + $0x2ec] sm:$0xf]
        %v3900 = vld [vmem:[#allocation5 + $0x2f0] sm:$0xf]
        %v3901 = vld [vmem:[#allocation5 + $0x2f4] sm:$0xf]
        %v3902 = vld [vmem:[#allocation5 + $0x2f8] sm:$0xf]
        %v3903 = vld [vmem:[#allocation5 + $0x2fc] sm:$0xf]
        %v3904 = vld [vmem:[#allocation5 + $0x300] sm:$0xf]
        %v3905 = vld [vmem:[#allocation5 + $0x304] sm:$0xf]
        %v3906 = vld [vmem:[#allocation5 + $0x308] sm:$0xf]
        %v3907 = vld [vmem:[#allocation5 + $0x30c] sm:$0xf]
        %v3908 = vld [vmem:[#allocation5 + $0x310] sm:$0xf]
        %v3909 = vld [vmem:[#allocation5 + $0x314] sm:$0xf]
        %v3910 = vld [vmem:[#allocation5 + $0x318] sm:$0xf]
        %v3911 = vld [vmem:[#allocation5 + $0x31c] sm:$0xf]
        %v3912 = vld [vmem:[#allocation5 + $0x320] sm:$0xf]
        %v3913 = vld [vmem:[#allocation5 + $0x324] sm:$0xf]
        %v3914 = vld [vmem:[#allocation5 + $0x328] sm:$0xf]
        %v3915 = vld [vmem:[#allocation5 + $0x32c] sm:$0xf]
        %v3916 = vld [vmem:[#allocation5 + $0x330] sm:$0xf]
        %v3917 = vld [vmem:[#allocation5 + $0x334] sm:$0xf]
        %v3918 = vld [vmem:[#allocation5 + $0x338] sm:$0xf]
        %v3919 = vld [vmem:[#allocation5 + $0x33c] sm:$0xf]
        %v3920 = vld [vmem:[#allocation5 + $0x340] sm:$0xf]
        %v3921 = vld [vmem:[#allocation5 + $0x344] sm:$0xf]
        %v3922 = vld [vmem:[#allocation5 + $0x348] sm:$0xf]
        %v3923 = vld [vmem:[#allocation5 + $0x34c] sm:$0xf]
        %v3924 = vld [vmem:[#allocation5 + $0x350] sm:$0xf]
        %v3925 = vld [vmem:[#allocation5 + $0x354] sm:$0xf]
        %v3926 = vld [vmem:[#allocation5 + $0x358] sm:$0xf]
        %v3927 = vld [vmem:[#allocation5 + $0x35c] sm:$0xf]
        %v3928 = vld [vmem:[#allocation5 + $0x360] sm:$0xf]
        %v3929 = vld [vmem:[#allocation5 + $0x364] sm:$0xf]
        %v3930 = vld [vmem:[#allocation5 + $0x368] sm:$0xf]
        %v3931 = vld [vmem:[#allocation5 + $0x36c] sm:$0xf]
        %v3932 = vld [vmem:[#allocation5 + $0x370] sm:$0xf]
        %v3933 = vld [vmem:[#allocation5 + $0x374] sm:$0xf]
        %v3934 = vld [vmem:[#allocation5 + $0x378] sm:$0xf]
        %v3935 = vld [vmem:[#allocation5 + $0x37c] sm:$0xf]
        %v3936 = vld [vmem:[#allocation5 + $0x380] sm:$0xf]
        %v3937 = vld [vmem:[#allocation5 + $0x384] sm:$0xf]
        %v3938 = vld [vmem:[#allocation5 + $0x388] sm:$0xf]
        %v3939 = vld [vmem:[#allocation5 + $0x38c] sm:$0xf]
        %v3940 = vld [vmem:[#allocation5 + $0x390] sm:$0xf]
        %v3941 = vld [vmem:[#allocation5 + $0x394] sm:$0xf]
        %v3942 = vld [vmem:[#allocation5 + $0x398] sm:$0xf]
        %v3943 = vld [vmem:[#allocation5 + $0x39c] sm:$0xf]
        %v3944 = vld [vmem:[#allocation5 + $0x3a0] sm:$0xf]
        %v3945 = vld [vmem:[#allocation5 + $0x3a4] sm:$0xf]
        %v3946 = vld [vmem:[#allocation5 + $0x3a8] sm:$0xf]
        %v3947 = vld [vmem:[#allocation5 + $0x3ac] sm:$0xf]
        %v3948 = vld [vmem:[#allocation5 + $0x3b0] sm:$0xf]
        %v3949 = vld [vmem:[#allocation5 + $0x3b4] sm:$0xf]
        %v3950 = vld [vmem:[#allocation5 + $0x3b8] sm:$0xf]
        %v3951 = vld [vmem:[#allocation5 + $0x3bc] sm:$0xf]
        %v3952 = vld [vmem:[#allocation5 + $0x3c0] sm:$0xf]
        %v3953 = vld [vmem:[#allocation5 + $0x3c4] sm:$0xf]
        %v3954 = vld [vmem:[#allocation5 + $0x3c8] sm:$0xf]
        %v3955 = vld [vmem:[#allocation5 + $0x3cc] sm:$0xf]
        %v3956 = vld [vmem:[#allocation5 + $0x3d0] sm:$0xf]
        %v3957 = vld [vmem:[#allocation5 + $0x3d4] sm:$0xf]
        %v3958 = vld [vmem:[#allocation5 + $0x3d8] sm:$0xf]
        %v3959 = vld [vmem:[#allocation5 + $0x3dc] sm:$0xf]
        %v3960 = vld [vmem:[#allocation5 + $0x3e0] sm:$0xf]
        %v3961 = vld [vmem:[#allocation5 + $0x3e4] sm:$0xf]
        %v3962 = vld [vmem:[#allocation5 + $0x3e8] sm:$0xf]
        %v3963 = vld [vmem:[#allocation5 + $0x3ec] sm:$0xf]
        %v3964 = vld [vmem:[#allocation5 + $0x3f0] sm:$0xf]
        %v3965 = vld [vmem:[#allocation5 + $0x3f4] sm:$0xf]
        %v3966 = vld [vmem:[#allocation5 + $0x3f8] sm:$0xf]
        %v3967 = vld [vmem:[#allocation5 + $0x3fc] sm:$0xf]
        %v3968 = vld [vmem:[#allocation5 + $0x400] sm:$0xf]
        %v3969 = vld [vmem:[#allocation5 + $0x404] sm:$0xf]
        %v3970 = vld [vmem:[#allocation5 + $0x408] sm:$0xf]
        %v3971 = vld [vmem:[#allocation5 + $0x40c] sm:$0xf]
        %v3972 = vld [vmem:[#allocation5 + $0x410] sm:$0xf]
        %v3973 = vld [vmem:[#allocation5 + $0x414] sm:$0xf]
        %v3974 = vld [vmem:[#allocation5 + $0x418] sm:$0xf]
        %v3975 = vld [vmem:[#allocation5 + $0x41c] sm:$0xf]
        %v3976 = vld [vmem:[#allocation5 + $0x420] sm:$0xf]
        %v3977 = vld [vmem:[#allocation5 + $0x424] sm:$0xf]
        %v3978 = vld [vmem:[#allocation5 + $0x428] sm:$0xf]
        %v3979 = vld [vmem:[#allocation5 + $0x42c] sm:$0xf]
        %v3980 = vld [vmem:[#allocation5 + $0x430] sm:$0xf]
        %v3981 = vld [vmem:[#allocation5 + $0x434] sm:$0xf]
        %v3982 = vld [vmem:[#allocation5 + $0x438] sm:$0xf]
        %v3983 = vld [vmem:[#allocation5 + $0x43c] sm:$0xf]
        %v3984 = vld [vmem:[#allocation5 + $0x440] sm:$0xf]
        %v3985 = vld [vmem:[#allocation5 + $0x444] sm:$0xf]
        %v3986 = vld [vmem:[#allocation5 + $0x448] sm:$0xf]
        %v3987 = vld [vmem:[#allocation5 + $0x44c] sm:$0xf]
        %v3988 = vld [vmem:[#allocation5 + $0x450] sm:$0xf]
        %v3989 = vld [vmem:[#allocation5 + $0x454] sm:$0xf]
        %v3990 = vld [vmem:[#allocation5 + $0x458] sm:$0xf]
        %v3991 = vld [vmem:[#allocation5 + $0x45c] sm:$0xf]
        %v3992 = vld [vmem:[#allocation5 + $0x460] sm:$0xf]
        %v3993 = vld [vmem:[#allocation5 + $0x464] sm:$0xf]
        %v3994 = vld [vmem:[#allocation5 + $0x468] sm:$0xf]
        %v3995 = vld [vmem:[#allocation5 + $0x46c] sm:$0xf]
        %v3996 = vld [vmem:[#allocation5 + $0x470] sm:$0xf]
        %v3997 = vld [vmem:[#allocation5 + $0x474] sm:$0xf]
        %v3998 = vld [vmem:[#allocation5 + $0x478] sm:$0xf]
        %v3999 = vld [vmem:[#allocation5 + $0x47c] sm:$0xf]
        %v4000 = vld [vmem:[#allocation5 + $0x480] sm:$0xf]
        %v4001 = vld [vmem:[#allocation5 + $0x484] sm:$0xf]
        %v4002 = vld [vmem:[#allocation5 + $0x488] sm:$0xf]
        %v4003 = vld [vmem:[#allocation5 + $0x48c] sm:$0xf]
        %v4004 = vld [vmem:[#allocation5 + $0x490] sm:$0xf]
        %v4005 = vld [vmem:[#allocation5 + $0x494] sm:$0xf]
        %v4006 = vld [vmem:[#allocation5 + $0x498] sm:$0xf]
        %v4007 = vld [vmem:[#allocation5 + $0x49c] sm:$0xf]
        %v4008 = vld [vmem:[#allocation5 + $0x4a0] sm:$0xf]
        %v4009 = vld [vmem:[#allocation5 + $0x4a4] sm:$0xf]
        %v4010 = vld [vmem:[#allocation5 + $0x4a8] sm:$0xf]
        %v4011 = vld [vmem:[#allocation5 + $0x4ac] sm:$0xf]
        %v4012 = vld [vmem:[#allocation5 + $0x4b0] sm:$0xf]
        %v4013 = vld [vmem:[#allocation5 + $0x4b4] sm:$0xf]
        %v4014 = vld [vmem:[#allocation5 + $0x4b8] sm:$0xf]
        %v4015 = vld [vmem:[#allocation5 + $0x4bc] sm:$0xf]
        %v4016 = vld [vmem:[#allocation5 + $0x4c0] sm:$0xf]
        %v4017 = vld [vmem:[#allocation5 + $0x4c4] sm:$0xf]
        %v4018 = vld [vmem:[#allocation5 + $0x4c8] sm:$0xf]
        %v4019 = vld [vmem:[#allocation5 + $0x4cc] sm:$0xf]
        %v4020 = vld [vmem:[#allocation5 + $0x4d0] sm:$0xf]
        %v4021 = vld [vmem:[#allocation5 + $0x4d4] sm:$0xf]
        %v4022 = vld [vmem:[#allocation5 + $0x4d8] sm:$0xf]
        %v4023 = vld [vmem:[#allocation5 + $0x4dc] sm:$0xf]
        %v4024 = vld [vmem:[#allocation5 + $0x4e0] sm:$0xf]
        %v4025 = vld [vmem:[#allocation5 + $0x4e4] sm:$0xf]
        %v4026 = vld [vmem:[#allocation5 + $0x4e8] sm:$0xf]
        %v4027 = vld [vmem:[#allocation5 + $0x4ec] sm:$0xf]
        %v4028 = vld [vmem:[#allocation5 + $0x4f0] sm:$0xf]
        %v4029 = vld [vmem:[#allocation5 + $0x4f4] sm:$0xf]
        %v4030 = vld [vmem:[#allocation5 + $0x4f8] sm:$0xf]
        %v4031 = vld [vmem:[#allocation5 + $0x4fc] sm:$0xf]
        %v4032 = vld [vmem:[#allocation5 + $0x500] sm:$0xf]
        %v4033 = vld [vmem:[#allocation5 + $0x504] sm:$0xf]
        %v4034 = vld [vmem:[#allocation5 + $0x508] sm:$0xf]
        %v4035 = vld [vmem:[#allocation5 + $0x50c] sm:$0xf]
        %v4036 = vld [vmem:[#allocation5 + $0x510] sm:$0xf]
        %v4037 = vld [vmem:[#allocation5 + $0x514] sm:$0xf]
        %v4038 = vld [vmem:[#allocation5 + $0x518] sm:$0xf]
        %v4039 = vld [vmem:[#allocation5 + $0x51c] sm:$0xf]
        %v4040 = vld [vmem:[#allocation5 + $0x520] sm:$0xf]
        %v4041 = vld [vmem:[#allocation5 + $0x524] sm:$0xf]
        %v4042 = vld [vmem:[#allocation5 + $0x528] sm:$0xf]
        %v4043 = vld [vmem:[#allocation5 + $0x52c] sm:$0xf]
        %v4044 = vld [vmem:[#allocation5 + $0x530] sm:$0xf]
        %v4045 = vld [vmem:[#allocation5 + $0x534] sm:$0xf]
        %v4046 = vld [vmem:[#allocation5 + $0x538] sm:$0xf]
        %v4047 = vld [vmem:[#allocation5 + $0x53c] sm:$0xf]
        %v4048 = vld [vmem:[#allocation5 + $0x540] sm:$0xf]
        %v4049 = vld [vmem:[#allocation5 + $0x544] sm:$0xf]
        %v4050 = vld [vmem:[#allocation5 + $0x548] sm:$0xf]
        %v4051 = vld [vmem:[#allocation5 + $0x54c] sm:$0xf]
        %v4052 = vld [vmem:[#allocation5 + $0x550] sm:$0xf]
        %v4053 = vld [vmem:[#allocation5 + $0x554] sm:$0xf]
        %v4054 = vld [vmem:[#allocation5 + $0x558] sm:$0xf]
        %v4055 = vld [vmem:[#allocation5 + $0x55c] sm:$0xf]
        %v4056 = vld [vmem:[#allocation5 + $0x560] sm:$0xf]
        %v4057 = vld [vmem:[#allocation5 + $0x564] sm:$0xf]
        %v4058 = vld [vmem:[#allocation5 + $0x568] sm:$0xf]
        %v4059 = vld [vmem:[#allocation5 + $0x56c] sm:$0xf]
        %v4060 = vld [vmem:[#allocation5 + $0x570] sm:$0xf]
        %v4061 = vld [vmem:[#allocation5 + $0x574] sm:$0xf]
        %v4062 = vld [vmem:[#allocation5 + $0x578] sm:$0xf]
        %v4063 = vld [vmem:[#allocation5 + $0x57c] sm:$0xf]
        %v4064 = vld [vmem:[#allocation5 + $0x580] sm:$0xf]
        %v4065 = vld [vmem:[#allocation5 + $0x584] sm:$0xf]
        %v4066 = vld [vmem:[#allocation5 + $0x588] sm:$0xf]
        %v4067 = vld [vmem:[#allocation5 + $0x58c] sm:$0xf]
        %v4068 = vld [vmem:[#allocation5 + $0x590] sm:$0xf]
        %v4069 = vld [vmem:[#allocation5 + $0x594] sm:$0xf]
        %v4070 = vld [vmem:[#allocation5 + $0x598] sm:$0xf]
        %v4071 = vld [vmem:[#allocation5 + $0x59c] sm:$0xf]
        %v4072 = vld [vmem:[#allocation5 + $0x5a0] sm:$0xf]
        %v4073 = vld [vmem:[#allocation5 + $0x5a4] sm:$0xf]
        %v4074 = vld [vmem:[#allocation5 + $0x5a8] sm:$0xf]
        %v4075 = vld [vmem:[#allocation5 + $0x5ac] sm:$0xf]
        %v4076 = vld [vmem:[#allocation5 + $0x5b0] sm:$0xf]
        %v4077 = vld [vmem:[#allocation5 + $0x5b4] sm:$0xf]
        %v4078 = vld [vmem:[#allocation5 + $0x5b8] sm:$0xf]
        %v4079 = vld [vmem:[#allocation5 + $0x5bc] sm:$0xf]
        %v4080 = vld [vmem:[#allocation5 + $0x5c0] sm:$0xf]
        %v4081 = vld [vmem:[#allocation5 + $0x5c4] sm:$0xf]
        %v4082 = vld [vmem:[#allocation5 + $0x5c8] sm:$0xf]
        %v4083 = vld [vmem:[#allocation5 + $0x5cc] sm:$0xf]
        %v4084 = vld [vmem:[#allocation5 + $0x5d0] sm:$0xf]
        %v4085 = vld [vmem:[#allocation5 + $0x5d4] sm:$0xf]
        %v4086 = vld [vmem:[#allocation5 + $0x5d8] sm:$0xf]
        %v4087 = vld [vmem:[#allocation5 + $0x5dc] sm:$0xf]
        %v4088 = vld [vmem:[#allocation5 + $0x5e0] sm:$0xf]
        %v4089 = vld [vmem:[#allocation5 + $0x5e4] sm:$0xf]
        %v4090 = vld [vmem:[#allocation5 + $0x5e8] sm:$0xf]
        %v4091 = vld [vmem:[#allocation5 + $0x5ec] sm:$0xf]
        %v4092 = vld [vmem:[#allocation5 + $0x5f0] sm:$0xf]
        %v4093 = vld [vmem:[#allocation5 + $0x5f4] sm:$0xf]
        %v4094 = vld [vmem:[#allocation5 + $0x5f8] sm:$0xf]
        %v4095 = vld [vmem:[#allocation5 + $0x5fc] sm:$0xf]
        %v4096 = vld [vmem:[#allocation5 + $0x600] sm:$0xf]
        %v4097 = vld [vmem:[#allocation5 + $0x604] sm:$0xf]
        %v4098 = vld [vmem:[#allocation5 + $0x608] sm:$0xf]
        %v4099 = vld [vmem:[#allocation5 + $0x60c] sm:$0xf]
        %v4100 = vld [vmem:[#allocation5 + $0x610] sm:$0xf]
        %v4101 = vld [vmem:[#allocation5 + $0x614] sm:$0xf]
        %v4102 = vld [vmem:[#allocation5 + $0x618] sm:$0xf]
        %v4103 = vld [vmem:[#allocation5 + $0x61c] sm:$0xf]
        %v4104 = vld [vmem:[#allocation5 + $0x620] sm:$0xf]
        %v4105 = vld [vmem:[#allocation5 + $0x624] sm:$0xf]
        %v4106 = vld [vmem:[#allocation5 + $0x628] sm:$0xf]
        %v4107 = vld [vmem:[#allocation5 + $0x62c] sm:$0xf]
        %v4108 = vld [vmem:[#allocation5 + $0x630] sm:$0xf]
        %v4109 = vld [vmem:[#allocation5 + $0x634] sm:$0xf]
        %v4110 = vld [vmem:[#allocation5 + $0x638] sm:$0xf]
        %v4111 = vld [vmem:[#allocation5 + $0x63c] sm:$0xf]
        %v4112 = vld [vmem:[%s4] sm:$0x1]
        %v4114 = vlaneseq
        %v4115 = vshrl.u32 %v4114, 7
        %v4116 = vsub.s32 0, %v4115
        %v4117 = vrot.slane %v4112, %v4116
        %v4519 = vunpack.c.l.b16 %v3712
        %v4520 = vunpack.c.l.b16 %v3713
        %v4521 = vunpack.c.l.b16 %v3714
        %v4522 = vunpack.c.l.b16 %v3715
        %v4523 = vunpack.c.l.b16 %v3716
        %v4524 = vunpack.c.l.b16 %v3717
        %v4525 = vunpack.c.l.b16 %v3718
        %v4526 = vunpack.c.l.b16 %v3719
        %v4527 = vunpack.c.l.b16 %v3720
        %v4528 = vunpack.c.l.b16 %v3721
        %v4529 = vunpack.c.l.b16 %v3722
        %v4530 = vunpack.c.l.b16 %v3723
        %v4531 = vunpack.c.l.b16 %v3724
        %v4532 = vunpack.c.l.b16 %v3725
        %v4533 = vunpack.c.l.b16 %v3726
        %v4534 = vunpack.c.l.b16 %v3727
        %v4535 = vunpack.c.l.b16 %v3728
        %v4536 = vunpack.c.l.b16 %v3729
        %v4537 = vunpack.c.l.b16 %v3730
        %v4538 = vunpack.c.l.b16 %v3731
        %v4539 = vunpack.c.l.b16 %v3732
        %v4540 = vunpack.c.l.b16 %v3733
        %v4541 = vunpack.c.l.b16 %v3734
        %v4542 = vunpack.c.l.b16 %v3735
        %v4543 = vunpack.c.l.b16 %v3736
        %v4544 = vunpack.c.l.b16 %v3737
        %v4545 = vunpack.c.l.b16 %v3738
        %v4546 = vunpack.c.l.b16 %v3739
        %v4547 = vunpack.c.l.b16 %v3740
        %v4548 = vunpack.c.l.b16 %v3741
        %v4549 = vunpack.c.l.b16 %v3742
        %v4550 = vunpack.c.l.b16 %v3743
        %v4551 = vunpack.c.l.b16 %v3744
        %v4552 = vunpack.c.l.b16 %v3745
        %v4553 = vunpack.c.l.b16 %v3746
        %v4554 = vunpack.c.l.b16 %v3747
        %v4555 = vunpack.c.l.b16 %v3748
        %v4556 = vunpack.c.l.b16 %v3749
        %v4557 = vunpack.c.l.b16 %v3750
        %v4558 = vunpack.c.l.b16 %v3751
        %v4559 = vunpack.c.l.b16 %v3752
        %v4560 = vunpack.c.l.b16 %v3753
        %v4561 = vunpack.c.l.b16 %v3754
        %v4562 = vunpack.c.l.b16 %v3755
        %v4563 = vunpack.c.l.b16 %v3756
        %v4564 = vunpack.c.l.b16 %v3757
        %v4565 = vunpack.c.l.b16 %v3758
        %v4566 = vunpack.c.l.b16 %v3759
        %v4567 = vunpack.c.l.b16 %v3760
        %v4568 = vunpack.c.l.b16 %v3761
        %v4569 = vunpack.c.l.b16 %v3762
        %v4570 = vunpack.c.l.b16 %v3763
        %v4571 = vunpack.c.l.b16 %v3764
        %v4572 = vunpack.c.l.b16 %v3765
        %v4573 = vunpack.c.l.b16 %v3766
        %v4574 = vunpack.c.l.b16 %v3767
        %v4575 = vunpack.c.l.b16 %v3768
        %v4576 = vunpack.c.l.b16 %v3769
        %v4577 = vunpack.c.l.b16 %v3770
        %v4578 = vunpack.c.l.b16 %v3771
        %v4579 = vunpack.c.l.b16 %v3772
        %v4580 = vunpack.c.l.b16 %v3773
        %v4581 = vunpack.c.l.b16 %v3774
        %v4582 = vunpack.c.l.b16 %v3775
        %v4583 = vunpack.c.l.b16 %v3776
        %v4584 = vunpack.c.l.b16 %v3777
        %v4585 = vunpack.c.l.b16 %v3778
        %v4586 = vunpack.c.l.b16 %v3779
        %v4587 = vunpack.c.l.b16 %v3780
        %v4588 = vunpack.c.l.b16 %v3781
        %v4589 = vunpack.c.l.b16 %v3782
        %v4590 = vunpack.c.l.b16 %v3783
        %v4591 = vunpack.c.l.b16 %v3784
        %v4592 = vunpack.c.l.b16 %v3785
        %v4593 = vunpack.c.l.b16 %v3786
        %v4594 = vunpack.c.l.b16 %v3787
        %v4595 = vunpack.c.l.b16 %v3788
        %v4596 = vunpack.c.l.b16 %v3789
        %v4597 = vunpack.c.l.b16 %v3790
        %v4598 = vunpack.c.l.b16 %v3791
        %v4599 = vunpack.c.l.b16 %v3792
        %v4600 = vunpack.c.l.b16 %v3793
        %v4601 = vunpack.c.l.b16 %v3794
        %v4602 = vunpack.c.l.b16 %v3795
        %v4603 = vunpack.c.l.b16 %v3796
        %v4604 = vunpack.c.l.b16 %v3797
        %v4605 = vunpack.c.l.b16 %v3798
        %v4606 = vunpack.c.l.b16 %v3799
        %v4607 = vunpack.c.l.b16 %v3800
        %v4608 = vunpack.c.l.b16 %v3801
        %v4609 = vunpack.c.l.b16 %v3802
        %v4610 = vunpack.c.l.b16 %v3803
        %v4611 = vunpack.c.l.b16 %v3804
        %v4612 = vunpack.c.l.b16 %v3805
        %v4613 = vunpack.c.l.b16 %v3806
        %v4614 = vunpack.c.l.b16 %v3807
        %v4615 = vunpack.c.l.b16 %v3808
        %v4616 = vunpack.c.l.b16 %v3809
        %v4617 = vunpack.c.l.b16 %v3810
        %v4618 = vunpack.c.l.b16 %v3811
        %v4619 = vunpack.c.l.b16 %v3812
        %v4620 = vunpack.c.l.b16 %v3813
        %v4621 = vunpack.c.l.b16 %v3814
        %v4622 = vunpack.c.l.b16 %v3815
        %v4623 = vunpack.c.l.b16 %v3816
        %v4624 = vunpack.c.l.b16 %v3817
        %v4625 = vunpack.c.l.b16 %v3818
        %v4626 = vunpack.c.l.b16 %v3819
        %v4627 = vunpack.c.l.b16 %v3820
        %v4628 = vunpack.c.l.b16 %v3821
        %v4629 = vunpack.c.l.b16 %v3822
        %v4630 = vunpack.c.l.b16 %v3823
        %v4631 = vunpack.c.l.b16 %v3824
        %v4632 = vunpack.c.l.b16 %v3825
        %v4633 = vunpack.c.l.b16 %v3826
        %v4634 = vunpack.c.l.b16 %v3827
        %v4635 = vunpack.c.l.b16 %v3828
        %v4636 = vunpack.c.l.b16 %v3829
        %v4637 = vunpack.c.l.b16 %v3830
        %v4638 = vunpack.c.l.b16 %v3831
        %v4639 = vunpack.c.l.b16 %v3832
        %v4640 = vunpack.c.l.b16 %v3833
        %v4641 = vunpack.c.l.b16 %v3834
        %v4642 = vunpack.c.l.b16 %v3835
        %v4643 = vunpack.c.l.b16 %v3836
        %v4644 = vunpack.c.l.b16 %v3837
        %v4645 = vunpack.c.l.b16 %v3838
        %v4646 = vunpack.c.l.b16 %v3839
        %v4647 = vunpack.c.l.b16 %v3840
        %v4648 = vunpack.c.l.b16 %v3841
        %v4649 = vunpack.c.l.b16 %v3842
        %v4650 = vunpack.c.l.b16 %v3843
        %v4651 = vunpack.c.l.b16 %v3844
        %v4652 = vunpack.c.l.b16 %v3845
        %v4653 = vunpack.c.l.b16 %v3846
        %v4654 = vunpack.c.l.b16 %v3847
        %v4655 = vunpack.c.l.b16 %v3848
        %v4656 = vunpack.c.l.b16 %v3849
        %v4657 = vunpack.c.l.b16 %v3850
        %v4658 = vunpack.c.l.b16 %v3851
        %v4659 = vunpack.c.l.b16 %v3852
        %v4660 = vunpack.c.l.b16 %v3853
        %v4661 = vunpack.c.l.b16 %v3854
        %v4662 = vunpack.c.l.b16 %v3855
        %v4663 = vunpack.c.l.b16 %v3856
        %v4664 = vunpack.c.l.b16 %v3857
        %v4665 = vunpack.c.l.b16 %v3858
        %v4666 = vunpack.c.l.b16 %v3859
        %v4667 = vunpack.c.l.b16 %v3860
        %v4668 = vunpack.c.l.b16 %v3861
        %v4669 = vunpack.c.l.b16 %v3862
        %v4670 = vunpack.c.l.b16 %v3863
        %v4671 = vunpack.c.l.b16 %v3864
        %v4672 = vunpack.c.l.b16 %v3865
        %v4673 = vunpack.c.l.b16 %v3866
        %v4674 = vunpack.c.l.b16 %v3867
        %v4675 = vunpack.c.l.b16 %v3868
        %v4676 = vunpack.c.l.b16 %v3869
        %v4677 = vunpack.c.l.b16 %v3870
        %v4678 = vunpack.c.l.b16 %v3871
        %v4679 = vunpack.c.l.b16 %v3872
        %v4680 = vunpack.c.l.b16 %v3873
        %v4681 = vunpack.c.l.b16 %v3874
        %v4682 = vunpack.c.l.b16 %v3875
        %v4683 = vunpack.c.l.b16 %v3876
        %v4684 = vunpack.c.l.b16 %v3877
        %v4685 = vunpack.c.l.b16 %v3878
        %v4686 = vunpack.c.l.b16 %v3879
        %v4687 = vunpack.c.l.b16 %v3880
        %v4688 = vunpack.c.l.b16 %v3881
        %v4689 = vunpack.c.l.b16 %v3882
        %v4690 = vunpack.c.l.b16 %v3883
        %v4691 = vunpack.c.l.b16 %v3884
        %v4692 = vunpack.c.l.b16 %v3885
        %v4693 = vunpack.c.l.b16 %v3886
        %v4694 = vunpack.c.l.b16 %v3887
        %v4695 = vunpack.c.l.b16 %v3888
        %v4696 = vunpack.c.l.b16 %v3889
        %v4697 = vunpack.c.l.b16 %v3890
        %v4698 = vunpack.c.l.b16 %v3891
        %v4699 = vunpack.c.l.b16 %v3892
        %v4700 = vunpack.c.l.b16 %v3893
        %v4701 = vunpack.c.l.b16 %v3894
        %v4702 = vunpack.c.l.b16 %v3895
        %v4703 = vunpack.c.l.b16 %v3896
        %v4704 = vunpack.c.l.b16 %v3897
        %v4705 = vunpack.c.l.b16 %v3898
        %v4706 = vunpack.c.l.b16 %v3899
        %v4707 = vunpack.c.l.b16 %v3900
        %v4708 = vunpack.c.l.b16 %v3901
        %v4709 = vunpack.c.l.b16 %v3902
        %v4710 = vunpack.c.l.b16 %v3903
        %v4711 = vunpack.c.l.b16 %v3904
        %v4712 = vunpack.c.l.b16 %v3905
        %v4713 = vunpack.c.l.b16 %v3906
        %v4714 = vunpack.c.l.b16 %v3907
        %v4715 = vunpack.c.l.b16 %v3908
        %v4716 = vunpack.c.l.b16 %v3909
        %v4717 = vunpack.c.l.b16 %v3910
        %v4718 = vunpack.c.l.b16 %v3911
        %v4719 = vunpack.c.l.b16 %v3912
        %v4720 = vunpack.c.l.b16 %v3913
        %v4721 = vunpack.c.l.b16 %v3914
        %v4722 = vunpack.c.l.b16 %v3915
        %v4723 = vunpack.c.l.b16 %v3916
        %v4724 = vunpack.c.l.b16 %v3917
        %v4725 = vunpack.c.l.b16 %v3918
        %v4726 = vunpack.c.l.b16 %v3919
        %v4727 = vunpack.c.l.b16 %v3920
        %v4728 = vunpack.c.l.b16 %v3921
        %v4729 = vunpack.c.l.b16 %v3922
        %v4730 = vunpack.c.l.b16 %v3923
        %v4731 = vunpack.c.l.b16 %v3924
        %v4732 = vunpack.c.l.b16 %v3925
        %v4733 = vunpack.c.l.b16 %v3926
        %v4734 = vunpack.c.l.b16 %v3927
        %v4735 = vunpack.c.l.b16 %v3928
        %v4736 = vunpack.c.l.b16 %v3929
        %v4737 = vunpack.c.l.b16 %v3930
        %v4738 = vunpack.c.l.b16 %v3931
        %v4739 = vunpack.c.l.b16 %v3932
        %v4740 = vunpack.c.l.b16 %v3933
        %v4741 = vunpack.c.l.b16 %v3934
        %v4742 = vunpack.c.l.b16 %v3935
        %v4743 = vunpack.c.l.b16 %v3936
        %v4744 = vunpack.c.l.b16 %v3937
        %v4745 = vunpack.c.l.b16 %v3938
        %v4746 = vunpack.c.l.b16 %v3939
        %v4747 = vunpack.c.l.b16 %v3940
        %v4748 = vunpack.c.l.b16 %v3941
        %v4749 = vunpack.c.l.b16 %v3942
        %v4750 = vunpack.c.l.b16 %v3943
        %v4751 = vunpack.c.l.b16 %v3944
        %v4752 = vunpack.c.l.b16 %v3945
        %v4753 = vunpack.c.l.b16 %v3946
        %v4754 = vunpack.c.l.b16 %v3947
        %v4755 = vunpack.c.l.b16 %v3948
        %v4756 = vunpack.c.l.b16 %v3949
        %v4757 = vunpack.c.l.b16 %v3950
        %v4758 = vunpack.c.l.b16 %v3951
        %v4759 = vunpack.c.l.b16 %v3952
        %v4760 = vunpack.c.l.b16 %v3953
        %v4761 = vunpack.c.l.b16 %v3954
        %v4762 = vunpack.c.l.b16 %v3955
        %v4763 = vunpack.c.l.b16 %v3956
        %v4764 = vunpack.c.l.b16 %v3957
        %v4765 = vunpack.c.l.b16 %v3958
        %v4766 = vunpack.c.l.b16 %v3959
        %v4767 = vunpack.c.l.b16 %v3960
        %v4768 = vunpack.c.l.b16 %v3961
        %v4769 = vunpack.c.l.b16 %v3962
        %v4770 = vunpack.c.l.b16 %v3963
        %v4771 = vunpack.c.l.b16 %v3964
        %v4772 = vunpack.c.l.b16 %v3965
        %v4773 = vunpack.c.l.b16 %v3966
        %v4774 = vunpack.c.l.b16 %v3967
        %v4775 = vunpack.c.l.b16 %v3968
        %v4776 = vunpack.c.l.b16 %v3969
        %v4777 = vunpack.c.l.b16 %v3970
        %v4778 = vunpack.c.l.b16 %v3971
        %v4779 = vunpack.c.l.b16 %v3972
        %v4780 = vunpack.c.l.b16 %v3973
        %v4781 = vunpack.c.l.b16 %v3974
        %v4782 = vunpack.c.l.b16 %v3975
        %v4783 = vunpack.c.l.b16 %v3976
        %v4784 = vunpack.c.l.b16 %v3977
        %v4785 = vunpack.c.l.b16 %v3978
        %v4786 = vunpack.c.l.b16 %v3979
        %v4787 = vunpack.c.l.b16 %v3980
        %v4788 = vunpack.c.l.b16 %v3981
        %v4789 = vunpack.c.l.b16 %v3982
        %v4790 = vunpack.c.l.b16 %v3983
        %v4791 = vunpack.c.l.b16 %v3984
        %v4792 = vunpack.c.l.b16 %v3985
        %v4793 = vunpack.c.l.b16 %v3986
        %v4794 = vunpack.c.l.b16 %v3987
        %v4795 = vunpack.c.l.b16 %v3988
        %v4796 = vunpack.c.l.b16 %v3989
        %v4797 = vunpack.c.l.b16 %v3990
        %v4798 = vunpack.c.l.b16 %v3991
        %v4799 = vunpack.c.l.b16 %v3992
        %v4800 = vunpack.c.l.b16 %v3993
        %v4801 = vunpack.c.l.b16 %v3994
        %v4802 = vunpack.c.l.b16 %v3995
        %v4803 = vunpack.c.l.b16 %v3996
        %v4804 = vunpack.c.l.b16 %v3997
        %v4805 = vunpack.c.l.b16 %v3998
        %v4806 = vunpack.c.l.b16 %v3999
        %v4807 = vunpack.c.l.b16 %v4000
        %v4808 = vunpack.c.l.b16 %v4001
        %v4809 = vunpack.c.l.b16 %v4002
        %v4810 = vunpack.c.l.b16 %v4003
        %v4811 = vunpack.c.l.b16 %v4004
        %v4812 = vunpack.c.l.b16 %v4005
        %v4813 = vunpack.c.l.b16 %v4006
        %v4814 = vunpack.c.l.b16 %v4007
        %v4815 = vunpack.c.l.b16 %v4008
        %v4816 = vunpack.c.l.b16 %v4009
        %v4817 = vunpack.c.l.b16 %v4010
        %v4818 = vunpack.c.l.b16 %v4011
        %v4819 = vunpack.c.l.b16 %v4012
        %v4820 = vunpack.c.l.b16 %v4013
        %v4821 = vunpack.c.l.b16 %v4014
        %v4822 = vunpack.c.l.b16 %v4015
        %v4823 = vunpack.c.l.b16 %v4016
        %v4824 = vunpack.c.l.b16 %v4017
        %v4825 = vunpack.c.l.b16 %v4018
        %v4826 = vunpack.c.l.b16 %v4019
        %v4827 = vunpack.c.l.b16 %v4020
        %v4828 = vunpack.c.l.b16 %v4021
        %v4829 = vunpack.c.l.b16 %v4022
        %v4830 = vunpack.c.l.b16 %v4023
        %v4831 = vunpack.c.l.b16 %v4024
        %v4832 = vunpack.c.l.b16 %v4025
        %v4833 = vunpack.c.l.b16 %v4026
        %v4834 = vunpack.c.l.b16 %v4027
        %v4835 = vunpack.c.l.b16 %v4028
        %v4836 = vunpack.c.l.b16 %v4029
        %v4837 = vunpack.c.l.b16 %v4030
        %v4838 = vunpack.c.l.b16 %v4031
        %v4839 = vunpack.c.l.b16 %v4032
        %v4840 = vunpack.c.l.b16 %v4033
        %v4841 = vunpack.c.l.b16 %v4034
        %v4842 = vunpack.c.l.b16 %v4035
        %v4843 = vunpack.c.l.b16 %v4036
        %v4844 = vunpack.c.l.b16 %v4037
        %v4845 = vunpack.c.l.b16 %v4038
        %v4846 = vunpack.c.l.b16 %v4039
        %v4847 = vunpack.c.l.b16 %v4040
        %v4848 = vunpack.c.l.b16 %v4041
        %v4849 = vunpack.c.l.b16 %v4042
        %v4850 = vunpack.c.l.b16 %v4043
        %v4851 = vunpack.c.l.b16 %v4044
        %v4852 = vunpack.c.l.b16 %v4045
        %v4853 = vunpack.c.l.b16 %v4046
        %v4854 = vunpack.c.l.b16 %v4047
        %v4855 = vunpack.c.l.b16 %v4048
        %v4856 = vunpack.c.l.b16 %v4049
        %v4857 = vunpack.c.l.b16 %v4050
        %v4858 = vunpack.c.l.b16 %v4051
        %v4859 = vunpack.c.l.b16 %v4052
        %v4860 = vunpack.c.l.b16 %v4053
        %v4861 = vunpack.c.l.b16 %v4054
        %v4862 = vunpack.c.l.b16 %v4055
        %v4863 = vunpack.c.l.b16 %v4056
        %v4864 = vunpack.c.l.b16 %v4057
        %v4865 = vunpack.c.l.b16 %v4058
        %v4866 = vunpack.c.l.b16 %v4059
        %v4867 = vunpack.c.l.b16 %v4060
        %v4868 = vunpack.c.l.b16 %v4061
        %v4869 = vunpack.c.l.b16 %v4062
        %v4870 = vunpack.c.l.b16 %v4063
        %v4871 = vunpack.c.l.b16 %v4064
        %v4872 = vunpack.c.l.b16 %v4065
        %v4873 = vunpack.c.l.b16 %v4066
        %v4874 = vunpack.c.l.b16 %v4067
        %v4875 = vunpack.c.l.b16 %v4068
        %v4876 = vunpack.c.l.b16 %v4069
        %v4877 = vunpack.c.l.b16 %v4070
        %v4878 = vunpack.c.l.b16 %v4071
        %v4879 = vunpack.c.l.b16 %v4072
        %v4880 = vunpack.c.l.b16 %v4073
        %v4881 = vunpack.c.l.b16 %v4074
        %v4882 = vunpack.c.l.b16 %v4075
        %v4883 = vunpack.c.l.b16 %v4076
        %v4884 = vunpack.c.l.b16 %v4077
        %v4885 = vunpack.c.l.b16 %v4078
        %v4886 = vunpack.c.l.b16 %v4079
        %v4887 = vunpack.c.l.b16 %v4080
        %v4888 = vunpack.c.l.b16 %v4081
        %v4889 = vunpack.c.l.b16 %v4082
        %v4890 = vunpack.c.l.b16 %v4083
        %v4891 = vunpack.c.l.b16 %v4084
        %v4892 = vunpack.c.l.b16 %v4085
        %v4893 = vunpack.c.l.b16 %v4086
        %v4894 = vunpack.c.l.b16 %v4087
        %v4895 = vunpack.c.l.b16 %v4088
        %v4896 = vunpack.c.l.b16 %v4089
        %v4897 = vunpack.c.l.b16 %v4090
        %v4898 = vunpack.c.l.b16 %v4091
        %v4899 = vunpack.c.l.b16 %v4092
        %v4900 = vunpack.c.l.b16 %v4093
        %v4901 = vunpack.c.l.b16 %v4094
        %v4902 = vunpack.c.l.b16 %v4095
        %v4903 = vunpack.c.l.b16 %v4096
        %v4904 = vunpack.c.l.b16 %v4097
        %v4905 = vunpack.c.l.b16 %v4098
        %v4906 = vunpack.c.l.b16 %v4099
        %v4907 = vunpack.c.l.b16 %v4100
        %v4908 = vunpack.c.l.b16 %v4101
        %v4909 = vunpack.c.l.b16 %v4102
        %v4910 = vunpack.c.l.b16 %v4103
        %v4911 = vunpack.c.l.b16 %v4104
        %v4912 = vunpack.c.l.b16 %v4105
        %v4913 = vunpack.c.l.b16 %v4106
        %v4914 = vunpack.c.l.b16 %v4107
        %v4915 = vunpack.c.l.b16 %v4108
        %v4916 = vunpack.c.l.b16 %v4109
        %v4917 = vunpack.c.l.b16 %v4110
        %v4918 = vunpack.c.l.b16 %v4111
        %v4919 = vpack.c.b16 %v4520, %v4519
        %v4920 = vpack.c.b16 %v4522, %v4521
        %v4921 = vpack.c.b16 %v4524, %v4523
        %v4922 = vpack.c.b16 %v4526, %v4525
        %v4923 = vpack.c.b16 %v4528, %v4527
        %v4924 = vpack.c.b16 %v4530, %v4529
        %v4925 = vpack.c.b16 %v4532, %v4531
        %v4926 = vpack.c.b16 %v4534, %v4533
        %v4927 = vpack.c.b16 %v4536, %v4535
        %v4928 = vpack.c.b16 %v4538, %v4537
        %v4929 = vpack.c.b16 %v4540, %v4539
        %v4930 = vpack.c.b16 %v4542, %v4541
        %v4931 = vpack.c.b16 %v4544, %v4543
        %v4932 = vpack.c.b16 %v4546, %v4545
        %v4933 = vpack.c.b16 %v4548, %v4547
        %v4934 = vpack.c.b16 %v4550, %v4549
        %v4935 = vpack.c.b16 %v4552, %v4551
        %v4936 = vpack.c.b16 %v4554, %v4553
        %v4937 = vpack.c.b16 %v4556, %v4555
        %v4938 = vpack.c.b16 %v4558, %v4557
        %v4939 = vpack.c.b16 %v4560, %v4559
        %v4940 = vpack.c.b16 %v4562, %v4561
        %v4941 = vpack.c.b16 %v4564, %v4563
        %v4942 = vpack.c.b16 %v4566, %v4565
        %v4943 = vpack.c.b16 %v4568, %v4567
        %v4944 = vpack.c.b16 %v4570, %v4569
        %v4945 = vpack.c.b16 %v4572, %v4571
        %v4946 = vpack.c.b16 %v4574, %v4573
        %v4947 = vpack.c.b16 %v4576, %v4575
        %v4948 = vpack.c.b16 %v4578, %v4577
        %v4949 = vpack.c.b16 %v4580, %v4579
        %v4950 = vpack.c.b16 %v4582, %v4581
        %v4951 = vpack.c.b16 %v4584, %v4583
        %v4952 = vpack.c.b16 %v4586, %v4585
        %v4953 = vpack.c.b16 %v4588, %v4587
        %v4954 = vpack.c.b16 %v4590, %v4589
        %v4955 = vpack.c.b16 %v4592, %v4591
        %v4956 = vpack.c.b16 %v4594, %v4593
        %v4957 = vpack.c.b16 %v4596, %v4595
        %v4958 = vpack.c.b16 %v4598, %v4597
        %v4959 = vpack.c.b16 %v4600, %v4599
        %v4960 = vpack.c.b16 %v4602, %v4601
        %v4961 = vpack.c.b16 %v4604, %v4603
        %v4962 = vpack.c.b16 %v4606, %v4605
        %v4963 = vpack.c.b16 %v4608, %v4607
        %v4964 = vpack.c.b16 %v4610, %v4609
        %v4965 = vpack.c.b16 %v4612, %v4611
        %v4966 = vpack.c.b16 %v4614, %v4613
        %v4967 = vpack.c.b16 %v4616, %v4615
        %v4968 = vpack.c.b16 %v4618, %v4617
        %v4969 = vpack.c.b16 %v4620, %v4619
        %v4970 = vpack.c.b16 %v4622, %v4621
        %v4971 = vpack.c.b16 %v4624, %v4623
        %v4972 = vpack.c.b16 %v4626, %v4625
        %v4973 = vpack.c.b16 %v4628, %v4627
        %v4974 = vpack.c.b16 %v4630, %v4629
        %v4975 = vpack.c.b16 %v4632, %v4631
        %v4976 = vpack.c.b16 %v4634, %v4633
        %v4977 = vpack.c.b16 %v4636, %v4635
        %v4978 = vpack.c.b16 %v4638, %v4637
        %v4979 = vpack.c.b16 %v4640, %v4639
        %v4980 = vpack.c.b16 %v4642, %v4641
        %v4981 = vpack.c.b16 %v4644, %v4643
        %v4982 = vpack.c.b16 %v4646, %v4645
        %v4983 = vpack.c.b16 %v4648, %v4647
        %v4984 = vpack.c.b16 %v4650, %v4649
        %v4985 = vpack.c.b16 %v4652, %v4651
        %v4986 = vpack.c.b16 %v4654, %v4653
        %v4987 = vpack.c.b16 %v4656, %v4655
        %v4988 = vpack.c.b16 %v4658, %v4657
        %v4989 = vpack.c.b16 %v4660, %v4659
        %v4990 = vpack.c.b16 %v4662, %v4661
        %v4991 = vpack.c.b16 %v4664, %v4663
        %v4992 = vpack.c.b16 %v4666, %v4665
        %v4993 = vpack.c.b16 %v4668, %v4667
        %v4994 = vpack.c.b16 %v4670, %v4669
        %v4995 = vpack.c.b16 %v4672, %v4671
        %v4996 = vpack.c.b16 %v4674, %v4673
        %v4997 = vpack.c.b16 %v4676, %v4675
        %v4998 = vpack.c.b16 %v4678, %v4677
        %v4999 = vpack.c.b16 %v4680, %v4679
        %v5000 = vpack.c.b16 %v4682, %v4681
        %v5001 = vpack.c.b16 %v4684, %v4683
        %v5002 = vpack.c.b16 %v4686, %v4685
        %v5003 = vpack.c.b16 %v4688, %v4687
        %v5004 = vpack.c.b16 %v4690, %v4689
        %v5005 = vpack.c.b16 %v4692, %v4691
        %v5006 = vpack.c.b16 %v4694, %v4693
        %v5007 = vpack.c.b16 %v4696, %v4695
        %v5008 = vpack.c.b16 %v4698, %v4697
        %v5009 = vpack.c.b16 %v4700, %v4699
        %v5010 = vpack.c.b16 %v4702, %v4701
        %v5011 = vpack.c.b16 %v4704, %v4703
        %v5012 = vpack.c.b16 %v4706, %v4705
        %v5013 = vpack.c.b16 %v4708, %v4707
        %v5014 = vpack.c.b16 %v4710, %v4709
        %v5015 = vpack.c.b16 %v4712, %v4711
        %v5016 = vpack.c.b16 %v4714, %v4713
        %v5017 = vpack.c.b16 %v4716, %v4715
        %v5018 = vpack.c.b16 %v4718, %v4717
        %v5019 = vpack.c.b16 %v4720, %v4719
        %v5020 = vpack.c.b16 %v4722, %v4721
        %v5021 = vpack.c.b16 %v4724, %v4723
        %v5022 = vpack.c.b16 %v4726, %v4725
        %v5023 = vpack.c.b16 %v4728, %v4727
        %v5024 = vpack.c.b16 %v4730, %v4729
        %v5025 = vpack.c.b16 %v4732, %v4731
        %v5026 = vpack.c.b16 %v4734, %v4733
        %v5027 = vpack.c.b16 %v4736, %v4735
        %v5028 = vpack.c.b16 %v4738, %v4737
        %v5029 = vpack.c.b16 %v4740, %v4739
        %v5030 = vpack.c.b16 %v4742, %v4741
        %v5031 = vpack.c.b16 %v4744, %v4743
        %v5032 = vpack.c.b16 %v4746, %v4745
        %v5033 = vpack.c.b16 %v4748, %v4747
        %v5034 = vpack.c.b16 %v4750, %v4749
        %v5035 = vpack.c.b16 %v4752, %v4751
        %v5036 = vpack.c.b16 %v4754, %v4753
        %v5037 = vpack.c.b16 %v4756, %v4755
        %v5038 = vpack.c.b16 %v4758, %v4757
        %v5039 = vpack.c.b16 %v4760, %v4759
        %v5040 = vpack.c.b16 %v4762, %v4761
        %v5041 = vpack.c.b16 %v4764, %v4763
        %v5042 = vpack.c.b16 %v4766, %v4765
        %v5043 = vpack.c.b16 %v4768, %v4767
        %v5044 = vpack.c.b16 %v4770, %v4769
        %v5045 = vpack.c.b16 %v4772, %v4771
        %v5046 = vpack.c.b16 %v4774, %v4773
        %v5047 = vpack.c.b16 %v4776, %v4775
        %v5048 = vpack.c.b16 %v4778, %v4777
        %v5049 = vpack.c.b16 %v4780, %v4779
        %v5050 = vpack.c.b16 %v4782, %v4781
        %v5051 = vpack.c.b16 %v4784, %v4783
        %v5052 = vpack.c.b16 %v4786, %v4785
        %v5053 = vpack.c.b16 %v4788, %v4787
        %v5054 = vpack.c.b16 %v4790, %v4789
        %v5055 = vpack.c.b16 %v4792, %v4791
        %v5056 = vpack.c.b16 %v4794, %v4793
        %v5057 = vpack.c.b16 %v4796, %v4795
        %v5058 = vpack.c.b16 %v4798, %v4797
        %v5059 = vpack.c.b16 %v4800, %v4799
        %v5060 = vpack.c.b16 %v4802, %v4801
        %v5061 = vpack.c.b16 %v4804, %v4803
        %v5062 = vpack.c.b16 %v4806, %v4805
        %v5063 = vpack.c.b16 %v4808, %v4807
        %v5064 = vpack.c.b16 %v4810, %v4809
        %v5065 = vpack.c.b16 %v4812, %v4811
        %v5066 = vpack.c.b16 %v4814, %v4813
        %v5067 = vpack.c.b16 %v4816, %v4815
        %v5068 = vpack.c.b16 %v4818, %v4817
        %v5069 = vpack.c.b16 %v4820, %v4819
        %v5070 = vpack.c.b16 %v4822, %v4821
        %v5071 = vpack.c.b16 %v4824, %v4823
        %v5072 = vpack.c.b16 %v4826, %v4825
        %v5073 = vpack.c.b16 %v4828, %v4827
        %v5074 = vpack.c.b16 %v4830, %v4829
        %v5075 = vpack.c.b16 %v4832, %v4831
        %v5076 = vpack.c.b16 %v4834, %v4833
        %v5077 = vpack.c.b16 %v4836, %v4835
        %v5078 = vpack.c.b16 %v4838, %v4837
        %v5079 = vpack.c.b16 %v4840, %v4839
        %v5080 = vpack.c.b16 %v4842, %v4841
        %v5081 = vpack.c.b16 %v4844, %v4843
        %v5082 = vpack.c.b16 %v4846, %v4845
        %v5083 = vpack.c.b16 %v4848, %v4847
        %v5084 = vpack.c.b16 %v4850, %v4849
        %v5085 = vpack.c.b16 %v4852, %v4851
        %v5086 = vpack.c.b16 %v4854, %v4853
        %v5087 = vpack.c.b16 %v4856, %v4855
        %v5088 = vpack.c.b16 %v4858, %v4857
        %v5089 = vpack.c.b16 %v4860, %v4859
        %v5090 = vpack.c.b16 %v4862, %v4861
        %v5091 = vpack.c.b16 %v4864, %v4863
        %v5092 = vpack.c.b16 %v4866, %v4865
        %v5093 = vpack.c.b16 %v4868, %v4867
        %v5094 = vpack.c.b16 %v4870, %v4869
        %v5095 = vpack.c.b16 %v4872, %v4871
        %v5096 = vpack.c.b16 %v4874, %v4873
        %v5097 = vpack.c.b16 %v4876, %v4875
        %v5098 = vpack.c.b16 %v4878, %v4877
        %v5099 = vpack.c.b16 %v4880, %v4879
        %v5100 = vpack.c.b16 %v4882, %v4881
        %v5101 = vpack.c.b16 %v4884, %v4883
        %v5102 = vpack.c.b16 %v4886, %v4885
        %v5103 = vpack.c.b16 %v4888, %v4887
        %v5104 = vpack.c.b16 %v4890, %v4889
        %v5105 = vpack.c.b16 %v4892, %v4891
        %v5106 = vpack.c.b16 %v4894, %v4893
        %v5107 = vpack.c.b16 %v4896, %v4895
        %v5108 = vpack.c.b16 %v4898, %v4897
        %v5109 = vpack.c.b16 %v4900, %v4899
        %v5110 = vpack.c.b16 %v4902, %v4901
        %v5111 = vpack.c.b16 %v4904, %v4903
        %v5112 = vpack.c.b16 %v4906, %v4905
        %v5113 = vpack.c.b16 %v4908, %v4907
        %v5114 = vpack.c.b16 %v4910, %v4909
        %v5115 = vpack.c.b16 %v4912, %v4911
        %v5116 = vpack.c.b16 %v4914, %v4913
        %v5117 = vpack.c.b16 %v4916, %v4915
        %v5118 = vpack.c.b16 %v4918, %v4917
        %5319 = vmatprep.subr.bf16.mxu0 0
        %5320 = vmatpush1.bf16.msra.mxu0 %v4926
        %5321 = vmatprep.subr.bf16.mxu0 0
        %5322 = vmatpush1.bf16.msra.mxu0 %v4925
        %5323 = vmatprep.subr.bf16.mxu0 0
        %5324 = vmatpush1.bf16.msra.mxu0 %v4924
        %5325 = vmatprep.subr.bf16.mxu0 0
        %5326 = vmatpush1.bf16.msra.mxu0 %v4923
        %5327 = vmatprep.subr.bf16.mxu0 0
        %5328 = vmatpush1.bf16.msra.mxu0 %v4922
        %5329 = vmatprep.subr.bf16.mxu0 0
        %5330 = vmatpush1.bf16.msra.mxu0 %v4921
        %5331 = vmatprep.subr.bf16.mxu0 0
        %5332 = vmatpush1.bf16.msra.mxu0 %v4920
        %5333 = vmatprep.subr.bf16.mxu0 0
        %5334 = vmatpush1.bf16.msra.mxu0 %v4919
        %5335 = vmatprep.subr.bf16.mxu0 0
        %5336 = vmatpush2.bf16.msra.mxu0 %v4934
        %5337 = vmatprep.subr.bf16.mxu0 0
        %5338 = vmatpush2.bf16.msra.mxu0 %v4933
        %5339 = vmatprep.subr.bf16.mxu0 0
        %5340 = vmatpush2.bf16.msra.mxu0 %v4932
        %5341 = vmatprep.subr.bf16.mxu0 0
        %5342 = vmatpush2.bf16.msra.mxu0 %v4931
        %5343 = vmatprep.subr.bf16.mxu0 0
        %5344 = vmatpush2.bf16.msra.mxu0 %v4930
        %5345 = vmatprep.subr.bf16.mxu0 0
        %5346 = vmatpush2.bf16.msra.mxu0 %v4929
        %5347 = vmatprep.subr.bf16.mxu0 0
        %5348 = vmatpush2.bf16.msra.mxu0 %v4928
        %5349 = vmatprep.subr.bf16.mxu0 0
        %5350 = vmatpush2.bf16.msra.mxu0 %v4927
        %5351 = vmatprep.mubr.bf16.mxu0 %v3663
        %5352 = vmatmul.mubr.bf16.gmra.mxu0 %v3662
        %v5353 = vpop.f32.mrf.mxu0
        %v5354 = vadd.f32 %v4117, %v5353
        %v5355 = vpop.f32.mrf.mxu0
        %v5356 = vpop.f32.mrf.mxu0
        %v5357 = vadd.f32 %v4117, %v5356
        %v5358 = vpop.f32.mrf.mxu0
        %5359 = vmatprep.mubr.bf16.mxu0 %v3688
        %5360 = vmatmul.mubr.bf16.gmra.mxu0 %v3687
        %v5361 = vpop.f32.mrf.mxu0
        %v5362 = vadd.f32 %v4117, %v5361
        %v5363 = vpop.f32.mrf.mxu0
        %v5364 = vpop.f32.mrf.mxu0
        %v5365 = vpop.f32.mrf.mxu0
        %5366 = vdwg.mxu0
        %5367 = vmatprep.subr.bf16.mxu0 0
        %5368 = vmatpush1.bf16.msra.mxu0 %v4942
        %5369 = vmatprep.subr.bf16.mxu0 0
        %5370 = vmatpush1.bf16.msra.mxu0 %v4941
        %5371 = vmatprep.subr.bf16.mxu0 0
        %5372 = vmatpush1.bf16.msra.mxu0 %v4940
        %5373 = vmatprep.subr.bf16.mxu0 0
        %5374 = vmatpush1.bf16.msra.mxu0 %v4939
        %5375 = vmatprep.subr.bf16.mxu0 0
        %5376 = vmatpush1.bf16.msra.mxu0 %v4938
        %5377 = vmatprep.subr.bf16.mxu0 0
        %5378 = vmatpush1.bf16.msra.mxu0 %v4937
        %5379 = vmatprep.subr.bf16.mxu0 0
        %5380 = vmatpush1.bf16.msra.mxu0 %v4936
        %5381 = vmatprep.subr.bf16.mxu0 0
        %5382 = vmatpush1.bf16.msra.mxu0 %v4935
        %5383 = vmatprep.subr.bf16.mxu0 0
        %5384 = vmatpush2.bf16.msra.mxu0 %v4950
        %5385 = vmatprep.subr.bf16.mxu0 0
        %5386 = vmatpush2.bf16.msra.mxu0 %v4949
        %5387 = vmatprep.subr.bf16.mxu0 0
        %5388 = vmatpush2.bf16.msra.mxu0 %v4948
        %5389 = vmatprep.subr.bf16.mxu0 0
        %5390 = vmatpush2.bf16.msra.mxu0 %v4947
        %5391 = vmatprep.subr.bf16.mxu0 0
        %5392 = vmatpush2.bf16.msra.mxu0 %v4946
        %5393 = vmatprep.subr.bf16.mxu0 0
        %5394 = vmatpush2.bf16.msra.mxu0 %v4945
        %5395 = vmatprep.subr.bf16.mxu0 0
        %5396 = vmatpush2.bf16.msra.mxu0 %v4944
        %5397 = vmatprep.subr.bf16.mxu0 0
        %5398 = vmatpush2.bf16.msra.mxu0 %v4943
        %5399 = vmatprep.mubr.bf16.mxu0 %v3665
        %5400 = vmatmul.mubr.bf16.gmra.mxu0 %v3664
        %v5401 = vpop.f32.mrf.mxu0
        %v5402 = vadd.f32 %v5354, %v5401
        %v5403 = vpop.f32.mrf.mxu0
        %v5404 = vpop.f32.mrf.mxu0
        %v5405 = vadd.f32 %v5357, %v5404
        %v5406 = vpop.f32.mrf.mxu0
        %5407 = vmatprep.mubr.bf16.mxu0 %v3690
        %5408 = vmatmul.mubr.bf16.gmra.mxu0 %v3689
        %v5409 = vpop.f32.mrf.mxu0
        %v5410 = vadd.f32 %v5362, %v5409
        %v5411 = vpop.f32.mrf.mxu0
        %v5412 = vpop.f32.mrf.mxu0
        %v5413 = vpop.f32.mrf.mxu0
        %5414 = vdwg.mxu0
        %5415 = vmatprep.subr.bf16.mxu0 0
        %5416 = vmatpush1.bf16.msra.mxu0 %v4958
        %5417 = vmatprep.subr.bf16.mxu0 0
        %5418 = vmatpush1.bf16.msra.mxu0 %v4957
        %5419 = vmatprep.subr.bf16.mxu0 0
        %5420 = vmatpush1.bf16.msra.mxu0 %v4956
        %5421 = vmatprep.subr.bf16.mxu0 0
        %5422 = vmatpush1.bf16.msra.mxu0 %v4955
        %5423 = vmatprep.subr.bf16.mxu0 0
        %5424 = vmatpush1.bf16.msra.mxu0 %v4954
        %5425 = vmatprep.subr.bf16.mxu0 0
        %5426 = vmatpush1.bf16.msra.mxu0 %v4953
        %5427 = vmatprep.subr.bf16.mxu0 0
        %5428 = vmatpush1.bf16.msra.mxu0 %v4952
        %5429 = vmatprep.subr.bf16.mxu0 0
        %5430 = vmatpush1.bf16.msra.mxu0 %v4951
        %5431 = vmatprep.subr.bf16.mxu0 0
        %5432 = vmatpush2.bf16.msra.mxu0 %v4966
        %5433 = vmatprep.subr.bf16.mxu0 0
        %5434 = vmatpush2.bf16.msra.mxu0 %v4965
        %5435 = vmatprep.subr.bf16.mxu0 0
        %5436 = vmatpush2.bf16.msra.mxu0 %v4964
        %5437 = vmatprep.subr.bf16.mxu0 0
        %5438 = vmatpush2.bf16.msra.mxu0 %v4963
        %5439 = vmatprep.subr.bf16.mxu0 0
        %5440 = vmatpush2.bf16.msra.mxu0 %v4962
        %5441 = vmatprep.subr.bf16.mxu0 0
        %5442 = vmatpush2.bf16.msra.mxu0 %v4961
        %5443 = vmatprep.subr.bf16.mxu0 0
        %5444 = vmatpush2.bf16.msra.mxu0 %v4960
        %5445 = vmatprep.subr.bf16.mxu0 0
        %5446 = vmatpush2.bf16.msra.mxu0 %v4959
        %5447 = vmatprep.mubr.bf16.mxu0 %v3667
        %5448 = vmatmul.mubr.bf16.gmra.mxu0 %v3666
        %v5449 = vpop.f32.mrf.mxu0
        %v5450 = vadd.f32 %v5402, %v5449
        %v5451 = vpop.f32.mrf.mxu0
        %v5452 = vpop.f32.mrf.mxu0
        %v5453 = vadd.f32 %v5405, %v5452
        %v5454 = vpop.f32.mrf.mxu0
        %5455 = vmatprep.mubr.bf16.mxu0 %v3692
        %5456 = vmatmul.mubr.bf16.gmra.mxu0 %v3691
        %v5457 = vpop.f32.mrf.mxu0
        %v5458 = vadd.f32 %v5410, %v5457
        %v5459 = vpop.f32.mrf.mxu0
        %v5460 = vpop.f32.mrf.mxu0
        %v5461 = vpop.f32.mrf.mxu0
        %5462 = vdwg.mxu0
        %5463 = vmatprep.subr.bf16.mxu0 0
        %5464 = vmatpush1.bf16.msra.mxu0 %v4974
        %5465 = vmatprep.subr.bf16.mxu0 0
        %5466 = vmatpush1.bf16.msra.mxu0 %v4973
        %5467 = vmatprep.subr.bf16.mxu0 0
        %5468 = vmatpush1.bf16.msra.mxu0 %v4972
        %5469 = vmatprep.subr.bf16.mxu0 0
        %5470 = vmatpush1.bf16.msra.mxu0 %v4971
        %5471 = vmatprep.subr.bf16.mxu0 0
        %5472 = vmatpush1.bf16.msra.mxu0 %v4970
        %5473 = vmatprep.subr.bf16.mxu0 0
        %5474 = vmatpush1.bf16.msra.mxu0 %v4969
        %5475 = vmatprep.subr.bf16.mxu0 0
        %5476 = vmatpush1.bf16.msra.mxu0 %v4968
        %5477 = vmatprep.subr.bf16.mxu0 0
        %5478 = vmatpush1.bf16.msra.mxu0 %v4967
        %5479 = vmatprep.subr.bf16.mxu0 0
        %5480 = vmatpush2.bf16.msra.mxu0 %v4982
        %5481 = vmatprep.subr.bf16.mxu0 0
        %5482 = vmatpush2.bf16.msra.mxu0 %v4981
        %5483 = vmatprep.subr.bf16.mxu0 0
        %5484 = vmatpush2.bf16.msra.mxu0 %v4980
        %5485 = vmatprep.subr.bf16.mxu0 0
        %5486 = vmatpush2.bf16.msra.mxu0 %v4979
        %5487 = vmatprep.subr.bf16.mxu0 0
        %5488 = vmatpush2.bf16.msra.mxu0 %v4978
        %5489 = vmatprep.subr.bf16.mxu0 0
        %5490 = vmatpush2.bf16.msra.mxu0 %v4977
        %5491 = vmatprep.subr.bf16.mxu0 0
        %5492 = vmatpush2.bf16.msra.mxu0 %v4976
        %5493 = vmatprep.subr.bf16.mxu0 0
        %5494 = vmatpush2.bf16.msra.mxu0 %v4975
        %5495 = vmatprep.mubr.bf16.mxu0 %v3669
        %5496 = vmatmul.mubr.bf16.gmra.mxu0 %v3668
        %v5497 = vpop.f32.mrf.mxu0
        %v5498 = vadd.f32 %v5450, %v5497
        %v5499 = vpop.f32.mrf.mxu0
        %v5500 = vpop.f32.mrf.mxu0
        %v5501 = vadd.f32 %v5453, %v5500
        %v5502 = vpop.f32.mrf.mxu0
        %5503 = vmatprep.mubr.bf16.mxu0 %v3694
        %5504 = vmatmul.mubr.bf16.gmra.mxu0 %v3693
        %v5505 = vpop.f32.mrf.mxu0
        %v5506 = vadd.f32 %v5458, %v5505
        %v5507 = vpop.f32.mrf.mxu0
        %v5508 = vpop.f32.mrf.mxu0
        %v5509 = vpop.f32.mrf.mxu0
        %5510 = vdwg.mxu0
        %5511 = vmatprep.subr.bf16.mxu0 0
        %5512 = vmatpush1.bf16.msra.mxu0 %v4990
        %5513 = vmatprep.subr.bf16.mxu0 0
        %5514 = vmatpush1.bf16.msra.mxu0 %v4989
        %5515 = vmatprep.subr.bf16.mxu0 0
        %5516 = vmatpush1.bf16.msra.mxu0 %v4988
        %5517 = vmatprep.subr.bf16.mxu0 0
        %5518 = vmatpush1.bf16.msra.mxu0 %v4987
        %5519 = vmatprep.subr.bf16.mxu0 0
        %5520 = vmatpush1.bf16.msra.mxu0 %v4986
        %5521 = vmatprep.subr.bf16.mxu0 0
        %5522 = vmatpush1.bf16.msra.mxu0 %v4985
        %5523 = vmatprep.subr.bf16.mxu0 0
        %5524 = vmatpush1.bf16.msra.mxu0 %v4984
        %5525 = vmatprep.subr.bf16.mxu0 0
        %5526 = vmatpush1.bf16.msra.mxu0 %v4983
        %5527 = vmatprep.subr.bf16.mxu0 0
        %5528 = vmatpush2.bf16.msra.mxu0 %v4998
        %5529 = vmatprep.subr.bf16.mxu0 0
        %5530 = vmatpush2.bf16.msra.mxu0 %v4997
        %5531 = vmatprep.subr.bf16.mxu0 0
        %5532 = vmatpush2.bf16.msra.mxu0 %v4996
        %5533 = vmatprep.subr.bf16.mxu0 0
        %5534 = vmatpush2.bf16.msra.mxu0 %v4995
        %5535 = vmatprep.subr.bf16.mxu0 0
        %5536 = vmatpush2.bf16.msra.mxu0 %v4994
        %5537 = vmatprep.subr.bf16.mxu0 0
        %5538 = vmatpush2.bf16.msra.mxu0 %v4993
        %5539 = vmatprep.subr.bf16.mxu0 0
        %5540 = vmatpush2.bf16.msra.mxu0 %v4992
        %5541 = vmatprep.subr.bf16.mxu0 0
        %5542 = vmatpush2.bf16.msra.mxu0 %v4991
        %5543 = vmatprep.mubr.bf16.mxu0 %v3671
        %5544 = vmatmul.mubr.bf16.gmra.mxu0 %v3670
        %v5545 = vpop.f32.mrf.mxu0
        %v5546 = vadd.f32 %v5498, %v5545
        %v5547 = vpop.f32.mrf.mxu0
        %v5548 = vpop.f32.mrf.mxu0
        %v5549 = vadd.f32 %v5501, %v5548
        %v5550 = vpop.f32.mrf.mxu0
        %5551 = vmatprep.mubr.bf16.mxu0 %v3696
        %5552 = vmatmul.mubr.bf16.gmra.mxu0 %v3695
        %v5553 = vpop.f32.mrf.mxu0
        %v5554 = vadd.f32 %v5506, %v5553
        %v5555 = vpop.f32.mrf.mxu0
        %v5556 = vpop.f32.mrf.mxu0
        %v5557 = vpop.f32.mrf.mxu0
        %5558 = vdwg.mxu0
        %5559 = vmatprep.subr.bf16.mxu0 0
        %5560 = vmatpush1.bf16.msra.mxu0 %v5006
        %5561 = vmatprep.subr.bf16.mxu0 0
        %5562 = vmatpush1.bf16.msra.mxu0 %v5005
        %5563 = vmatprep.subr.bf16.mxu0 0
        %5564 = vmatpush1.bf16.msra.mxu0 %v5004
        %5565 = vmatprep.subr.bf16.mxu0 0
        %5566 = vmatpush1.bf16.msra.mxu0 %v5003
        %5567 = vmatprep.subr.bf16.mxu0 0
        %5568 = vmatpush1.bf16.msra.mxu0 %v5002
        %5569 = vmatprep.subr.bf16.mxu0 0
        %5570 = vmatpush1.bf16.msra.mxu0 %v5001
        %5571 = vmatprep.subr.bf16.mxu0 0
        %5572 = vmatpush1.bf16.msra.mxu0 %v5000
        %5573 = vmatprep.subr.bf16.mxu0 0
        %5574 = vmatpush1.bf16.msra.mxu0 %v4999
        %5575 = vmatprep.subr.bf16.mxu0 0
        %5576 = vmatpush2.bf16.msra.mxu0 %v5014
        %5577 = vmatprep.subr.bf16.mxu0 0
        %5578 = vmatpush2.bf16.msra.mxu0 %v5013
        %5579 = vmatprep.subr.bf16.mxu0 0
        %5580 = vmatpush2.bf16.msra.mxu0 %v5012
        %5581 = vmatprep.subr.bf16.mxu0 0
        %5582 = vmatpush2.bf16.msra.mxu0 %v5011
        %5583 = vmatprep.subr.bf16.mxu0 0
        %5584 = vmatpush2.bf16.msra.mxu0 %v5010
        %5585 = vmatprep.subr.bf16.mxu0 0
        %5586 = vmatpush2.bf16.msra.mxu0 %v5009
        %5587 = vmatprep.subr.bf16.mxu0 0
        %5588 = vmatpush2.bf16.msra.mxu0 %v5008
        %5589 = vmatprep.subr.bf16.mxu0 0
        %5590 = vmatpush2.bf16.msra.mxu0 %v5007
        %5591 = vmatprep.mubr.bf16.mxu0 %v3673
        %5592 = vmatmul.mubr.bf16.gmra.mxu0 %v3672
        %v5593 = vpop.f32.mrf.mxu0
        %v5594 = vadd.f32 %v5546, %v5593
        %v5595 = vpop.f32.mrf.mxu0
        %v5596 = vpop.f32.mrf.mxu0
        %v5597 = vadd.f32 %v5549, %v5596
        %v5598 = vpop.f32.mrf.mxu0
        %5599 = vmatprep.mubr.bf16.mxu0 %v3698
        %5600 = vmatmul.mubr.bf16.gmra.mxu0 %v3697
        %v5601 = vpop.f32.mrf.mxu0
        %v5602 = vadd.f32 %v5554, %v5601
        %v5603 = vpop.f32.mrf.mxu0
        %v5604 = vpop.f32.mrf.mxu0
        %v5605 = vpop.f32.mrf.mxu0
        %5606 = vdwg.mxu0
        %5607 = vmatprep.subr.bf16.mxu0 0
        %5608 = vmatpush1.bf16.msra.mxu0 %v5022
        %5609 = vmatprep.subr.bf16.mxu0 0
        %5610 = vmatpush1.bf16.msra.mxu0 %v5021
        %5611 = vmatprep.subr.bf16.mxu0 0
        %5612 = vmatpush1.bf16.msra.mxu0 %v5020
        %5613 = vmatprep.subr.bf16.mxu0 0
        %5614 = vmatpush1.bf16.msra.mxu0 %v5019
        %5615 = vmatprep.subr.bf16.mxu0 0
        %5616 = vmatpush1.bf16.msra.mxu0 %v5018
        %5617 = vmatprep.subr.bf16.mxu0 0
        %5618 = vmatpush1.bf16.msra.mxu0 %v5017
        %5619 = vmatprep.subr.bf16.mxu0 0
        %5620 = vmatpush1.bf16.msra.mxu0 %v5016
        %5621 = vmatprep.subr.bf16.mxu0 0
        %5622 = vmatpush1.bf16.msra.mxu0 %v5015
        %5623 = vmatprep.subr.bf16.mxu0 0
        %5624 = vmatpush2.bf16.msra.mxu0 %v5030
        %5625 = vmatprep.subr.bf16.mxu0 0
        %5626 = vmatpush2.bf16.msra.mxu0 %v5029
        %5627 = vmatprep.subr.bf16.mxu0 0
        %5628 = vmatpush2.bf16.msra.mxu0 %v5028
        %5629 = vmatprep.subr.bf16.mxu0 0
        %5630 = vmatpush2.bf16.msra.mxu0 %v5027
        %5631 = vmatprep.subr.bf16.mxu0 0
        %5632 = vmatpush2.bf16.msra.mxu0 %v5026
        %5633 = vmatprep.subr.bf16.mxu0 0
        %5634 = vmatpush2.bf16.msra.mxu0 %v5025
        %5635 = vmatprep.subr.bf16.mxu0 0
        %5636 = vmatpush2.bf16.msra.mxu0 %v5024
        %5637 = vmatprep.subr.bf16.mxu0 0
        %5638 = vmatpush2.bf16.msra.mxu0 %v5023
        %5639 = vmatprep.mubr.bf16.mxu0 %v3675
        %5640 = vmatmul.mubr.bf16.gmra.mxu0 %v3674
        %v5641 = vpop.f32.mrf.mxu0
        %v5642 = vadd.f32 %v5594, %v5641
        %v5643 = vpop.f32.mrf.mxu0
        %v5644 = vpop.f32.mrf.mxu0
        %v5645 = vadd.f32 %v5597, %v5644
        %v5646 = vpop.f32.mrf.mxu0
        %5647 = vmatprep.mubr.bf16.mxu0 %v3700
        %5648 = vmatmul.mubr.bf16.gmra.mxu0 %v3699
        %v5649 = vpop.f32.mrf.mxu0
        %v5650 = vadd.f32 %v5602, %v5649
        %v5651 = vpop.f32.mrf.mxu0
        %v5652 = vpop.f32.mrf.mxu0
        %v5653 = vpop.f32.mrf.mxu0
        %5654 = vdwg.mxu0
        %5655 = vmatprep.subr.bf16.mxu0 0
        %5656 = vmatpush1.bf16.msra.mxu0 %v5038
        %5657 = vmatprep.subr.bf16.mxu0 0
        %5658 = vmatpush1.bf16.msra.mxu0 %v5037
        %5659 = vmatprep.subr.bf16.mxu0 0
        %5660 = vmatpush1.bf16.msra.mxu0 %v5036
        %5661 = vmatprep.subr.bf16.mxu0 0
        %5662 = vmatpush1.bf16.msra.mxu0 %v5035
        %5663 = vmatprep.subr.bf16.mxu0 0
        %5664 = vmatpush1.bf16.msra.mxu0 %v5034
        %5665 = vmatprep.subr.bf16.mxu0 0
        %5666 = vmatpush1.bf16.msra.mxu0 %v5033
        %5667 = vmatprep.subr.bf16.mxu0 0
        %5668 = vmatpush1.bf16.msra.mxu0 %v5032
        %5669 = vmatprep.subr.bf16.mxu0 0
        %5670 = vmatpush1.bf16.msra.mxu0 %v5031
        %5671 = vmatprep.subr.bf16.mxu0 0
        %5672 = vmatpush2.bf16.msra.mxu0 %v5046
        %5673 = vmatprep.subr.bf16.mxu0 0
        %5674 = vmatpush2.bf16.msra.mxu0 %v5045
        %5675 = vmatprep.subr.bf16.mxu0 0
        %5676 = vmatpush2.bf16.msra.mxu0 %v5044
        %5677 = vmatprep.subr.bf16.mxu0 0
        %5678 = vmatpush2.bf16.msra.mxu0 %v5043
        %5679 = vmatprep.subr.bf16.mxu0 0
        %5680 = vmatpush2.bf16.msra.mxu0 %v5042
        %5681 = vmatprep.subr.bf16.mxu0 0
        %5682 = vmatpush2.bf16.msra.mxu0 %v5041
        %5683 = vmatprep.subr.bf16.mxu0 0
        %5684 = vmatpush2.bf16.msra.mxu0 %v5040
        %5685 = vmatprep.subr.bf16.mxu0 0
        %5686 = vmatpush2.bf16.msra.mxu0 %v5039
        %5687 = vmatprep.mubr.bf16.mxu0 %v3677
        %5688 = vmatmul.mubr.bf16.gmra.mxu0 %v3676
        %v5689 = vpop.f32.mrf.mxu0
        %v5690 = vadd.f32 %v5642, %v5689
        %v5691 = vpop.f32.mrf.mxu0
        %v5692 = vpop.f32.mrf.mxu0
        %v5693 = vadd.f32 %v5645, %v5692
        %v5694 = vpop.f32.mrf.mxu0
        %5695 = vmatprep.mubr.bf16.mxu0 %v3702
        %5696 = vmatmul.mubr.bf16.gmra.mxu0 %v3701
        %v5697 = vpop.f32.mrf.mxu0
        %v5698 = vadd.f32 %v5650, %v5697
        %v5699 = vpop.f32.mrf.mxu0
        %v5700 = vpop.f32.mrf.mxu0
        %v5701 = vpop.f32.mrf.mxu0
        %5702 = vdwg.mxu0
        %5703 = vmatprep.subr.bf16.mxu0 0
        %5704 = vmatpush1.bf16.msra.mxu0 %v5054
        %5705 = vmatprep.subr.bf16.mxu0 0
        %5706 = vmatpush1.bf16.msra.mxu0 %v5053
        %5707 = vmatprep.subr.bf16.mxu0 0
        %5708 = vmatpush1.bf16.msra.mxu0 %v5052
        %5709 = vmatprep.subr.bf16.mxu0 0
        %5710 = vmatpush1.bf16.msra.mxu0 %v5051
        %5711 = vmatprep.subr.bf16.mxu0 0
        %5712 = vmatpush1.bf16.msra.mxu0 %v5050
        %5713 = vmatprep.subr.bf16.mxu0 0
        %5714 = vmatpush1.bf16.msra.mxu0 %v5049
        %5715 = vmatprep.subr.bf16.mxu0 0
        %5716 = vmatpush1.bf16.msra.mxu0 %v5048
        %5717 = vmatprep.subr.bf16.mxu0 0
        %5718 = vmatpush1.bf16.msra.mxu0 %v5047
        %5719 = vmatprep.subr.bf16.mxu0 0
        %5720 = vmatpush2.bf16.msra.mxu0 %v5062
        %5721 = vmatprep.subr.bf16.mxu0 0
        %5722 = vmatpush2.bf16.msra.mxu0 %v5061
        %5723 = vmatprep.subr.bf16.mxu0 0
        %5724 = vmatpush2.bf16.msra.mxu0 %v5060
        %5725 = vmatprep.subr.bf16.mxu0 0
        %5726 = vmatpush2.bf16.msra.mxu0 %v5059
        %5727 = vmatprep.subr.bf16.mxu0 0
        %5728 = vmatpush2.bf16.msra.mxu0 %v5058
        %5729 = vmatprep.subr.bf16.mxu0 0
        %5730 = vmatpush2.bf16.msra.mxu0 %v5057
        %5731 = vmatprep.subr.bf16.mxu0 0
        %5732 = vmatpush2.bf16.msra.mxu0 %v5056
        %5733 = vmatprep.subr.bf16.mxu0 0
        %5734 = vmatpush2.bf16.msra.mxu0 %v5055
        %5735 = vmatprep.mubr.bf16.mxu0 %v3679
        %5736 = vmatmul.mubr.bf16.gmra.mxu0 %v3678
        %v5737 = vpop.f32.mrf.mxu0
        %v5738 = vadd.f32 %v5690, %v5737
        %v5739 = vpop.f32.mrf.mxu0
        %v5740 = vpop.f32.mrf.mxu0
        %v5741 = vadd.f32 %v5693, %v5740
        %v5742 = vpop.f32.mrf.mxu0
        %5743 = vmatprep.mubr.bf16.mxu0 %v3704
        %5744 = vmatmul.mubr.bf16.gmra.mxu0 %v3703
        %v5745 = vpop.f32.mrf.mxu0
        %v5746 = vadd.f32 %v5698, %v5745
        %v5747 = vpop.f32.mrf.mxu0
        %v5748 = vpop.f32.mrf.mxu0
        %v5749 = vpop.f32.mrf.mxu0
        %5750 = vdwg.mxu0
        %5751 = vmatprep.subr.bf16.mxu0 0
        %5752 = vmatpush1.bf16.msra.mxu0 %v5070
        %5753 = vmatprep.subr.bf16.mxu0 0
        %5754 = vmatpush1.bf16.msra.mxu0 %v5069
        %5755 = vmatprep.subr.bf16.mxu0 0
        %5756 = vmatpush1.bf16.msra.mxu0 %v5068
        %5757 = vmatprep.subr.bf16.mxu0 0
        %5758 = vmatpush1.bf16.msra.mxu0 %v5067
        %5759 = vmatprep.subr.bf16.mxu0 0
        %5760 = vmatpush1.bf16.msra.mxu0 %v5066
        %5761 = vmatprep.subr.bf16.mxu0 0
        %5762 = vmatpush1.bf16.msra.mxu0 %v5065
        %5763 = vmatprep.subr.bf16.mxu0 0
        %5764 = vmatpush1.bf16.msra.mxu0 %v5064
        %5765 = vmatprep.subr.bf16.mxu0 0
        %5766 = vmatpush1.bf16.msra.mxu0 %v5063
        %5767 = vmatprep.subr.bf16.mxu0 0
        %5768 = vmatpush2.bf16.msra.mxu0 %v5078
        %5769 = vmatprep.subr.bf16.mxu0 0
        %5770 = vmatpush2.bf16.msra.mxu0 %v5077
        %5771 = vmatprep.subr.bf16.mxu0 0
        %5772 = vmatpush2.bf16.msra.mxu0 %v5076
        %5773 = vmatprep.subr.bf16.mxu0 0
        %5774 = vmatpush2.bf16.msra.mxu0 %v5075
        %5775 = vmatprep.subr.bf16.mxu0 0
        %5776 = vmatpush2.bf16.msra.mxu0 %v5074
        %5777 = vmatprep.subr.bf16.mxu0 0
        %5778 = vmatpush2.bf16.msra.mxu0 %v5073
        %5779 = vmatprep.subr.bf16.mxu0 0
        %5780 = vmatpush2.bf16.msra.mxu0 %v5072
        %5781 = vmatprep.subr.bf16.mxu0 0
        %5782 = vmatpush2.bf16.msra.mxu0 %v5071
        %5783 = vmatprep.mubr.bf16.mxu0 %v3681
        %5784 = vmatmul.mubr.bf16.gmra.mxu0 %v3680
        %v5785 = vpop.f32.mrf.mxu0
        %v5786 = vadd.f32 %v5738, %v5785
        %v5787 = vpop.f32.mrf.mxu0
        %v5788 = vpop.f32.mrf.mxu0
        %v5789 = vadd.f32 %v5741, %v5788
        %v5790 = vpop.f32.mrf.mxu0
        %5791 = vmatprep.mubr.bf16.mxu0 %v3706
        %5792 = vmatmul.mubr.bf16.gmra.mxu0 %v3705
        %v5793 = vpop.f32.mrf.mxu0
        %v5794 = vadd.f32 %v5746, %v5793
        %v5795 = vpop.f32.mrf.mxu0
        %v5796 = vpop.f32.mrf.mxu0
        %v5797 = vpop.f32.mrf.mxu0
        %5798 = vdwg.mxu0
        %5799 = vmatprep.subr.bf16.mxu0 0
        %5800 = vmatpush1.bf16.msra.mxu0 %v5086
        %5801 = vmatprep.subr.bf16.mxu0 0
        %5802 = vmatpush1.bf16.msra.mxu0 %v5085
        %5803 = vmatprep.subr.bf16.mxu0 0
        %5804 = vmatpush1.bf16.msra.mxu0 %v5084
        %5805 = vmatprep.subr.bf16.mxu0 0
        %5806 = vmatpush1.bf16.msra.mxu0 %v5083
        %5807 = vmatprep.subr.bf16.mxu0 0
        %5808 = vmatpush1.bf16.msra.mxu0 %v5082
        %5809 = vmatprep.subr.bf16.mxu0 0
        %5810 = vmatpush1.bf16.msra.mxu0 %v5081
        %5811 = vmatprep.subr.bf16.mxu0 0
        %5812 = vmatpush1.bf16.msra.mxu0 %v5080
        %5813 = vmatprep.subr.bf16.mxu0 0
        %5814 = vmatpush1.bf16.msra.mxu0 %v5079
        %5815 = vmatprep.subr.bf16.mxu0 0
        %5816 = vmatpush2.bf16.msra.mxu0 %v5094
        %5817 = vmatprep.subr.bf16.mxu0 0
        %5818 = vmatpush2.bf16.msra.mxu0 %v5093
        %5819 = vmatprep.subr.bf16.mxu0 0
        %5820 = vmatpush2.bf16.msra.mxu0 %v5092
        %5821 = vmatprep.subr.bf16.mxu0 0
        %5822 = vmatpush2.bf16.msra.mxu0 %v5091
        %5823 = vmatprep.subr.bf16.mxu0 0
        %5824 = vmatpush2.bf16.msra.mxu0 %v5090
        %5825 = vmatprep.subr.bf16.mxu0 0
        %5826 = vmatpush2.bf16.msra.mxu0 %v5089
        %5827 = vmatprep.subr.bf16.mxu0 0
        %5828 = vmatpush2.bf16.msra.mxu0 %v5088
        %5829 = vmatprep.subr.bf16.mxu0 0
        %5830 = vmatpush2.bf16.msra.mxu0 %v5087
        %5831 = vmatprep.mubr.bf16.mxu0 %v3683
        %5832 = vmatmul.mubr.bf16.gmra.mxu0 %v3682
        %v5833 = vpop.f32.mrf.mxu0
        %v5834 = vadd.f32 %v5786, %v5833
        %v5835 = vpop.f32.mrf.mxu0
        %v5836 = vpop.f32.mrf.mxu0
        %v5837 = vadd.f32 %v5789, %v5836
        %v5838 = vpop.f32.mrf.mxu0
        %5839 = vmatprep.mubr.bf16.mxu0 %v3708
        %5840 = vmatmul.mubr.bf16.gmra.mxu0 %v3707
        %v5841 = vpop.f32.mrf.mxu0
        %v5842 = vadd.f32 %v5794, %v5841
        %v5843 = vpop.f32.mrf.mxu0
        %v5844 = vpop.f32.mrf.mxu0
        %v5845 = vpop.f32.mrf.mxu0
        %5846 = vdwg.mxu0
        %5847 = vmatprep.subr.bf16.mxu0 0
        %5848 = vmatpush1.bf16.msra.mxu0 %v5102
        %5849 = vmatprep.subr.bf16.mxu0 0
        %5850 = vmatpush1.bf16.msra.mxu0 %v5101
        %5851 = vmatprep.subr.bf16.mxu0 0
        %5852 = vmatpush1.bf16.msra.mxu0 %v5100
        %5853 = vmatprep.subr.bf16.mxu0 0
        %5854 = vmatpush1.bf16.msra.mxu0 %v5099
        %5855 = vmatprep.subr.bf16.mxu0 0
        %5856 = vmatpush1.bf16.msra.mxu0 %v5098
        %5857 = vmatprep.subr.bf16.mxu0 0
        %5858 = vmatpush1.bf16.msra.mxu0 %v5097
        %5859 = vmatprep.subr.bf16.mxu0 0
        %5860 = vmatpush1.bf16.msra.mxu0 %v5096
        %5861 = vmatprep.subr.bf16.mxu0 0
        %5862 = vmatpush1.bf16.msra.mxu0 %v5095
        %5863 = vmatprep.subr.bf16.mxu0 0
        %5864 = vmatpush2.bf16.msra.mxu0 %v5110
        %5865 = vmatprep.subr.bf16.mxu0 0
        %5866 = vmatpush2.bf16.msra.mxu0 %v5109
        %5867 = vmatprep.subr.bf16.mxu0 0
        %5868 = vmatpush2.bf16.msra.mxu0 %v5108
        %5869 = vmatprep.subr.bf16.mxu0 0
        %5870 = vmatpush2.bf16.msra.mxu0 %v5107
        %5871 = vmatprep.subr.bf16.mxu0 0
        %5872 = vmatpush2.bf16.msra.mxu0 %v5106
        %5873 = vmatprep.subr.bf16.mxu0 0
        %5874 = vmatpush2.bf16.msra.mxu0 %v5105
        %5875 = vmatprep.subr.bf16.mxu0 0
        %5876 = vmatpush2.bf16.msra.mxu0 %v5104
        %5877 = vmatprep.subr.bf16.mxu0 0
        %5878 = vmatpush2.bf16.msra.mxu0 %v5103
        %5879 = vmatprep.mubr.bf16.mxu0 %v3685
        %5880 = vmatmul.mubr.bf16.gmra.mxu0 %v3684
        %v5881 = vpop.f32.mrf.mxu0
        %v5882 = vadd.f32 %v5834, %v5881
        %v5883 = vpop.f32.mrf.mxu0
        %v5884 = vpop.f32.mrf.mxu0
        %v5885 = vadd.f32 %v5837, %v5884
        %v5886 = vpop.f32.mrf.mxu0
        %5887 = vmatprep.mubr.bf16.mxu0 %v3710
        %5888 = vmatmul.mubr.bf16.gmra.mxu0 %v3709
        %v5889 = vpop.f32.mrf.mxu0
        %v5890 = vadd.f32 %v5842, %v5889
        %v5891 = vpop.f32.mrf.mxu0
        %v5892 = vpop.f32.mrf.mxu0
        %v5893 = vpop.f32.mrf.mxu0
        %5894 = vdwg.mxu0
        %5895 = vmatprep.subr.bf16.mxu0 0
        %5896 = vmatpush1.bf16.msra.mxu0 %v5118
        %5897 = vmatprep.subr.bf16.mxu0 0
        %5898 = vmatpush1.bf16.msra.mxu0 %v5117
        %5899 = vmatprep.subr.bf16.mxu0 0
        %5900 = vmatpush1.bf16.msra.mxu0 %v5116
        %5901 = vmatprep.subr.bf16.mxu0 0
        %5902 = vmatpush1.bf16.msra.mxu0 %v5115
        %5903 = vmatprep.subr.bf16.mxu0 0
        %5904 = vmatpush1.bf16.msra.mxu0 %v5114
        %5905 = vmatprep.subr.bf16.mxu0 0
        %5906 = vmatpush1.bf16.msra.mxu0 %v5113
        %5907 = vmatprep.subr.bf16.mxu0 0
        %5908 = vmatpush1.bf16.msra.mxu0 %v5112
        %5909 = vmatprep.subr.bf16.mxu0 0
        %5910 = vmatpush1.bf16.msra.mxu0 %v5111
        %5911 = vmatprep.subr.bf16.mxu0 0
        %5912 = vmatpush2.bf16.msra.mxu0 0
        %5913 = vmatprep.subr.bf16.mxu0 0
        %5914 = vmatpush2.bf16.msra.mxu0 0
        %5915 = vmatprep.subr.bf16.mxu0 0
        %5916 = vmatpush2.bf16.msra.mxu0 0
        %5917 = vmatprep.subr.bf16.mxu0 0
        %5918 = vmatpush2.bf16.msra.mxu0 0
        %5919 = vmatprep.subr.bf16.mxu0 0
        %5920 = vmatpush2.bf16.msra.mxu0 0
        %5921 = vmatprep.subr.bf16.mxu0 0
        %5922 = vmatpush2.bf16.msra.mxu0 0
        %5923 = vmatprep.subr.bf16.mxu0 0
        %5924 = vmatpush2.bf16.msra.mxu0 0
        %5925 = vmatprep.subr.bf16.mxu0 0
        %5926 = vmatpush2.bf16.msra.mxu0 0
        %5927 = vmatprep.mubr.bf16.mxu0 0
        %5928 = vmatmul.mubr.bf16.gmra.mxu0 %v3686
        %v5929 = vpop.f32.mrf.mxu0
        %v5930 = vadd.f32 %v5882, %v5929
        %v5931 = vpop.f32.mrf.mxu0
        %v5932 = vpop.f32.mrf.mxu0
        %v5933 = vadd.f32 %v5885, %v5932
        %v5934 = vpop.f32.mrf.mxu0
        %5935 = vmatprep.mubr.bf16.mxu0 0
        %5936 = vmatmul.mubr.bf16.gmra.mxu0 %v3711
        %v5937 = vpop.f32.mrf.mxu0
        %v5938 = vadd.f32 %v5890, %v5937
        %v5939 = vpop.f32.mrf.mxu0
        %v5940 = vpop.f32.mrf.mxu0
        %v5941 = vpop.f32.mrf.mxu0
        %5942 = vdwg.mxu0
        %v5943 = vmax.f32 %v5930, 0.0
        %v5944 = vmax.f32 %v5933, 0.0
        %v5945 = vmax.f32 %v5938, 0.0
        %v5946 = vsel %vm3348, %v5943, 0.0
        %v5947 = vsel %vm3348, %v5944, 0.0
        %v5948 = vadd.f32 %v5946, %v5947
        %v5949 = vsel %vm3348, %v5945, 0.0
        %v5950 = vadd.f32 %v5948, %v5949
        %v5951 = vrot.slane %v5950, 4
        %v5952 = vadd.f32 %v5950, %v5951
        %v5953 = vrot.slane %v5952, 2
        %v5954 = vadd.f32 %v5952, %v5953
        %v5955 = vrot.slane %v5954, 1
        %v5956 = vadd.f32 %v5954, %v5955
        %v5957 = vmul.f32 %v5956, 0.11111111
        %v5958 = vpack.c.bf16 %v5957, %v5957
        %s5959 = smul.u32 4, 16
        %s5960 = smul.u32 %s5959, 1
        %s5961 = sshll.u32 %s5960, 4
        %5962 = dma.done %s666, %s5961
        %v5963 = vld [vmem:[#allocation6] sm:$0xf]
        %v5964 = vld [vmem:[#allocation6 + $0x4] sm:$0xf]
        %v5965 = vld [vmem:[#allocation6 + $0x8] sm:$0xf]
        %v5966 = vld [vmem:[#allocation6 + $0xc] sm:$0xf]
        %v5967 = vld [vmem:[#allocation6 + $0x10] sm:$0xf]
        %v5968 = vld [vmem:[#allocation6 + $0x14] sm:$0xf]
        %v5969 = vld [vmem:[#allocation6 + $0x18] sm:$0xf]
        %v5970 = vld [vmem:[#allocation6 + $0x1c] sm:$0xf]
        %v5971 = vld [vmem:[#allocation6 + $0x20] sm:$0xf]
        %v5972 = vld [vmem:[#allocation6 + $0x24] sm:$0xf]
        %v5973 = vld [vmem:[#allocation6 + $0x28] sm:$0xf]
        %v5974 = vld [vmem:[#allocation6 + $0x2c] sm:$0xf]
        %v5975 = vld [vmem:[#allocation6 + $0x30] sm:$0xf]
        %v5976 = vld [vmem:[#allocation6 + $0x34] sm:$0xf]
        %v5977 = vld [vmem:[#allocation6 + $0x38] sm:$0xf]
        %v5978 = vld [vmem:[#allocation6 + $0x3c] sm:$0xf]
        %v5979 = vld [vmem:[%s6] sm:$0x1]
        %v5996 = vunpack.c.l.b16 %v5963
        %v5997 = vunpack.c.l.b16 %v5964
        %v5998 = vunpack.c.l.b16 %v5965
        %v5999 = vunpack.c.l.b16 %v5966
        %v6000 = vunpack.c.l.b16 %v5967
        %v6001 = vunpack.c.l.b16 %v5968
        %v6002 = vunpack.c.l.b16 %v5969
        %v6003 = vunpack.c.l.b16 %v5970
        %v6004 = vunpack.c.l.b16 %v5971
        %v6005 = vunpack.c.l.b16 %v5972
        %v6006 = vunpack.c.l.b16 %v5973
        %v6007 = vunpack.c.l.b16 %v5974
        %v6008 = vunpack.c.l.b16 %v5975
        %v6009 = vunpack.c.l.b16 %v5976
        %v6010 = vunpack.c.l.b16 %v5977
        %v6011 = vunpack.c.l.b16 %v5978
        %v6012 = vpack.c.b16 %v5997, %v5996
        %v6013 = vpack.c.b16 %v5999, %v5998
        %v6014 = vpack.c.b16 %v6001, %v6000
        %v6015 = vpack.c.b16 %v6003, %v6002
        %v6016 = vpack.c.b16 %v6005, %v6004
        %v6017 = vpack.c.b16 %v6007, %v6006
        %v6018 = vpack.c.b16 %v6009, %v6008
        %v6019 = vpack.c.b16 %v6011, %v6010
        %6028 = vmatprep.subr.bf16.mxu0 0
        %6029 = vmatpush1.bf16.msra.mxu0 %v6019
        %6030 = vmatprep.subr.bf16.mxu0 0
        %6031 = vmatpush1.bf16.msra.mxu0 %v6018
        %6032 = vmatprep.subr.bf16.mxu0 0
        %6033 = vmatpush1.bf16.msra.mxu0 %v6017
        %6034 = vmatprep.subr.bf16.mxu0 0
        %6035 = vmatpush1.bf16.msra.mxu0 %v6016
        %6036 = vmatprep.subr.bf16.mxu0 0
        %6037 = vmatpush1.bf16.msra.mxu0 %v6015
        %6038 = vmatprep.subr.bf16.mxu0 0
        %6039 = vmatpush1.bf16.msra.mxu0 %v6014
        %6040 = vmatprep.subr.bf16.mxu0 0
        %6041 = vmatpush1.bf16.msra.mxu0 %v6013
        %6042 = vmatprep.subr.bf16.mxu0 0
        %6043 = vmatpush1.bf16.msra.mxu0 %v6012
        %6044 = vmatprep.subr.bf16.mxu0 0
        %6045 = vmatpush2.bf16.msra.mxu0 0
        %6046 = vmatprep.subr.bf16.mxu0 0
        %6047 = vmatpush2.bf16.msra.mxu0 0
        %6048 = vmatprep.subr.bf16.mxu0 0
        %6049 = vmatpush2.bf16.msra.mxu0 0
        %6050 = vmatprep.subr.bf16.mxu0 0
        %6051 = vmatpush2.bf16.msra.mxu0 0
        %6052 = vmatprep.subr.bf16.mxu0 0
        %6053 = vmatpush2.bf16.msra.mxu0 0
        %6054 = vmatprep.subr.bf16.mxu0 0
        %6055 = vmatpush2.bf16.msra.mxu0 0
        %6056 = vmatprep.subr.bf16.mxu0 0
        %6057 = vmatpush2.bf16.msra.mxu0 0
        %6058 = vmatprep.subr.bf16.mxu0 0
        %6059 = vmatpush2.bf16.msra.mxu0 0
        %6060 = vmatprep.mubr.bf16.mxu0 0
        %6061 = vmatmul.mubr.bf16.gmra.mxu0 %v5958
        %v6062 = vpop.f32.mrf.mxu0
        %v6063 = vadd.f32 %v5979, %v6062
        %v6064 = vpop.f32.mrf.mxu0
        %v6065 = vpop.f32.mrf.mxu0
        %v6066 = vpop.f32.mrf.mxu0
        %6067 = vdwg.mxu0
        %6068 = vst [vmem:[%s218] sm:$0x1] %v6063
        %s6069 = sand.u32 %s139, 1
        %s6070 = scalar_lea.sflag [#allocation9], %s6069
        %s6071 = sand.u32 %s139, 1
        %s6072 = scalar_lea.vmem [#allocation8], %s6071
        // Predicated region
        $region109: #{chopped_alexnet64bn_forward.1} parent=39 // pred_check
          %p6073 = pneg %p149
        $region110: #{chopped_alexnet64bn_forward.1} parent=39 // pred_check_branch
          %6075 = sbr.rel (%p6073) target = $region112
        $region111: #{chopped_alexnet64bn_forward.1} parent=39 // pred_region
          %s6077 = ssub.s32 16, 16
          %6078 = vsyncadd %s6070, %s6077
          %s6079 = smul.addr %s21, 16
          %s6080 = scalar_lea.hbm %s7, %s6079
          %s6082 = sshll.u32 %s6072, 4
          %s6083 = int_to_ptr.vmem [resolvable:$true] %s6082
          %6085 = dma.vmem_to_hbm [thread:$0]  %s6083, 16, %s6080, %s6070
        $region112: #{chopped_alexnet64bn_forward.1} parent=39 // pred_fallthru
          _
      $region40: #{chopped_alexnet64bn_forward.1} parent=5 // pred_fallthru
        _
      %p6086 = scmp.le.s32.totalorder 2, %s16
      // Predicated region
      $region113: #{chopped_alexnet64bn_forward.1} parent=5 // pred_check
        %p6087 = pneg %p6086
      $region114: #{chopped_alexnet64bn_forward.1} parent=5 // pred_check_branch
        %6089 = sbr.rel (%p6087) target = $region116
      $region115: #{chopped_alexnet64bn_forward.1} parent=5 // pred_region
        %s6090 = ssub.s32 %s16, 2
        // Predicated region
        $region117: #{chopped_alexnet64bn_forward.1} parent=115 // pred_check
          %p6091 = pneg %p155
        $region118: #{chopped_alexnet64bn_forward.1} parent=115 // pred_check_branch
          %6093 = sbr.rel (%p6091) target = $region120
        $region119: #{chopped_alexnet64bn_forward.1} parent=115 // pred_region
          %s6094 = sand.u32 %s140, 1
          %s6095 = scalar_lea.sflag [#allocation9], %s6094
          %s6096 = sand.u32 %s140, 1
          %s6097 = scalar_lea.vmem [#allocation8], %s6096
          %6098 = dma.done %s6095, 16
        $region120: #{chopped_alexnet64bn_forward.1} parent=115 // pred_fallthru
          _
      $region116: #{chopped_alexnet64bn_forward.1} parent=5 // pred_fallthru
        _
    $region6: #{chopped_alexnet64bn_forward.1} parent=1 // loop_footer
      %s20 = sadd.s32 1, %s16
    $region7: #{chopped_alexnet64bn_forward.1} parent=1 // loop_footer_branch
      %15 = sbr.rel target = $region3
    $region8: #{chopped_alexnet64bn_forward.1} parent=1 // loop_exit
      _
    %6099 = vsyncpa [#allocation9], 1
    %s6100 = scalar_lea.sflag [#allocation9], 1
    %6101 = vsyncpa %s6100, 1
  %6102 = vsyncmov [#allocation7]
  %s6103 = vpop.sfrf %6102
  %p6104 = scmp.eq.s32.totalorder %s6103, 0
  %p6105 = pneg %p6104
  %6107 = shalt.err (%p6105)
  %s6108 = scalar_lea.sflag [#allocation7], 1
  %6109 = vsyncmov %s6108
  %s6110 = vpop.sfrf %6109
  %p6111 = scmp.eq.s32.totalorder %s6110, 0
  %p6112 = pneg %p6111
  %6114 = shalt.err (%p6112)

</llo_original>
